<compile_context>
chip_gen: v5e
topology: v5e:2x2
jax: 0.10.0
libtpu: 0.0.40
codegen_flags: <defaults>
</compile_context>

<pallas_src>
import jax
import jax.numpy as jnp
from jax import lax
from jax.experimental import pallas as pl
from jax.experimental.pallas import tpu as pltpu

IN_FEATURES = 161 * 101 * 1           # 16261
HIDDEN = 1000
OUT_CLASSES = 6

# padded / tiled sizes (lane/sublane friendly)
K1_PAD = 16384                        # 16261 -> 16384
TK = 2048                             # reduction tile for fc1
N1_PAD = 1024                         # 1000  -> 1024
N2_PAD = 128                          # 6     -> 128
M_MIN = 8                             # batch padded up to a multiple of 8

NUM_SPLITS = 2                        # leading "parallel" axis: 2 TensorCores on v7x
K_STEPS = K1_PAD // TK                # 8
K_STEPS_PER_SPLIT = K_STEPS // NUM_SPLITS


def _round_up(x, m):
    return (x + m - 1) // m * m


# ---------------------------------------------------------------------------
# Kernel A: partial fc1 accumulation.
#   For split c (parallel across TensorCores) and K-step k:
#     partial[:, c*N1 : (c+1)*N1] += x_k @ dequant(W1_k)   (bf16 x bf16 -> f32)
#   The per-column dequant *scale* is NOT applied here; it factors out of the K sum
#   and is applied once in the finisher.
# ---------------------------------------------------------------------------
def fc1_partial_kernel(x_ref, w1q_ref, p_ref):
    k = pl.program_id(1)

    @pl.when(k == 0)
    def _():
        p_ref[...] = jnp.zeros_like(p_ref)

    w1_tile = w1q_ref[...].astype(jnp.bfloat16)   # int8 -> bf16 is exact (|q| <= 127)
    p_ref[...] += jnp.dot(
        x_ref[...], w1_tile, preferred_element_type=jnp.float32
    )


def fc1_partial(x_pad, w1q_pad):
    m = x_pad.shape[0]
    return pl.pallas_call(
        fc1_partial_kernel,
        out_shape=jax.ShapeDtypeStruct((m, NUM_SPLITS * N1_PAD), jnp.float32),
        grid_spec=pltpu.PrefetchScalarGridSpec(
            num_scalar_prefetch=0,
            grid=(NUM_SPLITS, K_STEPS_PER_SPLIT),
            in_specs=[
                # x tile (bf16)
                pl.BlockSpec((m, TK), lambda c, k: (0, c * K_STEPS_PER_SPLIT + k)),
                # W1 tile (int8) -- half the HBM bytes of the bf16 version
                pl.BlockSpec((TK, N1_PAD),
                             lambda c, k: (c * K_STEPS_PER_SPLIT + k, 0)),
            ],
            # Each split writes its own (m, N1_PAD) partial; constant across k, so the
            # block stays resident in VMEM and acts as the f32 accumulator.
            out_specs=pl.BlockSpec((m, N1_PAD), lambda c, k: (0, c)),
        ),
        compiler_params=pltpu.CompilerParams(
            dimension_semantics=("parallel", "arbitrary"),
            vmem_limit_bytes=48 << 20,   # headroom for int8 double-buffer + dequant temps
        ),
    )(x_pad, w1q_pad)


# ---------------------------------------------------------------------------
# Kernel B: tiny finisher.
#   acc    = sum over splits of partials
#   h      = sigmoid(acc * w1_scale + b1), padded hidden cols masked to 0
#   logits = h_bf16 @ W2_bf16 + b2
#   out    = log_softmax(logits[:, :6])   (padded cols masked with -1e30)
# ---------------------------------------------------------------------------
def fc2_finisher_kernel(p_ref, s_ref, b1_ref, w2_ref, b2_ref, o_ref):
    acc = p_ref[:, 0:N1_PAD]
    for c in range(1, NUM_SPLITS):                           # static, tiny
        acc = acc + p_ref[:, c * N1_PAD:(c + 1) * N1_PAD]

    h = jax.nn.sigmoid(acc * s_ref[...] + b1_ref[...])       # (m, N1_PAD) f32
    hcol = lax.broadcasted_iota(jnp.int32, h.shape, 1)
    h = jnp.where(hcol < HIDDEN, h, 0.0)                     # don't rely on W2 padding

    logits = (
        jnp.dot(h.astype(jnp.bfloat16), w2_ref[...],
                preferred_element_type=jnp.float32)
        + b2_ref[...]
    )                                                        # (m, N2_PAD) f32
    col = lax.broadcasted_iota(jnp.int32, logits.shape, 1)
    logits = jnp.where(col < OUT_CLASSES, logits, -1e30)
    mx = jnp.max(logits, axis=-1, keepdims=True)
    lse = mx + jnp.log(jnp.sum(jnp.exp(logits - mx), axis=-1, keepdims=True))
    o_ref[...] = logits - lse


def fc2_finisher(partials, w1_scale, b1, w2, b2):
    m = partials.shape[0]
    return pl.pallas_call(
        fc2_finisher_kernel,
        out_shape=jax.ShapeDtypeStruct((m, N2_PAD), jnp.float32),
        grid_spec=pltpu.PrefetchScalarGridSpec(
            num_scalar_prefetch=0,
            grid=(1,),
            in_specs=[
                pl.BlockSpec((m, NUM_SPLITS * N1_PAD), lambda i: (0, 0)),  # partials f32
                pl.BlockSpec((1, N1_PAD), lambda i: (0, 0)),               # W1 col scales
                pl.BlockSpec((1, N1_PAD), lambda i: (0, 0)),               # b1 f32
                pl.BlockSpec((N1_PAD, N2_PAD), lambda i: (0, 0)),          # W2 bf16
                pl.BlockSpec((1, N2_PAD), lambda i: (0, 0)),               # b2 f32
            ],
            out_specs=pl.BlockSpec((m, N2_PAD), lambda i: (0, 0)),
        ),
        compiler_params=pltpu.CompilerParams(
            dimension_semantics=("arbitrary",),
        ),
    )(partials, w1_scale, b1, w2, b2)


# ---------------------------------------------------------------------------
# Parameter init + quantization/padding (shapes from FcNet.__init__)
# ---------------------------------------------------------------------------
def init_params(key):
    k1, k2, k3, k4 = jax.random.split(key, 4)
    # stored transposed vs. nn.Linear: (in, out)
    w1 = jax.random.normal(k1, (IN_FEATURES, HIDDEN), jnp.float32) * 0.01
    b1 = jax.random.normal(k2, (HIDDEN,), jnp.float32) * 0.01
    w2 = jax.random.normal(k3, (HIDDEN, OUT_CLASSES), jnp.float32) * 0.05
    b2 = jax.random.normal(k4, (OUT_CLASSES,), jnp.float32) * 0.05
    return {"w1": w1, "b1": b1, "w2": w2, "b2": b2}


def quantize_w1(w1):
    """Symmetric per-output-column int8 quantization: w1 ~= q * scale."""
    absmax = jnp.max(jnp.abs(w1), axis=0)                     # (HIDDEN,)
    scale = jnp.maximum(absmax, 1e-12) / 127.0
    q = jnp.clip(jnp.round(w1 / scale), -127, 127).astype(jnp.int8)
    return q, scale


def pad_params(params):
    w1_q, w1_scale = quantize_w1(params["w1"])
    w1q_pad = (
        jnp.zeros((K1_PAD, N1_PAD), jnp.int8).at[:IN_FEATURES, :HIDDEN].set(w1_q)
    )
    scale_pad = jnp.zeros((1, N1_PAD), jnp.float32).at[0, :HIDDEN].set(w1_scale)
    b1_pad = jnp.zeros((1, N1_PAD), jnp.float32).at[0, :HIDDEN].set(params["b1"])
    w2_pad = (
        jnp.zeros((N1_PAD, N2_PAD), jnp.bfloat16)
        .at[:HIDDEN, :OUT_CLASSES]
        .set(params["w2"].astype(jnp.bfloat16))
    )
    b2_pad = jnp.zeros((1, N2_PAD), jnp.float32).at[0, :OUT_CLASSES].set(params["b2"])
    return w1q_pad, scale_pad, b1_pad, w2_pad, b2_pad


# ---------------------------------------------------------------------------
# Forward pass (== FcNet.forward)
# ---------------------------------------------------------------------------
@jax.jit
def fcnet_forward(x, w1q_pad, w1_scale_pad, b1_pad, w2_pad, b2_pad):
    # x: (B, 1, 161, 101) NCHW -> flatten exactly like torch .view(-1, 16261)
    b = x.shape[0]
    xf = x.reshape(b, IN_FEATURES)

    m_pad = _round_up(max(b, M_MIN), 8)
    # Negligible at small batch; at large batch handle the K remainder in-kernel instead
    # of materializing this padded HBM copy (see TODO at top of file).
    x_pad = (
        jnp.zeros((m_pad, K1_PAD), jnp.bfloat16)
        .at[:b, :IN_FEATURES]
        .set(xf.astype(jnp.bfloat16))
    )

    partials = fc1_partial(x_pad, w1q_pad)                    # (m_pad, 2*1024) f32
    out_pad = fc2_finisher(partials, w1_scale_pad, b1_pad, w2_pad, b2_pad)
    return out_pad[:b, :OUT_CLASSES]                          # (B, 6) log-probs


# ---------------------------------------------------------------------------
# References
# ---------------------------------------------------------------------------
def reference_forward_matched(x, params):
    """Same quantized/bf16 math as the kernels, in plain JAX (gating check)."""
    b = x.shape[0]
    xf = x.reshape(b, IN_FEATURES).astype(jnp.bfloat16).astype(jnp.float32)
    w1_q, w1_scale = quantize_w1(params["w1"])
    acc = xf @ w1_q.astype(jnp.float32)
    h = jax.nn.sigmoid(acc * w1_scale + params["b1"])
    h = h.astype(jnp.bfloat16).astype(jnp.float32)
    w2 = params["w2"].astype(jnp.bfloat16).astype(jnp.float32)
    logits = h @ w2 + params["b2"]
    return jax.nn.log_softmax(logits, axis=1)


def reference_forward_f32(x, params):
    """Full-f32 reference (loose check; int8/bf16 storage diverges slightly)."""
    b = x.shape[0]
    xf = x.reshape(b, IN_FEATURES).astype(jnp.float32)
    h = jax.nn.sigmoid(xf @ params["w1"] + params["b1"])
    logits = h @ params["w2"] + params["b2"]
    return jax.nn.log_softmax(logits, axis=1)


if __name__ == "__main__":
    key = jax.random.PRNGKey(0)
    pkey, xkey = jax.random.split(key)
    params = init_params(pkey)
    w1q_pad, w1_scale_pad, b1_pad, w2_pad, b2_pad = pad_params(params)

    # small batch; feature shape is fixed by the module's view(-1, 161*101*1)
    batch = 2
    x = jax.random.normal(xkey, (batch, 1, 161, 101), jnp.float32)

    out = fcnet_forward(x, w1q_pad, w1_scale_pad, b1_pad, w2_pad, b2_pad)
    out = jax.block_until_ready(out)
    assert out.shape == (batch, OUT_CLASSES)

    # Tight check against a reference using the same int8/bf16 rounding as the kernels.
    ref_m = reference_forward_matched(x, params)
    err_m = jnp.max(jnp.abs(out - ref_m))
    assert jnp.allclose(out, ref_m, atol=2e-3, rtol=2e-3), (
        f"matched-reference max abs err {err_m}"
    )

    # Loose check against the full-f32 reference.
    ref_f32 = reference_forward_f32(x, params)
    err_f32 = jnp.max(jnp.abs(out - ref_f32))
    assert jnp.allclose(out, ref_f32, atol=1e-1, rtol=1e-1), (
        f"f32-reference max abs err {err_f32}"
    )

    print("KERNEL_OK")
</pallas_src>

<mosaic_0001>
module attributes {stable_mosaic.version = 11 : i64} {
  func.func @fc1_partial_kernel(%arg0: i32, %arg1: i32, %arg2: memref<8x2048xbf16, #tpu.memory_space<vmem>>, %arg3: memref<2048x1024xi8, #tpu.memory_space<vmem>>, %arg4: memref<8x1024xf32, #tpu.memory_space<vmem>>) attributes {dimension_semantics = [#tpu.dimension_semantics<parallel>, #tpu.dimension_semantics<arbitrary>], iteration_bounds = array<i64: 2, 4>, scalar_prefetch = 0 : i64, scratch_operands = 0 : i64, tpu.core_type = #tpu.core_type<tc>, window_params = [{transform_indices = @transform_0, window_bounds = array<i64: 8, 2048>}, {transform_indices = @transform_1, window_bounds = array<i64: 2048, 1024>}, {transform_indices = @transform_2, window_bounds = array<i64: 8, 1024>}]} {
    %c0_i32 = arith.constant 0 : i32
    %0 = arith.cmpi eq, %arg1, %c0_i32 : i32
    %1 = arith.extui %0 : i1 to i32
    %c0_i32_0 = arith.constant 0 : i32
    %2 = arith.cmpi ne, %1, %c0_i32_0 : i32
    scf.if %2 {
      %cst_8 = arith.constant 0.000000e+00 : f32
      %10 = vector.broadcast %cst_8 : f32 to vector<8x1024xf32>
      %c0_9 = arith.constant 0 : index
      %c0_10 = arith.constant 0 : index
      %11 = vector.load %arg4[%c0_9, %c0_10] : memref<8x1024xf32, #tpu.memory_space<vmem>>, vector<8x1024xf32>
      tpu.vector_store %arg4[%c0_9, %c0_10], %10 {strides = array<i32>} : memref<8x1024xf32, #tpu.memory_space<vmem>>, vector<8x1024xf32>,
    } else {
    }
    %c0 = arith.constant 0 : index
    %c0_1 = arith.constant 0 : index
    %3 = vector.load %arg3[%c0, %c0_1] : memref<2048x1024xi8, #tpu.memory_space<vmem>>, vector<2048x1024xi8>
    %4 = arith.sitofp %3 : vector<2048x1024xi8> to vector<2048x1024xbf16>
    %c0_2 = arith.constant 0 : index
    %c0_3 = arith.constant 0 : index
    %5 = vector.load %arg4[%c0_2, %c0_3] : memref<8x1024xf32, #tpu.memory_space<vmem>>, vector<8x1024xf32>
    %c0_4 = arith.constant 0 : index
    %c0_5 = arith.constant 0 : index
    %6 = vector.load %arg2[%c0_4, %c0_5] : memref<8x2048xbf16, #tpu.memory_space<vmem>>, vector<8x2048xbf16>
    %cst = arith.constant dense<0.000000e+00> : vector<8x1024xf32>
    %7 = tpu.matmul %6, %4, %cst {dimension_numbers = #tpu.dot_dimension_numbers<[1], [0], [0], [1], [0, 0, 1, 1], [], []>} : vector<8x2048xbf16>, vector<2048x1024xbf16>, vector<8x1024xf32> -> vector<8x1024xf32>
    %8 = arith.addf %5, %7 : vector<8x1024xf32>
    %c0_6 = arith.constant 0 : index
    %c0_7 = arith.constant 0 : index
    %9 = vector.load %arg4[%c0_6, %c0_7] : memref<8x1024xf32, #tpu.memory_space<vmem>>, vector<8x1024xf32>
    tpu.vector_store %arg4[%c0_6, %c0_7], %8 {strides = array<i32>} : memref<8x1024xf32, #tpu.memory_space<vmem>>, vector<8x1024xf32>,
    return
  }
  func.func @transform_0(%arg0: i32, %arg1: i32) -> (i32, i32) {
    %c4_i32 = arith.constant 4 : i32
    %0 = arith.muli %arg0, %c4_i32 : i32
    %1 = arith.addi %0, %arg1 : i32
    %c0_i32 = arith.constant 0 : i32
    %c0_i32_0 = arith.constant 0 : i32
    return %c0_i32, %1 : i32, i32
  }
  func.func @transform_1(%arg0: i32, %arg1: i32) -> (i32, i32) {
    %c4_i32 = arith.constant 4 : i32
    %0 = arith.muli %arg0, %c4_i32 : i32
    %1 = arith.addi %0, %arg1 : i32
    %c0_i32 = arith.constant 0 : i32
    %c0_i32_0 = arith.constant 0 : i32
    return %1, %c0_i32 : i32, i32
  }
  func.func @transform_2(%arg0: i32, %arg1: i32) -> (i32, i32) {
    %c0_i32 = arith.constant 0 : i32
    %c0_i32_0 = arith.constant 0 : i32
    return %c0_i32, %arg0 : i32, i32
  }
}

module attributes {stable_mosaic.version = 11 : i64} {
  func.func @fc2_finisher_kernel(%arg0: i32, %arg1: memref<8x2048xf32, #tpu.memory_space<vmem>>, %arg2: memref<1x1024xf32, #tpu.memory_space<vmem>>, %arg3: memref<1x1024xf32, #tpu.memory_space<vmem>>, %arg4: memref<1024x128xbf16, #tpu.memory_space<vmem>>, %arg5: memref<1x128xf32, #tpu.memory_space<vmem>>, %arg6: memref<8x128xf32, #tpu.memory_space<vmem>>) attributes {dimension_semantics = [#tpu.dimension_semantics<arbitrary>], iteration_bounds = array<i64: 1>, scalar_prefetch = 0 : i64, scratch_operands = 0 : i64, tpu.core_type = #tpu.core_type<tc>, window_params = [{pipeline_mode = #tpu.pipeline_mode<synchronous>, transform_indices = @transform_0, window_bounds = array<i64: 8, 2048>}, {pipeline_mode = #tpu.pipeline_mode<synchronous>, transform_indices = @transform_1, window_bounds = array<i64: 1, 1024>}, {pipeline_mode = #tpu.pipeline_mode<synchronous>, transform_indices = @transform_2, window_bounds = array<i64: 1, 1024>}, {pipeline_mode = #tpu.pipeline_mode<synchronous>, transform_indices = @transform_3, window_bounds = array<i64: 1024, 128>}, {pipeline_mode = #tpu.pipeline_mode<synchronous>, transform_indices = @transform_4, window_bounds = array<i64: 1, 128>}, {pipeline_mode = #tpu.pipeline_mode<synchronous>, transform_indices = @transform_5, window_bounds = array<i64: 8, 128>}]} {
    %c0 = arith.constant 0 : index
    %c0_0 = arith.constant 0 : index
    %0 = vector.load %arg1[%c0, %c0_0] : memref<8x2048xf32, #tpu.memory_space<vmem>>, vector<8x1024xf32>
    %c0_1 = arith.constant 0 : index
    %c1024 = arith.constant 1024 : index
    %1 = vector.load %arg1[%c0_1, %c1024] : memref<8x2048xf32, #tpu.memory_space<vmem>>, vector<8x1024xf32>
    %2 = arith.addf %0, %1 : vector<8x1024xf32>
    %c0_2 = arith.constant 0 : index
    %c0_3 = arith.constant 0 : index
    %3 = vector.load %arg2[%c0_2, %c0_3] : memref<1x1024xf32, #tpu.memory_space<vmem>>, vector<1x1024xf32>
    %4 = vector.broadcast %3 : vector<1x1024xf32> to vector<8x1024xf32>
    %5 = arith.mulf %2, %4 : vector<8x1024xf32>
    %c0_4 = arith.constant 0 : index
    %c0_5 = arith.constant 0 : index
    %6 = vector.load %arg3[%c0_4, %c0_5] : memref<1x1024xf32, #tpu.memory_space<vmem>>, vector<1x1024xf32>
    %7 = vector.broadcast %6 : vector<1x1024xf32> to vector<8x1024xf32>
    %8 = arith.addf %5, %7 : vector<8x1024xf32>
    %9 = arith.negf %8 : vector<8x1024xf32>
    %10 = math.exp %9 : vector<8x1024xf32>
    %cst = arith.constant 1.000000e+00 : f32
    %11 = vector.broadcast %cst : f32 to vector<8x1024xf32>
    %12 = arith.addf %11, %10 : vector<8x1024xf32>
    %13 = arith.divf %11, %12 : vector<8x1024xf32>
    %14 = tpu.iota {dimensions = array<i32: 1>} : vector<8x1024xi32>
    %c1000_i32 = arith.constant 1000 : i32
    %15 = vector.broadcast %c1000_i32 : i32 to vector<8x1024xi32>
    %16 = arith.cmpi slt, %14, %15 : vector<8x1024xi32>
    %cst_6 = arith.constant 0.000000e+00 : f32
    %17 = vector.broadcast %cst_6 : f32 to vector<8x1024xf32>
    %18 = arith.select %16, %13, %17 : vector<8x1024xi1>, vector<8x1024xf32>
    %19 = arith.truncf %18 : vector<8x1024xf32> to vector<8x1024xbf16>
    %c0_7 = arith.constant 0 : index
    %c0_8 = arith.constant 0 : index
    %20 = vector.load %arg4[%c0_7, %c0_8] : memref<1024x128xbf16, #tpu.memory_space<vmem>>, vector<1024x128xbf16>
    %cst_9 = arith.constant dense<0.000000e+00> : vector<8x128xf32>
    %21 = tpu.matmul %19, %20, %cst_9 {dimension_numbers = #tpu.dot_dimension_numbers<[1], [0], [0], [1], [0, 0, 1, 1], [], []>} : vector<8x1024xbf16>, vector<1024x128xbf16>, vector<8x128xf32> -> vector<8x128xf32>
    %c0_10 = arith.constant 0 : index
    %c0_11 = arith.constant 0 : index
    %22 = vector.load %arg5[%c0_10, %c0_11] : memref<1x128xf32, #tpu.memory_space<vmem>>, vector<1x128xf32>
    %23 = vector.broadcast %22 : vector<1x128xf32> to vector<8x128xf32>
    %24 = arith.addf %21, %23 : vector<8x128xf32>
    %25 = tpu.iota {dimensions = array<i32: 1>} : vector<8x128xi32>
    %c6_i32 = arith.constant 6 : i32
    %26 = vector.broadcast %c6_i32 : i32 to vector<8x128xi32>
    %27 = arith.cmpi slt, %25, %26 : vector<8x128xi32>
    %cst_12 = arith.constant -1.000000e+30 : f32
    %28 = vector.broadcast %cst_12 : f32 to vector<8x128xf32>
    %29 = arith.select %27, %24, %28 : vector<8x128xi1>, vector<8x128xf32>
    %cst_13 = arith.constant dense<0xFF800000> : vector<8xf32>
    %30 = vector.multi_reduction <maximumf>, %29, %cst_13 [1] : vector<8x128xf32> to vector<8xf32>
    %31 = vector.shape_cast %30 : vector<8xf32> to vector<8x1xf32>
    %32 = vector.broadcast %31 : vector<8x1xf32> to vector<8x128xf32>
    %33 = arith.subf %29, %32 : vector<8x128xf32>
    %34 = math.exp %33 : vector<8x128xf32>
    %cst_14 = arith.constant dense<0.000000e+00> : vector<8xf32>
    %35 = vector.multi_reduction <add>, %34, %cst_14 [1] : vector<8x128xf32> to vector<8xf32>
    %36 = vector.shape_cast %35 : vector<8xf32> to vector<8x1xf32>
    %37 = math.log %36 : vector<8x1xf32>
    %38 = arith.addf %31, %37 : vector<8x1xf32>
    %39 = vector.broadcast %38 : vector<8x1xf32> to vector<8x128xf32>
    %40 = arith.subf %29, %39 : vector<8x128xf32>
    %c0_15 = arith.constant 0 : index
    %c0_16 = arith.constant 0 : index
    %41 = vector.load %arg6[%c0_15, %c0_16] : memref<8x128xf32, #tpu.memory_space<vmem>>, vector<8x128xf32>
    tpu.vector_store %arg6[%c0_15, %c0_16], %40 {strides = array<i32>} : memref<8x128xf32, #tpu.memory_space<vmem>>, vector<8x128xf32>,
    return
  }
  func.func @transform_0(%arg0: i32) -> (i32, i32) {
    %c0_i32 = arith.constant 0 : i32
    %c0_i32_0 = arith.constant 0 : i32
    %c0_i32_1 = arith.constant 0 : i32
    return %c0_i32, %c0_i32_0 : i32, i32
  }
  func.func @transform_1(%arg0: i32) -> (i32, i32) {
    %c0_i32 = arith.constant 0 : i32
    %c0_i32_0 = arith.constant 0 : i32
    %c0_i32_1 = arith.constant 0 : i32
    return %c0_i32, %c0_i32_0 : i32, i32
  }
  func.func @transform_2(%arg0: i32) -> (i32, i32) {
    %c0_i32 = arith.constant 0 : i32
    %c0_i32_0 = arith.constant 0 : i32
    %c0_i32_1 = arith.constant 0 : i32
    return %c0_i32, %c0_i32_0 : i32, i32
  }
  func.func @transform_3(%arg0: i32) -> (i32, i32) {
    %c0_i32 = arith.constant 0 : i32
    %c0_i32_0 = arith.constant 0 : i32
    %c0_i32_1 = arith.constant 0 : i32
    return %c0_i32, %c0_i32_0 : i32, i32
  }
  func.func @transform_4(%arg0: i32) -> (i32, i32) {
    %c0_i32 = arith.constant 0 : i32
    %c0_i32_0 = arith.constant 0 : i32
    %c0_i32_1 = arith.constant 0 : i32
    return %c0_i32, %c0_i32_0 : i32, i32
  }
  func.func @transform_5(%arg0: i32) -> (i32, i32) {
    %c0_i32 = arith.constant 0 : i32
    %c0_i32_0 = arith.constant 0 : i32
    %c0_i32_1 = arith.constant 0 : i32
    return %c0_i32, %c0_i32_0 : i32, i32
  }
}

</mosaic_0001>

<llo_original>
// kernel: fcnet_forward.3
$region0: #{fcnet_forward.3}
  #allocation0 [shape = 'u32[]', space=smem, size = 0x4, offset = 0x4, fixed_abs, tag = 'smem constant byte address 0x4 - core index']
  #allocation1 [shape = 'u32[72,128]{1,0:T(1,128)}', space=vmem, size = 0x9000, scoped, tag = 'internal scratch']
  %s0 = inlined_call_operand.vmem [shape: f32[8,2048], index: 0, kind: input, shape index: {}]
  %s1 = inlined_call_operand.hbm [shape: f32[1,1024], index: 1, kind: input, shape index: {}]
  %s2 = inlined_call_operand.hbm [shape: f32[1,1024], index: 2, kind: input, shape index: {}]
  %s3 = inlined_call_operand.hbm [shape: bf16[1024,128], index: 3, kind: input, shape index: {}]
  %s4 = inlined_call_operand.hbm [shape: f32[1,128], index: 4, kind: input, shape index: {}]
  %s5 = inlined_call_operand.vmem [shape: f32[8,128], index: 5, kind: output, shape index: {}]
  %s6 = sld [smem:[#allocation0]]
  $region46: #{fcnet_forward.3} parent=0
    _
  %s8 = ssub.s32 1, %s6
  %s9 = scalar_select 0, %s8, %s6
  $region1: #{fcnet_forward.3} parent=0
    #allocation2 [shape = 'u8[4096]{0}', space=vmem, size = 0x1000, scoped, tag = 'input window, operand 1, single buffered']
    #allocation3 [shape = 's32[1]{0}', space=sflag, size = 0x4, scoped, tag = 'scoped memory for fcnet_forward.3']
    #allocation4 [shape = 'u8[4096]{0}', space=vmem, size = 0x1000, scoped, tag = 'input window, operand 2, single buffered']
    #allocation5 [shape = 's32[1]{0}', space=sflag, size = 0x4, scoped, tag = 'scoped memory for fcnet_forward.3']
    #allocation6 [shape = 'u8[262144]{0}', space=vmem, size = 0x40000, scoped, tag = 'input window, operand 3, single buffered']
    #allocation7 [shape = 'u8[512]{0}', space=vmem, size = 0x400, scoped, tag = 'input window, operand 4, single buffered']
    #allocation8 [shape = 's32[1]{0}', space=sflag, size = 0x4, scoped, tag = 'scoped memory for fcnet_forward.3']
    %10 = vsyncpa [#allocation3], 0
    %11 = vsyncpa [#allocation5], 0
    %12 = vsyncpa [#allocation8], 0
    // Predicated region
    $region2: #{fcnet_forward.3} parent=1 // pred_check
      _
    $region3: #{fcnet_forward.3} parent=1 // pred_check_branch
      %14 = sbr.rel (0) target = $region5
    $region4: #{fcnet_forward.3} parent=1 // pred_region
      _
    $region5: #{fcnet_forward.3} parent=1 // pred_fallthru
      _
    // Predicated region
    $region6: #{fcnet_forward.3} parent=1 // pred_check
      _
    $region7: #{fcnet_forward.3} parent=1 // pred_check_branch
      %16 = sbr.rel (0) target = $region9
    $region8: #{fcnet_forward.3} parent=1 // pred_region
      %18 = vsyncadd [#allocation3], 0
      %s20 = sshll.u32 %s1, 4
      %s21 = int_to_ptr.hbm [resolvable:$true] %s20
      %s22 = sshll.u32 [#allocation2], 4
      %s23 = int_to_ptr.vmem [resolvable:$true] %s22
      %25 = dma.hbm_to_vmem [thread:$0]  %s21, 128, %s23, [#allocation3]
    $region9: #{fcnet_forward.3} parent=1 // pred_fallthru
      _
    // Predicated region
    $region10: #{fcnet_forward.3} parent=1 // pred_check
      _
    $region11: #{fcnet_forward.3} parent=1 // pred_check_branch
      %27 = sbr.rel (0) target = $region13
    $region12: #{fcnet_forward.3} parent=1 // pred_region
      %29 = vsyncadd [#allocation5], 0
      %s31 = sshll.u32 %s2, 4
      %s32 = int_to_ptr.hbm [resolvable:$true] %s31
      %s33 = sshll.u32 [#allocation4], 4
      %s34 = int_to_ptr.vmem [resolvable:$true] %s33
      %36 = dma.hbm_to_vmem [thread:$0]  %s32, 128, %s34, [#allocation5]
    $region13: #{fcnet_forward.3} parent=1 // pred_fallthru
      _
    // Predicated region
    $region14: #{fcnet_forward.3} parent=1 // pred_check
      _
    $region15: #{fcnet_forward.3} parent=1 // pred_check_branch
      %38 = sbr.rel (0) target = $region17
    $region16: #{fcnet_forward.3} parent=1 // pred_region
      %40 = vsyncadd [#allocation5], 0
      %s41 = sshll.u32 %s3, 4
      %s42 = int_to_ptr.hbm [resolvable:$true] %s41
      %s43 = sshll.u32 [#allocation6], 4
      %s44 = int_to_ptr.vmem [resolvable:$true] %s43
      %49 = dma.hbm_to_vmem [thread:$0]  %s42, 8192, %s44, [#allocation5], 64, 64, 4
    $region17: #{fcnet_forward.3} parent=1 // pred_fallthru
      _
    // Predicated region
    $region18: #{fcnet_forward.3} parent=1 // pred_check
      _
    $region19: #{fcnet_forward.3} parent=1 // pred_check_branch
      %51 = sbr.rel (0) target = $region21
    $region20: #{fcnet_forward.3} parent=1 // pred_region
      %53 = vsyncadd [#allocation8], 0
      %s55 = sshll.u32 %s4, 4
      %s56 = int_to_ptr.hbm [resolvable:$true] %s55
      %s57 = sshll.u32 [#allocation7], 4
      %s58 = int_to_ptr.vmem [resolvable:$true] %s57
      %60 = dma.hbm_to_vmem [thread:$0]  %s56, 16, %s58, [#allocation8]
    $region21: #{fcnet_forward.3} parent=1 // pred_fallthru
      _
    // Predicated region
    $region22: #{fcnet_forward.3} parent=1 // pred_check
      _
    $region23: #{fcnet_forward.3} parent=1 // pred_check_branch
      %62 = sbr.rel (0) target = $region25
    $region24: #{fcnet_forward.3} parent=1 // pred_region
      %64 = dma.done [#allocation3], 128
    $region25: #{fcnet_forward.3} parent=1 // pred_fallthru
      _
    // Predicated region
    $region26: #{fcnet_forward.3} parent=1 // pred_check
      _
    $region27: #{fcnet_forward.3} parent=1 // pred_check_branch
      %66 = sbr.rel (0) target = $region29
    $region28: #{fcnet_forward.3} parent=1 // pred_region
      %68 = dma.done [#allocation5], 128
    $region29: #{fcnet_forward.3} parent=1 // pred_fallthru
      _
    // Predicated region
    $region30: #{fcnet_forward.3} parent=1 // pred_check
      _
    $region31: #{fcnet_forward.3} parent=1 // pred_check_branch
      %70 = sbr.rel (0) target = $region33
    $region32: #{fcnet_forward.3} parent=1 // pred_region
      %72 = dma.done [#allocation5], 8192
    $region33: #{fcnet_forward.3} parent=1 // pred_fallthru
      _
    // Predicated region
    $region34: #{fcnet_forward.3} parent=1 // pred_check
      _
    $region35: #{fcnet_forward.3} parent=1 // pred_check_branch
      %74 = sbr.rel (0) target = $region37
    $region36: #{fcnet_forward.3} parent=1 // pred_region
      %76 = dma.done [#allocation8], 16
    $region37: #{fcnet_forward.3} parent=1 // pred_fallthru
      _
    %v77 = vld [vmem:[%s0] sm:$0xff]
    %v78 = vld [vmem:[%s0 + $0x8] sm:$0xff]
    %v79 = vld [vmem:[%s0 + $0x10] sm:$0xff]
    %v80 = vld [vmem:[%s0 + $0x18] sm:$0xff]
    %v81 = vld [vmem:[%s0 + $0x20] sm:$0xff]
    %v82 = vld [vmem:[%s0 + $0x28] sm:$0xff]
    %v83 = vld [vmem:[%s0 + $0x30] sm:$0xff]
    %v84 = vld [vmem:[%s0 + $0x38] sm:$0xff]
    %v85 = vld [vmem:[%s0 + $0x40] sm:$0xff]
    %v86 = vld [vmem:[%s0 + $0x48] sm:$0xff]
    %v87 = vld [vmem:[%s0 + $0x50] sm:$0xff]
    %v88 = vld [vmem:[%s0 + $0x58] sm:$0xff]
    %v89 = vld [vmem:[%s0 + $0x60] sm:$0xff]
    %v90 = vld [vmem:[%s0 + $0x68] sm:$0xff]
    %v91 = vld [vmem:[%s0 + $0x70] sm:$0xff]
    %v92 = vld [vmem:[%s0 + $0x78] sm:$0xff]
    %v93 = vadd.f32 %v77, %v85
    %v94 = vadd.f32 %v78, %v86
    %v95 = vadd.f32 %v79, %v87
    %v96 = vadd.f32 %v80, %v88
    %v97 = vadd.f32 %v81, %v89
    %v98 = vadd.f32 %v82, %v90
    %v99 = vadd.f32 %v83, %v91
    %v100 = vadd.f32 %v84, %v92
    %v101 = vld [vmem:[#allocation2] sm:$0xff]
    %v103 = vperm.slane %v101, 0
    %v104 = vperm.slane %v101, 1
    %v105 = vperm.slane %v101, 2
    %v106 = vperm.slane %v101, 3
    %v107 = vperm.slane %v101, 4
    %v108 = vperm.slane %v101, 5
    %v109 = vperm.slane %v101, 6
    %v110 = vperm.slane %v101, 7
    %v119 = vmul.f32 %v93, %v103
    %v120 = vmul.f32 %v94, %v104
    %v121 = vmul.f32 %v95, %v105
    %v122 = vmul.f32 %v96, %v106
    %v123 = vmul.f32 %v97, %v107
    %v124 = vmul.f32 %v98, %v108
    %v125 = vmul.f32 %v99, %v109
    %v126 = vmul.f32 %v100, %v110
    %v127 = vld [vmem:[#allocation4] sm:$0xff]
    %v129 = vperm.slane %v127, 0
    %v130 = vperm.slane %v127, 1
    %v131 = vperm.slane %v127, 2
    %v132 = vperm.slane %v127, 3
    %v133 = vperm.slane %v127, 4
    %v134 = vperm.slane %v127, 5
    %v135 = vperm.slane %v127, 6
    %v136 = vperm.slane %v127, 7
    %v145 = vadd.f32 %v119, %v129
    %v146 = vadd.f32 %v120, %v130
    %v147 = vadd.f32 %v121, %v131
    %v148 = vadd.f32 %v122, %v132
    %v149 = vadd.f32 %v123, %v133
    %v150 = vadd.f32 %v124, %v134
    %v151 = vadd.f32 %v125, %v135
    %v152 = vadd.f32 %v126, %v136
    %v153 = vxor.u32 %v145, 2147483648
    %v154 = vxor.u32 %v146, 2147483648
    %v155 = vxor.u32 %v147, 2147483648
    %v156 = vxor.u32 %v148, 2147483648
    %v157 = vxor.u32 %v149, 2147483648
    %v158 = vxor.u32 %v150, 2147483648
    %v159 = vxor.u32 %v151, 2147483648
    %v160 = vxor.u32 %v152, 2147483648
    %v161 = vmul.f32 %v153, 1.442695
    %v162 = vpow.pop %v161
    %v163 = vmul.f32 %v154, 1.442695
    %v164 = vpow.pop %v163
    %v165 = vmul.f32 %v155, 1.442695
    %v166 = vpow.pop %v165
    %v167 = vmul.f32 %v156, 1.442695
    %v168 = vpow.pop %v167
    %v169 = vmul.f32 %v157, 1.442695
    %v170 = vpow.pop %v169
    %v171 = vmul.f32 %v158, 1.442695
    %v172 = vpow.pop %v171
    %v173 = vmul.f32 %v159, 1.442695
    %v174 = vpow.pop %v173
    %v175 = vmul.f32 %v160, 1.442695
    %v176 = vpow.pop %v175
    %v177 = vadd.f32 %v162, 1.0
    %v178 = vadd.f32 %v164, 1.0
    %v179 = vadd.f32 %v166, 1.0
    %v180 = vadd.f32 %v168, 1.0
    %v181 = vadd.f32 %v170, 1.0
    %v182 = vadd.f32 %v172, 1.0
    %v183 = vadd.f32 %v174, 1.0
    %v184 = vadd.f32 %v176, 1.0
    %v185 = vrcp.pop %v177
    %v186 = vmul.f32 %v177, %v185
    %v187 = vsub.f32 1.0, %v186
    %v188 = vmul.f32 %v185, %v187
    %v189 = vadd.f32 %v185, %v188
    %vm190 = vweird.f32 %v177
    %vm191 = vweird.f32 %v185
    %vm192 = vmor %vm190, %vm191
    %v193 = vsel %vm192, %v185, %v189
    %v194 = vand.u32 2147483647, %v177
    %vm195 = vcmp.eq.f32.partialorder %v194, 8.507059e+37
    %v196 = vand.u32 %v177, 2147483648
    %v197 = vor.u32 1.1754944e-38, %v196
    %v198 = vsel %vm195, %v197, %v193
    %v199 = vmul.f32 1.0, %v198
    %v200 = vrcp.pop %v178
    %v201 = vmul.f32 %v178, %v200
    %v202 = vsub.f32 1.0, %v201
    %v203 = vmul.f32 %v200, %v202
    %v204 = vadd.f32 %v200, %v203
    %vm205 = vweird.f32 %v178
    %vm206 = vweird.f32 %v200
    %vm207 = vmor %vm205, %vm206
    %v208 = vsel %vm207, %v200, %v204
    %v209 = vand.u32 2147483647, %v178
    %vm210 = vcmp.eq.f32.partialorder %v209, 8.507059e+37
    %v211 = vand.u32 %v178, 2147483648
    %v212 = vor.u32 1.1754944e-38, %v211
    %v213 = vsel %vm210, %v212, %v208
    %v214 = vmul.f32 1.0, %v213
    %v215 = vrcp.pop %v179
    %v216 = vmul.f32 %v179, %v215
    %v217 = vsub.f32 1.0, %v216
    %v218 = vmul.f32 %v215, %v217
    %v219 = vadd.f32 %v215, %v218
    %vm220 = vweird.f32 %v179
    %vm221 = vweird.f32 %v215
    %vm222 = vmor %vm220, %vm221
    %v223 = vsel %vm222, %v215, %v219
    %v224 = vand.u32 2147483647, %v179
    %vm225 = vcmp.eq.f32.partialorder %v224, 8.507059e+37
    %v226 = vand.u32 %v179, 2147483648
    %v227 = vor.u32 1.1754944e-38, %v226
    %v228 = vsel %vm225, %v227, %v223
    %v229 = vmul.f32 1.0, %v228
    %v230 = vrcp.pop %v180
    %v231 = vmul.f32 %v180, %v230
    %v232 = vsub.f32 1.0, %v231
    %v233 = vmul.f32 %v230, %v232
    %v234 = vadd.f32 %v230, %v233
    %vm235 = vweird.f32 %v180
    %vm236 = vweird.f32 %v230
    %vm237 = vmor %vm235, %vm236
    %v238 = vsel %vm237, %v230, %v234
    %v239 = vand.u32 2147483647, %v180
    %vm240 = vcmp.eq.f32.partialorder %v239, 8.507059e+37
    %v241 = vand.u32 %v180, 2147483648
    %v242 = vor.u32 1.1754944e-38, %v241
    %v243 = vsel %vm240, %v242, %v238
    %v244 = vmul.f32 1.0, %v243
    %v245 = vrcp.pop %v181
    %v246 = vmul.f32 %v181, %v245
    %v247 = vsub.f32 1.0, %v246
    %v248 = vmul.f32 %v245, %v247
    %v249 = vadd.f32 %v245, %v248
    %vm250 = vweird.f32 %v181
    %vm251 = vweird.f32 %v245
    %vm252 = vmor %vm250, %vm251
    %v253 = vsel %vm252, %v245, %v249
    %v254 = vand.u32 2147483647, %v181
    %vm255 = vcmp.eq.f32.partialorder %v254, 8.507059e+37
    %v256 = vand.u32 %v181, 2147483648
    %v257 = vor.u32 1.1754944e-38, %v256
    %v258 = vsel %vm255, %v257, %v253
    %v259 = vmul.f32 1.0, %v258
    %v260 = vrcp.pop %v182
    %v261 = vmul.f32 %v182, %v260
    %v262 = vsub.f32 1.0, %v261
    %v263 = vmul.f32 %v260, %v262
    %v264 = vadd.f32 %v260, %v263
    %vm265 = vweird.f32 %v182
    %vm266 = vweird.f32 %v260
    %vm267 = vmor %vm265, %vm266
    %v268 = vsel %vm267, %v260, %v264
    %v269 = vand.u32 2147483647, %v182
    %vm270 = vcmp.eq.f32.partialorder %v269, 8.507059e+37
    %v271 = vand.u32 %v182, 2147483648
    %v272 = vor.u32 1.1754944e-38, %v271
    %v273 = vsel %vm270, %v272, %v268
    %v274 = vmul.f32 1.0, %v273
    %v275 = vrcp.pop %v183
    %v276 = vmul.f32 %v183, %v275
    %v277 = vsub.f32 1.0, %v276
    %v278 = vmul.f32 %v275, %v277
    %v279 = vadd.f32 %v275, %v278
    %vm280 = vweird.f32 %v183
    %vm281 = vweird.f32 %v275
    %vm282 = vmor %vm280, %vm281
    %v283 = vsel %vm282, %v275, %v279
    %v284 = vand.u32 2147483647, %v183
    %vm285 = vcmp.eq.f32.partialorder %v284, 8.507059e+37
    %v286 = vand.u32 %v183, 2147483648
    %v287 = vor.u32 1.1754944e-38, %v286
    %v288 = vsel %vm285, %v287, %v283
    %v289 = vmul.f32 1.0, %v288
    %v290 = vrcp.pop %v184
    %v291 = vmul.f32 %v184, %v290
    %v292 = vsub.f32 1.0, %v291
    %v293 = vmul.f32 %v290, %v292
    %v294 = vadd.f32 %v290, %v293
    %vm295 = vweird.f32 %v184
    %vm296 = vweird.f32 %v290
    %vm297 = vmor %vm295, %vm296
    %v298 = vsel %vm297, %v290, %v294
    %v299 = vand.u32 2147483647, %v184
    %vm300 = vcmp.eq.f32.partialorder %v299, 8.507059e+37
    %v301 = vand.u32 %v184, 2147483648
    %v302 = vor.u32 1.1754944e-38, %v301
    %v303 = vsel %vm300, %v302, %v298
    %v304 = vmul.f32 1.0, %v303
    %v305 = vlaneseq
    %v306 = vand.u32 %v305, 127
    %v307 = vadd.s32 %v306, 128
    %v308 = vadd.s32 %v306, 256
    %v309 = vadd.s32 %v306, 384
    %v310 = vadd.s32 %v306, 512
    %v311 = vadd.s32 %v306, 640
    %v312 = vadd.s32 %v306, 768
    %v313 = vadd.s32 %v306, 896
    %vm314 = vcmp.lt.s32.totalorder %v306, 1000
    %vm315 = vcmp.lt.s32.totalorder %v307, 1000
    %vm316 = vcmp.lt.s32.totalorder %v308, 1000
    %vm317 = vcmp.lt.s32.totalorder %v309, 1000
    %vm318 = vcmp.lt.s32.totalorder %v310, 1000
    %vm319 = vcmp.lt.s32.totalorder %v311, 1000
    %vm320 = vcmp.lt.s32.totalorder %v312, 1000
    %vm321 = vcmp.lt.s32.totalorder %v313, 1000
    %v322 = vsel %vm314, %v199, 0.0
    %v323 = vsel %vm315, %v214, 0.0
    %v324 = vsel %vm316, %v229, 0.0
    %v325 = vsel %vm317, %v244, 0.0
    %v326 = vsel %vm318, %v259, 0.0
    %v327 = vsel %vm319, %v274, 0.0
    %v328 = vsel %vm320, %v289, 0.0
    %v329 = vsel %vm321, %v304, 0.0
    %v330 = vpack.c.bf16 %v322, %v322
    %v331 = vpack.c.bf16 %v323, %v323
    %v332 = vpack.c.bf16 %v324, %v324
    %v333 = vpack.c.bf16 %v325, %v325
    %v334 = vpack.c.bf16 %v326, %v326
    %v335 = vpack.c.bf16 %v327, %v327
    %v336 = vpack.c.bf16 %v328, %v328
    %v337 = vpack.c.bf16 %v329, %v329
    %v338 = vld [vmem:[#allocation6] sm:$0xf]
    %v339 = vld [vmem:[#allocation6 + $0x4] sm:$0xf]
    %v340 = vld [vmem:[#allocation6 + $0x8] sm:$0xf]
    %v341 = vld [vmem:[#allocation6 + $0xc] sm:$0xf]
    %v342 = vld [vmem:[#allocation6 + $0x10] sm:$0xf]
    %v343 = vld [vmem:[#allocation6 + $0x14] sm:$0xf]
    %v344 = vld [vmem:[#allocation6 + $0x18] sm:$0xf]
    %v345 = vld [vmem:[#allocation6 + $0x1c] sm:$0xf]
    %v346 = vld [vmem:[#allocation6 + $0x20] sm:$0xf]
    %v347 = vld [vmem:[#allocation6 + $0x24] sm:$0xf]
    %v348 = vld [vmem:[#allocation6 + $0x28] sm:$0xf]
    %v349 = vld [vmem:[#allocation6 + $0x2c] sm:$0xf]
    %v350 = vld [vmem:[#allocation6 + $0x30] sm:$0xf]
    %v351 = vld [vmem:[#allocation6 + $0x34] sm:$0xf]
    %v352 = vld [vmem:[#allocation6 + $0x38] sm:$0xf]
    %v353 = vld [vmem:[#allocation6 + $0x3c] sm:$0xf]
    %v354 = vld [vmem:[#allocation6 + $0x40] sm:$0xf]
    %v355 = vld [vmem:[#allocation6 + $0x44] sm:$0xf]
    %v356 = vld [vmem:[#allocation6 + $0x48] sm:$0xf]
    %v357 = vld [vmem:[#allocation6 + $0x4c] sm:$0xf]
    %v358 = vld [vmem:[#allocation6 + $0x50] sm:$0xf]
    %v359 = vld [vmem:[#allocation6 + $0x54] sm:$0xf]
    %v360 = vld [vmem:[#allocation6 + $0x58] sm:$0xf]
    %v361 = vld [vmem:[#allocation6 + $0x5c] sm:$0xf]
    %v362 = vld [vmem:[#allocation6 + $0x60] sm:$0xf]
    %v363 = vld [vmem:[#allocation6 + $0x64] sm:$0xf]
    %v364 = vld [vmem:[#allocation6 + $0x68] sm:$0xf]
    %v365 = vld [vmem:[#allocation6 + $0x6c] sm:$0xf]
    %v366 = vld [vmem:[#allocation6 + $0x70] sm:$0xf]
    %v367 = vld [vmem:[#allocation6 + $0x74] sm:$0xf]
    %v368 = vld [vmem:[#allocation6 + $0x78] sm:$0xf]
    %v369 = vld [vmem:[#allocation6 + $0x7c] sm:$0xf]
    %v370 = vld [vmem:[#allocation6 + $0x80] sm:$0xf]
    %v371 = vld [vmem:[#allocation6 + $0x84] sm:$0xf]
    %v372 = vld [vmem:[#allocation6 + $0x88] sm:$0xf]
    %v373 = vld [vmem:[#allocation6 + $0x8c] sm:$0xf]
    %v374 = vld [vmem:[#allocation6 + $0x90] sm:$0xf]
    %v375 = vld [vmem:[#allocation6 + $0x94] sm:$0xf]
    %v376 = vld [vmem:[#allocation6 + $0x98] sm:$0xf]
    %v377 = vld [vmem:[#allocation6 + $0x9c] sm:$0xf]
    %v378 = vld [vmem:[#allocation6 + $0xa0] sm:$0xf]
    %v379 = vld [vmem:[#allocation6 + $0xa4] sm:$0xf]
    %v380 = vld [vmem:[#allocation6 + $0xa8] sm:$0xf]
    %v381 = vld [vmem:[#allocation6 + $0xac] sm:$0xf]
    %v382 = vld [vmem:[#allocation6 + $0xb0] sm:$0xf]
    %v383 = vld [vmem:[#allocation6 + $0xb4] sm:$0xf]
    %v384 = vld [vmem:[#allocation6 + $0xb8] sm:$0xf]
    %v385 = vld [vmem:[#allocation6 + $0xbc] sm:$0xf]
    %v386 = vld [vmem:[#allocation6 + $0xc0] sm:$0xf]
    %v387 = vld [vmem:[#allocation6 + $0xc4] sm:$0xf]
    %v388 = vld [vmem:[#allocation6 + $0xc8] sm:$0xf]
    %v389 = vld [vmem:[#allocation6 + $0xcc] sm:$0xf]
    %v390 = vld [vmem:[#allocation6 + $0xd0] sm:$0xf]
    %v391 = vld [vmem:[#allocation6 + $0xd4] sm:$0xf]
    %v392 = vld [vmem:[#allocation6 + $0xd8] sm:$0xf]
    %v393 = vld [vmem:[#allocation6 + $0xdc] sm:$0xf]
    %v394 = vld [vmem:[#allocation6 + $0xe0] sm:$0xf]
    %v395 = vld [vmem:[#allocation6 + $0xe4] sm:$0xf]
    %v396 = vld [vmem:[#allocation6 + $0xe8] sm:$0xf]
    %v397 = vld [vmem:[#allocation6 + $0xec] sm:$0xf]
    %v398 = vld [vmem:[#allocation6 + $0xf0] sm:$0xf]
    %v399 = vld [vmem:[#allocation6 + $0xf4] sm:$0xf]
    %v400 = vld [vmem:[#allocation6 + $0xf8] sm:$0xf]
    %v401 = vld [vmem:[#allocation6 + $0xfc] sm:$0xf]
    %v402 = vld [vmem:[#allocation6 + $0x100] sm:$0xf]
    %v403 = vld [vmem:[#allocation6 + $0x104] sm:$0xf]
    %v404 = vld [vmem:[#allocation6 + $0x108] sm:$0xf]
    %v405 = vld [vmem:[#allocation6 + $0x10c] sm:$0xf]
    %v406 = vld [vmem:[#allocation6 + $0x110] sm:$0xf]
    %v407 = vld [vmem:[#allocation6 + $0x114] sm:$0xf]
    %v408 = vld [vmem:[#allocation6 + $0x118] sm:$0xf]
    %v409 = vld [vmem:[#allocation6 + $0x11c] sm:$0xf]
    %v410 = vld [vmem:[#allocation6 + $0x120] sm:$0xf]
    %v411 = vld [vmem:[#allocation6 + $0x124] sm:$0xf]
    %v412 = vld [vmem:[#allocation6 + $0x128] sm:$0xf]
    %v413 = vld [vmem:[#allocation6 + $0x12c] sm:$0xf]
    %v414 = vld [vmem:[#allocation6 + $0x130] sm:$0xf]
    %v415 = vld [vmem:[#allocation6 + $0x134] sm:$0xf]
    %v416 = vld [vmem:[#allocation6 + $0x138] sm:$0xf]
    %v417 = vld [vmem:[#allocation6 + $0x13c] sm:$0xf]
    %v418 = vld [vmem:[#allocation6 + $0x140] sm:$0xf]
    %v419 = vld [vmem:[#allocation6 + $0x144] sm:$0xf]
    %v420 = vld [vmem:[#allocation6 + $0x148] sm:$0xf]
    %v421 = vld [vmem:[#allocation6 + $0x14c] sm:$0xf]
    %v422 = vld [vmem:[#allocation6 + $0x150] sm:$0xf]
    %v423 = vld [vmem:[#allocation6 + $0x154] sm:$0xf]
    %v424 = vld [vmem:[#allocation6 + $0x158] sm:$0xf]
    %v425 = vld [vmem:[#allocation6 + $0x15c] sm:$0xf]
    %v426 = vld [vmem:[#allocation6 + $0x160] sm:$0xf]
    %v427 = vld [vmem:[#allocation6 + $0x164] sm:$0xf]
    %v428 = vld [vmem:[#allocation6 + $0x168] sm:$0xf]
    %v429 = vld [vmem:[#allocation6 + $0x16c] sm:$0xf]
    %v430 = vld [vmem:[#allocation6 + $0x170] sm:$0xf]
    %v431 = vld [vmem:[#allocation6 + $0x174] sm:$0xf]
    %v432 = vld [vmem:[#allocation6 + $0x178] sm:$0xf]
    %v433 = vld [vmem:[#allocation6 + $0x17c] sm:$0xf]
    %v434 = vld [vmem:[#allocation6 + $0x180] sm:$0xf]
    %v435 = vld [vmem:[#allocation6 + $0x184] sm:$0xf]
    %v436 = vld [vmem:[#allocation6 + $0x188] sm:$0xf]
    %v437 = vld [vmem:[#allocation6 + $0x18c] sm:$0xf]
    %v438 = vld [vmem:[#allocation6 + $0x190] sm:$0xf]
    %v439 = vld [vmem:[#allocation6 + $0x194] sm:$0xf]
    %v440 = vld [vmem:[#allocation6 + $0x198] sm:$0xf]
    %v441 = vld [vmem:[#allocation6 + $0x19c] sm:$0xf]
    %v442 = vld [vmem:[#allocation6 + $0x1a0] sm:$0xf]
    %v443 = vld [vmem:[#allocation6 + $0x1a4] sm:$0xf]
    %v444 = vld [vmem:[#allocation6 + $0x1a8] sm:$0xf]
    %v445 = vld [vmem:[#allocation6 + $0x1ac] sm:$0xf]
    %v446 = vld [vmem:[#allocation6 + $0x1b0] sm:$0xf]
    %v447 = vld [vmem:[#allocation6 + $0x1b4] sm:$0xf]
    %v448 = vld [vmem:[#allocation6 + $0x1b8] sm:$0xf]
    %v449 = vld [vmem:[#allocation6 + $0x1bc] sm:$0xf]
    %v450 = vld [vmem:[#allocation6 + $0x1c0] sm:$0xf]
    %v451 = vld [vmem:[#allocation6 + $0x1c4] sm:$0xf]
    %v452 = vld [vmem:[#allocation6 + $0x1c8] sm:$0xf]
    %v453 = vld [vmem:[#allocation6 + $0x1cc] sm:$0xf]
    %v454 = vld [vmem:[#allocation6 + $0x1d0] sm:$0xf]
    %v455 = vld [vmem:[#allocation6 + $0x1d4] sm:$0xf]
    %v456 = vld [vmem:[#allocation6 + $0x1d8] sm:$0xf]
    %v457 = vld [vmem:[#allocation6 + $0x1dc] sm:$0xf]
    %v458 = vld [vmem:[#allocation6 + $0x1e0] sm:$0xf]
    %v459 = vld [vmem:[#allocation6 + $0x1e4] sm:$0xf]
    %v460 = vld [vmem:[#allocation6 + $0x1e8] sm:$0xf]
    %v461 = vld [vmem:[#allocation6 + $0x1ec] sm:$0xf]
    %v462 = vld [vmem:[#allocation6 + $0x1f0] sm:$0xf]
    %v463 = vld [vmem:[#allocation6 + $0x1f4] sm:$0xf]
    %v464 = vld [vmem:[#allocation6 + $0x1f8] sm:$0xf]
    %v465 = vld [vmem:[#allocation6 + $0x1fc] sm:$0xf]
    %v466 = vld [vmem:[#allocation7] sm:$0x1]
    %v468 = vperm.slane %v466, 0
    %v598 = vunpack.c.l.b16 %v338
    %v599 = vunpack.c.l.b16 %v339
    %v600 = vunpack.c.l.b16 %v340
    %v601 = vunpack.c.l.b16 %v341
    %v602 = vunpack.c.l.b16 %v342
    %v603 = vunpack.c.l.b16 %v343
    %v604 = vunpack.c.l.b16 %v344
    %v605 = vunpack.c.l.b16 %v345
    %v606 = vunpack.c.l.b16 %v346
    %v607 = vunpack.c.l.b16 %v347
    %v608 = vunpack.c.l.b16 %v348
    %v609 = vunpack.c.l.b16 %v349
    %v610 = vunpack.c.l.b16 %v350
    %v611 = vunpack.c.l.b16 %v351
    %v612 = vunpack.c.l.b16 %v352
    %v613 = vunpack.c.l.b16 %v353
    %v614 = vunpack.c.l.b16 %v354
    %v615 = vunpack.c.l.b16 %v355
    %v616 = vunpack.c.l.b16 %v356
    %v617 = vunpack.c.l.b16 %v357
    %v618 = vunpack.c.l.b16 %v358
    %v619 = vunpack.c.l.b16 %v359
    %v620 = vunpack.c.l.b16 %v360
    %v621 = vunpack.c.l.b16 %v361
    %v622 = vunpack.c.l.b16 %v362
    %v623 = vunpack.c.l.b16 %v363
    %v624 = vunpack.c.l.b16 %v364
    %v625 = vunpack.c.l.b16 %v365
    %v626 = vunpack.c.l.b16 %v366
    %v627 = vunpack.c.l.b16 %v367
    %v628 = vunpack.c.l.b16 %v368
    %v629 = vunpack.c.l.b16 %v369
    %v630 = vunpack.c.l.b16 %v370
    %v631 = vunpack.c.l.b16 %v371
    %v632 = vunpack.c.l.b16 %v372
    %v633 = vunpack.c.l.b16 %v373
    %v634 = vunpack.c.l.b16 %v374
    %v635 = vunpack.c.l.b16 %v375
    %v636 = vunpack.c.l.b16 %v376
    %v637 = vunpack.c.l.b16 %v377
    %v638 = vunpack.c.l.b16 %v378
    %v639 = vunpack.c.l.b16 %v379
    %v640 = vunpack.c.l.b16 %v380
    %v641 = vunpack.c.l.b16 %v381
    %v642 = vunpack.c.l.b16 %v382
    %v643 = vunpack.c.l.b16 %v383
    %v644 = vunpack.c.l.b16 %v384
    %v645 = vunpack.c.l.b16 %v385
    %v646 = vunpack.c.l.b16 %v386
    %v647 = vunpack.c.l.b16 %v387
    %v648 = vunpack.c.l.b16 %v388
    %v649 = vunpack.c.l.b16 %v389
    %v650 = vunpack.c.l.b16 %v390
    %v651 = vunpack.c.l.b16 %v391
    %v652 = vunpack.c.l.b16 %v392
    %v653 = vunpack.c.l.b16 %v393
    %v654 = vunpack.c.l.b16 %v394
    %v655 = vunpack.c.l.b16 %v395
    %v656 = vunpack.c.l.b16 %v396
    %v657 = vunpack.c.l.b16 %v397
    %v658 = vunpack.c.l.b16 %v398
    %v659 = vunpack.c.l.b16 %v399
    %v660 = vunpack.c.l.b16 %v400
    %v661 = vunpack.c.l.b16 %v401
    %v662 = vunpack.c.l.b16 %v402
    %v663 = vunpack.c.l.b16 %v403
    %v664 = vunpack.c.l.b16 %v404
    %v665 = vunpack.c.l.b16 %v405
    %v666 = vunpack.c.l.b16 %v406
    %v667 = vunpack.c.l.b16 %v407
    %v668 = vunpack.c.l.b16 %v408
    %v669 = vunpack.c.l.b16 %v409
    %v670 = vunpack.c.l.b16 %v410
    %v671 = vunpack.c.l.b16 %v411
    %v672 = vunpack.c.l.b16 %v412
    %v673 = vunpack.c.l.b16 %v413
    %v674 = vunpack.c.l.b16 %v414
    %v675 = vunpack.c.l.b16 %v415
    %v676 = vunpack.c.l.b16 %v416
    %v677 = vunpack.c.l.b16 %v417
    %v678 = vunpack.c.l.b16 %v418
    %v679 = vunpack.c.l.b16 %v419
    %v680 = vunpack.c.l.b16 %v420
    %v681 = vunpack.c.l.b16 %v421
    %v682 = vunpack.c.l.b16 %v422
    %v683 = vunpack.c.l.b16 %v423
    %v684 = vunpack.c.l.b16 %v424
    %v685 = vunpack.c.l.b16 %v425
    %v686 = vunpack.c.l.b16 %v426
    %v687 = vunpack.c.l.b16 %v427
    %v688 = vunpack.c.l.b16 %v428
    %v689 = vunpack.c.l.b16 %v429
    %v690 = vunpack.c.l.b16 %v430
    %v691 = vunpack.c.l.b16 %v431
    %v692 = vunpack.c.l.b16 %v432
    %v693 = vunpack.c.l.b16 %v433
    %v694 = vunpack.c.l.b16 %v434
    %v695 = vunpack.c.l.b16 %v435
    %v696 = vunpack.c.l.b16 %v436
    %v697 = vunpack.c.l.b16 %v437
    %v698 = vunpack.c.l.b16 %v438
    %v699 = vunpack.c.l.b16 %v439
    %v700 = vunpack.c.l.b16 %v440
    %v701 = vunpack.c.l.b16 %v441
    %v702 = vunpack.c.l.b16 %v442
    %v703 = vunpack.c.l.b16 %v443
    %v704 = vunpack.c.l.b16 %v444
    %v705 = vunpack.c.l.b16 %v445
    %v706 = vunpack.c.l.b16 %v446
    %v707 = vunpack.c.l.b16 %v447
    %v708 = vunpack.c.l.b16 %v448
    %v709 = vunpack.c.l.b16 %v449
    %v710 = vunpack.c.l.b16 %v450
    %v711 = vunpack.c.l.b16 %v451
    %v712 = vunpack.c.l.b16 %v452
    %v713 = vunpack.c.l.b16 %v453
    %v714 = vunpack.c.l.b16 %v454
    %v715 = vunpack.c.l.b16 %v455
    %v716 = vunpack.c.l.b16 %v456
    %v717 = vunpack.c.l.b16 %v457
    %v718 = vunpack.c.l.b16 %v458
    %v719 = vunpack.c.l.b16 %v459
    %v720 = vunpack.c.l.b16 %v460
    %v721 = vunpack.c.l.b16 %v461
    %v722 = vunpack.c.l.b16 %v462
    %v723 = vunpack.c.l.b16 %v463
    %v724 = vunpack.c.l.b16 %v464
    %v725 = vunpack.c.l.b16 %v465
    %v726 = vpack.c.b16 %v599, %v598
    %v727 = vpack.c.b16 %v601, %v600
    %v728 = vpack.c.b16 %v603, %v602
    %v729 = vpack.c.b16 %v605, %v604
    %v730 = vpack.c.b16 %v607, %v606
    %v731 = vpack.c.b16 %v609, %v608
    %v732 = vpack.c.b16 %v611, %v610
    %v733 = vpack.c.b16 %v613, %v612
    %v734 = vpack.c.b16 %v615, %v614
    %v735 = vpack.c.b16 %v617, %v616
    %v736 = vpack.c.b16 %v619, %v618
    %v737 = vpack.c.b16 %v621, %v620
    %v738 = vpack.c.b16 %v623, %v622
    %v739 = vpack.c.b16 %v625, %v624
    %v740 = vpack.c.b16 %v627, %v626
    %v741 = vpack.c.b16 %v629, %v628
    %v742 = vpack.c.b16 %v631, %v630
    %v743 = vpack.c.b16 %v633, %v632
    %v744 = vpack.c.b16 %v635, %v634
    %v745 = vpack.c.b16 %v637, %v636
    %v746 = vpack.c.b16 %v639, %v638
    %v747 = vpack.c.b16 %v641, %v640
    %v748 = vpack.c.b16 %v643, %v642
    %v749 = vpack.c.b16 %v645, %v644
    %v750 = vpack.c.b16 %v647, %v646
    %v751 = vpack.c.b16 %v649, %v648
    %v752 = vpack.c.b16 %v651, %v650
    %v753 = vpack.c.b16 %v653, %v652
    %v754 = vpack.c.b16 %v655, %v654
    %v755 = vpack.c.b16 %v657, %v656
    %v756 = vpack.c.b16 %v659, %v658
    %v757 = vpack.c.b16 %v661, %v660
    %v758 = vpack.c.b16 %v663, %v662
    %v759 = vpack.c.b16 %v665, %v664
    %v760 = vpack.c.b16 %v667, %v666
    %v761 = vpack.c.b16 %v669, %v668
    %v762 = vpack.c.b16 %v671, %v670
    %v763 = vpack.c.b16 %v673, %v672
    %v764 = vpack.c.b16 %v675, %v674
    %v765 = vpack.c.b16 %v677, %v676
    %v766 = vpack.c.b16 %v679, %v678
    %v767 = vpack.c.b16 %v681, %v680
    %v768 = vpack.c.b16 %v683, %v682
    %v769 = vpack.c.b16 %v685, %v684
    %v770 = vpack.c.b16 %v687, %v686
    %v771 = vpack.c.b16 %v689, %v688
    %v772 = vpack.c.b16 %v691, %v690
    %v773 = vpack.c.b16 %v693, %v692
    %v774 = vpack.c.b16 %v695, %v694
    %v775 = vpack.c.b16 %v697, %v696
    %v776 = vpack.c.b16 %v699, %v698
    %v777 = vpack.c.b16 %v701, %v700
    %v778 = vpack.c.b16 %v703, %v702
    %v779 = vpack.c.b16 %v705, %v704
    %v780 = vpack.c.b16 %v707, %v706
    %v781 = vpack.c.b16 %v709, %v708
    %v782 = vpack.c.b16 %v711, %v710
    %v783 = vpack.c.b16 %v713, %v712
    %v784 = vpack.c.b16 %v715, %v714
    %v785 = vpack.c.b16 %v717, %v716
    %v786 = vpack.c.b16 %v719, %v718
    %v787 = vpack.c.b16 %v721, %v720
    %v788 = vpack.c.b16 %v723, %v722
    %v789 = vpack.c.b16 %v725, %v724
    %854 = vmatpush.bf16.msra.mxu0 %v733
    %855 = vmatpush.bf16.msra.mxu0 %v732
    %856 = vmatpush.bf16.msra.mxu0 %v731
    %857 = vmatpush.bf16.msra.mxu0 %v730
    %858 = vmatpush.bf16.msra.mxu0 %v729
    %859 = vmatpush.bf16.msra.mxu0 %v728
    %860 = vmatpush.bf16.msra.mxu0 %v727
    %861 = vmatpush.bf16.msra.mxu0 %v726
    %862 = vmatmul.bf16.gmra.mxu0 %v330
    %v863 = vpop.f32.mrf.mxu0
    %v864 = vadd.f32 %v468, %v863
    %v865 = vpop.f32.mrf.mxu0
    %866 = vdwg.mxu0
    %867 = vmatpush.bf16.msra.mxu0 %v741
    %868 = vmatpush.bf16.msra.mxu0 %v740
    %869 = vmatpush.bf16.msra.mxu0 %v739
    %870 = vmatpush.bf16.msra.mxu0 %v738
    %871 = vmatpush.bf16.msra.mxu0 %v737
    %872 = vmatpush.bf16.msra.mxu0 %v736
    %873 = vmatpush.bf16.msra.mxu0 %v735
    %874 = vmatpush.bf16.msra.mxu0 %v734
    %875 = vmatmul.bf16.gmra.mxu0 %v331
    %v876 = vpop.f32.mrf.mxu0
    %v877 = vadd.f32 %v864, %v876
    %v878 = vpop.f32.mrf.mxu0
    %879 = vdwg.mxu0
    %880 = vmatpush.bf16.msra.mxu0 %v749
    %881 = vmatpush.bf16.msra.mxu0 %v748
    %882 = vmatpush.bf16.msra.mxu0 %v747
    %883 = vmatpush.bf16.msra.mxu0 %v746
    %884 = vmatpush.bf16.msra.mxu0 %v745
    %885 = vmatpush.bf16.msra.mxu0 %v744
    %886 = vmatpush.bf16.msra.mxu0 %v743
    %887 = vmatpush.bf16.msra.mxu0 %v742
    %888 = vmatmul.bf16.gmra.mxu0 %v332
    %v889 = vpop.f32.mrf.mxu0
    %v890 = vadd.f32 %v877, %v889
    %v891 = vpop.f32.mrf.mxu0
    %892 = vdwg.mxu0
    %893 = vmatpush.bf16.msra.mxu0 %v757
    %894 = vmatpush.bf16.msra.mxu0 %v756
    %895 = vmatpush.bf16.msra.mxu0 %v755
    %896 = vmatpush.bf16.msra.mxu0 %v754
    %897 = vmatpush.bf16.msra.mxu0 %v753
    %898 = vmatpush.bf16.msra.mxu0 %v752
    %899 = vmatpush.bf16.msra.mxu0 %v751
    %900 = vmatpush.bf16.msra.mxu0 %v750
    %901 = vmatmul.bf16.gmra.mxu0 %v333
    %v902 = vpop.f32.mrf.mxu0
    %v903 = vadd.f32 %v890, %v902
    %v904 = vpop.f32.mrf.mxu0
    %905 = vdwg.mxu0
    %906 = vmatpush.bf16.msra.mxu0 %v765
    %907 = vmatpush.bf16.msra.mxu0 %v764
    %908 = vmatpush.bf16.msra.mxu0 %v763
    %909 = vmatpush.bf16.msra.mxu0 %v762
    %910 = vmatpush.bf16.msra.mxu0 %v761
    %911 = vmatpush.bf16.msra.mxu0 %v760
    %912 = vmatpush.bf16.msra.mxu0 %v759
    %913 = vmatpush.bf16.msra.mxu0 %v758
    %914 = vmatmul.bf16.gmra.mxu0 %v334
    %v915 = vpop.f32.mrf.mxu0
    %v916 = vadd.f32 %v903, %v915
    %v917 = vpop.f32.mrf.mxu0
    %918 = vdwg.mxu0
    %919 = vmatpush.bf16.msra.mxu0 %v773
    %920 = vmatpush.bf16.msra.mxu0 %v772
    %921 = vmatpush.bf16.msra.mxu0 %v771
    %922 = vmatpush.bf16.msra.mxu0 %v770
    %923 = vmatpush.bf16.msra.mxu0 %v769
    %924 = vmatpush.bf16.msra.mxu0 %v768
    %925 = vmatpush.bf16.msra.mxu0 %v767
    %926 = vmatpush.bf16.msra.mxu0 %v766
    %927 = vmatmul.bf16.gmra.mxu0 %v335
    %v928 = vpop.f32.mrf.mxu0
    %v929 = vadd.f32 %v916, %v928
    %v930 = vpop.f32.mrf.mxu0
    %931 = vdwg.mxu0
    %932 = vmatpush.bf16.msra.mxu0 %v781
    %933 = vmatpush.bf16.msra.mxu0 %v780
    %934 = vmatpush.bf16.msra.mxu0 %v779
    %935 = vmatpush.bf16.msra.mxu0 %v778
    %936 = vmatpush.bf16.msra.mxu0 %v777
    %937 = vmatpush.bf16.msra.mxu0 %v776
    %938 = vmatpush.bf16.msra.mxu0 %v775
    %939 = vmatpush.bf16.msra.mxu0 %v774
    %940 = vmatmul.bf16.gmra.mxu0 %v336
    %v941 = vpop.f32.mrf.mxu0
    %v942 = vadd.f32 %v929, %v941
    %v943 = vpop.f32.mrf.mxu0
    %944 = vdwg.mxu0
    %945 = vmatpush.bf16.msra.mxu0 %v789
    %946 = vmatpush.bf16.msra.mxu0 %v788
    %947 = vmatpush.bf16.msra.mxu0 %v787
    %948 = vmatpush.bf16.msra.mxu0 %v786
    %949 = vmatpush.bf16.msra.mxu0 %v785
    %950 = vmatpush.bf16.msra.mxu0 %v784
    %951 = vmatpush.bf16.msra.mxu0 %v783
    %952 = vmatpush.bf16.msra.mxu0 %v782
    %953 = vmatmul.bf16.gmra.mxu0 %v337
    %v954 = vpop.f32.mrf.mxu0
    %v955 = vadd.f32 %v942, %v954
    %v956 = vpop.f32.mrf.mxu0
    %957 = vdwg.mxu0
    %vm958 = vcmp.lt.s32.totalorder %v306, 6
    %v959 = vsel %vm958, %v955, -1e+30
    %960 = vmax.xlane.f32.xlu0 %v959
    %v961 = vpop.xlane.xlu0 %960
    %v962 = vsub.f32 %v959, %v961
    %v963 = vmul.f32 %v962, 1.442695
    %v964 = vpow.pop %v963
    %965 = vadd.xlane.f32.xlu0 %v964
    %v966 = vpop.xlane.xlu0 %965
    %v967 = vlog2.pop %v966
    %v968 = vmul.f32 %v967, 0.6931472
    %v969 = vadd.f32 %v961, %v968
    %v970 = vsub.f32 %v959, %v969
    %971 = vst [vmem:[%s5] sm:$0xff] %v970
    // Predicated region
    $region38: #{fcnet_forward.3} parent=1 // pred_check
      _
    $region39: #{fcnet_forward.3} parent=1 // pred_check_branch
      %973 = sbr.rel (0) target = $region41
    $region40: #{fcnet_forward.3} parent=1 // pred_region
      _
    $region41: #{fcnet_forward.3} parent=1 // pred_fallthru
      _
    // Predicated region
    $region42: #{fcnet_forward.3} parent=1 // pred_check
      _
    $region43: #{fcnet_forward.3} parent=1 // pred_check_branch
      %975 = sbr.rel (0) target = $region45
    $region44: #{fcnet_forward.3} parent=1 // pred_region
      _
    $region45: #{fcnet_forward.3} parent=1 // pred_fallthru
      _
    %976 = vsyncpa [#allocation3], 1
    %977 = vsyncpa [#allocation5], 1
    %978 = vsyncpa [#allocation8], 1

// kernel: fcnet_forward.2
$region0: #{fcnet_forward.2}
  #allocation0 [shape = 'u32[]', space=smem, size = 0x4, offset = 0x4, fixed_abs, tag = 'smem constant byte address 0x4 - core index']
  #allocation1 [shape = 'u32[72,128]{1,0:T(1,128)}', space=vmem, size = 0x9000, scoped, tag = 'internal scratch']
  %s0 = inlined_call_operand.vmem [shape: bf16[8,16384], index: 0, kind: input, shape index: {}]
  %s1 = inlined_call_operand.hbm [shape: s8[16384,1024], index: 1, kind: input, shape index: {}]
  %s2 = inlined_call_operand.vmem [shape: f32[8,2048], index: 2, kind: output, shape index: {}]
  %s3 = sld [smem:[#allocation0]]
  $region49: #{fcnet_forward.2} parent=0
    _
  %s5 = ssub.s32 1, %s3
  %s6 = scalar_select 0, %s5, %s3
  $region1: #{fcnet_forward.2} parent=0
    #allocation2 [shape = 'u8[4194304]{0}', space=vmem, size = 0x400000, scoped, tag = 'input window, operand 1']
    #allocation3 [shape = 's32[2]{0}', space=sflag, size = 0x8, scoped, tag = 'scoped memory for fcnet_forward.2']
    %7 = vsyncpa [#allocation3], 0
    %s8 = scalar_lea.sflag [#allocation3], 1
    %9 = vsyncpa %s8, 0
    loop: start=0, step=1, limit=10
    $region2: #{fcnet_forward.2} parent=1 // loop_pre_header
      _
    $region3: #{fcnet_forward.2} parent=1 // loop_header
      %s11 = sphi 0, %s15
      %p12 = scmp.ge.s32.totalorder %s11, 10
      %s18 = sphi 0, %s30
      %s19 = sphi 0, %s26
      %s20 = sphi 0, %s18
      %s21 = sphi 0, %s19
      %s22 = sphi 0, %s20
      %s23 = sphi 0, %s21
      %s37 = sphi 0, %s39
      %s40 = sphi 0, %s37
      %s41 = sphi 0, %s40
      %s57 = sphi 0, %s41
      %s67 = sphi 0, %s69
      %s70 = sphi 0, %s67
      %s71 = sphi 0, %s70
      %s87 = sphi 0, %s71
      %s93 = sphi 0, %s95
      %s96 = sphi 0, %s93
      %s97 = sphi 0, %s96
      %s113 = sphi 0, %s97
    $region4: #{fcnet_forward.2} parent=1 // loop_header_branch
      %14 = sbr.rel (%p12) target = $region8
    $region5: #{fcnet_forward.2} parent=1 // loop_body
      %s16 = ssub.s32 %s11, 1
      %s17 = ssub.s32 %s11, 2
      %s24 = sadd.s32 1, %s19
      %p25 = scmp.ge.s32.totalorder %s24, 4
      %s26 = scalar_select %p25, 0, %s24
      %s27 = sadd.s32 1, %s18
      %s28 = scalar_select %p25, %s27, %s18
      %p29 = scmp.ge.s32.totalorder %s28, 2
      %s30 = scalar_select %p29, 0, %s28
      %s31 = smul.u32 %s18, 4
      %s32 = sadd.s32 %s31, %s19
      %s33 = smul.u32 %s30, 4
      %s34 = sadd.s32 %s33, %s26
      %s35 = ssub.s32 %s32, %s34
      %p36 = scmp.eq.s32.totalorder %s35, 0
      %s38 = sadd.s32 %s37, 1
      %s39 = scalar_select %p36, %s37, %s38
      %p42 = pneg %p36
      %p43 = scmp.eq.s32.totalorder %s11, 7
      %p44 = por %p42, %p43
      %p45 = scmp.ne.s32.totalorder %s37, %s40
      %p46 = scmp.eq.s32.totalorder %s11, 0
      %p47 = por %p45, %p46
      %p48 = scmp.ne.s32.totalorder %s37, %s40
      %p49 = scmp.eq.s32.totalorder %s16, 7
      %p50 = por %p48, %p49
      %p51 = scmp.ne.s32.totalorder %s40, %s41
      %p52 = scmp.eq.s32.totalorder %s16, 0
      %p53 = por %p51, %p52
      %p54 = scmp.ne.s32.totalorder %s40, %s41
      %p55 = scmp.eq.s32.totalorder %s17, 7
      %p56 = por %p54, %p55
      %p58 = scmp.ne.s32.totalorder %s41, %s57
      %p59 = scmp.eq.s32.totalorder %s17, 0
      %p60 = por %p58, %p59
      %s61 = smul.u32 %s18, 4
      %s62 = sadd.s32 %s61, %s19
      %s63 = smul.u32 %s30, 4
      %s64 = sadd.s32 %s63, %s26
      %s65 = ssub.s32 %s62, %s64
      %p66 = scmp.eq.s32.totalorder %s65, 0
      %s68 = sadd.s32 %s67, 1
      %s69 = scalar_select %p66, %s67, %s68
      %p72 = pneg %p66
      %p73 = scmp.eq.s32.totalorder %s11, 7
      %p74 = por %p72, %p73
      %p75 = scmp.ne.s32.totalorder %s67, %s70
      %p76 = scmp.eq.s32.totalorder %s11, 0
      %p77 = por %p75, %p76
      %p78 = scmp.ne.s32.totalorder %s67, %s70
      %p79 = scmp.eq.s32.totalorder %s16, 7
      %p80 = por %p78, %p79
      %p81 = scmp.ne.s32.totalorder %s70, %s71
      %p82 = scmp.eq.s32.totalorder %s16, 0
      %p83 = por %p81, %p82
      %p84 = scmp.ne.s32.totalorder %s70, %s71
      %p85 = scmp.eq.s32.totalorder %s17, 7
      %p86 = por %p84, %p85
      %p88 = scmp.ne.s32.totalorder %s71, %s87
      %p89 = scmp.eq.s32.totalorder %s17, 0
      %p90 = por %p88, %p89
      %s91 = ssub.s32 %s18, %s30
      %p92 = scmp.eq.s32.totalorder %s91, 0
      %s94 = sadd.s32 %s93, 1
      %s95 = scalar_select %p92, %s93, %s94
      %p98 = pneg %p92
      %p99 = scmp.eq.s32.totalorder %s11, 7
      %p100 = por %p98, %p99
      %p101 = scmp.ne.s32.totalorder %s93, %s96
      %p102 = scmp.eq.s32.totalorder %s11, 0
      %p103 = por %p101, %p102
      %p104 = scmp.ne.s32.totalorder %s93, %s96
      %p105 = scmp.eq.s32.totalorder %s16, 7
      %p106 = por %p104, %p105
      %p107 = scmp.ne.s32.totalorder %s96, %s97
      %p108 = scmp.eq.s32.totalorder %s16, 0
      %p109 = por %p107, %p108
      %p110 = scmp.ne.s32.totalorder %s96, %s97
      %p111 = scmp.eq.s32.totalorder %s17, 7
      %p112 = por %p110, %p111
      %p114 = scmp.ne.s32.totalorder %s97, %s113
      %p115 = scmp.eq.s32.totalorder %s17, 0
      %p116 = por %p114, %p115
      %p117 = scmp.le.s32.totalorder 1, %s11
      %p118 = scmp.lt.s32.totalorder %s11, 9
      %p119 = pnand %p117, %p118
      %p120 = pneg %p119
      // Predicated region
      $region9: #{fcnet_forward.2} parent=5 // pred_check
        _
      $region10: #{fcnet_forward.2} parent=5 // pred_check_branch
        %122 = sbr.rel (%p119) target = $region12
      $region11: #{fcnet_forward.2} parent=5 // pred_region
        %s123 = ssub.s32 %s11, 1
      $region12: #{fcnet_forward.2} parent=5 // pred_fallthru
        _
      %p124 = scmp.lt.s32.totalorder %s11, 8
      // Predicated region
      $region13: #{fcnet_forward.2} parent=5 // pred_check
        %p125 = pneg %p124
      $region14: #{fcnet_forward.2} parent=5 // pred_check_branch
        %127 = sbr.rel (%p125) target = $region16
      $region15: #{fcnet_forward.2} parent=5 // pred_region
        // Predicated region
        $region17: #{fcnet_forward.2} parent=15 // pred_check
          %p128 = pneg %p47
        $region18: #{fcnet_forward.2} parent=15 // pred_check_branch
          %130 = sbr.rel (%p128) target = $region20
        $region19: #{fcnet_forward.2} parent=15 // pred_region
          %s131 = smul.u32 %s18, 4
          %s132 = sadd.s32 %s131, %s19
          %s133 = smul.u32 16, %s132
          %p134 = scmp.lt.s32.totalorder %s133, 127
          %s135 = scalar_select %p134, %s133, 127
          %s136 = smul.addr %s135, 4
          %s137 = scalar_lea.vmem %s0, %s136
          %s138 = smul.u32 %s18, 4
          %s139 = sadd.s32 %s138, %s19
          %s140 = smul.u32 16, %s139
        $region20: #{fcnet_forward.2} parent=15 // pred_fallthru
          _
        // Predicated region
        $region21: #{fcnet_forward.2} parent=15 // pred_check
          %p141 = pneg %p77
        $region22: #{fcnet_forward.2} parent=15 // pred_check_branch
          %143 = sbr.rel (%p141) target = $region24
        $region23: #{fcnet_forward.2} parent=15 // pred_region
          %s144 = sand.u32 %s67, 1
          %s145 = scalar_lea.sflag [#allocation3], %s144
          %s146 = sand.u32 %s67, 1
          %s147 = smul.addr %s146, 4096
          %s148 = scalar_lea.vmem [#allocation2], %s147
          %s149 = smul.u32 %s18, 4
          %s150 = sadd.s32 %s149, %s19
          %s151 = smul.u32 64, %s150
          %153 = vsyncadd %s145, 0
          %s154 = smul.addr %s151, 8
          %s155 = smul.addr %s154, 8
          %s156 = scalar_lea.hbm %s1, %s155
          %s157 = sshll.u32 %s156, 4
          %s158 = int_to_ptr.hbm [resolvable:$true] %s157
          %s159 = sshll.u32 %s148, 4
          %s160 = int_to_ptr.vmem [resolvable:$true] %s159
          %165 = dma.hbm_to_vmem [thread:$0]  %s158, 65536, %s160, %s145, 1024, 1024, 64
        $region24: #{fcnet_forward.2} parent=15 // pred_fallthru
          _
      $region16: #{fcnet_forward.2} parent=5 // pred_fallthru
        _
      %p166 = scmp.le.s32.totalorder 1, %s11
      %p167 = scmp.lt.s32.totalorder %s11, 9
      %p168 = pnand %p166, %p167
      %p169 = pneg %p168
      // Predicated region
      $region25: #{fcnet_forward.2} parent=5 // pred_check
        _
      $region26: #{fcnet_forward.2} parent=5 // pred_check_branch
        %171 = sbr.rel (%p168) target = $region28
      $region27: #{fcnet_forward.2} parent=5 // pred_region
        %s172 = ssub.s32 %s11, 1
        %s173 = sand.u32 %s70, 1
        %s174 = scalar_lea.sflag [#allocation3], %s173
        %s175 = sand.u32 %s70, 1
        %s176 = smul.addr %s175, 4096
        %s177 = scalar_lea.vmem [#allocation2], %s176
        // Predicated region
        $region29: #{fcnet_forward.2} parent=27 // pred_check
          %p178 = pneg %p83
        $region30: #{fcnet_forward.2} parent=27 // pred_check_branch
          %180 = sbr.rel (%p178) target = $region32
        $region31: #{fcnet_forward.2} parent=27 // pred_region
          %182 = dma.done %s174, 65536
        $region32: #{fcnet_forward.2} parent=27 // pred_fallthru
          _
        %s183 = smul.u32 %s20, 4
        %s184 = sadd.s32 %s183, %s21
        %s185 = smul.u32 16, %s184
        %p186 = scmp.lt.s32.totalorder %s185, 127
        %s187 = scalar_select %p186, %s185, 127
        %s188 = smul.addr %s187, 4
        %s189 = scalar_lea.vmem %s0, %s188
        %p190 = pneg %p53
        %p191 = pneg %p50
        %s192 = sand.u32 %s70, 1
        %s193 = scalar_lea.sflag [#allocation3], %s192
        %s194 = sand.u32 %s70, 1
        %s195 = smul.addr %s194, 4096
        %s196 = scalar_lea.vmem [#allocation2], %s195
        %p197 = pneg %p83
        %p198 = pneg %p80
        %p199 = pneg %p109
        %p200 = pneg %p106
        %s201 = smul.u32 8, %s20
        %p202 = scmp.lt.s32.totalorder %s201, 15
        %s203 = scalar_select %p202, %s201, 15
        %s204 = smul.addr %s203, 8
        %s205 = scalar_lea.vmem %s2, %s204
        %s206 = smul.u32 %s20, 4
        %s207 = sadd.s32 %s206, %s21
        %s208 = smul.u32 16, %s207
        %p209 = scmp.lt.s32.totalorder %s208, 127
        %s210 = scalar_select %p209, %s208, 127
        %s211 = smul.addr %s210, 4
        %s212 = scalar_lea.vmem %s0, %s211
        %s213 = smul.u32 %s20, 4
        %s214 = sadd.s32 %s213, %s21
        %s215 = smul.u32 16, %s214
        %s216 = smul.u32 %s20, 4
        %s217 = sadd.s32 %s216, %s21
        %s218 = smul.u32 64, %s217
        %s219 = smul.u32 8, %s20
        %p220 = scmp.lt.s32.totalorder %s219, 15
        %s221 = scalar_select %p220, %s219, 15
        %s222 = smul.addr %s221, 8
        %s223 = scalar_lea.vmem %s2, %s222
        %s224 = smul.u32 8, %s20
        %p225 = scmp.eq.s32.totalorder %s21, 0
        // Predicated region
        $region33: #{fcnet_forward.2} parent=27 // pred_check
          %p226 = pneg %p225
        $region34: #{fcnet_forward.2} parent=27 // pred_check_branch
          %228 = sbr.rel (%p226) target = $region36
        $region35: #{fcnet_forward.2} parent=27 // pred_region
          %229 = vst [vmem:[%s223] sm:$0xff] 0.0
          %230 = vst [vmem:[%s223 + $0x8] sm:$0xff] 0.0
          %231 = vst [vmem:[%s223 + $0x10] sm:$0xff] 0.0
          %232 = vst [vmem:[%s223 + $0x18] sm:$0xff] 0.0
          %233 = vst [vmem:[%s223 + $0x20] sm:$0xff] 0.0
          %234 = vst [vmem:[%s223 + $0x28] sm:$0xff] 0.0
          %235 = vst [vmem:[%s223 + $0x30] sm:$0xff] 0.0
          %236 = vst [vmem:[%s223 + $0x38] sm:$0xff] 0.0
        $region36: #{fcnet_forward.2} parent=27 // pred_fallthru
          _
        %v237 = vld [vmem:[%s177] sm:$0xff]
        %v238 = vld [vmem:[%s177 + $0x8] sm:$0xff]
        %v239 = vld [vmem:[%s177 + $0x10] sm:$0xff]
        %v240 = vld [vmem:[%s177 + $0x18] sm:$0xff]
        %v241 = vld [vmem:[%s177 + $0x20] sm:$0xff]
        %v242 = vld [vmem:[%s177 + $0x28] sm:$0xff]
        %v243 = vld [vmem:[%s177 + $0x30] sm:$0xff]
        %v244 = vld [vmem:[%s177 + $0x38] sm:$0xff]
        %v245 = vld [vmem:[%s177 + $0x40] sm:$0xff]
        %v246 = vld [vmem:[%s177 + $0x48] sm:$0xff]
        %v247 = vld [vmem:[%s177 + $0x50] sm:$0xff]
        %v248 = vld [vmem:[%s177 + $0x58] sm:$0xff]
        %v249 = vld [vmem:[%s177 + $0x60] sm:$0xff]
        %v250 = vld [vmem:[%s177 + $0x68] sm:$0xff]
        %v251 = vld [vmem:[%s177 + $0x70] sm:$0xff]
        %v252 = vld [vmem:[%s177 + $0x78] sm:$0xff]
        %v253 = vld [vmem:[%s177 + $0x80] sm:$0xff]
        %v254 = vld [vmem:[%s177 + $0x88] sm:$0xff]
        %v255 = vld [vmem:[%s177 + $0x90] sm:$0xff]
        %v256 = vld [vmem:[%s177 + $0x98] sm:$0xff]
        %v257 = vld [vmem:[%s177 + $0xa0] sm:$0xff]
        %v258 = vld [vmem:[%s177 + $0xa8] sm:$0xff]
        %v259 = vld [vmem:[%s177 + $0xb0] sm:$0xff]
        %v260 = vld [vmem:[%s177 + $0xb8] sm:$0xff]
        %v261 = vld [vmem:[%s177 + $0xc0] sm:$0xff]
        %v262 = vld [vmem:[%s177 + $0xc8] sm:$0xff]
        %v263 = vld [vmem:[%s177 + $0xd0] sm:$0xff]
        %v264 = vld [vmem:[%s177 + $0xd8] sm:$0xff]
        %v265 = vld [vmem:[%s177 + $0xe0] sm:$0xff]
        %v266 = vld [vmem:[%s177 + $0xe8] sm:$0xff]
        %v267 = vld [vmem:[%s177 + $0xf0] sm:$0xff]
        %v268 = vld [vmem:[%s177 + $0xf8] sm:$0xff]
        %v269 = vld [vmem:[%s177 + $0x100] sm:$0xff]
        %v270 = vld [vmem:[%s177 + $0x108] sm:$0xff]
        %v271 = vld [vmem:[%s177 + $0x110] sm:$0xff]
        %v272 = vld [vmem:[%s177 + $0x118] sm:$0xff]
        %v273 = vld [vmem:[%s177 + $0x120] sm:$0xff]
        %v274 = vld [vmem:[%s177 + $0x128] sm:$0xff]
        %v275 = vld [vmem:[%s177 + $0x130] sm:$0xff]
        %v276 = vld [vmem:[%s177 + $0x138] sm:$0xff]
        %v277 = vld [vmem:[%s177 + $0x140] sm:$0xff]
        %v278 = vld [vmem:[%s177 + $0x148] sm:$0xff]
        %v279 = vld [vmem:[%s177 + $0x150] sm:$0xff]
        %v280 = vld [vmem:[%s177 + $0x158] sm:$0xff]
        %v281 = vld [vmem:[%s177 + $0x160] sm:$0xff]
        %v282 = vld [vmem:[%s177 + $0x168] sm:$0xff]
        %v283 = vld [vmem:[%s177 + $0x170] sm:$0xff]
        %v284 = vld [vmem:[%s177 + $0x178] sm:$0xff]
        %v285 = vld [vmem:[%s177 + $0x180] sm:$0xff]
        %v286 = vld [vmem:[%s177 + $0x188] sm:$0xff]
        %v287 = vld [vmem:[%s177 + $0x190] sm:$0xff]
        %v288 = vld [vmem:[%s177 + $0x198] sm:$0xff]
        %v289 = vld [vmem:[%s177 + $0x1a0] sm:$0xff]
        %v290 = vld [vmem:[%s177 + $0x1a8] sm:$0xff]
        %v291 = vld [vmem:[%s177 + $0x1b0] sm:$0xff]
        %v292 = vld [vmem:[%s177 + $0x1b8] sm:$0xff]
        %v293 = vld [vmem:[%s177 + $0x1c0] sm:$0xff]
        %v294 = vld [vmem:[%s177 + $0x1c8] sm:$0xff]
        %v295 = vld [vmem:[%s177 + $0x1d0] sm:$0xff]
        %v296 = vld [vmem:[%s177 + $0x1d8] sm:$0xff]
        %v297 = vld [vmem:[%s177 + $0x1e0] sm:$0xff]
        %v298 = vld [vmem:[%s177 + $0x1e8] sm:$0xff]
        %v299 = vld [vmem:[%s177 + $0x1f0] sm:$0xff]
        %v300 = vld [vmem:[%s177 + $0x1f8] sm:$0xff]
        %v301 = vld [vmem:[%s177 + $0x200] sm:$0xff]
        %v302 = vld [vmem:[%s177 + $0x208] sm:$0xff]
        %v303 = vld [vmem:[%s177 + $0x210] sm:$0xff]
        %v304 = vld [vmem:[%s177 + $0x218] sm:$0xff]
        %v305 = vld [vmem:[%s177 + $0x220] sm:$0xff]
        %v306 = vld [vmem:[%s177 + $0x228] sm:$0xff]
        %v307 = vld [vmem:[%s177 + $0x230] sm:$0xff]
        %v308 = vld [vmem:[%s177 + $0x238] sm:$0xff]
        %v309 = vld [vmem:[%s177 + $0x240] sm:$0xff]
        %v310 = vld [vmem:[%s177 + $0x248] sm:$0xff]
        %v311 = vld [vmem:[%s177 + $0x250] sm:$0xff]
        %v312 = vld [vmem:[%s177 + $0x258] sm:$0xff]
        %v313 = vld [vmem:[%s177 + $0x260] sm:$0xff]
        %v314 = vld [vmem:[%s177 + $0x268] sm:$0xff]
        %v315 = vld [vmem:[%s177 + $0x270] sm:$0xff]
        %v316 = vld [vmem:[%s177 + $0x278] sm:$0xff]
        %v317 = vld [vmem:[%s177 + $0x280] sm:$0xff]
        %v318 = vld [vmem:[%s177 + $0x288] sm:$0xff]
        %v319 = vld [vmem:[%s177 + $0x290] sm:$0xff]
        %v320 = vld [vmem:[%s177 + $0x298] sm:$0xff]
        %v321 = vld [vmem:[%s177 + $0x2a0] sm:$0xff]
        %v322 = vld [vmem:[%s177 + $0x2a8] sm:$0xff]
        %v323 = vld [vmem:[%s177 + $0x2b0] sm:$0xff]
        %v324 = vld [vmem:[%s177 + $0x2b8] sm:$0xff]
        %v325 = vld [vmem:[%s177 + $0x2c0] sm:$0xff]
        %v326 = vld [vmem:[%s177 + $0x2c8] sm:$0xff]
        %v327 = vld [vmem:[%s177 + $0x2d0] sm:$0xff]
        %v328 = vld [vmem:[%s177 + $0x2d8] sm:$0xff]
        %v329 = vld [vmem:[%s177 + $0x2e0] sm:$0xff]
        %v330 = vld [vmem:[%s177 + $0x2e8] sm:$0xff]
        %v331 = vld [vmem:[%s177 + $0x2f0] sm:$0xff]
        %v332 = vld [vmem:[%s177 + $0x2f8] sm:$0xff]
        %v333 = vld [vmem:[%s177 + $0x300] sm:$0xff]
        %v334 = vld [vmem:[%s177 + $0x308] sm:$0xff]
        %v335 = vld [vmem:[%s177 + $0x310] sm:$0xff]
        %v336 = vld [vmem:[%s177 + $0x318] sm:$0xff]
        %v337 = vld [vmem:[%s177 + $0x320] sm:$0xff]
        %v338 = vld [vmem:[%s177 + $0x328] sm:$0xff]
        %v339 = vld [vmem:[%s177 + $0x330] sm:$0xff]
        %v340 = vld [vmem:[%s177 + $0x338] sm:$0xff]
        %v341 = vld [vmem:[%s177 + $0x340] sm:$0xff]
        %v342 = vld [vmem:[%s177 + $0x348] sm:$0xff]
        %v343 = vld [vmem:[%s177 + $0x350] sm:$0xff]
        %v344 = vld [vmem:[%s177 + $0x358] sm:$0xff]
        %v345 = vld [vmem:[%s177 + $0x360] sm:$0xff]
        %v346 = vld [vmem:[%s177 + $0x368] sm:$0xff]
        %v347 = vld [vmem:[%s177 + $0x370] sm:$0xff]
        %v348 = vld [vmem:[%s177 + $0x378] sm:$0xff]
        %v349 = vld [vmem:[%s177 + $0x380] sm:$0xff]
        %v350 = vld [vmem:[%s177 + $0x388] sm:$0xff]
        %v351 = vld [vmem:[%s177 + $0x390] sm:$0xff]
        %v352 = vld [vmem:[%s177 + $0x398] sm:$0xff]
        %v353 = vld [vmem:[%s177 + $0x3a0] sm:$0xff]
        %v354 = vld [vmem:[%s177 + $0x3a8] sm:$0xff]
        %v355 = vld [vmem:[%s177 + $0x3b0] sm:$0xff]
        %v356 = vld [vmem:[%s177 + $0x3b8] sm:$0xff]
        %v357 = vld [vmem:[%s177 + $0x3c0] sm:$0xff]
        %v358 = vld [vmem:[%s177 + $0x3c8] sm:$0xff]
        %v359 = vld [vmem:[%s177 + $0x3d0] sm:$0xff]
        %v360 = vld [vmem:[%s177 + $0x3d8] sm:$0xff]
        %v361 = vld [vmem:[%s177 + $0x3e0] sm:$0xff]
        %v362 = vld [vmem:[%s177 + $0x3e8] sm:$0xff]
        %v363 = vld [vmem:[%s177 + $0x3f0] sm:$0xff]
        %v364 = vld [vmem:[%s177 + $0x3f8] sm:$0xff]
        %v365 = vld [vmem:[%s177 + $0x400] sm:$0xff]
        %v366 = vld [vmem:[%s177 + $0x408] sm:$0xff]
        %v367 = vld [vmem:[%s177 + $0x410] sm:$0xff]
        %v368 = vld [vmem:[%s177 + $0x418] sm:$0xff]
        %v369 = vld [vmem:[%s177 + $0x420] sm:$0xff]
        %v370 = vld [vmem:[%s177 + $0x428] sm:$0xff]
        %v371 = vld [vmem:[%s177 + $0x430] sm:$0xff]
        %v372 = vld [vmem:[%s177 + $0x438] sm:$0xff]
        %v373 = vld [vmem:[%s177 + $0x440] sm:$0xff]
        %v374 = vld [vmem:[%s177 + $0x448] sm:$0xff]
        %v375 = vld [vmem:[%s177 + $0x450] sm:$0xff]
        %v376 = vld [vmem:[%s177 + $0x458] sm:$0xff]
        %v377 = vld [vmem:[%s177 + $0x460] sm:$0xff]
        %v378 = vld [vmem:[%s177 + $0x468] sm:$0xff]
        %v379 = vld [vmem:[%s177 + $0x470] sm:$0xff]
        %v380 = vld [vmem:[%s177 + $0x478] sm:$0xff]
        %v381 = vld [vmem:[%s177 + $0x480] sm:$0xff]
        %v382 = vld [vmem:[%s177 + $0x488] sm:$0xff]
        %v383 = vld [vmem:[%s177 + $0x490] sm:$0xff]
        %v384 = vld [vmem:[%s177 + $0x498] sm:$0xff]
        %v385 = vld [vmem:[%s177 + $0x4a0] sm:$0xff]
        %v386 = vld [vmem:[%s177 + $0x4a8] sm:$0xff]
        %v387 = vld [vmem:[%s177 + $0x4b0] sm:$0xff]
        %v388 = vld [vmem:[%s177 + $0x4b8] sm:$0xff]
        %v389 = vld [vmem:[%s177 + $0x4c0] sm:$0xff]
        %v390 = vld [vmem:[%s177 + $0x4c8] sm:$0xff]
        %v391 = vld [vmem:[%s177 + $0x4d0] sm:$0xff]
        %v392 = vld [vmem:[%s177 + $0x4d8] sm:$0xff]
        %v393 = vld [vmem:[%s177 + $0x4e0] sm:$0xff]
        %v394 = vld [vmem:[%s177 + $0x4e8] sm:$0xff]
        %v395 = vld [vmem:[%s177 + $0x4f0] sm:$0xff]
        %v396 = vld [vmem:[%s177 + $0x4f8] sm:$0xff]
        %v397 = vld [vmem:[%s177 + $0x500] sm:$0xff]
        %v398 = vld [vmem:[%s177 + $0x508] sm:$0xff]
        %v399 = vld [vmem:[%s177 + $0x510] sm:$0xff]
        %v400 = vld [vmem:[%s177 + $0x518] sm:$0xff]
        %v401 = vld [vmem:[%s177 + $0x520] sm:$0xff]
        %v402 = vld [vmem:[%s177 + $0x528] sm:$0xff]
        %v403 = vld [vmem:[%s177 + $0x530] sm:$0xff]
        %v404 = vld [vmem:[%s177 + $0x538] sm:$0xff]
        %v405 = vld [vmem:[%s177 + $0x540] sm:$0xff]
        %v406 = vld [vmem:[%s177 + $0x548] sm:$0xff]
        %v407 = vld [vmem:[%s177 + $0x550] sm:$0xff]
        %v408 = vld [vmem:[%s177 + $0x558] sm:$0xff]
        %v409 = vld [vmem:[%s177 + $0x560] sm:$0xff]
        %v410 = vld [vmem:[%s177 + $0x568] sm:$0xff]
        %v411 = vld [vmem:[%s177 + $0x570] sm:$0xff]
        %v412 = vld [vmem:[%s177 + $0x578] sm:$0xff]
        %v413 = vld [vmem:[%s177 + $0x580] sm:$0xff]
        %v414 = vld [vmem:[%s177 + $0x588] sm:$0xff]
        %v415 = vld [vmem:[%s177 + $0x590] sm:$0xff]
        %v416 = vld [vmem:[%s177 + $0x598] sm:$0xff]
        %v417 = vld [vmem:[%s177 + $0x5a0] sm:$0xff]
        %v418 = vld [vmem:[%s177 + $0x5a8] sm:$0xff]
        %v419 = vld [vmem:[%s177 + $0x5b0] sm:$0xff]
        %v420 = vld [vmem:[%s177 + $0x5b8] sm:$0xff]
        %v421 = vld [vmem:[%s177 + $0x5c0] sm:$0xff]
        %v422 = vld [vmem:[%s177 + $0x5c8] sm:$0xff]
        %v423 = vld [vmem:[%s177 + $0x5d0] sm:$0xff]
        %v424 = vld [vmem:[%s177 + $0x5d8] sm:$0xff]
        %v425 = vld [vmem:[%s177 + $0x5e0] sm:$0xff]
        %v426 = vld [vmem:[%s177 + $0x5e8] sm:$0xff]
        %v427 = vld [vmem:[%s177 + $0x5f0] sm:$0xff]
        %v428 = vld [vmem:[%s177 + $0x5f8] sm:$0xff]
        %v429 = vld [vmem:[%s177 + $0x600] sm:$0xff]
        %v430 = vld [vmem:[%s177 + $0x608] sm:$0xff]
        %v431 = vld [vmem:[%s177 + $0x610] sm:$0xff]
        %v432 = vld [vmem:[%s177 + $0x618] sm:$0xff]
        %v433 = vld [vmem:[%s177 + $0x620] sm:$0xff]
        %v434 = vld [vmem:[%s177 + $0x628] sm:$0xff]
        %v435 = vld [vmem:[%s177 + $0x630] sm:$0xff]
        %v436 = vld [vmem:[%s177 + $0x638] sm:$0xff]
        %v437 = vld [vmem:[%s177 + $0x640] sm:$0xff]
        %v438 = vld [vmem:[%s177 + $0x648] sm:$0xff]
        %v439 = vld [vmem:[%s177 + $0x650] sm:$0xff]
        %v440 = vld [vmem:[%s177 + $0x658] sm:$0xff]
        %v441 = vld [vmem:[%s177 + $0x660] sm:$0xff]
        %v442 = vld [vmem:[%s177 + $0x668] sm:$0xff]
        %v443 = vld [vmem:[%s177 + $0x670] sm:$0xff]
        %v444 = vld [vmem:[%s177 + $0x678] sm:$0xff]
        %v445 = vld [vmem:[%s177 + $0x680] sm:$0xff]
        %v446 = vld [vmem:[%s177 + $0x688] sm:$0xff]
        %v447 = vld [vmem:[%s177 + $0x690] sm:$0xff]
        %v448 = vld [vmem:[%s177 + $0x698] sm:$0xff]
        %v449 = vld [vmem:[%s177 + $0x6a0] sm:$0xff]
        %v450 = vld [vmem:[%s177 + $0x6a8] sm:$0xff]
        %v451 = vld [vmem:[%s177 + $0x6b0] sm:$0xff]
        %v452 = vld [vmem:[%s177 + $0x6b8] sm:$0xff]
        %v453 = vld [vmem:[%s177 + $0x6c0] sm:$0xff]
        %v454 = vld [vmem:[%s177 + $0x6c8] sm:$0xff]
        %v455 = vld [vmem:[%s177 + $0x6d0] sm:$0xff]
        %v456 = vld [vmem:[%s177 + $0x6d8] sm:$0xff]
        %v457 = vld [vmem:[%s177 + $0x6e0] sm:$0xff]
        %v458 = vld [vmem:[%s177 + $0x6e8] sm:$0xff]
        %v459 = vld [vmem:[%s177 + $0x6f0] sm:$0xff]
        %v460 = vld [vmem:[%s177 + $0x6f8] sm:$0xff]
        %v461 = vld [vmem:[%s177 + $0x700] sm:$0xff]
        %v462 = vld [vmem:[%s177 + $0x708] sm:$0xff]
        %v463 = vld [vmem:[%s177 + $0x710] sm:$0xff]
        %v464 = vld [vmem:[%s177 + $0x718] sm:$0xff]
        %v465 = vld [vmem:[%s177 + $0x720] sm:$0xff]
        %v466 = vld [vmem:[%s177 + $0x728] sm:$0xff]
        %v467 = vld [vmem:[%s177 + $0x730] sm:$0xff]
        %v468 = vld [vmem:[%s177 + $0x738] sm:$0xff]
        %v469 = vld [vmem:[%s177 + $0x740] sm:$0xff]
        %v470 = vld [vmem:[%s177 + $0x748] sm:$0xff]
        %v471 = vld [vmem:[%s177 + $0x750] sm:$0xff]
        %v472 = vld [vmem:[%s177 + $0x758] sm:$0xff]
        %v473 = vld [vmem:[%s177 + $0x760] sm:$0xff]
        %v474 = vld [vmem:[%s177 + $0x768] sm:$0xff]
        %v475 = vld [vmem:[%s177 + $0x770] sm:$0xff]
        %v476 = vld [vmem:[%s177 + $0x778] sm:$0xff]
        %v477 = vld [vmem:[%s177 + $0x780] sm:$0xff]
        %v478 = vld [vmem:[%s177 + $0x788] sm:$0xff]
        %v479 = vld [vmem:[%s177 + $0x790] sm:$0xff]
        %v480 = vld [vmem:[%s177 + $0x798] sm:$0xff]
        %v481 = vld [vmem:[%s177 + $0x7a0] sm:$0xff]
        %v482 = vld [vmem:[%s177 + $0x7a8] sm:$0xff]
        %v483 = vld [vmem:[%s177 + $0x7b0] sm:$0xff]
        %v484 = vld [vmem:[%s177 + $0x7b8] sm:$0xff]
        %v485 = vld [vmem:[%s177 + $0x7c0] sm:$0xff]
        %v486 = vld [vmem:[%s177 + $0x7c8] sm:$0xff]
        %v487 = vld [vmem:[%s177 + $0x7d0] sm:$0xff]
        %v488 = vld [vmem:[%s177 + $0x7d8] sm:$0xff]
        %v489 = vld [vmem:[%s177 + $0x7e0] sm:$0xff]
        %v490 = vld [vmem:[%s177 + $0x7e8] sm:$0xff]
        %v491 = vld [vmem:[%s177 + $0x7f0] sm:$0xff]
        %v492 = vld [vmem:[%s177 + $0x7f8] sm:$0xff]
        %v493 = vld [vmem:[%s177 + $0x800] sm:$0xff]
        %v494 = vld [vmem:[%s177 + $0x808] sm:$0xff]
        %v495 = vld [vmem:[%s177 + $0x810] sm:$0xff]
        %v496 = vld [vmem:[%s177 + $0x818] sm:$0xff]
        %v497 = vld [vmem:[%s177 + $0x820] sm:$0xff]
        %v498 = vld [vmem:[%s177 + $0x828] sm:$0xff]
        %v499 = vld [vmem:[%s177 + $0x830] sm:$0xff]
        %v500 = vld [vmem:[%s177 + $0x838] sm:$0xff]
        %v501 = vld [vmem:[%s177 + $0x840] sm:$0xff]
        %v502 = vld [vmem:[%s177 + $0x848] sm:$0xff]
        %v503 = vld [vmem:[%s177 + $0x850] sm:$0xff]
        %v504 = vld [vmem:[%s177 + $0x858] sm:$0xff]
        %v505 = vld [vmem:[%s177 + $0x860] sm:$0xff]
        %v506 = vld [vmem:[%s177 + $0x868] sm:$0xff]
        %v507 = vld [vmem:[%s177 + $0x870] sm:$0xff]
        %v508 = vld [vmem:[%s177 + $0x878] sm:$0xff]
        %v509 = vld [vmem:[%s177 + $0x880] sm:$0xff]
        %v510 = vld [vmem:[%s177 + $0x888] sm:$0xff]
        %v511 = vld [vmem:[%s177 + $0x890] sm:$0xff]
        %v512 = vld [vmem:[%s177 + $0x898] sm:$0xff]
        %v513 = vld [vmem:[%s177 + $0x8a0] sm:$0xff]
        %v514 = vld [vmem:[%s177 + $0x8a8] sm:$0xff]
        %v515 = vld [vmem:[%s177 + $0x8b0] sm:$0xff]
        %v516 = vld [vmem:[%s177 + $0x8b8] sm:$0xff]
        %v517 = vld [vmem:[%s177 + $0x8c0] sm:$0xff]
        %v518 = vld [vmem:[%s177 + $0x8c8] sm:$0xff]
        %v519 = vld [vmem:[%s177 + $0x8d0] sm:$0xff]
        %v520 = vld [vmem:[%s177 + $0x8d8] sm:$0xff]
        %v521 = vld [vmem:[%s177 + $0x8e0] sm:$0xff]
        %v522 = vld [vmem:[%s177 + $0x8e8] sm:$0xff]
        %v523 = vld [vmem:[%s177 + $0x8f0] sm:$0xff]
        %v524 = vld [vmem:[%s177 + $0x8f8] sm:$0xff]
        %v525 = vld [vmem:[%s177 + $0x900] sm:$0xff]
        %v526 = vld [vmem:[%s177 + $0x908] sm:$0xff]
        %v527 = vld [vmem:[%s177 + $0x910] sm:$0xff]
        %v528 = vld [vmem:[%s177 + $0x918] sm:$0xff]
        %v529 = vld [vmem:[%s177 + $0x920] sm:$0xff]
        %v530 = vld [vmem:[%s177 + $0x928] sm:$0xff]
        %v531 = vld [vmem:[%s177 + $0x930] sm:$0xff]
        %v532 = vld [vmem:[%s177 + $0x938] sm:$0xff]
        %v533 = vld [vmem:[%s177 + $0x940] sm:$0xff]
        %v534 = vld [vmem:[%s177 + $0x948] sm:$0xff]
        %v535 = vld [vmem:[%s177 + $0x950] sm:$0xff]
        %v536 = vld [vmem:[%s177 + $0x958] sm:$0xff]
        %v537 = vld [vmem:[%s177 + $0x960] sm:$0xff]
        %v538 = vld [vmem:[%s177 + $0x968] sm:$0xff]
        %v539 = vld [vmem:[%s177 + $0x970] sm:$0xff]
        %v540 = vld [vmem:[%s177 + $0x978] sm:$0xff]
        %v541 = vld [vmem:[%s177 + $0x980] sm:$0xff]
        %v542 = vld [vmem:[%s177 + $0x988] sm:$0xff]
        %v543 = vld [vmem:[%s177 + $0x990] sm:$0xff]
        %v544 = vld [vmem:[%s177 + $0x998] sm:$0xff]
        %v545 = vld [vmem:[%s177 + $0x9a0] sm:$0xff]
        %v546 = vld [vmem:[%s177 + $0x9a8] sm:$0xff]
        %v547 = vld [vmem:[%s177 + $0x9b0] sm:$0xff]
        %v548 = vld [vmem:[%s177 + $0x9b8] sm:$0xff]
        %v549 = vld [vmem:[%s177 + $0x9c0] sm:$0xff]
        %v550 = vld [vmem:[%s177 + $0x9c8] sm:$0xff]
        %v551 = vld [vmem:[%s177 + $0x9d0] sm:$0xff]
        %v552 = vld [vmem:[%s177 + $0x9d8] sm:$0xff]
        %v553 = vld [vmem:[%s177 + $0x9e0] sm:$0xff]
        %v554 = vld [vmem:[%s177 + $0x9e8] sm:$0xff]
        %v555 = vld [vmem:[%s177 + $0x9f0] sm:$0xff]
        %v556 = vld [vmem:[%s177 + $0x9f8] sm:$0xff]
        %v557 = vld [vmem:[%s177 + $0xa00] sm:$0xff]
        %v558 = vld [vmem:[%s177 + $0xa08] sm:$0xff]
        %v559 = vld [vmem:[%s177 + $0xa10] sm:$0xff]
        %v560 = vld [vmem:[%s177 + $0xa18] sm:$0xff]
        %v561 = vld [vmem:[%s177 + $0xa20] sm:$0xff]
        %v562 = vld [vmem:[%s177 + $0xa28] sm:$0xff]
        %v563 = vld [vmem:[%s177 + $0xa30] sm:$0xff]
        %v564 = vld [vmem:[%s177 + $0xa38] sm:$0xff]
        %v565 = vld [vmem:[%s177 + $0xa40] sm:$0xff]
        %v566 = vld [vmem:[%s177 + $0xa48] sm:$0xff]
        %v567 = vld [vmem:[%s177 + $0xa50] sm:$0xff]
        %v568 = vld [vmem:[%s177 + $0xa58] sm:$0xff]
        %v569 = vld [vmem:[%s177 + $0xa60] sm:$0xff]
        %v570 = vld [vmem:[%s177 + $0xa68] sm:$0xff]
        %v571 = vld [vmem:[%s177 + $0xa70] sm:$0xff]
        %v572 = vld [vmem:[%s177 + $0xa78] sm:$0xff]
        %v573 = vld [vmem:[%s177 + $0xa80] sm:$0xff]
        %v574 = vld [vmem:[%s177 + $0xa88] sm:$0xff]
        %v575 = vld [vmem:[%s177 + $0xa90] sm:$0xff]
        %v576 = vld [vmem:[%s177 + $0xa98] sm:$0xff]
        %v577 = vld [vmem:[%s177 + $0xaa0] sm:$0xff]
        %v578 = vld [vmem:[%s177 + $0xaa8] sm:$0xff]
        %v579 = vld [vmem:[%s177 + $0xab0] sm:$0xff]
        %v580 = vld [vmem:[%s177 + $0xab8] sm:$0xff]
        %v581 = vld [vmem:[%s177 + $0xac0] sm:$0xff]
        %v582 = vld [vmem:[%s177 + $0xac8] sm:$0xff]
        %v583 = vld [vmem:[%s177 + $0xad0] sm:$0xff]
        %v584 = vld [vmem:[%s177 + $0xad8] sm:$0xff]
        %v585 = vld [vmem:[%s177 + $0xae0] sm:$0xff]
        %v586 = vld [vmem:[%s177 + $0xae8] sm:$0xff]
        %v587 = vld [vmem:[%s177 + $0xaf0] sm:$0xff]
        %v588 = vld [vmem:[%s177 + $0xaf8] sm:$0xff]
        %v589 = vld [vmem:[%s177 + $0xb00] sm:$0xff]
        %v590 = vld [vmem:[%s177 + $0xb08] sm:$0xff]
        %v591 = vld [vmem:[%s177 + $0xb10] sm:$0xff]
        %v592 = vld [vmem:[%s177 + $0xb18] sm:$0xff]
        %v593 = vld [vmem:[%s177 + $0xb20] sm:$0xff]
        %v594 = vld [vmem:[%s177 + $0xb28] sm:$0xff]
        %v595 = vld [vmem:[%s177 + $0xb30] sm:$0xff]
        %v596 = vld [vmem:[%s177 + $0xb38] sm:$0xff]
        %v597 = vld [vmem:[%s177 + $0xb40] sm:$0xff]
        %v598 = vld [vmem:[%s177 + $0xb48] sm:$0xff]
        %v599 = vld [vmem:[%s177 + $0xb50] sm:$0xff]
        %v600 = vld [vmem:[%s177 + $0xb58] sm:$0xff]
        %v601 = vld [vmem:[%s177 + $0xb60] sm:$0xff]
        %v602 = vld [vmem:[%s177 + $0xb68] sm:$0xff]
        %v603 = vld [vmem:[%s177 + $0xb70] sm:$0xff]
        %v604 = vld [vmem:[%s177 + $0xb78] sm:$0xff]
        %v605 = vld [vmem:[%s177 + $0xb80] sm:$0xff]
        %v606 = vld [vmem:[%s177 + $0xb88] sm:$0xff]
        %v607 = vld [vmem:[%s177 + $0xb90] sm:$0xff]
        %v608 = vld [vmem:[%s177 + $0xb98] sm:$0xff]
        %v609 = vld [vmem:[%s177 + $0xba0] sm:$0xff]
        %v610 = vld [vmem:[%s177 + $0xba8] sm:$0xff]
        %v611 = vld [vmem:[%s177 + $0xbb0] sm:$0xff]
        %v612 = vld [vmem:[%s177 + $0xbb8] sm:$0xff]
        %v613 = vld [vmem:[%s177 + $0xbc0] sm:$0xff]
        %v614 = vld [vmem:[%s177 + $0xbc8] sm:$0xff]
        %v615 = vld [vmem:[%s177 + $0xbd0] sm:$0xff]
        %v616 = vld [vmem:[%s177 + $0xbd8] sm:$0xff]
        %v617 = vld [vmem:[%s177 + $0xbe0] sm:$0xff]
        %v618 = vld [vmem:[%s177 + $0xbe8] sm:$0xff]
        %v619 = vld [vmem:[%s177 + $0xbf0] sm:$0xff]
        %v620 = vld [vmem:[%s177 + $0xbf8] sm:$0xff]
        %v621 = vld [vmem:[%s177 + $0xc00] sm:$0xff]
        %v622 = vld [vmem:[%s177 + $0xc08] sm:$0xff]
        %v623 = vld [vmem:[%s177 + $0xc10] sm:$0xff]
        %v624 = vld [vmem:[%s177 + $0xc18] sm:$0xff]
        %v625 = vld [vmem:[%s177 + $0xc20] sm:$0xff]
        %v626 = vld [vmem:[%s177 + $0xc28] sm:$0xff]
        %v627 = vld [vmem:[%s177 + $0xc30] sm:$0xff]
        %v628 = vld [vmem:[%s177 + $0xc38] sm:$0xff]
        %v629 = vld [vmem:[%s177 + $0xc40] sm:$0xff]
        %v630 = vld [vmem:[%s177 + $0xc48] sm:$0xff]
        %v631 = vld [vmem:[%s177 + $0xc50] sm:$0xff]
        %v632 = vld [vmem:[%s177 + $0xc58] sm:$0xff]
        %v633 = vld [vmem:[%s177 + $0xc60] sm:$0xff]
        %v634 = vld [vmem:[%s177 + $0xc68] sm:$0xff]
        %v635 = vld [vmem:[%s177 + $0xc70] sm:$0xff]
        %v636 = vld [vmem:[%s177 + $0xc78] sm:$0xff]
        %v637 = vld [vmem:[%s177 + $0xc80] sm:$0xff]
        %v638 = vld [vmem:[%s177 + $0xc88] sm:$0xff]
        %v639 = vld [vmem:[%s177 + $0xc90] sm:$0xff]
        %v640 = vld [vmem:[%s177 + $0xc98] sm:$0xff]
        %v641 = vld [vmem:[%s177 + $0xca0] sm:$0xff]
        %v642 = vld [vmem:[%s177 + $0xca8] sm:$0xff]
        %v643 = vld [vmem:[%s177 + $0xcb0] sm:$0xff]
        %v644 = vld [vmem:[%s177 + $0xcb8] sm:$0xff]
        %v645 = vld [vmem:[%s177 + $0xcc0] sm:$0xff]
        %v646 = vld [vmem:[%s177 + $0xcc8] sm:$0xff]
        %v647 = vld [vmem:[%s177 + $0xcd0] sm:$0xff]
        %v648 = vld [vmem:[%s177 + $0xcd8] sm:$0xff]
        %v649 = vld [vmem:[%s177 + $0xce0] sm:$0xff]
        %v650 = vld [vmem:[%s177 + $0xce8] sm:$0xff]
        %v651 = vld [vmem:[%s177 + $0xcf0] sm:$0xff]
        %v652 = vld [vmem:[%s177 + $0xcf8] sm:$0xff]
        %v653 = vld [vmem:[%s177 + $0xd00] sm:$0xff]
        %v654 = vld [vmem:[%s177 + $0xd08] sm:$0xff]
        %v655 = vld [vmem:[%s177 + $0xd10] sm:$0xff]
        %v656 = vld [vmem:[%s177 + $0xd18] sm:$0xff]
        %v657 = vld [vmem:[%s177 + $0xd20] sm:$0xff]
        %v658 = vld [vmem:[%s177 + $0xd28] sm:$0xff]
        %v659 = vld [vmem:[%s177 + $0xd30] sm:$0xff]
        %v660 = vld [vmem:[%s177 + $0xd38] sm:$0xff]
        %v661 = vld [vmem:[%s177 + $0xd40] sm:$0xff]
        %v662 = vld [vmem:[%s177 + $0xd48] sm:$0xff]
        %v663 = vld [vmem:[%s177 + $0xd50] sm:$0xff]
        %v664 = vld [vmem:[%s177 + $0xd58] sm:$0xff]
        %v665 = vld [vmem:[%s177 + $0xd60] sm:$0xff]
        %v666 = vld [vmem:[%s177 + $0xd68] sm:$0xff]
        %v667 = vld [vmem:[%s177 + $0xd70] sm:$0xff]
        %v668 = vld [vmem:[%s177 + $0xd78] sm:$0xff]
        %v669 = vld [vmem:[%s177 + $0xd80] sm:$0xff]
        %v670 = vld [vmem:[%s177 + $0xd88] sm:$0xff]
        %v671 = vld [vmem:[%s177 + $0xd90] sm:$0xff]
        %v672 = vld [vmem:[%s177 + $0xd98] sm:$0xff]
        %v673 = vld [vmem:[%s177 + $0xda0] sm:$0xff]
        %v674 = vld [vmem:[%s177 + $0xda8] sm:$0xff]
        %v675 = vld [vmem:[%s177 + $0xdb0] sm:$0xff]
        %v676 = vld [vmem:[%s177 + $0xdb8] sm:$0xff]
        %v677 = vld [vmem:[%s177 + $0xdc0] sm:$0xff]
        %v678 = vld [vmem:[%s177 + $0xdc8] sm:$0xff]
        %v679 = vld [vmem:[%s177 + $0xdd0] sm:$0xff]
        %v680 = vld [vmem:[%s177 + $0xdd8] sm:$0xff]
        %v681 = vld [vmem:[%s177 + $0xde0] sm:$0xff]
        %v682 = vld [vmem:[%s177 + $0xde8] sm:$0xff]
        %v683 = vld [vmem:[%s177 + $0xdf0] sm:$0xff]
        %v684 = vld [vmem:[%s177 + $0xdf8] sm:$0xff]
        %v685 = vld [vmem:[%s177 + $0xe00] sm:$0xff]
        %v686 = vld [vmem:[%s177 + $0xe08] sm:$0xff]
        %v687 = vld [vmem:[%s177 + $0xe10] sm:$0xff]
        %v688 = vld [vmem:[%s177 + $0xe18] sm:$0xff]
        %v689 = vld [vmem:[%s177 + $0xe20] sm:$0xff]
        %v690 = vld [vmem:[%s177 + $0xe28] sm:$0xff]
        %v691 = vld [vmem:[%s177 + $0xe30] sm:$0xff]
        %v692 = vld [vmem:[%s177 + $0xe38] sm:$0xff]
        %v693 = vld [vmem:[%s177 + $0xe40] sm:$0xff]
        %v694 = vld [vmem:[%s177 + $0xe48] sm:$0xff]
        %v695 = vld [vmem:[%s177 + $0xe50] sm:$0xff]
        %v696 = vld [vmem:[%s177 + $0xe58] sm:$0xff]
        %v697 = vld [vmem:[%s177 + $0xe60] sm:$0xff]
        %v698 = vld [vmem:[%s177 + $0xe68] sm:$0xff]
        %v699 = vld [vmem:[%s177 + $0xe70] sm:$0xff]
        %v700 = vld [vmem:[%s177 + $0xe78] sm:$0xff]
        %v701 = vld [vmem:[%s177 + $0xe80] sm:$0xff]
        %v702 = vld [vmem:[%s177 + $0xe88] sm:$0xff]
        %v703 = vld [vmem:[%s177 + $0xe90] sm:$0xff]
        %v704 = vld [vmem:[%s177 + $0xe98] sm:$0xff]
        %v705 = vld [vmem:[%s177 + $0xea0] sm:$0xff]
        %v706 = vld [vmem:[%s177 + $0xea8] sm:$0xff]
        %v707 = vld [vmem:[%s177 + $0xeb0] sm:$0xff]
        %v708 = vld [vmem:[%s177 + $0xeb8] sm:$0xff]
        %v709 = vld [vmem:[%s177 + $0xec0] sm:$0xff]
        %v710 = vld [vmem:[%s177 + $0xec8] sm:$0xff]
        %v711 = vld [vmem:[%s177 + $0xed0] sm:$0xff]
        %v712 = vld [vmem:[%s177 + $0xed8] sm:$0xff]
        %v713 = vld [vmem:[%s177 + $0xee0] sm:$0xff]
        %v714 = vld [vmem:[%s177 + $0xee8] sm:$0xff]
        %v715 = vld [vmem:[%s177 + $0xef0] sm:$0xff]
        %v716 = vld [vmem:[%s177 + $0xef8] sm:$0xff]
        %v717 = vld [vmem:[%s177 + $0xf00] sm:$0xff]
        %v718 = vld [vmem:[%s177 + $0xf08] sm:$0xff]
        %v719 = vld [vmem:[%s177 + $0xf10] sm:$0xff]
        %v720 = vld [vmem:[%s177 + $0xf18] sm:$0xff]
        %v721 = vld [vmem:[%s177 + $0xf20] sm:$0xff]
        %v722 = vld [vmem:[%s177 + $0xf28] sm:$0xff]
        %v723 = vld [vmem:[%s177 + $0xf30] sm:$0xff]
        %v724 = vld [vmem:[%s177 + $0xf38] sm:$0xff]
        %v725 = vld [vmem:[%s177 + $0xf40] sm:$0xff]
        %v726 = vld [vmem:[%s177 + $0xf48] sm:$0xff]
        %v727 = vld [vmem:[%s177 + $0xf50] sm:$0xff]
        %v728 = vld [vmem:[%s177 + $0xf58] sm:$0xff]
        %v729 = vld [vmem:[%s177 + $0xf60] sm:$0xff]
        %v730 = vld [vmem:[%s177 + $0xf68] sm:$0xff]
        %v731 = vld [vmem:[%s177 + $0xf70] sm:$0xff]
        %v732 = vld [vmem:[%s177 + $0xf78] sm:$0xff]
        %v733 = vld [vmem:[%s177 + $0xf80] sm:$0xff]
        %v734 = vld [vmem:[%s177 + $0xf88] sm:$0xff]
        %v735 = vld [vmem:[%s177 + $0xf90] sm:$0xff]
        %v736 = vld [vmem:[%s177 + $0xf98] sm:$0xff]
        %v737 = vld [vmem:[%s177 + $0xfa0] sm:$0xff]
        %v738 = vld [vmem:[%s177 + $0xfa8] sm:$0xff]
        %v739 = vld [vmem:[%s177 + $0xfb0] sm:$0xff]
        %v740 = vld [vmem:[%s177 + $0xfb8] sm:$0xff]
        %v741 = vld [vmem:[%s177 + $0xfc0] sm:$0xff]
        %v742 = vld [vmem:[%s177 + $0xfc8] sm:$0xff]
        %v743 = vld [vmem:[%s177 + $0xfd0] sm:$0xff]
        %v744 = vld [vmem:[%s177 + $0xfd8] sm:$0xff]
        %v745 = vld [vmem:[%s177 + $0xfe0] sm:$0xff]
        %v746 = vld [vmem:[%s177 + $0xfe8] sm:$0xff]
        %v747 = vld [vmem:[%s177 + $0xff0] sm:$0xff]
        %v748 = vld [vmem:[%s177 + $0xff8] sm:$0xff]
        %v749 = vunpack.c.0.s8 %v237
        %v750 = vunpack.c.0.s8 %v238
        %v751 = vunpack.c.0.s8 %v239
        %v752 = vunpack.c.0.s8 %v240
        %v753 = vunpack.c.0.s8 %v241
        %v754 = vunpack.c.0.s8 %v242
        %v755 = vunpack.c.0.s8 %v243
        %v756 = vunpack.c.0.s8 %v244
        %v757 = vunpack.c.1.s8 %v237
        %v758 = vunpack.c.1.s8 %v238
        %v759 = vunpack.c.1.s8 %v239
        %v760 = vunpack.c.1.s8 %v240
        %v761 = vunpack.c.1.s8 %v241
        %v762 = vunpack.c.1.s8 %v242
        %v763 = vunpack.c.1.s8 %v243
        %v764 = vunpack.c.1.s8 %v244
        %v765 = vunpack.c.2.s8 %v237
        %v766 = vunpack.c.2.s8 %v238
        %v767 = vunpack.c.2.s8 %v239
        %v768 = vunpack.c.2.s8 %v240
        %v769 = vunpack.c.2.s8 %v241
        %v770 = vunpack.c.2.s8 %v242
        %v771 = vunpack.c.2.s8 %v243
        %v772 = vunpack.c.2.s8 %v244
        %v773 = vunpack.c.3.s8 %v237
        %v774 = vunpack.c.3.s8 %v238
        %v775 = vunpack.c.3.s8 %v239
        %v776 = vunpack.c.3.s8 %v240
        %v777 = vunpack.c.3.s8 %v241
        %v778 = vunpack.c.3.s8 %v242
        %v779 = vunpack.c.3.s8 %v243
        %v780 = vunpack.c.3.s8 %v244
        %v781 = vunpack.c.0.s8 %v245
        %v782 = vunpack.c.0.s8 %v246
        %v783 = vunpack.c.0.s8 %v247
        %v784 = vunpack.c.0.s8 %v248
        %v785 = vunpack.c.0.s8 %v249
        %v786 = vunpack.c.0.s8 %v250
        %v787 = vunpack.c.0.s8 %v251
        %v788 = vunpack.c.0.s8 %v252
        %v789 = vunpack.c.1.s8 %v245
        %v790 = vunpack.c.1.s8 %v246
        %v791 = vunpack.c.1.s8 %v247
        %v792 = vunpack.c.1.s8 %v248
        %v793 = vunpack.c.1.s8 %v249
        %v794 = vunpack.c.1.s8 %v250
        %v795 = vunpack.c.1.s8 %v251
        %v796 = vunpack.c.1.s8 %v252
        %v797 = vunpack.c.2.s8 %v245
        %v798 = vunpack.c.2.s8 %v246
        %v799 = vunpack.c.2.s8 %v247
        %v800 = vunpack.c.2.s8 %v248
        %v801 = vunpack.c.2.s8 %v249
        %v802 = vunpack.c.2.s8 %v250
        %v803 = vunpack.c.2.s8 %v251
        %v804 = vunpack.c.2.s8 %v252
        %v805 = vunpack.c.3.s8 %v245
        %v806 = vunpack.c.3.s8 %v246
        %v807 = vunpack.c.3.s8 %v247
        %v808 = vunpack.c.3.s8 %v248
        %v809 = vunpack.c.3.s8 %v249
        %v810 = vunpack.c.3.s8 %v250
        %v811 = vunpack.c.3.s8 %v251
        %v812 = vunpack.c.3.s8 %v252
        %v813 = vunpack.c.0.s8 %v253
        %v814 = vunpack.c.0.s8 %v254
        %v815 = vunpack.c.0.s8 %v255
        %v816 = vunpack.c.0.s8 %v256
        %v817 = vunpack.c.0.s8 %v257
        %v818 = vunpack.c.0.s8 %v258
        %v819 = vunpack.c.0.s8 %v259
        %v820 = vunpack.c.0.s8 %v260
        %v821 = vunpack.c.1.s8 %v253
        %v822 = vunpack.c.1.s8 %v254
        %v823 = vunpack.c.1.s8 %v255
        %v824 = vunpack.c.1.s8 %v256
        %v825 = vunpack.c.1.s8 %v257
        %v826 = vunpack.c.1.s8 %v258
        %v827 = vunpack.c.1.s8 %v259
        %v828 = vunpack.c.1.s8 %v260
        %v829 = vunpack.c.2.s8 %v253
        %v830 = vunpack.c.2.s8 %v254
        %v831 = vunpack.c.2.s8 %v255
        %v832 = vunpack.c.2.s8 %v256
        %v833 = vunpack.c.2.s8 %v257
        %v834 = vunpack.c.2.s8 %v258
        %v835 = vunpack.c.2.s8 %v259
        %v836 = vunpack.c.2.s8 %v260
        %v837 = vunpack.c.3.s8 %v253
        %v838 = vunpack.c.3.s8 %v254
        %v839 = vunpack.c.3.s8 %v255
        %v840 = vunpack.c.3.s8 %v256
        %v841 = vunpack.c.3.s8 %v257
        %v842 = vunpack.c.3.s8 %v258
        %v843 = vunpack.c.3.s8 %v259
        %v844 = vunpack.c.3.s8 %v260
        %v845 = vunpack.c.0.s8 %v261
        %v846 = vunpack.c.0.s8 %v262
        %v847 = vunpack.c.0.s8 %v263
        %v848 = vunpack.c.0.s8 %v264
        %v849 = vunpack.c.0.s8 %v265
        %v850 = vunpack.c.0.s8 %v266
        %v851 = vunpack.c.0.s8 %v267
        %v852 = vunpack.c.0.s8 %v268
        %v853 = vunpack.c.1.s8 %v261
        %v854 = vunpack.c.1.s8 %v262
        %v855 = vunpack.c.1.s8 %v263
        %v856 = vunpack.c.1.s8 %v264
        %v857 = vunpack.c.1.s8 %v265
        %v858 = vunpack.c.1.s8 %v266
        %v859 = vunpack.c.1.s8 %v267
        %v860 = vunpack.c.1.s8 %v268
        %v861 = vunpack.c.2.s8 %v261
        %v862 = vunpack.c.2.s8 %v262
        %v863 = vunpack.c.2.s8 %v263
        %v864 = vunpack.c.2.s8 %v264
        %v865 = vunpack.c.2.s8 %v265
        %v866 = vunpack.c.2.s8 %v266
        %v867 = vunpack.c.2.s8 %v267
        %v868 = vunpack.c.2.s8 %v268
        %v869 = vunpack.c.3.s8 %v261
        %v870 = vunpack.c.3.s8 %v262
        %v871 = vunpack.c.3.s8 %v263
        %v872 = vunpack.c.3.s8 %v264
        %v873 = vunpack.c.3.s8 %v265
        %v874 = vunpack.c.3.s8 %v266
        %v875 = vunpack.c.3.s8 %v267
        %v876 = vunpack.c.3.s8 %v268
        %v877 = vunpack.c.0.s8 %v269
        %v878 = vunpack.c.0.s8 %v270
        %v879 = vunpack.c.0.s8 %v271
        %v880 = vunpack.c.0.s8 %v272
        %v881 = vunpack.c.0.s8 %v273
        %v882 = vunpack.c.0.s8 %v274
        %v883 = vunpack.c.0.s8 %v275
        %v884 = vunpack.c.0.s8 %v276
        %v885 = vunpack.c.1.s8 %v269
        %v886 = vunpack.c.1.s8 %v270
        %v887 = vunpack.c.1.s8 %v271
        %v888 = vunpack.c.1.s8 %v272
        %v889 = vunpack.c.1.s8 %v273
        %v890 = vunpack.c.1.s8 %v274
        %v891 = vunpack.c.1.s8 %v275
        %v892 = vunpack.c.1.s8 %v276
        %v893 = vunpack.c.2.s8 %v269
        %v894 = vunpack.c.2.s8 %v270
        %v895 = vunpack.c.2.s8 %v271
        %v896 = vunpack.c.2.s8 %v272
        %v897 = vunpack.c.2.s8 %v273
        %v898 = vunpack.c.2.s8 %v274
        %v899 = vunpack.c.2.s8 %v275
        %v900 = vunpack.c.2.s8 %v276
        %v901 = vunpack.c.3.s8 %v269
        %v902 = vunpack.c.3.s8 %v270
        %v903 = vunpack.c.3.s8 %v271
        %v904 = vunpack.c.3.s8 %v272
        %v905 = vunpack.c.3.s8 %v273
        %v906 = vunpack.c.3.s8 %v274
        %v907 = vunpack.c.3.s8 %v275
        %v908 = vunpack.c.3.s8 %v276
        %v909 = vunpack.c.0.s8 %v277
        %v910 = vunpack.c.0.s8 %v278
        %v911 = vunpack.c.0.s8 %v279
        %v912 = vunpack.c.0.s8 %v280
        %v913 = vunpack.c.0.s8 %v281
        %v914 = vunpack.c.0.s8 %v282
        %v915 = vunpack.c.0.s8 %v283
        %v916 = vunpack.c.0.s8 %v284
        %v917 = vunpack.c.1.s8 %v277
        %v918 = vunpack.c.1.s8 %v278
        %v919 = vunpack.c.1.s8 %v279
        %v920 = vunpack.c.1.s8 %v280
        %v921 = vunpack.c.1.s8 %v281
        %v922 = vunpack.c.1.s8 %v282
        %v923 = vunpack.c.1.s8 %v283
        %v924 = vunpack.c.1.s8 %v284
        %v925 = vunpack.c.2.s8 %v277
        %v926 = vunpack.c.2.s8 %v278
        %v927 = vunpack.c.2.s8 %v279
        %v928 = vunpack.c.2.s8 %v280
        %v929 = vunpack.c.2.s8 %v281
        %v930 = vunpack.c.2.s8 %v282
        %v931 = vunpack.c.2.s8 %v283
        %v932 = vunpack.c.2.s8 %v284
        %v933 = vunpack.c.3.s8 %v277
        %v934 = vunpack.c.3.s8 %v278
        %v935 = vunpack.c.3.s8 %v279
        %v936 = vunpack.c.3.s8 %v280
        %v937 = vunpack.c.3.s8 %v281
        %v938 = vunpack.c.3.s8 %v282
        %v939 = vunpack.c.3.s8 %v283
        %v940 = vunpack.c.3.s8 %v284
        %v941 = vunpack.c.0.s8 %v285
        %v942 = vunpack.c.0.s8 %v286
        %v943 = vunpack.c.0.s8 %v287
        %v944 = vunpack.c.0.s8 %v288
        %v945 = vunpack.c.0.s8 %v289
        %v946 = vunpack.c.0.s8 %v290
        %v947 = vunpack.c.0.s8 %v291
        %v948 = vunpack.c.0.s8 %v292
        %v949 = vunpack.c.1.s8 %v285
        %v950 = vunpack.c.1.s8 %v286
        %v951 = vunpack.c.1.s8 %v287
        %v952 = vunpack.c.1.s8 %v288
        %v953 = vunpack.c.1.s8 %v289
        %v954 = vunpack.c.1.s8 %v290
        %v955 = vunpack.c.1.s8 %v291
        %v956 = vunpack.c.1.s8 %v292
        %v957 = vunpack.c.2.s8 %v285
        %v958 = vunpack.c.2.s8 %v286
        %v959 = vunpack.c.2.s8 %v287
        %v960 = vunpack.c.2.s8 %v288
        %v961 = vunpack.c.2.s8 %v289
        %v962 = vunpack.c.2.s8 %v290
        %v963 = vunpack.c.2.s8 %v291
        %v964 = vunpack.c.2.s8 %v292
        %v965 = vunpack.c.3.s8 %v285
        %v966 = vunpack.c.3.s8 %v286
        %v967 = vunpack.c.3.s8 %v287
        %v968 = vunpack.c.3.s8 %v288
        %v969 = vunpack.c.3.s8 %v289
        %v970 = vunpack.c.3.s8 %v290
        %v971 = vunpack.c.3.s8 %v291
        %v972 = vunpack.c.3.s8 %v292
        %v973 = vunpack.c.0.s8 %v293
        %v974 = vunpack.c.0.s8 %v294
        %v975 = vunpack.c.0.s8 %v295
        %v976 = vunpack.c.0.s8 %v296
        %v977 = vunpack.c.0.s8 %v297
        %v978 = vunpack.c.0.s8 %v298
        %v979 = vunpack.c.0.s8 %v299
        %v980 = vunpack.c.0.s8 %v300
        %v981 = vunpack.c.1.s8 %v293
        %v982 = vunpack.c.1.s8 %v294
        %v983 = vunpack.c.1.s8 %v295
        %v984 = vunpack.c.1.s8 %v296
        %v985 = vunpack.c.1.s8 %v297
        %v986 = vunpack.c.1.s8 %v298
        %v987 = vunpack.c.1.s8 %v299
        %v988 = vunpack.c.1.s8 %v300
        %v989 = vunpack.c.2.s8 %v293
        %v990 = vunpack.c.2.s8 %v294
        %v991 = vunpack.c.2.s8 %v295
        %v992 = vunpack.c.2.s8 %v296
        %v993 = vunpack.c.2.s8 %v297
        %v994 = vunpack.c.2.s8 %v298
        %v995 = vunpack.c.2.s8 %v299
        %v996 = vunpack.c.2.s8 %v300
        %v997 = vunpack.c.3.s8 %v293
        %v998 = vunpack.c.3.s8 %v294
        %v999 = vunpack.c.3.s8 %v295
        %v1000 = vunpack.c.3.s8 %v296
        %v1001 = vunpack.c.3.s8 %v297
        %v1002 = vunpack.c.3.s8 %v298
        %v1003 = vunpack.c.3.s8 %v299
        %v1004 = vunpack.c.3.s8 %v300
        %v1005 = vunpack.c.0.s8 %v301
        %v1006 = vunpack.c.0.s8 %v302
        %v1007 = vunpack.c.0.s8 %v303
        %v1008 = vunpack.c.0.s8 %v304
        %v1009 = vunpack.c.0.s8 %v305
        %v1010 = vunpack.c.0.s8 %v306
        %v1011 = vunpack.c.0.s8 %v307
        %v1012 = vunpack.c.0.s8 %v308
        %v1013 = vunpack.c.1.s8 %v301
        %v1014 = vunpack.c.1.s8 %v302
        %v1015 = vunpack.c.1.s8 %v303
        %v1016 = vunpack.c.1.s8 %v304
        %v1017 = vunpack.c.1.s8 %v305
        %v1018 = vunpack.c.1.s8 %v306
        %v1019 = vunpack.c.1.s8 %v307
        %v1020 = vunpack.c.1.s8 %v308
        %v1021 = vunpack.c.2.s8 %v301
        %v1022 = vunpack.c.2.s8 %v302
        %v1023 = vunpack.c.2.s8 %v303
        %v1024 = vunpack.c.2.s8 %v304
        %v1025 = vunpack.c.2.s8 %v305
        %v1026 = vunpack.c.2.s8 %v306
        %v1027 = vunpack.c.2.s8 %v307
        %v1028 = vunpack.c.2.s8 %v308
        %v1029 = vunpack.c.3.s8 %v301
        %v1030 = vunpack.c.3.s8 %v302
        %v1031 = vunpack.c.3.s8 %v303
        %v1032 = vunpack.c.3.s8 %v304
        %v1033 = vunpack.c.3.s8 %v305
        %v1034 = vunpack.c.3.s8 %v306
        %v1035 = vunpack.c.3.s8 %v307
        %v1036 = vunpack.c.3.s8 %v308
        %v1037 = vunpack.c.0.s8 %v309
        %v1038 = vunpack.c.0.s8 %v310
        %v1039 = vunpack.c.0.s8 %v311
        %v1040 = vunpack.c.0.s8 %v312
        %v1041 = vunpack.c.0.s8 %v313
        %v1042 = vunpack.c.0.s8 %v314
        %v1043 = vunpack.c.0.s8 %v315
        %v1044 = vunpack.c.0.s8 %v316
        %v1045 = vunpack.c.1.s8 %v309
        %v1046 = vunpack.c.1.s8 %v310
        %v1047 = vunpack.c.1.s8 %v311
        %v1048 = vunpack.c.1.s8 %v312
        %v1049 = vunpack.c.1.s8 %v313
        %v1050 = vunpack.c.1.s8 %v314
        %v1051 = vunpack.c.1.s8 %v315
        %v1052 = vunpack.c.1.s8 %v316
        %v1053 = vunpack.c.2.s8 %v309
        %v1054 = vunpack.c.2.s8 %v310
        %v1055 = vunpack.c.2.s8 %v311
        %v1056 = vunpack.c.2.s8 %v312
        %v1057 = vunpack.c.2.s8 %v313
        %v1058 = vunpack.c.2.s8 %v314
        %v1059 = vunpack.c.2.s8 %v315
        %v1060 = vunpack.c.2.s8 %v316
        %v1061 = vunpack.c.3.s8 %v309
        %v1062 = vunpack.c.3.s8 %v310
        %v1063 = vunpack.c.3.s8 %v311
        %v1064 = vunpack.c.3.s8 %v312
        %v1065 = vunpack.c.3.s8 %v313
        %v1066 = vunpack.c.3.s8 %v314
        %v1067 = vunpack.c.3.s8 %v315
        %v1068 = vunpack.c.3.s8 %v316
        %v1069 = vunpack.c.0.s8 %v317
        %v1070 = vunpack.c.0.s8 %v318
        %v1071 = vunpack.c.0.s8 %v319
        %v1072 = vunpack.c.0.s8 %v320
        %v1073 = vunpack.c.0.s8 %v321
        %v1074 = vunpack.c.0.s8 %v322
        %v1075 = vunpack.c.0.s8 %v323
        %v1076 = vunpack.c.0.s8 %v324
        %v1077 = vunpack.c.1.s8 %v317
        %v1078 = vunpack.c.1.s8 %v318
        %v1079 = vunpack.c.1.s8 %v319
        %v1080 = vunpack.c.1.s8 %v320
        %v1081 = vunpack.c.1.s8 %v321
        %v1082 = vunpack.c.1.s8 %v322
        %v1083 = vunpack.c.1.s8 %v323
        %v1084 = vunpack.c.1.s8 %v324
        %v1085 = vunpack.c.2.s8 %v317
        %v1086 = vunpack.c.2.s8 %v318
        %v1087 = vunpack.c.2.s8 %v319
        %v1088 = vunpack.c.2.s8 %v320
        %v1089 = vunpack.c.2.s8 %v321
        %v1090 = vunpack.c.2.s8 %v322
        %v1091 = vunpack.c.2.s8 %v323
        %v1092 = vunpack.c.2.s8 %v324
        %v1093 = vunpack.c.3.s8 %v317
        %v1094 = vunpack.c.3.s8 %v318
        %v1095 = vunpack.c.3.s8 %v319
        %v1096 = vunpack.c.3.s8 %v320
        %v1097 = vunpack.c.3.s8 %v321
        %v1098 = vunpack.c.3.s8 %v322
        %v1099 = vunpack.c.3.s8 %v323
        %v1100 = vunpack.c.3.s8 %v324
        %v1101 = vunpack.c.0.s8 %v325
        %v1102 = vunpack.c.0.s8 %v326
        %v1103 = vunpack.c.0.s8 %v327
        %v1104 = vunpack.c.0.s8 %v328
        %v1105 = vunpack.c.0.s8 %v329
        %v1106 = vunpack.c.0.s8 %v330
        %v1107 = vunpack.c.0.s8 %v331
        %v1108 = vunpack.c.0.s8 %v332
        %v1109 = vunpack.c.1.s8 %v325
        %v1110 = vunpack.c.1.s8 %v326
        %v1111 = vunpack.c.1.s8 %v327
        %v1112 = vunpack.c.1.s8 %v328
        %v1113 = vunpack.c.1.s8 %v329
        %v1114 = vunpack.c.1.s8 %v330
        %v1115 = vunpack.c.1.s8 %v331
        %v1116 = vunpack.c.1.s8 %v332
        %v1117 = vunpack.c.2.s8 %v325
        %v1118 = vunpack.c.2.s8 %v326
        %v1119 = vunpack.c.2.s8 %v327
        %v1120 = vunpack.c.2.s8 %v328
        %v1121 = vunpack.c.2.s8 %v329
        %v1122 = vunpack.c.2.s8 %v330
        %v1123 = vunpack.c.2.s8 %v331
        %v1124 = vunpack.c.2.s8 %v332
        %v1125 = vunpack.c.3.s8 %v325
        %v1126 = vunpack.c.3.s8 %v326
        %v1127 = vunpack.c.3.s8 %v327
        %v1128 = vunpack.c.3.s8 %v328
        %v1129 = vunpack.c.3.s8 %v329
        %v1130 = vunpack.c.3.s8 %v330
        %v1131 = vunpack.c.3.s8 %v331
        %v1132 = vunpack.c.3.s8 %v332
        %v1133 = vunpack.c.0.s8 %v333
        %v1134 = vunpack.c.0.s8 %v334
        %v1135 = vunpack.c.0.s8 %v335
        %v1136 = vunpack.c.0.s8 %v336
        %v1137 = vunpack.c.0.s8 %v337
        %v1138 = vunpack.c.0.s8 %v338
        %v1139 = vunpack.c.0.s8 %v339
        %v1140 = vunpack.c.0.s8 %v340
        %v1141 = vunpack.c.1.s8 %v333
        %v1142 = vunpack.c.1.s8 %v334
        %v1143 = vunpack.c.1.s8 %v335
        %v1144 = vunpack.c.1.s8 %v336
        %v1145 = vunpack.c.1.s8 %v337
        %v1146 = vunpack.c.1.s8 %v338
        %v1147 = vunpack.c.1.s8 %v339
        %v1148 = vunpack.c.1.s8 %v340
        %v1149 = vunpack.c.2.s8 %v333
        %v1150 = vunpack.c.2.s8 %v334
        %v1151 = vunpack.c.2.s8 %v335
        %v1152 = vunpack.c.2.s8 %v336
        %v1153 = vunpack.c.2.s8 %v337
        %v1154 = vunpack.c.2.s8 %v338
        %v1155 = vunpack.c.2.s8 %v339
        %v1156 = vunpack.c.2.s8 %v340
        %v1157 = vunpack.c.3.s8 %v333
        %v1158 = vunpack.c.3.s8 %v334
        %v1159 = vunpack.c.3.s8 %v335
        %v1160 = vunpack.c.3.s8 %v336
        %v1161 = vunpack.c.3.s8 %v337
        %v1162 = vunpack.c.3.s8 %v338
        %v1163 = vunpack.c.3.s8 %v339
        %v1164 = vunpack.c.3.s8 %v340
        %v1165 = vunpack.c.0.s8 %v341
        %v1166 = vunpack.c.0.s8 %v342
        %v1167 = vunpack.c.0.s8 %v343
        %v1168 = vunpack.c.0.s8 %v344
        %v1169 = vunpack.c.0.s8 %v345
        %v1170 = vunpack.c.0.s8 %v346
        %v1171 = vunpack.c.0.s8 %v347
        %v1172 = vunpack.c.0.s8 %v348
        %v1173 = vunpack.c.1.s8 %v341
        %v1174 = vunpack.c.1.s8 %v342
        %v1175 = vunpack.c.1.s8 %v343
        %v1176 = vunpack.c.1.s8 %v344
        %v1177 = vunpack.c.1.s8 %v345
        %v1178 = vunpack.c.1.s8 %v346
        %v1179 = vunpack.c.1.s8 %v347
        %v1180 = vunpack.c.1.s8 %v348
        %v1181 = vunpack.c.2.s8 %v341
        %v1182 = vunpack.c.2.s8 %v342
        %v1183 = vunpack.c.2.s8 %v343
        %v1184 = vunpack.c.2.s8 %v344
        %v1185 = vunpack.c.2.s8 %v345
        %v1186 = vunpack.c.2.s8 %v346
        %v1187 = vunpack.c.2.s8 %v347
        %v1188 = vunpack.c.2.s8 %v348
        %v1189 = vunpack.c.3.s8 %v341
        %v1190 = vunpack.c.3.s8 %v342
        %v1191 = vunpack.c.3.s8 %v343
        %v1192 = vunpack.c.3.s8 %v344
        %v1193 = vunpack.c.3.s8 %v345
        %v1194 = vunpack.c.3.s8 %v346
        %v1195 = vunpack.c.3.s8 %v347
        %v1196 = vunpack.c.3.s8 %v348
        %v1197 = vunpack.c.0.s8 %v349
        %v1198 = vunpack.c.0.s8 %v350
        %v1199 = vunpack.c.0.s8 %v351
        %v1200 = vunpack.c.0.s8 %v352
        %v1201 = vunpack.c.0.s8 %v353
        %v1202 = vunpack.c.0.s8 %v354
        %v1203 = vunpack.c.0.s8 %v355
        %v1204 = vunpack.c.0.s8 %v356
        %v1205 = vunpack.c.1.s8 %v349
        %v1206 = vunpack.c.1.s8 %v350
        %v1207 = vunpack.c.1.s8 %v351
        %v1208 = vunpack.c.1.s8 %v352
        %v1209 = vunpack.c.1.s8 %v353
        %v1210 = vunpack.c.1.s8 %v354
        %v1211 = vunpack.c.1.s8 %v355
        %v1212 = vunpack.c.1.s8 %v356
        %v1213 = vunpack.c.2.s8 %v349
        %v1214 = vunpack.c.2.s8 %v350
        %v1215 = vunpack.c.2.s8 %v351
        %v1216 = vunpack.c.2.s8 %v352
        %v1217 = vunpack.c.2.s8 %v353
        %v1218 = vunpack.c.2.s8 %v354
        %v1219 = vunpack.c.2.s8 %v355
        %v1220 = vunpack.c.2.s8 %v356
        %v1221 = vunpack.c.3.s8 %v349
        %v1222 = vunpack.c.3.s8 %v350
        %v1223 = vunpack.c.3.s8 %v351
        %v1224 = vunpack.c.3.s8 %v352
        %v1225 = vunpack.c.3.s8 %v353
        %v1226 = vunpack.c.3.s8 %v354
        %v1227 = vunpack.c.3.s8 %v355
        %v1228 = vunpack.c.3.s8 %v356
        %v1229 = vunpack.c.0.s8 %v357
        %v1230 = vunpack.c.0.s8 %v358
        %v1231 = vunpack.c.0.s8 %v359
        %v1232 = vunpack.c.0.s8 %v360
        %v1233 = vunpack.c.0.s8 %v361
        %v1234 = vunpack.c.0.s8 %v362
        %v1235 = vunpack.c.0.s8 %v363
        %v1236 = vunpack.c.0.s8 %v364
        %v1237 = vunpack.c.1.s8 %v357
        %v1238 = vunpack.c.1.s8 %v358
        %v1239 = vunpack.c.1.s8 %v359
        %v1240 = vunpack.c.1.s8 %v360
        %v1241 = vunpack.c.1.s8 %v361
        %v1242 = vunpack.c.1.s8 %v362
        %v1243 = vunpack.c.1.s8 %v363
        %v1244 = vunpack.c.1.s8 %v364
        %v1245 = vunpack.c.2.s8 %v357
        %v1246 = vunpack.c.2.s8 %v358
        %v1247 = vunpack.c.2.s8 %v359
        %v1248 = vunpack.c.2.s8 %v360
        %v1249 = vunpack.c.2.s8 %v361
        %v1250 = vunpack.c.2.s8 %v362
        %v1251 = vunpack.c.2.s8 %v363
        %v1252 = vunpack.c.2.s8 %v364
        %v1253 = vunpack.c.3.s8 %v357
        %v1254 = vunpack.c.3.s8 %v358
        %v1255 = vunpack.c.3.s8 %v359
        %v1256 = vunpack.c.3.s8 %v360
        %v1257 = vunpack.c.3.s8 %v361
        %v1258 = vunpack.c.3.s8 %v362
        %v1259 = vunpack.c.3.s8 %v363
        %v1260 = vunpack.c.3.s8 %v364
        %v1261 = vunpack.c.0.s8 %v365
        %v1262 = vunpack.c.0.s8 %v366
        %v1263 = vunpack.c.0.s8 %v367
        %v1264 = vunpack.c.0.s8 %v368
        %v1265 = vunpack.c.0.s8 %v369
        %v1266 = vunpack.c.0.s8 %v370
        %v1267 = vunpack.c.0.s8 %v371
        %v1268 = vunpack.c.0.s8 %v372
        %v1269 = vunpack.c.1.s8 %v365
        %v1270 = vunpack.c.1.s8 %v366
        %v1271 = vunpack.c.1.s8 %v367
        %v1272 = vunpack.c.1.s8 %v368
        %v1273 = vunpack.c.1.s8 %v369
        %v1274 = vunpack.c.1.s8 %v370
        %v1275 = vunpack.c.1.s8 %v371
        %v1276 = vunpack.c.1.s8 %v372
        %v1277 = vunpack.c.2.s8 %v365
        %v1278 = vunpack.c.2.s8 %v366
        %v1279 = vunpack.c.2.s8 %v367
        %v1280 = vunpack.c.2.s8 %v368
        %v1281 = vunpack.c.2.s8 %v369
        %v1282 = vunpack.c.2.s8 %v370
        %v1283 = vunpack.c.2.s8 %v371
        %v1284 = vunpack.c.2.s8 %v372
        %v1285 = vunpack.c.3.s8 %v365
        %v1286 = vunpack.c.3.s8 %v366
        %v1287 = vunpack.c.3.s8 %v367
        %v1288 = vunpack.c.3.s8 %v368
        %v1289 = vunpack.c.3.s8 %v369
        %v1290 = vunpack.c.3.s8 %v370
        %v1291 = vunpack.c.3.s8 %v371
        %v1292 = vunpack.c.3.s8 %v372
        %v1293 = vunpack.c.0.s8 %v373
        %v1294 = vunpack.c.0.s8 %v374
        %v1295 = vunpack.c.0.s8 %v375
        %v1296 = vunpack.c.0.s8 %v376
        %v1297 = vunpack.c.0.s8 %v377
        %v1298 = vunpack.c.0.s8 %v378
        %v1299 = vunpack.c.0.s8 %v379
        %v1300 = vunpack.c.0.s8 %v380
        %v1301 = vunpack.c.1.s8 %v373
        %v1302 = vunpack.c.1.s8 %v374
        %v1303 = vunpack.c.1.s8 %v375
        %v1304 = vunpack.c.1.s8 %v376
        %v1305 = vunpack.c.1.s8 %v377
        %v1306 = vunpack.c.1.s8 %v378
        %v1307 = vunpack.c.1.s8 %v379
        %v1308 = vunpack.c.1.s8 %v380
        %v1309 = vunpack.c.2.s8 %v373
        %v1310 = vunpack.c.2.s8 %v374
        %v1311 = vunpack.c.2.s8 %v375
        %v1312 = vunpack.c.2.s8 %v376
        %v1313 = vunpack.c.2.s8 %v377
        %v1314 = vunpack.c.2.s8 %v378
        %v1315 = vunpack.c.2.s8 %v379
        %v1316 = vunpack.c.2.s8 %v380
        %v1317 = vunpack.c.3.s8 %v373
        %v1318 = vunpack.c.3.s8 %v374
        %v1319 = vunpack.c.3.s8 %v375
        %v1320 = vunpack.c.3.s8 %v376
        %v1321 = vunpack.c.3.s8 %v377
        %v1322 = vunpack.c.3.s8 %v378
        %v1323 = vunpack.c.3.s8 %v379
        %v1324 = vunpack.c.3.s8 %v380
        %v1325 = vunpack.c.0.s8 %v381
        %v1326 = vunpack.c.0.s8 %v382
        %v1327 = vunpack.c.0.s8 %v383
        %v1328 = vunpack.c.0.s8 %v384
        %v1329 = vunpack.c.0.s8 %v385
        %v1330 = vunpack.c.0.s8 %v386
        %v1331 = vunpack.c.0.s8 %v387
        %v1332 = vunpack.c.0.s8 %v388
        %v1333 = vunpack.c.1.s8 %v381
        %v1334 = vunpack.c.1.s8 %v382
        %v1335 = vunpack.c.1.s8 %v383
        %v1336 = vunpack.c.1.s8 %v384
        %v1337 = vunpack.c.1.s8 %v385
        %v1338 = vunpack.c.1.s8 %v386
        %v1339 = vunpack.c.1.s8 %v387
        %v1340 = vunpack.c.1.s8 %v388
        %v1341 = vunpack.c.2.s8 %v381
        %v1342 = vunpack.c.2.s8 %v382
        %v1343 = vunpack.c.2.s8 %v383
        %v1344 = vunpack.c.2.s8 %v384
        %v1345 = vunpack.c.2.s8 %v385
        %v1346 = vunpack.c.2.s8 %v386
        %v1347 = vunpack.c.2.s8 %v387
        %v1348 = vunpack.c.2.s8 %v388
        %v1349 = vunpack.c.3.s8 %v381
        %v1350 = vunpack.c.3.s8 %v382
        %v1351 = vunpack.c.3.s8 %v383
        %v1352 = vunpack.c.3.s8 %v384
        %v1353 = vunpack.c.3.s8 %v385
        %v1354 = vunpack.c.3.s8 %v386
        %v1355 = vunpack.c.3.s8 %v387
        %v1356 = vunpack.c.3.s8 %v388
        %v1357 = vunpack.c.0.s8 %v389
        %v1358 = vunpack.c.0.s8 %v390
        %v1359 = vunpack.c.0.s8 %v391
        %v1360 = vunpack.c.0.s8 %v392
        %v1361 = vunpack.c.0.s8 %v393
        %v1362 = vunpack.c.0.s8 %v394
        %v1363 = vunpack.c.0.s8 %v395
        %v1364 = vunpack.c.0.s8 %v396
        %v1365 = vunpack.c.1.s8 %v389
        %v1366 = vunpack.c.1.s8 %v390
        %v1367 = vunpack.c.1.s8 %v391
        %v1368 = vunpack.c.1.s8 %v392
        %v1369 = vunpack.c.1.s8 %v393
        %v1370 = vunpack.c.1.s8 %v394
        %v1371 = vunpack.c.1.s8 %v395
        %v1372 = vunpack.c.1.s8 %v396
        %v1373 = vunpack.c.2.s8 %v389
        %v1374 = vunpack.c.2.s8 %v390
        %v1375 = vunpack.c.2.s8 %v391
        %v1376 = vunpack.c.2.s8 %v392
        %v1377 = vunpack.c.2.s8 %v393
        %v1378 = vunpack.c.2.s8 %v394
        %v1379 = vunpack.c.2.s8 %v395
        %v1380 = vunpack.c.2.s8 %v396
        %v1381 = vunpack.c.3.s8 %v389
        %v1382 = vunpack.c.3.s8 %v390
        %v1383 = vunpack.c.3.s8 %v391
        %v1384 = vunpack.c.3.s8 %v392
        %v1385 = vunpack.c.3.s8 %v393
        %v1386 = vunpack.c.3.s8 %v394
        %v1387 = vunpack.c.3.s8 %v395
        %v1388 = vunpack.c.3.s8 %v396
        %v1389 = vunpack.c.0.s8 %v397
        %v1390 = vunpack.c.0.s8 %v398
        %v1391 = vunpack.c.0.s8 %v399
        %v1392 = vunpack.c.0.s8 %v400
        %v1393 = vunpack.c.0.s8 %v401
        %v1394 = vunpack.c.0.s8 %v402
        %v1395 = vunpack.c.0.s8 %v403
        %v1396 = vunpack.c.0.s8 %v404
        %v1397 = vunpack.c.1.s8 %v397
        %v1398 = vunpack.c.1.s8 %v398
        %v1399 = vunpack.c.1.s8 %v399
        %v1400 = vunpack.c.1.s8 %v400
        %v1401 = vunpack.c.1.s8 %v401
        %v1402 = vunpack.c.1.s8 %v402
        %v1403 = vunpack.c.1.s8 %v403
        %v1404 = vunpack.c.1.s8 %v404
        %v1405 = vunpack.c.2.s8 %v397
        %v1406 = vunpack.c.2.s8 %v398
        %v1407 = vunpack.c.2.s8 %v399
        %v1408 = vunpack.c.2.s8 %v400
        %v1409 = vunpack.c.2.s8 %v401
        %v1410 = vunpack.c.2.s8 %v402
        %v1411 = vunpack.c.2.s8 %v403
        %v1412 = vunpack.c.2.s8 %v404
        %v1413 = vunpack.c.3.s8 %v397
        %v1414 = vunpack.c.3.s8 %v398
        %v1415 = vunpack.c.3.s8 %v399
        %v1416 = vunpack.c.3.s8 %v400
        %v1417 = vunpack.c.3.s8 %v401
        %v1418 = vunpack.c.3.s8 %v402
        %v1419 = vunpack.c.3.s8 %v403
        %v1420 = vunpack.c.3.s8 %v404
        %v1421 = vunpack.c.0.s8 %v405
        %v1422 = vunpack.c.0.s8 %v406
        %v1423 = vunpack.c.0.s8 %v407
        %v1424 = vunpack.c.0.s8 %v408
        %v1425 = vunpack.c.0.s8 %v409
        %v1426 = vunpack.c.0.s8 %v410
        %v1427 = vunpack.c.0.s8 %v411
        %v1428 = vunpack.c.0.s8 %v412
        %v1429 = vunpack.c.1.s8 %v405
        %v1430 = vunpack.c.1.s8 %v406
        %v1431 = vunpack.c.1.s8 %v407
        %v1432 = vunpack.c.1.s8 %v408
        %v1433 = vunpack.c.1.s8 %v409
        %v1434 = vunpack.c.1.s8 %v410
        %v1435 = vunpack.c.1.s8 %v411
        %v1436 = vunpack.c.1.s8 %v412
        %v1437 = vunpack.c.2.s8 %v405
        %v1438 = vunpack.c.2.s8 %v406
        %v1439 = vunpack.c.2.s8 %v407
        %v1440 = vunpack.c.2.s8 %v408
        %v1441 = vunpack.c.2.s8 %v409
        %v1442 = vunpack.c.2.s8 %v410
        %v1443 = vunpack.c.2.s8 %v411
        %v1444 = vunpack.c.2.s8 %v412
        %v1445 = vunpack.c.3.s8 %v405
        %v1446 = vunpack.c.3.s8 %v406
        %v1447 = vunpack.c.3.s8 %v407
        %v1448 = vunpack.c.3.s8 %v408
        %v1449 = vunpack.c.3.s8 %v409
        %v1450 = vunpack.c.3.s8 %v410
        %v1451 = vunpack.c.3.s8 %v411
        %v1452 = vunpack.c.3.s8 %v412
        %v1453 = vunpack.c.0.s8 %v413
        %v1454 = vunpack.c.0.s8 %v414
        %v1455 = vunpack.c.0.s8 %v415
        %v1456 = vunpack.c.0.s8 %v416
        %v1457 = vunpack.c.0.s8 %v417
        %v1458 = vunpack.c.0.s8 %v418
        %v1459 = vunpack.c.0.s8 %v419
        %v1460 = vunpack.c.0.s8 %v420
        %v1461 = vunpack.c.1.s8 %v413
        %v1462 = vunpack.c.1.s8 %v414
        %v1463 = vunpack.c.1.s8 %v415
        %v1464 = vunpack.c.1.s8 %v416
        %v1465 = vunpack.c.1.s8 %v417
        %v1466 = vunpack.c.1.s8 %v418
        %v1467 = vunpack.c.1.s8 %v419
        %v1468 = vunpack.c.1.s8 %v420
        %v1469 = vunpack.c.2.s8 %v413
        %v1470 = vunpack.c.2.s8 %v414
        %v1471 = vunpack.c.2.s8 %v415
        %v1472 = vunpack.c.2.s8 %v416
        %v1473 = vunpack.c.2.s8 %v417
        %v1474 = vunpack.c.2.s8 %v418
        %v1475 = vunpack.c.2.s8 %v419
        %v1476 = vunpack.c.2.s8 %v420
        %v1477 = vunpack.c.3.s8 %v413
        %v1478 = vunpack.c.3.s8 %v414
        %v1479 = vunpack.c.3.s8 %v415
        %v1480 = vunpack.c.3.s8 %v416
        %v1481 = vunpack.c.3.s8 %v417
        %v1482 = vunpack.c.3.s8 %v418
        %v1483 = vunpack.c.3.s8 %v419
        %v1484 = vunpack.c.3.s8 %v420
        %v1485 = vunpack.c.0.s8 %v421
        %v1486 = vunpack.c.0.s8 %v422
        %v1487 = vunpack.c.0.s8 %v423
        %v1488 = vunpack.c.0.s8 %v424
        %v1489 = vunpack.c.0.s8 %v425
        %v1490 = vunpack.c.0.s8 %v426
        %v1491 = vunpack.c.0.s8 %v427
        %v1492 = vunpack.c.0.s8 %v428
        %v1493 = vunpack.c.1.s8 %v421
        %v1494 = vunpack.c.1.s8 %v422
        %v1495 = vunpack.c.1.s8 %v423
        %v1496 = vunpack.c.1.s8 %v424
        %v1497 = vunpack.c.1.s8 %v425
        %v1498 = vunpack.c.1.s8 %v426
        %v1499 = vunpack.c.1.s8 %v427
        %v1500 = vunpack.c.1.s8 %v428
        %v1501 = vunpack.c.2.s8 %v421
        %v1502 = vunpack.c.2.s8 %v422
        %v1503 = vunpack.c.2.s8 %v423
        %v1504 = vunpack.c.2.s8 %v424
        %v1505 = vunpack.c.2.s8 %v425
        %v1506 = vunpack.c.2.s8 %v426
        %v1507 = vunpack.c.2.s8 %v427
        %v1508 = vunpack.c.2.s8 %v428
        %v1509 = vunpack.c.3.s8 %v421
        %v1510 = vunpack.c.3.s8 %v422
        %v1511 = vunpack.c.3.s8 %v423
        %v1512 = vunpack.c.3.s8 %v424
        %v1513 = vunpack.c.3.s8 %v425
        %v1514 = vunpack.c.3.s8 %v426
        %v1515 = vunpack.c.3.s8 %v427
        %v1516 = vunpack.c.3.s8 %v428
        %v1517 = vunpack.c.0.s8 %v429
        %v1518 = vunpack.c.0.s8 %v430
        %v1519 = vunpack.c.0.s8 %v431
        %v1520 = vunpack.c.0.s8 %v432
        %v1521 = vunpack.c.0.s8 %v433
        %v1522 = vunpack.c.0.s8 %v434
        %v1523 = vunpack.c.0.s8 %v435
        %v1524 = vunpack.c.0.s8 %v436
        %v1525 = vunpack.c.1.s8 %v429
        %v1526 = vunpack.c.1.s8 %v430
        %v1527 = vunpack.c.1.s8 %v431
        %v1528 = vunpack.c.1.s8 %v432
        %v1529 = vunpack.c.1.s8 %v433
        %v1530 = vunpack.c.1.s8 %v434
        %v1531 = vunpack.c.1.s8 %v435
        %v1532 = vunpack.c.1.s8 %v436
        %v1533 = vunpack.c.2.s8 %v429
        %v1534 = vunpack.c.2.s8 %v430
        %v1535 = vunpack.c.2.s8 %v431
        %v1536 = vunpack.c.2.s8 %v432
        %v1537 = vunpack.c.2.s8 %v433
        %v1538 = vunpack.c.2.s8 %v434
        %v1539 = vunpack.c.2.s8 %v435
        %v1540 = vunpack.c.2.s8 %v436
        %v1541 = vunpack.c.3.s8 %v429
        %v1542 = vunpack.c.3.s8 %v430
        %v1543 = vunpack.c.3.s8 %v431
        %v1544 = vunpack.c.3.s8 %v432
        %v1545 = vunpack.c.3.s8 %v433
        %v1546 = vunpack.c.3.s8 %v434
        %v1547 = vunpack.c.3.s8 %v435
        %v1548 = vunpack.c.3.s8 %v436
        %v1549 = vunpack.c.0.s8 %v437
        %v1550 = vunpack.c.0.s8 %v438
        %v1551 = vunpack.c.0.s8 %v439
        %v1552 = vunpack.c.0.s8 %v440
        %v1553 = vunpack.c.0.s8 %v441
        %v1554 = vunpack.c.0.s8 %v442
        %v1555 = vunpack.c.0.s8 %v443
        %v1556 = vunpack.c.0.s8 %v444
        %v1557 = vunpack.c.1.s8 %v437
        %v1558 = vunpack.c.1.s8 %v438
        %v1559 = vunpack.c.1.s8 %v439
        %v1560 = vunpack.c.1.s8 %v440
        %v1561 = vunpack.c.1.s8 %v441
        %v1562 = vunpack.c.1.s8 %v442
        %v1563 = vunpack.c.1.s8 %v443
        %v1564 = vunpack.c.1.s8 %v444
        %v1565 = vunpack.c.2.s8 %v437
        %v1566 = vunpack.c.2.s8 %v438
        %v1567 = vunpack.c.2.s8 %v439
        %v1568 = vunpack.c.2.s8 %v440
        %v1569 = vunpack.c.2.s8 %v441
        %v1570 = vunpack.c.2.s8 %v442
        %v1571 = vunpack.c.2.s8 %v443
        %v1572 = vunpack.c.2.s8 %v444
        %v1573 = vunpack.c.3.s8 %v437
        %v1574 = vunpack.c.3.s8 %v438
        %v1575 = vunpack.c.3.s8 %v439
        %v1576 = vunpack.c.3.s8 %v440
        %v1577 = vunpack.c.3.s8 %v441
        %v1578 = vunpack.c.3.s8 %v442
        %v1579 = vunpack.c.3.s8 %v443
        %v1580 = vunpack.c.3.s8 %v444
        %v1581 = vunpack.c.0.s8 %v445
        %v1582 = vunpack.c.0.s8 %v446
        %v1583 = vunpack.c.0.s8 %v447
        %v1584 = vunpack.c.0.s8 %v448
        %v1585 = vunpack.c.0.s8 %v449
        %v1586 = vunpack.c.0.s8 %v450
        %v1587 = vunpack.c.0.s8 %v451
        %v1588 = vunpack.c.0.s8 %v452
        %v1589 = vunpack.c.1.s8 %v445
        %v1590 = vunpack.c.1.s8 %v446
        %v1591 = vunpack.c.1.s8 %v447
        %v1592 = vunpack.c.1.s8 %v448
        %v1593 = vunpack.c.1.s8 %v449
        %v1594 = vunpack.c.1.s8 %v450
        %v1595 = vunpack.c.1.s8 %v451
        %v1596 = vunpack.c.1.s8 %v452
        %v1597 = vunpack.c.2.s8 %v445
        %v1598 = vunpack.c.2.s8 %v446
        %v1599 = vunpack.c.2.s8 %v447
        %v1600 = vunpack.c.2.s8 %v448
        %v1601 = vunpack.c.2.s8 %v449
        %v1602 = vunpack.c.2.s8 %v450
        %v1603 = vunpack.c.2.s8 %v451
        %v1604 = vunpack.c.2.s8 %v452
        %v1605 = vunpack.c.3.s8 %v445
        %v1606 = vunpack.c.3.s8 %v446
        %v1607 = vunpack.c.3.s8 %v447
        %v1608 = vunpack.c.3.s8 %v448
        %v1609 = vunpack.c.3.s8 %v449
        %v1610 = vunpack.c.3.s8 %v450
        %v1611 = vunpack.c.3.s8 %v451
        %v1612 = vunpack.c.3.s8 %v452
        %v1613 = vunpack.c.0.s8 %v453
        %v1614 = vunpack.c.0.s8 %v454
        %v1615 = vunpack.c.0.s8 %v455
        %v1616 = vunpack.c.0.s8 %v456
        %v1617 = vunpack.c.0.s8 %v457
        %v1618 = vunpack.c.0.s8 %v458
        %v1619 = vunpack.c.0.s8 %v459
        %v1620 = vunpack.c.0.s8 %v460
        %v1621 = vunpack.c.1.s8 %v453
        %v1622 = vunpack.c.1.s8 %v454
        %v1623 = vunpack.c.1.s8 %v455
        %v1624 = vunpack.c.1.s8 %v456
        %v1625 = vunpack.c.1.s8 %v457
        %v1626 = vunpack.c.1.s8 %v458
        %v1627 = vunpack.c.1.s8 %v459
        %v1628 = vunpack.c.1.s8 %v460
        %v1629 = vunpack.c.2.s8 %v453
        %v1630 = vunpack.c.2.s8 %v454
        %v1631 = vunpack.c.2.s8 %v455
        %v1632 = vunpack.c.2.s8 %v456
        %v1633 = vunpack.c.2.s8 %v457
        %v1634 = vunpack.c.2.s8 %v458
        %v1635 = vunpack.c.2.s8 %v459
        %v1636 = vunpack.c.2.s8 %v460
        %v1637 = vunpack.c.3.s8 %v453
        %v1638 = vunpack.c.3.s8 %v454
        %v1639 = vunpack.c.3.s8 %v455
        %v1640 = vunpack.c.3.s8 %v456
        %v1641 = vunpack.c.3.s8 %v457
        %v1642 = vunpack.c.3.s8 %v458
        %v1643 = vunpack.c.3.s8 %v459
        %v1644 = vunpack.c.3.s8 %v460
        %v1645 = vunpack.c.0.s8 %v461
        %v1646 = vunpack.c.0.s8 %v462
        %v1647 = vunpack.c.0.s8 %v463
        %v1648 = vunpack.c.0.s8 %v464
        %v1649 = vunpack.c.0.s8 %v465
        %v1650 = vunpack.c.0.s8 %v466
        %v1651 = vunpack.c.0.s8 %v467
        %v1652 = vunpack.c.0.s8 %v468
        %v1653 = vunpack.c.1.s8 %v461
        %v1654 = vunpack.c.1.s8 %v462
        %v1655 = vunpack.c.1.s8 %v463
        %v1656 = vunpack.c.1.s8 %v464
        %v1657 = vunpack.c.1.s8 %v465
        %v1658 = vunpack.c.1.s8 %v466
        %v1659 = vunpack.c.1.s8 %v467
        %v1660 = vunpack.c.1.s8 %v468
        %v1661 = vunpack.c.2.s8 %v461
        %v1662 = vunpack.c.2.s8 %v462
        %v1663 = vunpack.c.2.s8 %v463
        %v1664 = vunpack.c.2.s8 %v464
        %v1665 = vunpack.c.2.s8 %v465
        %v1666 = vunpack.c.2.s8 %v466
        %v1667 = vunpack.c.2.s8 %v467
        %v1668 = vunpack.c.2.s8 %v468
        %v1669 = vunpack.c.3.s8 %v461
        %v1670 = vunpack.c.3.s8 %v462
        %v1671 = vunpack.c.3.s8 %v463
        %v1672 = vunpack.c.3.s8 %v464
        %v1673 = vunpack.c.3.s8 %v465
        %v1674 = vunpack.c.3.s8 %v466
        %v1675 = vunpack.c.3.s8 %v467
        %v1676 = vunpack.c.3.s8 %v468
        %v1677 = vunpack.c.0.s8 %v469
        %v1678 = vunpack.c.0.s8 %v470
        %v1679 = vunpack.c.0.s8 %v471
        %v1680 = vunpack.c.0.s8 %v472
        %v1681 = vunpack.c.0.s8 %v473
        %v1682 = vunpack.c.0.s8 %v474
        %v1683 = vunpack.c.0.s8 %v475
        %v1684 = vunpack.c.0.s8 %v476
        %v1685 = vunpack.c.1.s8 %v469
        %v1686 = vunpack.c.1.s8 %v470
        %v1687 = vunpack.c.1.s8 %v471
        %v1688 = vunpack.c.1.s8 %v472
        %v1689 = vunpack.c.1.s8 %v473
        %v1690 = vunpack.c.1.s8 %v474
        %v1691 = vunpack.c.1.s8 %v475
        %v1692 = vunpack.c.1.s8 %v476
        %v1693 = vunpack.c.2.s8 %v469
        %v1694 = vunpack.c.2.s8 %v470
        %v1695 = vunpack.c.2.s8 %v471
        %v1696 = vunpack.c.2.s8 %v472
        %v1697 = vunpack.c.2.s8 %v473
        %v1698 = vunpack.c.2.s8 %v474
        %v1699 = vunpack.c.2.s8 %v475
        %v1700 = vunpack.c.2.s8 %v476
        %v1701 = vunpack.c.3.s8 %v469
        %v1702 = vunpack.c.3.s8 %v470
        %v1703 = vunpack.c.3.s8 %v471
        %v1704 = vunpack.c.3.s8 %v472
        %v1705 = vunpack.c.3.s8 %v473
        %v1706 = vunpack.c.3.s8 %v474
        %v1707 = vunpack.c.3.s8 %v475
        %v1708 = vunpack.c.3.s8 %v476
        %v1709 = vunpack.c.0.s8 %v477
        %v1710 = vunpack.c.0.s8 %v478
        %v1711 = vunpack.c.0.s8 %v479
        %v1712 = vunpack.c.0.s8 %v480
        %v1713 = vunpack.c.0.s8 %v481
        %v1714 = vunpack.c.0.s8 %v482
        %v1715 = vunpack.c.0.s8 %v483
        %v1716 = vunpack.c.0.s8 %v484
        %v1717 = vunpack.c.1.s8 %v477
        %v1718 = vunpack.c.1.s8 %v478
        %v1719 = vunpack.c.1.s8 %v479
        %v1720 = vunpack.c.1.s8 %v480
        %v1721 = vunpack.c.1.s8 %v481
        %v1722 = vunpack.c.1.s8 %v482
        %v1723 = vunpack.c.1.s8 %v483
        %v1724 = vunpack.c.1.s8 %v484
        %v1725 = vunpack.c.2.s8 %v477
        %v1726 = vunpack.c.2.s8 %v478
        %v1727 = vunpack.c.2.s8 %v479
        %v1728 = vunpack.c.2.s8 %v480
        %v1729 = vunpack.c.2.s8 %v481
        %v1730 = vunpack.c.2.s8 %v482
        %v1731 = vunpack.c.2.s8 %v483
        %v1732 = vunpack.c.2.s8 %v484
        %v1733 = vunpack.c.3.s8 %v477
        %v1734 = vunpack.c.3.s8 %v478
        %v1735 = vunpack.c.3.s8 %v479
        %v1736 = vunpack.c.3.s8 %v480
        %v1737 = vunpack.c.3.s8 %v481
        %v1738 = vunpack.c.3.s8 %v482
        %v1739 = vunpack.c.3.s8 %v483
        %v1740 = vunpack.c.3.s8 %v484
        %v1741 = vunpack.c.0.s8 %v485
        %v1742 = vunpack.c.0.s8 %v486
        %v1743 = vunpack.c.0.s8 %v487
        %v1744 = vunpack.c.0.s8 %v488
        %v1745 = vunpack.c.0.s8 %v489
        %v1746 = vunpack.c.0.s8 %v490
        %v1747 = vunpack.c.0.s8 %v491
        %v1748 = vunpack.c.0.s8 %v492
        %v1749 = vunpack.c.1.s8 %v485
        %v1750 = vunpack.c.1.s8 %v486
        %v1751 = vunpack.c.1.s8 %v487
        %v1752 = vunpack.c.1.s8 %v488
        %v1753 = vunpack.c.1.s8 %v489
        %v1754 = vunpack.c.1.s8 %v490
        %v1755 = vunpack.c.1.s8 %v491
        %v1756 = vunpack.c.1.s8 %v492
        %v1757 = vunpack.c.2.s8 %v485
        %v1758 = vunpack.c.2.s8 %v486
        %v1759 = vunpack.c.2.s8 %v487
        %v1760 = vunpack.c.2.s8 %v488
        %v1761 = vunpack.c.2.s8 %v489
        %v1762 = vunpack.c.2.s8 %v490
        %v1763 = vunpack.c.2.s8 %v491
        %v1764 = vunpack.c.2.s8 %v492
        %v1765 = vunpack.c.3.s8 %v485
        %v1766 = vunpack.c.3.s8 %v486
        %v1767 = vunpack.c.3.s8 %v487
        %v1768 = vunpack.c.3.s8 %v488
        %v1769 = vunpack.c.3.s8 %v489
        %v1770 = vunpack.c.3.s8 %v490
        %v1771 = vunpack.c.3.s8 %v491
        %v1772 = vunpack.c.3.s8 %v492
        %v1773 = vunpack.c.0.s8 %v493
        %v1774 = vunpack.c.0.s8 %v494
        %v1775 = vunpack.c.0.s8 %v495
        %v1776 = vunpack.c.0.s8 %v496
        %v1777 = vunpack.c.0.s8 %v497
        %v1778 = vunpack.c.0.s8 %v498
        %v1779 = vunpack.c.0.s8 %v499
        %v1780 = vunpack.c.0.s8 %v500
        %v1781 = vunpack.c.1.s8 %v493
        %v1782 = vunpack.c.1.s8 %v494
        %v1783 = vunpack.c.1.s8 %v495
        %v1784 = vunpack.c.1.s8 %v496
        %v1785 = vunpack.c.1.s8 %v497
        %v1786 = vunpack.c.1.s8 %v498
        %v1787 = vunpack.c.1.s8 %v499
        %v1788 = vunpack.c.1.s8 %v500
        %v1789 = vunpack.c.2.s8 %v493
        %v1790 = vunpack.c.2.s8 %v494
        %v1791 = vunpack.c.2.s8 %v495
        %v1792 = vunpack.c.2.s8 %v496
        %v1793 = vunpack.c.2.s8 %v497
        %v1794 = vunpack.c.2.s8 %v498
        %v1795 = vunpack.c.2.s8 %v499
        %v1796 = vunpack.c.2.s8 %v500
        %v1797 = vunpack.c.3.s8 %v493
        %v1798 = vunpack.c.3.s8 %v494
        %v1799 = vunpack.c.3.s8 %v495
        %v1800 = vunpack.c.3.s8 %v496
        %v1801 = vunpack.c.3.s8 %v497
        %v1802 = vunpack.c.3.s8 %v498
        %v1803 = vunpack.c.3.s8 %v499
        %v1804 = vunpack.c.3.s8 %v500
        %v1805 = vunpack.c.0.s8 %v501
        %v1806 = vunpack.c.0.s8 %v502
        %v1807 = vunpack.c.0.s8 %v503
        %v1808 = vunpack.c.0.s8 %v504
        %v1809 = vunpack.c.0.s8 %v505
        %v1810 = vunpack.c.0.s8 %v506
        %v1811 = vunpack.c.0.s8 %v507
        %v1812 = vunpack.c.0.s8 %v508
        %v1813 = vunpack.c.1.s8 %v501
        %v1814 = vunpack.c.1.s8 %v502
        %v1815 = vunpack.c.1.s8 %v503
        %v1816 = vunpack.c.1.s8 %v504
        %v1817 = vunpack.c.1.s8 %v505
        %v1818 = vunpack.c.1.s8 %v506
        %v1819 = vunpack.c.1.s8 %v507
        %v1820 = vunpack.c.1.s8 %v508
        %v1821 = vunpack.c.2.s8 %v501
        %v1822 = vunpack.c.2.s8 %v502
        %v1823 = vunpack.c.2.s8 %v503
        %v1824 = vunpack.c.2.s8 %v504
        %v1825 = vunpack.c.2.s8 %v505
        %v1826 = vunpack.c.2.s8 %v506
        %v1827 = vunpack.c.2.s8 %v507
        %v1828 = vunpack.c.2.s8 %v508
        %v1829 = vunpack.c.3.s8 %v501
        %v1830 = vunpack.c.3.s8 %v502
        %v1831 = vunpack.c.3.s8 %v503
        %v1832 = vunpack.c.3.s8 %v504
        %v1833 = vunpack.c.3.s8 %v505
        %v1834 = vunpack.c.3.s8 %v506
        %v1835 = vunpack.c.3.s8 %v507
        %v1836 = vunpack.c.3.s8 %v508
        %v1837 = vunpack.c.0.s8 %v509
        %v1838 = vunpack.c.0.s8 %v510
        %v1839 = vunpack.c.0.s8 %v511
        %v1840 = vunpack.c.0.s8 %v512
        %v1841 = vunpack.c.0.s8 %v513
        %v1842 = vunpack.c.0.s8 %v514
        %v1843 = vunpack.c.0.s8 %v515
        %v1844 = vunpack.c.0.s8 %v516
        %v1845 = vunpack.c.1.s8 %v509
        %v1846 = vunpack.c.1.s8 %v510
        %v1847 = vunpack.c.1.s8 %v511
        %v1848 = vunpack.c.1.s8 %v512
        %v1849 = vunpack.c.1.s8 %v513
        %v1850 = vunpack.c.1.s8 %v514
        %v1851 = vunpack.c.1.s8 %v515
        %v1852 = vunpack.c.1.s8 %v516
        %v1853 = vunpack.c.2.s8 %v509
        %v1854 = vunpack.c.2.s8 %v510
        %v1855 = vunpack.c.2.s8 %v511
        %v1856 = vunpack.c.2.s8 %v512
        %v1857 = vunpack.c.2.s8 %v513
        %v1858 = vunpack.c.2.s8 %v514
        %v1859 = vunpack.c.2.s8 %v515
        %v1860 = vunpack.c.2.s8 %v516
        %v1861 = vunpack.c.3.s8 %v509
        %v1862 = vunpack.c.3.s8 %v510
        %v1863 = vunpack.c.3.s8 %v511
        %v1864 = vunpack.c.3.s8 %v512
        %v1865 = vunpack.c.3.s8 %v513
        %v1866 = vunpack.c.3.s8 %v514
        %v1867 = vunpack.c.3.s8 %v515
        %v1868 = vunpack.c.3.s8 %v516
        %v1869 = vunpack.c.0.s8 %v517
        %v1870 = vunpack.c.0.s8 %v518
        %v1871 = vunpack.c.0.s8 %v519
        %v1872 = vunpack.c.0.s8 %v520
        %v1873 = vunpack.c.0.s8 %v521
        %v1874 = vunpack.c.0.s8 %v522
        %v1875 = vunpack.c.0.s8 %v523
        %v1876 = vunpack.c.0.s8 %v524
        %v1877 = vunpack.c.1.s8 %v517
        %v1878 = vunpack.c.1.s8 %v518
        %v1879 = vunpack.c.1.s8 %v519
        %v1880 = vunpack.c.1.s8 %v520
        %v1881 = vunpack.c.1.s8 %v521
        %v1882 = vunpack.c.1.s8 %v522
        %v1883 = vunpack.c.1.s8 %v523
        %v1884 = vunpack.c.1.s8 %v524
        %v1885 = vunpack.c.2.s8 %v517
        %v1886 = vunpack.c.2.s8 %v518
        %v1887 = vunpack.c.2.s8 %v519
        %v1888 = vunpack.c.2.s8 %v520
        %v1889 = vunpack.c.2.s8 %v521
        %v1890 = vunpack.c.2.s8 %v522
        %v1891 = vunpack.c.2.s8 %v523
        %v1892 = vunpack.c.2.s8 %v524
        %v1893 = vunpack.c.3.s8 %v517
        %v1894 = vunpack.c.3.s8 %v518
        %v1895 = vunpack.c.3.s8 %v519
        %v1896 = vunpack.c.3.s8 %v520
        %v1897 = vunpack.c.3.s8 %v521
        %v1898 = vunpack.c.3.s8 %v522
        %v1899 = vunpack.c.3.s8 %v523
        %v1900 = vunpack.c.3.s8 %v524
        %v1901 = vunpack.c.0.s8 %v525
        %v1902 = vunpack.c.0.s8 %v526
        %v1903 = vunpack.c.0.s8 %v527
        %v1904 = vunpack.c.0.s8 %v528
        %v1905 = vunpack.c.0.s8 %v529
        %v1906 = vunpack.c.0.s8 %v530
        %v1907 = vunpack.c.0.s8 %v531
        %v1908 = vunpack.c.0.s8 %v532
        %v1909 = vunpack.c.1.s8 %v525
        %v1910 = vunpack.c.1.s8 %v526
        %v1911 = vunpack.c.1.s8 %v527
        %v1912 = vunpack.c.1.s8 %v528
        %v1913 = vunpack.c.1.s8 %v529
        %v1914 = vunpack.c.1.s8 %v530
        %v1915 = vunpack.c.1.s8 %v531
        %v1916 = vunpack.c.1.s8 %v532
        %v1917 = vunpack.c.2.s8 %v525
        %v1918 = vunpack.c.2.s8 %v526
        %v1919 = vunpack.c.2.s8 %v527
        %v1920 = vunpack.c.2.s8 %v528
        %v1921 = vunpack.c.2.s8 %v529
        %v1922 = vunpack.c.2.s8 %v530
        %v1923 = vunpack.c.2.s8 %v531
        %v1924 = vunpack.c.2.s8 %v532
        %v1925 = vunpack.c.3.s8 %v525
        %v1926 = vunpack.c.3.s8 %v526
        %v1927 = vunpack.c.3.s8 %v527
        %v1928 = vunpack.c.3.s8 %v528
        %v1929 = vunpack.c.3.s8 %v529
        %v1930 = vunpack.c.3.s8 %v530
        %v1931 = vunpack.c.3.s8 %v531
        %v1932 = vunpack.c.3.s8 %v532
        %v1933 = vunpack.c.0.s8 %v533
        %v1934 = vunpack.c.0.s8 %v534
        %v1935 = vunpack.c.0.s8 %v535
        %v1936 = vunpack.c.0.s8 %v536
        %v1937 = vunpack.c.0.s8 %v537
        %v1938 = vunpack.c.0.s8 %v538
        %v1939 = vunpack.c.0.s8 %v539
        %v1940 = vunpack.c.0.s8 %v540
        %v1941 = vunpack.c.1.s8 %v533
        %v1942 = vunpack.c.1.s8 %v534
        %v1943 = vunpack.c.1.s8 %v535
        %v1944 = vunpack.c.1.s8 %v536
        %v1945 = vunpack.c.1.s8 %v537
        %v1946 = vunpack.c.1.s8 %v538
        %v1947 = vunpack.c.1.s8 %v539
        %v1948 = vunpack.c.1.s8 %v540
        %v1949 = vunpack.c.2.s8 %v533
        %v1950 = vunpack.c.2.s8 %v534
        %v1951 = vunpack.c.2.s8 %v535
        %v1952 = vunpack.c.2.s8 %v536
        %v1953 = vunpack.c.2.s8 %v537
        %v1954 = vunpack.c.2.s8 %v538
        %v1955 = vunpack.c.2.s8 %v539
        %v1956 = vunpack.c.2.s8 %v540
        %v1957 = vunpack.c.3.s8 %v533
        %v1958 = vunpack.c.3.s8 %v534
        %v1959 = vunpack.c.3.s8 %v535
        %v1960 = vunpack.c.3.s8 %v536
        %v1961 = vunpack.c.3.s8 %v537
        %v1962 = vunpack.c.3.s8 %v538
        %v1963 = vunpack.c.3.s8 %v539
        %v1964 = vunpack.c.3.s8 %v540
        %v1965 = vunpack.c.0.s8 %v541
        %v1966 = vunpack.c.0.s8 %v542
        %v1967 = vunpack.c.0.s8 %v543
        %v1968 = vunpack.c.0.s8 %v544
        %v1969 = vunpack.c.0.s8 %v545
        %v1970 = vunpack.c.0.s8 %v546
        %v1971 = vunpack.c.0.s8 %v547
        %v1972 = vunpack.c.0.s8 %v548
        %v1973 = vunpack.c.1.s8 %v541
        %v1974 = vunpack.c.1.s8 %v542
        %v1975 = vunpack.c.1.s8 %v543
        %v1976 = vunpack.c.1.s8 %v544
        %v1977 = vunpack.c.1.s8 %v545
        %v1978 = vunpack.c.1.s8 %v546
        %v1979 = vunpack.c.1.s8 %v547
        %v1980 = vunpack.c.1.s8 %v548
        %v1981 = vunpack.c.2.s8 %v541
        %v1982 = vunpack.c.2.s8 %v542
        %v1983 = vunpack.c.2.s8 %v543
        %v1984 = vunpack.c.2.s8 %v544
        %v1985 = vunpack.c.2.s8 %v545
        %v1986 = vunpack.c.2.s8 %v546
        %v1987 = vunpack.c.2.s8 %v547
        %v1988 = vunpack.c.2.s8 %v548
        %v1989 = vunpack.c.3.s8 %v541
        %v1990 = vunpack.c.3.s8 %v542
        %v1991 = vunpack.c.3.s8 %v543
        %v1992 = vunpack.c.3.s8 %v544
        %v1993 = vunpack.c.3.s8 %v545
        %v1994 = vunpack.c.3.s8 %v546
        %v1995 = vunpack.c.3.s8 %v547
        %v1996 = vunpack.c.3.s8 %v548
        %v1997 = vunpack.c.0.s8 %v549
        %v1998 = vunpack.c.0.s8 %v550
        %v1999 = vunpack.c.0.s8 %v551
        %v2000 = vunpack.c.0.s8 %v552
        %v2001 = vunpack.c.0.s8 %v553
        %v2002 = vunpack.c.0.s8 %v554
        %v2003 = vunpack.c.0.s8 %v555
        %v2004 = vunpack.c.0.s8 %v556
        %v2005 = vunpack.c.1.s8 %v549
        %v2006 = vunpack.c.1.s8 %v550
        %v2007 = vunpack.c.1.s8 %v551
        %v2008 = vunpack.c.1.s8 %v552
        %v2009 = vunpack.c.1.s8 %v553
        %v2010 = vunpack.c.1.s8 %v554
        %v2011 = vunpack.c.1.s8 %v555
        %v2012 = vunpack.c.1.s8 %v556
        %v2013 = vunpack.c.2.s8 %v549
        %v2014 = vunpack.c.2.s8 %v550
        %v2015 = vunpack.c.2.s8 %v551
        %v2016 = vunpack.c.2.s8 %v552
        %v2017 = vunpack.c.2.s8 %v553
        %v2018 = vunpack.c.2.s8 %v554
        %v2019 = vunpack.c.2.s8 %v555
        %v2020 = vunpack.c.2.s8 %v556
        %v2021 = vunpack.c.3.s8 %v549
        %v2022 = vunpack.c.3.s8 %v550
        %v2023 = vunpack.c.3.s8 %v551
        %v2024 = vunpack.c.3.s8 %v552
        %v2025 = vunpack.c.3.s8 %v553
        %v2026 = vunpack.c.3.s8 %v554
        %v2027 = vunpack.c.3.s8 %v555
        %v2028 = vunpack.c.3.s8 %v556
        %v2029 = vunpack.c.0.s8 %v557
        %v2030 = vunpack.c.0.s8 %v558
        %v2031 = vunpack.c.0.s8 %v559
        %v2032 = vunpack.c.0.s8 %v560
        %v2033 = vunpack.c.0.s8 %v561
        %v2034 = vunpack.c.0.s8 %v562
        %v2035 = vunpack.c.0.s8 %v563
        %v2036 = vunpack.c.0.s8 %v564
        %v2037 = vunpack.c.1.s8 %v557
        %v2038 = vunpack.c.1.s8 %v558
        %v2039 = vunpack.c.1.s8 %v559
        %v2040 = vunpack.c.1.s8 %v560
        %v2041 = vunpack.c.1.s8 %v561
        %v2042 = vunpack.c.1.s8 %v562
        %v2043 = vunpack.c.1.s8 %v563
        %v2044 = vunpack.c.1.s8 %v564
        %v2045 = vunpack.c.2.s8 %v557
        %v2046 = vunpack.c.2.s8 %v558
        %v2047 = vunpack.c.2.s8 %v559
        %v2048 = vunpack.c.2.s8 %v560
        %v2049 = vunpack.c.2.s8 %v561
        %v2050 = vunpack.c.2.s8 %v562
        %v2051 = vunpack.c.2.s8 %v563
        %v2052 = vunpack.c.2.s8 %v564
        %v2053 = vunpack.c.3.s8 %v557
        %v2054 = vunpack.c.3.s8 %v558
        %v2055 = vunpack.c.3.s8 %v559
        %v2056 = vunpack.c.3.s8 %v560
        %v2057 = vunpack.c.3.s8 %v561
        %v2058 = vunpack.c.3.s8 %v562
        %v2059 = vunpack.c.3.s8 %v563
        %v2060 = vunpack.c.3.s8 %v564
        %v2061 = vunpack.c.0.s8 %v565
        %v2062 = vunpack.c.0.s8 %v566
        %v2063 = vunpack.c.0.s8 %v567
        %v2064 = vunpack.c.0.s8 %v568
        %v2065 = vunpack.c.0.s8 %v569
        %v2066 = vunpack.c.0.s8 %v570
        %v2067 = vunpack.c.0.s8 %v571
        %v2068 = vunpack.c.0.s8 %v572
        %v2069 = vunpack.c.1.s8 %v565
        %v2070 = vunpack.c.1.s8 %v566
        %v2071 = vunpack.c.1.s8 %v567
        %v2072 = vunpack.c.1.s8 %v568
        %v2073 = vunpack.c.1.s8 %v569
        %v2074 = vunpack.c.1.s8 %v570
        %v2075 = vunpack.c.1.s8 %v571
        %v2076 = vunpack.c.1.s8 %v572
        %v2077 = vunpack.c.2.s8 %v565
        %v2078 = vunpack.c.2.s8 %v566
        %v2079 = vunpack.c.2.s8 %v567
        %v2080 = vunpack.c.2.s8 %v568
        %v2081 = vunpack.c.2.s8 %v569
        %v2082 = vunpack.c.2.s8 %v570
        %v2083 = vunpack.c.2.s8 %v571
        %v2084 = vunpack.c.2.s8 %v572
        %v2085 = vunpack.c.3.s8 %v565
        %v2086 = vunpack.c.3.s8 %v566
        %v2087 = vunpack.c.3.s8 %v567
        %v2088 = vunpack.c.3.s8 %v568
        %v2089 = vunpack.c.3.s8 %v569
        %v2090 = vunpack.c.3.s8 %v570
        %v2091 = vunpack.c.3.s8 %v571
        %v2092 = vunpack.c.3.s8 %v572
        %v2093 = vunpack.c.0.s8 %v573
        %v2094 = vunpack.c.0.s8 %v574
        %v2095 = vunpack.c.0.s8 %v575
        %v2096 = vunpack.c.0.s8 %v576
        %v2097 = vunpack.c.0.s8 %v577
        %v2098 = vunpack.c.0.s8 %v578
        %v2099 = vunpack.c.0.s8 %v579
        %v2100 = vunpack.c.0.s8 %v580
        %v2101 = vunpack.c.1.s8 %v573
        %v2102 = vunpack.c.1.s8 %v574
        %v2103 = vunpack.c.1.s8 %v575
        %v2104 = vunpack.c.1.s8 %v576
        %v2105 = vunpack.c.1.s8 %v577
        %v2106 = vunpack.c.1.s8 %v578
        %v2107 = vunpack.c.1.s8 %v579
        %v2108 = vunpack.c.1.s8 %v580
        %v2109 = vunpack.c.2.s8 %v573
        %v2110 = vunpack.c.2.s8 %v574
        %v2111 = vunpack.c.2.s8 %v575
        %v2112 = vunpack.c.2.s8 %v576
        %v2113 = vunpack.c.2.s8 %v577
        %v2114 = vunpack.c.2.s8 %v578
        %v2115 = vunpack.c.2.s8 %v579
        %v2116 = vunpack.c.2.s8 %v580
        %v2117 = vunpack.c.3.s8 %v573
        %v2118 = vunpack.c.3.s8 %v574
        %v2119 = vunpack.c.3.s8 %v575
        %v2120 = vunpack.c.3.s8 %v576
        %v2121 = vunpack.c.3.s8 %v577
        %v2122 = vunpack.c.3.s8 %v578
        %v2123 = vunpack.c.3.s8 %v579
        %v2124 = vunpack.c.3.s8 %v580
        %v2125 = vunpack.c.0.s8 %v581
        %v2126 = vunpack.c.0.s8 %v582
        %v2127 = vunpack.c.0.s8 %v583
        %v2128 = vunpack.c.0.s8 %v584
        %v2129 = vunpack.c.0.s8 %v585
        %v2130 = vunpack.c.0.s8 %v586
        %v2131 = vunpack.c.0.s8 %v587
        %v2132 = vunpack.c.0.s8 %v588
        %v2133 = vunpack.c.1.s8 %v581
        %v2134 = vunpack.c.1.s8 %v582
        %v2135 = vunpack.c.1.s8 %v583
        %v2136 = vunpack.c.1.s8 %v584
        %v2137 = vunpack.c.1.s8 %v585
        %v2138 = vunpack.c.1.s8 %v586
        %v2139 = vunpack.c.1.s8 %v587
        %v2140 = vunpack.c.1.s8 %v588
        %v2141 = vunpack.c.2.s8 %v581
        %v2142 = vunpack.c.2.s8 %v582
        %v2143 = vunpack.c.2.s8 %v583
        %v2144 = vunpack.c.2.s8 %v584
        %v2145 = vunpack.c.2.s8 %v585
        %v2146 = vunpack.c.2.s8 %v586
        %v2147 = vunpack.c.2.s8 %v587
        %v2148 = vunpack.c.2.s8 %v588
        %v2149 = vunpack.c.3.s8 %v581
        %v2150 = vunpack.c.3.s8 %v582
        %v2151 = vunpack.c.3.s8 %v583
        %v2152 = vunpack.c.3.s8 %v584
        %v2153 = vunpack.c.3.s8 %v585
        %v2154 = vunpack.c.3.s8 %v586
        %v2155 = vunpack.c.3.s8 %v587
        %v2156 = vunpack.c.3.s8 %v588
        %v2157 = vunpack.c.0.s8 %v589
        %v2158 = vunpack.c.0.s8 %v590
        %v2159 = vunpack.c.0.s8 %v591
        %v2160 = vunpack.c.0.s8 %v592
        %v2161 = vunpack.c.0.s8 %v593
        %v2162 = vunpack.c.0.s8 %v594
        %v2163 = vunpack.c.0.s8 %v595
        %v2164 = vunpack.c.0.s8 %v596
        %v2165 = vunpack.c.1.s8 %v589
        %v2166 = vunpack.c.1.s8 %v590
        %v2167 = vunpack.c.1.s8 %v591
        %v2168 = vunpack.c.1.s8 %v592
        %v2169 = vunpack.c.1.s8 %v593
        %v2170 = vunpack.c.1.s8 %v594
        %v2171 = vunpack.c.1.s8 %v595
        %v2172 = vunpack.c.1.s8 %v596
        %v2173 = vunpack.c.2.s8 %v589
        %v2174 = vunpack.c.2.s8 %v590
        %v2175 = vunpack.c.2.s8 %v591
        %v2176 = vunpack.c.2.s8 %v592
        %v2177 = vunpack.c.2.s8 %v593
        %v2178 = vunpack.c.2.s8 %v594
        %v2179 = vunpack.c.2.s8 %v595
        %v2180 = vunpack.c.2.s8 %v596
        %v2181 = vunpack.c.3.s8 %v589
        %v2182 = vunpack.c.3.s8 %v590
        %v2183 = vunpack.c.3.s8 %v591
        %v2184 = vunpack.c.3.s8 %v592
        %v2185 = vunpack.c.3.s8 %v593
        %v2186 = vunpack.c.3.s8 %v594
        %v2187 = vunpack.c.3.s8 %v595
        %v2188 = vunpack.c.3.s8 %v596
        %v2189 = vunpack.c.0.s8 %v597
        %v2190 = vunpack.c.0.s8 %v598
        %v2191 = vunpack.c.0.s8 %v599
        %v2192 = vunpack.c.0.s8 %v600
        %v2193 = vunpack.c.0.s8 %v601
        %v2194 = vunpack.c.0.s8 %v602
        %v2195 = vunpack.c.0.s8 %v603
        %v2196 = vunpack.c.0.s8 %v604
        %v2197 = vunpack.c.1.s8 %v597
        %v2198 = vunpack.c.1.s8 %v598
        %v2199 = vunpack.c.1.s8 %v599
        %v2200 = vunpack.c.1.s8 %v600
        %v2201 = vunpack.c.1.s8 %v601
        %v2202 = vunpack.c.1.s8 %v602
        %v2203 = vunpack.c.1.s8 %v603
        %v2204 = vunpack.c.1.s8 %v604
        %v2205 = vunpack.c.2.s8 %v597
        %v2206 = vunpack.c.2.s8 %v598
        %v2207 = vunpack.c.2.s8 %v599
        %v2208 = vunpack.c.2.s8 %v600
        %v2209 = vunpack.c.2.s8 %v601
        %v2210 = vunpack.c.2.s8 %v602
        %v2211 = vunpack.c.2.s8 %v603
        %v2212 = vunpack.c.2.s8 %v604
        %v2213 = vunpack.c.3.s8 %v597
        %v2214 = vunpack.c.3.s8 %v598
        %v2215 = vunpack.c.3.s8 %v599
        %v2216 = vunpack.c.3.s8 %v600
        %v2217 = vunpack.c.3.s8 %v601
        %v2218 = vunpack.c.3.s8 %v602
        %v2219 = vunpack.c.3.s8 %v603
        %v2220 = vunpack.c.3.s8 %v604
        %v2221 = vunpack.c.0.s8 %v605
        %v2222 = vunpack.c.0.s8 %v606
        %v2223 = vunpack.c.0.s8 %v607
        %v2224 = vunpack.c.0.s8 %v608
        %v2225 = vunpack.c.0.s8 %v609
        %v2226 = vunpack.c.0.s8 %v610
        %v2227 = vunpack.c.0.s8 %v611
        %v2228 = vunpack.c.0.s8 %v612
        %v2229 = vunpack.c.1.s8 %v605
        %v2230 = vunpack.c.1.s8 %v606
        %v2231 = vunpack.c.1.s8 %v607
        %v2232 = vunpack.c.1.s8 %v608
        %v2233 = vunpack.c.1.s8 %v609
        %v2234 = vunpack.c.1.s8 %v610
        %v2235 = vunpack.c.1.s8 %v611
        %v2236 = vunpack.c.1.s8 %v612
        %v2237 = vunpack.c.2.s8 %v605
        %v2238 = vunpack.c.2.s8 %v606
        %v2239 = vunpack.c.2.s8 %v607
        %v2240 = vunpack.c.2.s8 %v608
        %v2241 = vunpack.c.2.s8 %v609
        %v2242 = vunpack.c.2.s8 %v610
        %v2243 = vunpack.c.2.s8 %v611
        %v2244 = vunpack.c.2.s8 %v612
        %v2245 = vunpack.c.3.s8 %v605
        %v2246 = vunpack.c.3.s8 %v606
        %v2247 = vunpack.c.3.s8 %v607
        %v2248 = vunpack.c.3.s8 %v608
        %v2249 = vunpack.c.3.s8 %v609
        %v2250 = vunpack.c.3.s8 %v610
        %v2251 = vunpack.c.3.s8 %v611
        %v2252 = vunpack.c.3.s8 %v612
        %v2253 = vunpack.c.0.s8 %v613
        %v2254 = vunpack.c.0.s8 %v614
        %v2255 = vunpack.c.0.s8 %v615
        %v2256 = vunpack.c.0.s8 %v616
        %v2257 = vunpack.c.0.s8 %v617
        %v2258 = vunpack.c.0.s8 %v618
        %v2259 = vunpack.c.0.s8 %v619
        %v2260 = vunpack.c.0.s8 %v620
        %v2261 = vunpack.c.1.s8 %v613
        %v2262 = vunpack.c.1.s8 %v614
        %v2263 = vunpack.c.1.s8 %v615
        %v2264 = vunpack.c.1.s8 %v616
        %v2265 = vunpack.c.1.s8 %v617
        %v2266 = vunpack.c.1.s8 %v618
        %v2267 = vunpack.c.1.s8 %v619
        %v2268 = vunpack.c.1.s8 %v620
        %v2269 = vunpack.c.2.s8 %v613
        %v2270 = vunpack.c.2.s8 %v614
        %v2271 = vunpack.c.2.s8 %v615
        %v2272 = vunpack.c.2.s8 %v616
        %v2273 = vunpack.c.2.s8 %v617
        %v2274 = vunpack.c.2.s8 %v618
        %v2275 = vunpack.c.2.s8 %v619
        %v2276 = vunpack.c.2.s8 %v620
        %v2277 = vunpack.c.3.s8 %v613
        %v2278 = vunpack.c.3.s8 %v614
        %v2279 = vunpack.c.3.s8 %v615
        %v2280 = vunpack.c.3.s8 %v616
        %v2281 = vunpack.c.3.s8 %v617
        %v2282 = vunpack.c.3.s8 %v618
        %v2283 = vunpack.c.3.s8 %v619
        %v2284 = vunpack.c.3.s8 %v620
        %v2285 = vunpack.c.0.s8 %v621
        %v2286 = vunpack.c.0.s8 %v622
        %v2287 = vunpack.c.0.s8 %v623
        %v2288 = vunpack.c.0.s8 %v624
        %v2289 = vunpack.c.0.s8 %v625
        %v2290 = vunpack.c.0.s8 %v626
        %v2291 = vunpack.c.0.s8 %v627
        %v2292 = vunpack.c.0.s8 %v628
        %v2293 = vunpack.c.1.s8 %v621
        %v2294 = vunpack.c.1.s8 %v622
        %v2295 = vunpack.c.1.s8 %v623
        %v2296 = vunpack.c.1.s8 %v624
        %v2297 = vunpack.c.1.s8 %v625
        %v2298 = vunpack.c.1.s8 %v626
        %v2299 = vunpack.c.1.s8 %v627
        %v2300 = vunpack.c.1.s8 %v628
        %v2301 = vunpack.c.2.s8 %v621
        %v2302 = vunpack.c.2.s8 %v622
        %v2303 = vunpack.c.2.s8 %v623
        %v2304 = vunpack.c.2.s8 %v624
        %v2305 = vunpack.c.2.s8 %v625
        %v2306 = vunpack.c.2.s8 %v626
        %v2307 = vunpack.c.2.s8 %v627
        %v2308 = vunpack.c.2.s8 %v628
        %v2309 = vunpack.c.3.s8 %v621
        %v2310 = vunpack.c.3.s8 %v622
        %v2311 = vunpack.c.3.s8 %v623
        %v2312 = vunpack.c.3.s8 %v624
        %v2313 = vunpack.c.3.s8 %v625
        %v2314 = vunpack.c.3.s8 %v626
        %v2315 = vunpack.c.3.s8 %v627
        %v2316 = vunpack.c.3.s8 %v628
        %v2317 = vunpack.c.0.s8 %v629
        %v2318 = vunpack.c.0.s8 %v630
        %v2319 = vunpack.c.0.s8 %v631
        %v2320 = vunpack.c.0.s8 %v632
        %v2321 = vunpack.c.0.s8 %v633
        %v2322 = vunpack.c.0.s8 %v634
        %v2323 = vunpack.c.0.s8 %v635
        %v2324 = vunpack.c.0.s8 %v636
        %v2325 = vunpack.c.1.s8 %v629
        %v2326 = vunpack.c.1.s8 %v630
        %v2327 = vunpack.c.1.s8 %v631
        %v2328 = vunpack.c.1.s8 %v632
        %v2329 = vunpack.c.1.s8 %v633
        %v2330 = vunpack.c.1.s8 %v634
        %v2331 = vunpack.c.1.s8 %v635
        %v2332 = vunpack.c.1.s8 %v636
        %v2333 = vunpack.c.2.s8 %v629
        %v2334 = vunpack.c.2.s8 %v630
        %v2335 = vunpack.c.2.s8 %v631
        %v2336 = vunpack.c.2.s8 %v632
        %v2337 = vunpack.c.2.s8 %v633
        %v2338 = vunpack.c.2.s8 %v634
        %v2339 = vunpack.c.2.s8 %v635
        %v2340 = vunpack.c.2.s8 %v636
        %v2341 = vunpack.c.3.s8 %v629
        %v2342 = vunpack.c.3.s8 %v630
        %v2343 = vunpack.c.3.s8 %v631
        %v2344 = vunpack.c.3.s8 %v632
        %v2345 = vunpack.c.3.s8 %v633
        %v2346 = vunpack.c.3.s8 %v634
        %v2347 = vunpack.c.3.s8 %v635
        %v2348 = vunpack.c.3.s8 %v636
        %v2349 = vunpack.c.0.s8 %v637
        %v2350 = vunpack.c.0.s8 %v638
        %v2351 = vunpack.c.0.s8 %v639
        %v2352 = vunpack.c.0.s8 %v640
        %v2353 = vunpack.c.0.s8 %v641
        %v2354 = vunpack.c.0.s8 %v642
        %v2355 = vunpack.c.0.s8 %v643
        %v2356 = vunpack.c.0.s8 %v644
        %v2357 = vunpack.c.1.s8 %v637
        %v2358 = vunpack.c.1.s8 %v638
        %v2359 = vunpack.c.1.s8 %v639
        %v2360 = vunpack.c.1.s8 %v640
        %v2361 = vunpack.c.1.s8 %v641
        %v2362 = vunpack.c.1.s8 %v642
        %v2363 = vunpack.c.1.s8 %v643
        %v2364 = vunpack.c.1.s8 %v644
        %v2365 = vunpack.c.2.s8 %v637
        %v2366 = vunpack.c.2.s8 %v638
        %v2367 = vunpack.c.2.s8 %v639
        %v2368 = vunpack.c.2.s8 %v640
        %v2369 = vunpack.c.2.s8 %v641
        %v2370 = vunpack.c.2.s8 %v642
        %v2371 = vunpack.c.2.s8 %v643
        %v2372 = vunpack.c.2.s8 %v644
        %v2373 = vunpack.c.3.s8 %v637
        %v2374 = vunpack.c.3.s8 %v638
        %v2375 = vunpack.c.3.s8 %v639
        %v2376 = vunpack.c.3.s8 %v640
        %v2377 = vunpack.c.3.s8 %v641
        %v2378 = vunpack.c.3.s8 %v642
        %v2379 = vunpack.c.3.s8 %v643
        %v2380 = vunpack.c.3.s8 %v644
        %v2381 = vunpack.c.0.s8 %v645
        %v2382 = vunpack.c.0.s8 %v646
        %v2383 = vunpack.c.0.s8 %v647
        %v2384 = vunpack.c.0.s8 %v648
        %v2385 = vunpack.c.0.s8 %v649
        %v2386 = vunpack.c.0.s8 %v650
        %v2387 = vunpack.c.0.s8 %v651
        %v2388 = vunpack.c.0.s8 %v652
        %v2389 = vunpack.c.1.s8 %v645
        %v2390 = vunpack.c.1.s8 %v646
        %v2391 = vunpack.c.1.s8 %v647
        %v2392 = vunpack.c.1.s8 %v648
        %v2393 = vunpack.c.1.s8 %v649
        %v2394 = vunpack.c.1.s8 %v650
        %v2395 = vunpack.c.1.s8 %v651
        %v2396 = vunpack.c.1.s8 %v652
        %v2397 = vunpack.c.2.s8 %v645
        %v2398 = vunpack.c.2.s8 %v646
        %v2399 = vunpack.c.2.s8 %v647
        %v2400 = vunpack.c.2.s8 %v648
        %v2401 = vunpack.c.2.s8 %v649
        %v2402 = vunpack.c.2.s8 %v650
        %v2403 = vunpack.c.2.s8 %v651
        %v2404 = vunpack.c.2.s8 %v652
        %v2405 = vunpack.c.3.s8 %v645
        %v2406 = vunpack.c.3.s8 %v646
        %v2407 = vunpack.c.3.s8 %v647
        %v2408 = vunpack.c.3.s8 %v648
        %v2409 = vunpack.c.3.s8 %v649
        %v2410 = vunpack.c.3.s8 %v650
        %v2411 = vunpack.c.3.s8 %v651
        %v2412 = vunpack.c.3.s8 %v652
        %v2413 = vunpack.c.0.s8 %v653
        %v2414 = vunpack.c.0.s8 %v654
        %v2415 = vunpack.c.0.s8 %v655
        %v2416 = vunpack.c.0.s8 %v656
        %v2417 = vunpack.c.0.s8 %v657
        %v2418 = vunpack.c.0.s8 %v658
        %v2419 = vunpack.c.0.s8 %v659
        %v2420 = vunpack.c.0.s8 %v660
        %v2421 = vunpack.c.1.s8 %v653
        %v2422 = vunpack.c.1.s8 %v654
        %v2423 = vunpack.c.1.s8 %v655
        %v2424 = vunpack.c.1.s8 %v656
        %v2425 = vunpack.c.1.s8 %v657
        %v2426 = vunpack.c.1.s8 %v658
        %v2427 = vunpack.c.1.s8 %v659
        %v2428 = vunpack.c.1.s8 %v660
        %v2429 = vunpack.c.2.s8 %v653
        %v2430 = vunpack.c.2.s8 %v654
        %v2431 = vunpack.c.2.s8 %v655
        %v2432 = vunpack.c.2.s8 %v656
        %v2433 = vunpack.c.2.s8 %v657
        %v2434 = vunpack.c.2.s8 %v658
        %v2435 = vunpack.c.2.s8 %v659
        %v2436 = vunpack.c.2.s8 %v660
        %v2437 = vunpack.c.3.s8 %v653
        %v2438 = vunpack.c.3.s8 %v654
        %v2439 = vunpack.c.3.s8 %v655
        %v2440 = vunpack.c.3.s8 %v656
        %v2441 = vunpack.c.3.s8 %v657
        %v2442 = vunpack.c.3.s8 %v658
        %v2443 = vunpack.c.3.s8 %v659
        %v2444 = vunpack.c.3.s8 %v660
        %v2445 = vunpack.c.0.s8 %v661
        %v2446 = vunpack.c.0.s8 %v662
        %v2447 = vunpack.c.0.s8 %v663
        %v2448 = vunpack.c.0.s8 %v664
        %v2449 = vunpack.c.0.s8 %v665
        %v2450 = vunpack.c.0.s8 %v666
        %v2451 = vunpack.c.0.s8 %v667
        %v2452 = vunpack.c.0.s8 %v668
        %v2453 = vunpack.c.1.s8 %v661
        %v2454 = vunpack.c.1.s8 %v662
        %v2455 = vunpack.c.1.s8 %v663
        %v2456 = vunpack.c.1.s8 %v664
        %v2457 = vunpack.c.1.s8 %v665
        %v2458 = vunpack.c.1.s8 %v666
        %v2459 = vunpack.c.1.s8 %v667
        %v2460 = vunpack.c.1.s8 %v668
        %v2461 = vunpack.c.2.s8 %v661
        %v2462 = vunpack.c.2.s8 %v662
        %v2463 = vunpack.c.2.s8 %v663
        %v2464 = vunpack.c.2.s8 %v664
        %v2465 = vunpack.c.2.s8 %v665
        %v2466 = vunpack.c.2.s8 %v666
        %v2467 = vunpack.c.2.s8 %v667
        %v2468 = vunpack.c.2.s8 %v668
        %v2469 = vunpack.c.3.s8 %v661
        %v2470 = vunpack.c.3.s8 %v662
        %v2471 = vunpack.c.3.s8 %v663
        %v2472 = vunpack.c.3.s8 %v664
        %v2473 = vunpack.c.3.s8 %v665
        %v2474 = vunpack.c.3.s8 %v666
        %v2475 = vunpack.c.3.s8 %v667
        %v2476 = vunpack.c.3.s8 %v668
        %v2477 = vunpack.c.0.s8 %v669
        %v2478 = vunpack.c.0.s8 %v670
        %v2479 = vunpack.c.0.s8 %v671
        %v2480 = vunpack.c.0.s8 %v672
        %v2481 = vunpack.c.0.s8 %v673
        %v2482 = vunpack.c.0.s8 %v674
        %v2483 = vunpack.c.0.s8 %v675
        %v2484 = vunpack.c.0.s8 %v676
        %v2485 = vunpack.c.1.s8 %v669
        %v2486 = vunpack.c.1.s8 %v670
        %v2487 = vunpack.c.1.s8 %v671
        %v2488 = vunpack.c.1.s8 %v672
        %v2489 = vunpack.c.1.s8 %v673
        %v2490 = vunpack.c.1.s8 %v674
        %v2491 = vunpack.c.1.s8 %v675
        %v2492 = vunpack.c.1.s8 %v676
        %v2493 = vunpack.c.2.s8 %v669
        %v2494 = vunpack.c.2.s8 %v670
        %v2495 = vunpack.c.2.s8 %v671
        %v2496 = vunpack.c.2.s8 %v672
        %v2497 = vunpack.c.2.s8 %v673
        %v2498 = vunpack.c.2.s8 %v674
        %v2499 = vunpack.c.2.s8 %v675
        %v2500 = vunpack.c.2.s8 %v676
        %v2501 = vunpack.c.3.s8 %v669
        %v2502 = vunpack.c.3.s8 %v670
        %v2503 = vunpack.c.3.s8 %v671
        %v2504 = vunpack.c.3.s8 %v672
        %v2505 = vunpack.c.3.s8 %v673
        %v2506 = vunpack.c.3.s8 %v674
        %v2507 = vunpack.c.3.s8 %v675
        %v2508 = vunpack.c.3.s8 %v676
        %v2509 = vunpack.c.0.s8 %v677
        %v2510 = vunpack.c.0.s8 %v678
        %v2511 = vunpack.c.0.s8 %v679
        %v2512 = vunpack.c.0.s8 %v680
        %v2513 = vunpack.c.0.s8 %v681
        %v2514 = vunpack.c.0.s8 %v682
        %v2515 = vunpack.c.0.s8 %v683
        %v2516 = vunpack.c.0.s8 %v684
        %v2517 = vunpack.c.1.s8 %v677
        %v2518 = vunpack.c.1.s8 %v678
        %v2519 = vunpack.c.1.s8 %v679
        %v2520 = vunpack.c.1.s8 %v680
        %v2521 = vunpack.c.1.s8 %v681
        %v2522 = vunpack.c.1.s8 %v682
        %v2523 = vunpack.c.1.s8 %v683
        %v2524 = vunpack.c.1.s8 %v684
        %v2525 = vunpack.c.2.s8 %v677
        %v2526 = vunpack.c.2.s8 %v678
        %v2527 = vunpack.c.2.s8 %v679
        %v2528 = vunpack.c.2.s8 %v680
        %v2529 = vunpack.c.2.s8 %v681
        %v2530 = vunpack.c.2.s8 %v682
        %v2531 = vunpack.c.2.s8 %v683
        %v2532 = vunpack.c.2.s8 %v684
        %v2533 = vunpack.c.3.s8 %v677
        %v2534 = vunpack.c.3.s8 %v678
        %v2535 = vunpack.c.3.s8 %v679
        %v2536 = vunpack.c.3.s8 %v680
        %v2537 = vunpack.c.3.s8 %v681
        %v2538 = vunpack.c.3.s8 %v682
        %v2539 = vunpack.c.3.s8 %v683
        %v2540 = vunpack.c.3.s8 %v684
        %v2541 = vunpack.c.0.s8 %v685
        %v2542 = vunpack.c.0.s8 %v686
        %v2543 = vunpack.c.0.s8 %v687
        %v2544 = vunpack.c.0.s8 %v688
        %v2545 = vunpack.c.0.s8 %v689
        %v2546 = vunpack.c.0.s8 %v690
        %v2547 = vunpack.c.0.s8 %v691
        %v2548 = vunpack.c.0.s8 %v692
        %v2549 = vunpack.c.1.s8 %v685
        %v2550 = vunpack.c.1.s8 %v686
        %v2551 = vunpack.c.1.s8 %v687
        %v2552 = vunpack.c.1.s8 %v688
        %v2553 = vunpack.c.1.s8 %v689
        %v2554 = vunpack.c.1.s8 %v690
        %v2555 = vunpack.c.1.s8 %v691
        %v2556 = vunpack.c.1.s8 %v692
        %v2557 = vunpack.c.2.s8 %v685
        %v2558 = vunpack.c.2.s8 %v686
        %v2559 = vunpack.c.2.s8 %v687
        %v2560 = vunpack.c.2.s8 %v688
        %v2561 = vunpack.c.2.s8 %v689
        %v2562 = vunpack.c.2.s8 %v690
        %v2563 = vunpack.c.2.s8 %v691
        %v2564 = vunpack.c.2.s8 %v692
        %v2565 = vunpack.c.3.s8 %v685
        %v2566 = vunpack.c.3.s8 %v686
        %v2567 = vunpack.c.3.s8 %v687
        %v2568 = vunpack.c.3.s8 %v688
        %v2569 = vunpack.c.3.s8 %v689
        %v2570 = vunpack.c.3.s8 %v690
        %v2571 = vunpack.c.3.s8 %v691
        %v2572 = vunpack.c.3.s8 %v692
        %v2573 = vunpack.c.0.s8 %v693
        %v2574 = vunpack.c.0.s8 %v694
        %v2575 = vunpack.c.0.s8 %v695
        %v2576 = vunpack.c.0.s8 %v696
        %v2577 = vunpack.c.0.s8 %v697
        %v2578 = vunpack.c.0.s8 %v698
        %v2579 = vunpack.c.0.s8 %v699
        %v2580 = vunpack.c.0.s8 %v700
        %v2581 = vunpack.c.1.s8 %v693
        %v2582 = vunpack.c.1.s8 %v694
        %v2583 = vunpack.c.1.s8 %v695
        %v2584 = vunpack.c.1.s8 %v696
        %v2585 = vunpack.c.1.s8 %v697
        %v2586 = vunpack.c.1.s8 %v698
        %v2587 = vunpack.c.1.s8 %v699
        %v2588 = vunpack.c.1.s8 %v700
        %v2589 = vunpack.c.2.s8 %v693
        %v2590 = vunpack.c.2.s8 %v694
        %v2591 = vunpack.c.2.s8 %v695
        %v2592 = vunpack.c.2.s8 %v696
        %v2593 = vunpack.c.2.s8 %v697
        %v2594 = vunpack.c.2.s8 %v698
        %v2595 = vunpack.c.2.s8 %v699
        %v2596 = vunpack.c.2.s8 %v700
        %v2597 = vunpack.c.3.s8 %v693
        %v2598 = vunpack.c.3.s8 %v694
        %v2599 = vunpack.c.3.s8 %v695
        %v2600 = vunpack.c.3.s8 %v696
        %v2601 = vunpack.c.3.s8 %v697
        %v2602 = vunpack.c.3.s8 %v698
        %v2603 = vunpack.c.3.s8 %v699
        %v2604 = vunpack.c.3.s8 %v700
        %v2605 = vunpack.c.0.s8 %v701
        %v2606 = vunpack.c.0.s8 %v702
        %v2607 = vunpack.c.0.s8 %v703
        %v2608 = vunpack.c.0.s8 %v704
        %v2609 = vunpack.c.0.s8 %v705
        %v2610 = vunpack.c.0.s8 %v706
        %v2611 = vunpack.c.0.s8 %v707
        %v2612 = vunpack.c.0.s8 %v708
        %v2613 = vunpack.c.1.s8 %v701
        %v2614 = vunpack.c.1.s8 %v702
        %v2615 = vunpack.c.1.s8 %v703
        %v2616 = vunpack.c.1.s8 %v704
        %v2617 = vunpack.c.1.s8 %v705
        %v2618 = vunpack.c.1.s8 %v706
        %v2619 = vunpack.c.1.s8 %v707
        %v2620 = vunpack.c.1.s8 %v708
        %v2621 = vunpack.c.2.s8 %v701
        %v2622 = vunpack.c.2.s8 %v702
        %v2623 = vunpack.c.2.s8 %v703
        %v2624 = vunpack.c.2.s8 %v704
        %v2625 = vunpack.c.2.s8 %v705
        %v2626 = vunpack.c.2.s8 %v706
        %v2627 = vunpack.c.2.s8 %v707
        %v2628 = vunpack.c.2.s8 %v708
        %v2629 = vunpack.c.3.s8 %v701
        %v2630 = vunpack.c.3.s8 %v702
        %v2631 = vunpack.c.3.s8 %v703
        %v2632 = vunpack.c.3.s8 %v704
        %v2633 = vunpack.c.3.s8 %v705
        %v2634 = vunpack.c.3.s8 %v706
        %v2635 = vunpack.c.3.s8 %v707
        %v2636 = vunpack.c.3.s8 %v708
        %v2637 = vunpack.c.0.s8 %v709
        %v2638 = vunpack.c.0.s8 %v710
        %v2639 = vunpack.c.0.s8 %v711
        %v2640 = vunpack.c.0.s8 %v712
        %v2641 = vunpack.c.0.s8 %v713
        %v2642 = vunpack.c.0.s8 %v714
        %v2643 = vunpack.c.0.s8 %v715
        %v2644 = vunpack.c.0.s8 %v716
        %v2645 = vunpack.c.1.s8 %v709
        %v2646 = vunpack.c.1.s8 %v710
        %v2647 = vunpack.c.1.s8 %v711
        %v2648 = vunpack.c.1.s8 %v712
        %v2649 = vunpack.c.1.s8 %v713
        %v2650 = vunpack.c.1.s8 %v714
        %v2651 = vunpack.c.1.s8 %v715
        %v2652 = vunpack.c.1.s8 %v716
        %v2653 = vunpack.c.2.s8 %v709
        %v2654 = vunpack.c.2.s8 %v710
        %v2655 = vunpack.c.2.s8 %v711
        %v2656 = vunpack.c.2.s8 %v712
        %v2657 = vunpack.c.2.s8 %v713
        %v2658 = vunpack.c.2.s8 %v714
        %v2659 = vunpack.c.2.s8 %v715
        %v2660 = vunpack.c.2.s8 %v716
        %v2661 = vunpack.c.3.s8 %v709
        %v2662 = vunpack.c.3.s8 %v710
        %v2663 = vunpack.c.3.s8 %v711
        %v2664 = vunpack.c.3.s8 %v712
        %v2665 = vunpack.c.3.s8 %v713
        %v2666 = vunpack.c.3.s8 %v714
        %v2667 = vunpack.c.3.s8 %v715
        %v2668 = vunpack.c.3.s8 %v716
        %v2669 = vunpack.c.0.s8 %v717
        %v2670 = vunpack.c.0.s8 %v718
        %v2671 = vunpack.c.0.s8 %v719
        %v2672 = vunpack.c.0.s8 %v720
        %v2673 = vunpack.c.0.s8 %v721
        %v2674 = vunpack.c.0.s8 %v722
        %v2675 = vunpack.c.0.s8 %v723
        %v2676 = vunpack.c.0.s8 %v724
        %v2677 = vunpack.c.1.s8 %v717
        %v2678 = vunpack.c.1.s8 %v718
        %v2679 = vunpack.c.1.s8 %v719
        %v2680 = vunpack.c.1.s8 %v720
        %v2681 = vunpack.c.1.s8 %v721
        %v2682 = vunpack.c.1.s8 %v722
        %v2683 = vunpack.c.1.s8 %v723
        %v2684 = vunpack.c.1.s8 %v724
        %v2685 = vunpack.c.2.s8 %v717
        %v2686 = vunpack.c.2.s8 %v718
        %v2687 = vunpack.c.2.s8 %v719
        %v2688 = vunpack.c.2.s8 %v720
        %v2689 = vunpack.c.2.s8 %v721
        %v2690 = vunpack.c.2.s8 %v722
        %v2691 = vunpack.c.2.s8 %v723
        %v2692 = vunpack.c.2.s8 %v724
        %v2693 = vunpack.c.3.s8 %v717
        %v2694 = vunpack.c.3.s8 %v718
        %v2695 = vunpack.c.3.s8 %v719
        %v2696 = vunpack.c.3.s8 %v720
        %v2697 = vunpack.c.3.s8 %v721
        %v2698 = vunpack.c.3.s8 %v722
        %v2699 = vunpack.c.3.s8 %v723
        %v2700 = vunpack.c.3.s8 %v724
        %v2701 = vunpack.c.0.s8 %v725
        %v2702 = vunpack.c.0.s8 %v726
        %v2703 = vunpack.c.0.s8 %v727
        %v2704 = vunpack.c.0.s8 %v728
        %v2705 = vunpack.c.0.s8 %v729
        %v2706 = vunpack.c.0.s8 %v730
        %v2707 = vunpack.c.0.s8 %v731
        %v2708 = vunpack.c.0.s8 %v732
        %v2709 = vunpack.c.1.s8 %v725
        %v2710 = vunpack.c.1.s8 %v726
        %v2711 = vunpack.c.1.s8 %v727
        %v2712 = vunpack.c.1.s8 %v728
        %v2713 = vunpack.c.1.s8 %v729
        %v2714 = vunpack.c.1.s8 %v730
        %v2715 = vunpack.c.1.s8 %v731
        %v2716 = vunpack.c.1.s8 %v732
        %v2717 = vunpack.c.2.s8 %v725
        %v2718 = vunpack.c.2.s8 %v726
        %v2719 = vunpack.c.2.s8 %v727
        %v2720 = vunpack.c.2.s8 %v728
        %v2721 = vunpack.c.2.s8 %v729
        %v2722 = vunpack.c.2.s8 %v730
        %v2723 = vunpack.c.2.s8 %v731
        %v2724 = vunpack.c.2.s8 %v732
        %v2725 = vunpack.c.3.s8 %v725
        %v2726 = vunpack.c.3.s8 %v726
        %v2727 = vunpack.c.3.s8 %v727
        %v2728 = vunpack.c.3.s8 %v728
        %v2729 = vunpack.c.3.s8 %v729
        %v2730 = vunpack.c.3.s8 %v730
        %v2731 = vunpack.c.3.s8 %v731
        %v2732 = vunpack.c.3.s8 %v732
        %v2733 = vunpack.c.0.s8 %v733
        %v2734 = vunpack.c.0.s8 %v734
        %v2735 = vunpack.c.0.s8 %v735
        %v2736 = vunpack.c.0.s8 %v736
        %v2737 = vunpack.c.0.s8 %v737
        %v2738 = vunpack.c.0.s8 %v738
        %v2739 = vunpack.c.0.s8 %v739
        %v2740 = vunpack.c.0.s8 %v740
        %v2741 = vunpack.c.1.s8 %v733
        %v2742 = vunpack.c.1.s8 %v734
        %v2743 = vunpack.c.1.s8 %v735
        %v2744 = vunpack.c.1.s8 %v736
        %v2745 = vunpack.c.1.s8 %v737
        %v2746 = vunpack.c.1.s8 %v738
        %v2747 = vunpack.c.1.s8 %v739
        %v2748 = vunpack.c.1.s8 %v740
        %v2749 = vunpack.c.2.s8 %v733
        %v2750 = vunpack.c.2.s8 %v734
        %v2751 = vunpack.c.2.s8 %v735
        %v2752 = vunpack.c.2.s8 %v736
        %v2753 = vunpack.c.2.s8 %v737
        %v2754 = vunpack.c.2.s8 %v738
        %v2755 = vunpack.c.2.s8 %v739
        %v2756 = vunpack.c.2.s8 %v740
        %v2757 = vunpack.c.3.s8 %v733
        %v2758 = vunpack.c.3.s8 %v734
        %v2759 = vunpack.c.3.s8 %v735
        %v2760 = vunpack.c.3.s8 %v736
        %v2761 = vunpack.c.3.s8 %v737
        %v2762 = vunpack.c.3.s8 %v738
        %v2763 = vunpack.c.3.s8 %v739
        %v2764 = vunpack.c.3.s8 %v740
        %v2765 = vunpack.c.0.s8 %v741
        %v2766 = vunpack.c.0.s8 %v742
        %v2767 = vunpack.c.0.s8 %v743
        %v2768 = vunpack.c.0.s8 %v744
        %v2769 = vunpack.c.0.s8 %v745
        %v2770 = vunpack.c.0.s8 %v746
        %v2771 = vunpack.c.0.s8 %v747
        %v2772 = vunpack.c.0.s8 %v748
        %v2773 = vunpack.c.1.s8 %v741
        %v2774 = vunpack.c.1.s8 %v742
        %v2775 = vunpack.c.1.s8 %v743
        %v2776 = vunpack.c.1.s8 %v744
        %v2777 = vunpack.c.1.s8 %v745
        %v2778 = vunpack.c.1.s8 %v746
        %v2779 = vunpack.c.1.s8 %v747
        %v2780 = vunpack.c.1.s8 %v748
        %v2781 = vunpack.c.2.s8 %v741
        %v2782 = vunpack.c.2.s8 %v742
        %v2783 = vunpack.c.2.s8 %v743
        %v2784 = vunpack.c.2.s8 %v744
        %v2785 = vunpack.c.2.s8 %v745
        %v2786 = vunpack.c.2.s8 %v746
        %v2787 = vunpack.c.2.s8 %v747
        %v2788 = vunpack.c.2.s8 %v748
        %v2789 = vunpack.c.3.s8 %v741
        %v2790 = vunpack.c.3.s8 %v742
        %v2791 = vunpack.c.3.s8 %v743
        %v2792 = vunpack.c.3.s8 %v744
        %v2793 = vunpack.c.3.s8 %v745
        %v2794 = vunpack.c.3.s8 %v746
        %v2795 = vunpack.c.3.s8 %v747
        %v2796 = vunpack.c.3.s8 %v748
        %v2797 = vcvt.s32.f32 %v749
        %v2798 = vcvt.s32.f32 %v750
        %v2799 = vcvt.s32.f32 %v751
        %v2800 = vcvt.s32.f32 %v752
        %v2801 = vcvt.s32.f32 %v753
        %v2802 = vcvt.s32.f32 %v754
        %v2803 = vcvt.s32.f32 %v755
        %v2804 = vcvt.s32.f32 %v756
        %v2805 = vcvt.s32.f32 %v757
        %v2806 = vcvt.s32.f32 %v758
        %v2807 = vcvt.s32.f32 %v759
        %v2808 = vcvt.s32.f32 %v760
        %v2809 = vcvt.s32.f32 %v761
        %v2810 = vcvt.s32.f32 %v762
        %v2811 = vcvt.s32.f32 %v763
        %v2812 = vcvt.s32.f32 %v764
        %v2813 = vcvt.s32.f32 %v765
        %v2814 = vcvt.s32.f32 %v766
        %v2815 = vcvt.s32.f32 %v767
        %v2816 = vcvt.s32.f32 %v768
        %v2817 = vcvt.s32.f32 %v769
        %v2818 = vcvt.s32.f32 %v770
        %v2819 = vcvt.s32.f32 %v771
        %v2820 = vcvt.s32.f32 %v772
        %v2821 = vcvt.s32.f32 %v773
        %v2822 = vcvt.s32.f32 %v774
        %v2823 = vcvt.s32.f32 %v775
        %v2824 = vcvt.s32.f32 %v776
        %v2825 = vcvt.s32.f32 %v777
        %v2826 = vcvt.s32.f32 %v778
        %v2827 = vcvt.s32.f32 %v779
        %v2828 = vcvt.s32.f32 %v780
        %v2829 = vcvt.s32.f32 %v781
        %v2830 = vcvt.s32.f32 %v782
        %v2831 = vcvt.s32.f32 %v783
        %v2832 = vcvt.s32.f32 %v784
        %v2833 = vcvt.s32.f32 %v785
        %v2834 = vcvt.s32.f32 %v786
        %v2835 = vcvt.s32.f32 %v787
        %v2836 = vcvt.s32.f32 %v788
        %v2837 = vcvt.s32.f32 %v789
        %v2838 = vcvt.s32.f32 %v790
        %v2839 = vcvt.s32.f32 %v791
        %v2840 = vcvt.s32.f32 %v792
        %v2841 = vcvt.s32.f32 %v793
        %v2842 = vcvt.s32.f32 %v794
        %v2843 = vcvt.s32.f32 %v795
        %v2844 = vcvt.s32.f32 %v796
        %v2845 = vcvt.s32.f32 %v797
        %v2846 = vcvt.s32.f32 %v798
        %v2847 = vcvt.s32.f32 %v799
        %v2848 = vcvt.s32.f32 %v800
        %v2849 = vcvt.s32.f32 %v801
        %v2850 = vcvt.s32.f32 %v802
        %v2851 = vcvt.s32.f32 %v803
        %v2852 = vcvt.s32.f32 %v804
        %v2853 = vcvt.s32.f32 %v805
        %v2854 = vcvt.s32.f32 %v806
        %v2855 = vcvt.s32.f32 %v807
        %v2856 = vcvt.s32.f32 %v808
        %v2857 = vcvt.s32.f32 %v809
        %v2858 = vcvt.s32.f32 %v810
        %v2859 = vcvt.s32.f32 %v811
        %v2860 = vcvt.s32.f32 %v812
        %v2861 = vcvt.s32.f32 %v813
        %v2862 = vcvt.s32.f32 %v814
        %v2863 = vcvt.s32.f32 %v815
        %v2864 = vcvt.s32.f32 %v816
        %v2865 = vcvt.s32.f32 %v817
        %v2866 = vcvt.s32.f32 %v818
        %v2867 = vcvt.s32.f32 %v819
        %v2868 = vcvt.s32.f32 %v820
        %v2869 = vcvt.s32.f32 %v821
        %v2870 = vcvt.s32.f32 %v822
        %v2871 = vcvt.s32.f32 %v823
        %v2872 = vcvt.s32.f32 %v824
        %v2873 = vcvt.s32.f32 %v825
        %v2874 = vcvt.s32.f32 %v826
        %v2875 = vcvt.s32.f32 %v827
        %v2876 = vcvt.s32.f32 %v828
        %v2877 = vcvt.s32.f32 %v829
        %v2878 = vcvt.s32.f32 %v830
        %v2879 = vcvt.s32.f32 %v831
        %v2880 = vcvt.s32.f32 %v832
        %v2881 = vcvt.s32.f32 %v833
        %v2882 = vcvt.s32.f32 %v834
        %v2883 = vcvt.s32.f32 %v835
        %v2884 = vcvt.s32.f32 %v836
        %v2885 = vcvt.s32.f32 %v837
        %v2886 = vcvt.s32.f32 %v838
        %v2887 = vcvt.s32.f32 %v839
        %v2888 = vcvt.s32.f32 %v840
        %v2889 = vcvt.s32.f32 %v841
        %v2890 = vcvt.s32.f32 %v842
        %v2891 = vcvt.s32.f32 %v843
        %v2892 = vcvt.s32.f32 %v844
        %v2893 = vcvt.s32.f32 %v845
        %v2894 = vcvt.s32.f32 %v846
        %v2895 = vcvt.s32.f32 %v847
        %v2896 = vcvt.s32.f32 %v848
        %v2897 = vcvt.s32.f32 %v849
        %v2898 = vcvt.s32.f32 %v850
        %v2899 = vcvt.s32.f32 %v851
        %v2900 = vcvt.s32.f32 %v852
        %v2901 = vcvt.s32.f32 %v853
        %v2902 = vcvt.s32.f32 %v854
        %v2903 = vcvt.s32.f32 %v855
        %v2904 = vcvt.s32.f32 %v856
        %v2905 = vcvt.s32.f32 %v857
        %v2906 = vcvt.s32.f32 %v858
        %v2907 = vcvt.s32.f32 %v859
        %v2908 = vcvt.s32.f32 %v860
        %v2909 = vcvt.s32.f32 %v861
        %v2910 = vcvt.s32.f32 %v862
        %v2911 = vcvt.s32.f32 %v863
        %v2912 = vcvt.s32.f32 %v864
        %v2913 = vcvt.s32.f32 %v865
        %v2914 = vcvt.s32.f32 %v866
        %v2915 = vcvt.s32.f32 %v867
        %v2916 = vcvt.s32.f32 %v868
        %v2917 = vcvt.s32.f32 %v869
        %v2918 = vcvt.s32.f32 %v870
        %v2919 = vcvt.s32.f32 %v871
        %v2920 = vcvt.s32.f32 %v872
        %v2921 = vcvt.s32.f32 %v873
        %v2922 = vcvt.s32.f32 %v874
        %v2923 = vcvt.s32.f32 %v875
        %v2924 = vcvt.s32.f32 %v876
        %v2925 = vcvt.s32.f32 %v877
        %v2926 = vcvt.s32.f32 %v878
        %v2927 = vcvt.s32.f32 %v879
        %v2928 = vcvt.s32.f32 %v880
        %v2929 = vcvt.s32.f32 %v881
        %v2930 = vcvt.s32.f32 %v882
        %v2931 = vcvt.s32.f32 %v883
        %v2932 = vcvt.s32.f32 %v884
        %v2933 = vcvt.s32.f32 %v885
        %v2934 = vcvt.s32.f32 %v886
        %v2935 = vcvt.s32.f32 %v887
        %v2936 = vcvt.s32.f32 %v888
        %v2937 = vcvt.s32.f32 %v889
        %v2938 = vcvt.s32.f32 %v890
        %v2939 = vcvt.s32.f32 %v891
        %v2940 = vcvt.s32.f32 %v892
        %v2941 = vcvt.s32.f32 %v893
        %v2942 = vcvt.s32.f32 %v894
        %v2943 = vcvt.s32.f32 %v895
        %v2944 = vcvt.s32.f32 %v896
        %v2945 = vcvt.s32.f32 %v897
        %v2946 = vcvt.s32.f32 %v898
        %v2947 = vcvt.s32.f32 %v899
        %v2948 = vcvt.s32.f32 %v900
        %v2949 = vcvt.s32.f32 %v901
        %v2950 = vcvt.s32.f32 %v902
        %v2951 = vcvt.s32.f32 %v903
        %v2952 = vcvt.s32.f32 %v904
        %v2953 = vcvt.s32.f32 %v905
        %v2954 = vcvt.s32.f32 %v906
        %v2955 = vcvt.s32.f32 %v907
        %v2956 = vcvt.s32.f32 %v908
        %v2957 = vcvt.s32.f32 %v909
        %v2958 = vcvt.s32.f32 %v910
        %v2959 = vcvt.s32.f32 %v911
        %v2960 = vcvt.s32.f32 %v912
        %v2961 = vcvt.s32.f32 %v913
        %v2962 = vcvt.s32.f32 %v914
        %v2963 = vcvt.s32.f32 %v915
        %v2964 = vcvt.s32.f32 %v916
        %v2965 = vcvt.s32.f32 %v917
        %v2966 = vcvt.s32.f32 %v918
        %v2967 = vcvt.s32.f32 %v919
        %v2968 = vcvt.s32.f32 %v920
        %v2969 = vcvt.s32.f32 %v921
        %v2970 = vcvt.s32.f32 %v922
        %v2971 = vcvt.s32.f32 %v923
        %v2972 = vcvt.s32.f32 %v924
        %v2973 = vcvt.s32.f32 %v925
        %v2974 = vcvt.s32.f32 %v926
        %v2975 = vcvt.s32.f32 %v927
        %v2976 = vcvt.s32.f32 %v928
        %v2977 = vcvt.s32.f32 %v929
        %v2978 = vcvt.s32.f32 %v930
        %v2979 = vcvt.s32.f32 %v931
        %v2980 = vcvt.s32.f32 %v932
        %v2981 = vcvt.s32.f32 %v933
        %v2982 = vcvt.s32.f32 %v934
        %v2983 = vcvt.s32.f32 %v935
        %v2984 = vcvt.s32.f32 %v936
        %v2985 = vcvt.s32.f32 %v937
        %v2986 = vcvt.s32.f32 %v938
        %v2987 = vcvt.s32.f32 %v939
        %v2988 = vcvt.s32.f32 %v940
        %v2989 = vcvt.s32.f32 %v941
        %v2990 = vcvt.s32.f32 %v942
        %v2991 = vcvt.s32.f32 %v943
        %v2992 = vcvt.s32.f32 %v944
        %v2993 = vcvt.s32.f32 %v945
        %v2994 = vcvt.s32.f32 %v946
        %v2995 = vcvt.s32.f32 %v947
        %v2996 = vcvt.s32.f32 %v948
        %v2997 = vcvt.s32.f32 %v949
        %v2998 = vcvt.s32.f32 %v950
        %v2999 = vcvt.s32.f32 %v951
        %v3000 = vcvt.s32.f32 %v952
        %v3001 = vcvt.s32.f32 %v953
        %v3002 = vcvt.s32.f32 %v954
        %v3003 = vcvt.s32.f32 %v955
        %v3004 = vcvt.s32.f32 %v956
        %v3005 = vcvt.s32.f32 %v957
        %v3006 = vcvt.s32.f32 %v958
        %v3007 = vcvt.s32.f32 %v959
        %v3008 = vcvt.s32.f32 %v960
        %v3009 = vcvt.s32.f32 %v961
        %v3010 = vcvt.s32.f32 %v962
        %v3011 = vcvt.s32.f32 %v963
        %v3012 = vcvt.s32.f32 %v964
        %v3013 = vcvt.s32.f32 %v965
        %v3014 = vcvt.s32.f32 %v966
        %v3015 = vcvt.s32.f32 %v967
        %v3016 = vcvt.s32.f32 %v968
        %v3017 = vcvt.s32.f32 %v969
        %v3018 = vcvt.s32.f32 %v970
        %v3019 = vcvt.s32.f32 %v971
        %v3020 = vcvt.s32.f32 %v972
        %v3021 = vcvt.s32.f32 %v973
        %v3022 = vcvt.s32.f32 %v974
        %v3023 = vcvt.s32.f32 %v975
        %v3024 = vcvt.s32.f32 %v976
        %v3025 = vcvt.s32.f32 %v977
        %v3026 = vcvt.s32.f32 %v978
        %v3027 = vcvt.s32.f32 %v979
        %v3028 = vcvt.s32.f32 %v980
        %v3029 = vcvt.s32.f32 %v981
        %v3030 = vcvt.s32.f32 %v982
        %v3031 = vcvt.s32.f32 %v983
        %v3032 = vcvt.s32.f32 %v984
        %v3033 = vcvt.s32.f32 %v985
        %v3034 = vcvt.s32.f32 %v986
        %v3035 = vcvt.s32.f32 %v987
        %v3036 = vcvt.s32.f32 %v988
        %v3037 = vcvt.s32.f32 %v989
        %v3038 = vcvt.s32.f32 %v990
        %v3039 = vcvt.s32.f32 %v991
        %v3040 = vcvt.s32.f32 %v992
        %v3041 = vcvt.s32.f32 %v993
        %v3042 = vcvt.s32.f32 %v994
        %v3043 = vcvt.s32.f32 %v995
        %v3044 = vcvt.s32.f32 %v996
        %v3045 = vcvt.s32.f32 %v997
        %v3046 = vcvt.s32.f32 %v998
        %v3047 = vcvt.s32.f32 %v999
        %v3048 = vcvt.s32.f32 %v1000
        %v3049 = vcvt.s32.f32 %v1001
        %v3050 = vcvt.s32.f32 %v1002
        %v3051 = vcvt.s32.f32 %v1003
        %v3052 = vcvt.s32.f32 %v1004
        %v3053 = vcvt.s32.f32 %v1005
        %v3054 = vcvt.s32.f32 %v1006
        %v3055 = vcvt.s32.f32 %v1007
        %v3056 = vcvt.s32.f32 %v1008
        %v3057 = vcvt.s32.f32 %v1009
        %v3058 = vcvt.s32.f32 %v1010
        %v3059 = vcvt.s32.f32 %v1011
        %v3060 = vcvt.s32.f32 %v1012
        %v3061 = vcvt.s32.f32 %v1013
        %v3062 = vcvt.s32.f32 %v1014
        %v3063 = vcvt.s32.f32 %v1015
        %v3064 = vcvt.s32.f32 %v1016
        %v3065 = vcvt.s32.f32 %v1017
        %v3066 = vcvt.s32.f32 %v1018
        %v3067 = vcvt.s32.f32 %v1019
        %v3068 = vcvt.s32.f32 %v1020
        %v3069 = vcvt.s32.f32 %v1021
        %v3070 = vcvt.s32.f32 %v1022
        %v3071 = vcvt.s32.f32 %v1023
        %v3072 = vcvt.s32.f32 %v1024
        %v3073 = vcvt.s32.f32 %v1025
        %v3074 = vcvt.s32.f32 %v1026
        %v3075 = vcvt.s32.f32 %v1027
        %v3076 = vcvt.s32.f32 %v1028
        %v3077 = vcvt.s32.f32 %v1029
        %v3078 = vcvt.s32.f32 %v1030
        %v3079 = vcvt.s32.f32 %v1031
        %v3080 = vcvt.s32.f32 %v1032
        %v3081 = vcvt.s32.f32 %v1033
        %v3082 = vcvt.s32.f32 %v1034
        %v3083 = vcvt.s32.f32 %v1035
        %v3084 = vcvt.s32.f32 %v1036
        %v3085 = vcvt.s32.f32 %v1037
        %v3086 = vcvt.s32.f32 %v1038
        %v3087 = vcvt.s32.f32 %v1039
        %v3088 = vcvt.s32.f32 %v1040
        %v3089 = vcvt.s32.f32 %v1041
        %v3090 = vcvt.s32.f32 %v1042
        %v3091 = vcvt.s32.f32 %v1043
        %v3092 = vcvt.s32.f32 %v1044
        %v3093 = vcvt.s32.f32 %v1045
        %v3094 = vcvt.s32.f32 %v1046
        %v3095 = vcvt.s32.f32 %v1047
        %v3096 = vcvt.s32.f32 %v1048
        %v3097 = vcvt.s32.f32 %v1049
        %v3098 = vcvt.s32.f32 %v1050
        %v3099 = vcvt.s32.f32 %v1051
        %v3100 = vcvt.s32.f32 %v1052
        %v3101 = vcvt.s32.f32 %v1053
        %v3102 = vcvt.s32.f32 %v1054
        %v3103 = vcvt.s32.f32 %v1055
        %v3104 = vcvt.s32.f32 %v1056
        %v3105 = vcvt.s32.f32 %v1057
        %v3106 = vcvt.s32.f32 %v1058
        %v3107 = vcvt.s32.f32 %v1059
        %v3108 = vcvt.s32.f32 %v1060
        %v3109 = vcvt.s32.f32 %v1061
        %v3110 = vcvt.s32.f32 %v1062
        %v3111 = vcvt.s32.f32 %v1063
        %v3112 = vcvt.s32.f32 %v1064
        %v3113 = vcvt.s32.f32 %v1065
        %v3114 = vcvt.s32.f32 %v1066
        %v3115 = vcvt.s32.f32 %v1067
        %v3116 = vcvt.s32.f32 %v1068
        %v3117 = vcvt.s32.f32 %v1069
        %v3118 = vcvt.s32.f32 %v1070
        %v3119 = vcvt.s32.f32 %v1071
        %v3120 = vcvt.s32.f32 %v1072
        %v3121 = vcvt.s32.f32 %v1073
        %v3122 = vcvt.s32.f32 %v1074
        %v3123 = vcvt.s32.f32 %v1075
        %v3124 = vcvt.s32.f32 %v1076
        %v3125 = vcvt.s32.f32 %v1077
        %v3126 = vcvt.s32.f32 %v1078
        %v3127 = vcvt.s32.f32 %v1079
        %v3128 = vcvt.s32.f32 %v1080
        %v3129 = vcvt.s32.f32 %v1081
        %v3130 = vcvt.s32.f32 %v1082
        %v3131 = vcvt.s32.f32 %v1083
        %v3132 = vcvt.s32.f32 %v1084
        %v3133 = vcvt.s32.f32 %v1085
        %v3134 = vcvt.s32.f32 %v1086
        %v3135 = vcvt.s32.f32 %v1087
        %v3136 = vcvt.s32.f32 %v1088
        %v3137 = vcvt.s32.f32 %v1089
        %v3138 = vcvt.s32.f32 %v1090
        %v3139 = vcvt.s32.f32 %v1091
        %v3140 = vcvt.s32.f32 %v1092
        %v3141 = vcvt.s32.f32 %v1093
        %v3142 = vcvt.s32.f32 %v1094
        %v3143 = vcvt.s32.f32 %v1095
        %v3144 = vcvt.s32.f32 %v1096
        %v3145 = vcvt.s32.f32 %v1097
        %v3146 = vcvt.s32.f32 %v1098
        %v3147 = vcvt.s32.f32 %v1099
        %v3148 = vcvt.s32.f32 %v1100
        %v3149 = vcvt.s32.f32 %v1101
        %v3150 = vcvt.s32.f32 %v1102
        %v3151 = vcvt.s32.f32 %v1103
        %v3152 = vcvt.s32.f32 %v1104
        %v3153 = vcvt.s32.f32 %v1105
        %v3154 = vcvt.s32.f32 %v1106
        %v3155 = vcvt.s32.f32 %v1107
        %v3156 = vcvt.s32.f32 %v1108
        %v3157 = vcvt.s32.f32 %v1109
        %v3158 = vcvt.s32.f32 %v1110
        %v3159 = vcvt.s32.f32 %v1111
        %v3160 = vcvt.s32.f32 %v1112
        %v3161 = vcvt.s32.f32 %v1113
        %v3162 = vcvt.s32.f32 %v1114
        %v3163 = vcvt.s32.f32 %v1115
        %v3164 = vcvt.s32.f32 %v1116
        %v3165 = vcvt.s32.f32 %v1117
        %v3166 = vcvt.s32.f32 %v1118
        %v3167 = vcvt.s32.f32 %v1119
        %v3168 = vcvt.s32.f32 %v1120
        %v3169 = vcvt.s32.f32 %v1121
        %v3170 = vcvt.s32.f32 %v1122
        %v3171 = vcvt.s32.f32 %v1123
        %v3172 = vcvt.s32.f32 %v1124
        %v3173 = vcvt.s32.f32 %v1125
        %v3174 = vcvt.s32.f32 %v1126
        %v3175 = vcvt.s32.f32 %v1127
        %v3176 = vcvt.s32.f32 %v1128
        %v3177 = vcvt.s32.f32 %v1129
        %v3178 = vcvt.s32.f32 %v1130
        %v3179 = vcvt.s32.f32 %v1131
        %v3180 = vcvt.s32.f32 %v1132
        %v3181 = vcvt.s32.f32 %v1133
        %v3182 = vcvt.s32.f32 %v1134
        %v3183 = vcvt.s32.f32 %v1135
        %v3184 = vcvt.s32.f32 %v1136
        %v3185 = vcvt.s32.f32 %v1137
        %v3186 = vcvt.s32.f32 %v1138
        %v3187 = vcvt.s32.f32 %v1139
        %v3188 = vcvt.s32.f32 %v1140
        %v3189 = vcvt.s32.f32 %v1141
        %v3190 = vcvt.s32.f32 %v1142
        %v3191 = vcvt.s32.f32 %v1143
        %v3192 = vcvt.s32.f32 %v1144
        %v3193 = vcvt.s32.f32 %v1145
        %v3194 = vcvt.s32.f32 %v1146
        %v3195 = vcvt.s32.f32 %v1147
        %v3196 = vcvt.s32.f32 %v1148
        %v3197 = vcvt.s32.f32 %v1149
        %v3198 = vcvt.s32.f32 %v1150
        %v3199 = vcvt.s32.f32 %v1151
        %v3200 = vcvt.s32.f32 %v1152
        %v3201 = vcvt.s32.f32 %v1153
        %v3202 = vcvt.s32.f32 %v1154
        %v3203 = vcvt.s32.f32 %v1155
        %v3204 = vcvt.s32.f32 %v1156
        %v3205 = vcvt.s32.f32 %v1157
        %v3206 = vcvt.s32.f32 %v1158
        %v3207 = vcvt.s32.f32 %v1159
        %v3208 = vcvt.s32.f32 %v1160
        %v3209 = vcvt.s32.f32 %v1161
        %v3210 = vcvt.s32.f32 %v1162
        %v3211 = vcvt.s32.f32 %v1163
        %v3212 = vcvt.s32.f32 %v1164
        %v3213 = vcvt.s32.f32 %v1165
        %v3214 = vcvt.s32.f32 %v1166
        %v3215 = vcvt.s32.f32 %v1167
        %v3216 = vcvt.s32.f32 %v1168
        %v3217 = vcvt.s32.f32 %v1169
        %v3218 = vcvt.s32.f32 %v1170
        %v3219 = vcvt.s32.f32 %v1171
        %v3220 = vcvt.s32.f32 %v1172
        %v3221 = vcvt.s32.f32 %v1173
        %v3222 = vcvt.s32.f32 %v1174
        %v3223 = vcvt.s32.f32 %v1175
        %v3224 = vcvt.s32.f32 %v1176
        %v3225 = vcvt.s32.f32 %v1177
        %v3226 = vcvt.s32.f32 %v1178
        %v3227 = vcvt.s32.f32 %v1179
        %v3228 = vcvt.s32.f32 %v1180
        %v3229 = vcvt.s32.f32 %v1181
        %v3230 = vcvt.s32.f32 %v1182
        %v3231 = vcvt.s32.f32 %v1183
        %v3232 = vcvt.s32.f32 %v1184
        %v3233 = vcvt.s32.f32 %v1185
        %v3234 = vcvt.s32.f32 %v1186
        %v3235 = vcvt.s32.f32 %v1187
        %v3236 = vcvt.s32.f32 %v1188
        %v3237 = vcvt.s32.f32 %v1189
        %v3238 = vcvt.s32.f32 %v1190
        %v3239 = vcvt.s32.f32 %v1191
        %v3240 = vcvt.s32.f32 %v1192
        %v3241 = vcvt.s32.f32 %v1193
        %v3242 = vcvt.s32.f32 %v1194
        %v3243 = vcvt.s32.f32 %v1195
        %v3244 = vcvt.s32.f32 %v1196
        %v3245 = vcvt.s32.f32 %v1197
        %v3246 = vcvt.s32.f32 %v1198
        %v3247 = vcvt.s32.f32 %v1199
        %v3248 = vcvt.s32.f32 %v1200
        %v3249 = vcvt.s32.f32 %v1201
        %v3250 = vcvt.s32.f32 %v1202
        %v3251 = vcvt.s32.f32 %v1203
        %v3252 = vcvt.s32.f32 %v1204
        %v3253 = vcvt.s32.f32 %v1205
        %v3254 = vcvt.s32.f32 %v1206
        %v3255 = vcvt.s32.f32 %v1207
        %v3256 = vcvt.s32.f32 %v1208
        %v3257 = vcvt.s32.f32 %v1209
        %v3258 = vcvt.s32.f32 %v1210
        %v3259 = vcvt.s32.f32 %v1211
        %v3260 = vcvt.s32.f32 %v1212
        %v3261 = vcvt.s32.f32 %v1213
        %v3262 = vcvt.s32.f32 %v1214
        %v3263 = vcvt.s32.f32 %v1215
        %v3264 = vcvt.s32.f32 %v1216
        %v3265 = vcvt.s32.f32 %v1217
        %v3266 = vcvt.s32.f32 %v1218
        %v3267 = vcvt.s32.f32 %v1219
        %v3268 = vcvt.s32.f32 %v1220
        %v3269 = vcvt.s32.f32 %v1221
        %v3270 = vcvt.s32.f32 %v1222
        %v3271 = vcvt.s32.f32 %v1223
        %v3272 = vcvt.s32.f32 %v1224
        %v3273 = vcvt.s32.f32 %v1225
        %v3274 = vcvt.s32.f32 %v1226
        %v3275 = vcvt.s32.f32 %v1227
        %v3276 = vcvt.s32.f32 %v1228
        %v3277 = vcvt.s32.f32 %v1229
        %v3278 = vcvt.s32.f32 %v1230
        %v3279 = vcvt.s32.f32 %v1231
        %v3280 = vcvt.s32.f32 %v1232
        %v3281 = vcvt.s32.f32 %v1233
        %v3282 = vcvt.s32.f32 %v1234
        %v3283 = vcvt.s32.f32 %v1235
        %v3284 = vcvt.s32.f32 %v1236
        %v3285 = vcvt.s32.f32 %v1237
        %v3286 = vcvt.s32.f32 %v1238
        %v3287 = vcvt.s32.f32 %v1239
        %v3288 = vcvt.s32.f32 %v1240
        %v3289 = vcvt.s32.f32 %v1241
        %v3290 = vcvt.s32.f32 %v1242
        %v3291 = vcvt.s32.f32 %v1243
        %v3292 = vcvt.s32.f32 %v1244
        %v3293 = vcvt.s32.f32 %v1245
        %v3294 = vcvt.s32.f32 %v1246
        %v3295 = vcvt.s32.f32 %v1247
        %v3296 = vcvt.s32.f32 %v1248
        %v3297 = vcvt.s32.f32 %v1249
        %v3298 = vcvt.s32.f32 %v1250
        %v3299 = vcvt.s32.f32 %v1251
        %v3300 = vcvt.s32.f32 %v1252
        %v3301 = vcvt.s32.f32 %v1253
        %v3302 = vcvt.s32.f32 %v1254
        %v3303 = vcvt.s32.f32 %v1255
        %v3304 = vcvt.s32.f32 %v1256
        %v3305 = vcvt.s32.f32 %v1257
        %v3306 = vcvt.s32.f32 %v1258
        %v3307 = vcvt.s32.f32 %v1259
        %v3308 = vcvt.s32.f32 %v1260
        %v3309 = vcvt.s32.f32 %v1261
        %v3310 = vcvt.s32.f32 %v1262
        %v3311 = vcvt.s32.f32 %v1263
        %v3312 = vcvt.s32.f32 %v1264
        %v3313 = vcvt.s32.f32 %v1265
        %v3314 = vcvt.s32.f32 %v1266
        %v3315 = vcvt.s32.f32 %v1267
        %v3316 = vcvt.s32.f32 %v1268
        %v3317 = vcvt.s32.f32 %v1269
        %v3318 = vcvt.s32.f32 %v1270
        %v3319 = vcvt.s32.f32 %v1271
        %v3320 = vcvt.s32.f32 %v1272
        %v3321 = vcvt.s32.f32 %v1273
        %v3322 = vcvt.s32.f32 %v1274
        %v3323 = vcvt.s32.f32 %v1275
        %v3324 = vcvt.s32.f32 %v1276
        %v3325 = vcvt.s32.f32 %v1277
        %v3326 = vcvt.s32.f32 %v1278
        %v3327 = vcvt.s32.f32 %v1279
        %v3328 = vcvt.s32.f32 %v1280
        %v3329 = vcvt.s32.f32 %v1281
        %v3330 = vcvt.s32.f32 %v1282
        %v3331 = vcvt.s32.f32 %v1283
        %v3332 = vcvt.s32.f32 %v1284
        %v3333 = vcvt.s32.f32 %v1285
        %v3334 = vcvt.s32.f32 %v1286
        %v3335 = vcvt.s32.f32 %v1287
        %v3336 = vcvt.s32.f32 %v1288
        %v3337 = vcvt.s32.f32 %v1289
        %v3338 = vcvt.s32.f32 %v1290
        %v3339 = vcvt.s32.f32 %v1291
        %v3340 = vcvt.s32.f32 %v1292
        %v3341 = vcvt.s32.f32 %v1293
        %v3342 = vcvt.s32.f32 %v1294
        %v3343 = vcvt.s32.f32 %v1295
        %v3344 = vcvt.s32.f32 %v1296
        %v3345 = vcvt.s32.f32 %v1297
        %v3346 = vcvt.s32.f32 %v1298
        %v3347 = vcvt.s32.f32 %v1299
        %v3348 = vcvt.s32.f32 %v1300
        %v3349 = vcvt.s32.f32 %v1301
        %v3350 = vcvt.s32.f32 %v1302
        %v3351 = vcvt.s32.f32 %v1303
        %v3352 = vcvt.s32.f32 %v1304
        %v3353 = vcvt.s32.f32 %v1305
        %v3354 = vcvt.s32.f32 %v1306
        %v3355 = vcvt.s32.f32 %v1307
        %v3356 = vcvt.s32.f32 %v1308
        %v3357 = vcvt.s32.f32 %v1309
        %v3358 = vcvt.s32.f32 %v1310
        %v3359 = vcvt.s32.f32 %v1311
        %v3360 = vcvt.s32.f32 %v1312
        %v3361 = vcvt.s32.f32 %v1313
        %v3362 = vcvt.s32.f32 %v1314
        %v3363 = vcvt.s32.f32 %v1315
        %v3364 = vcvt.s32.f32 %v1316
        %v3365 = vcvt.s32.f32 %v1317
        %v3366 = vcvt.s32.f32 %v1318
        %v3367 = vcvt.s32.f32 %v1319
        %v3368 = vcvt.s32.f32 %v1320
        %v3369 = vcvt.s32.f32 %v1321
        %v3370 = vcvt.s32.f32 %v1322
        %v3371 = vcvt.s32.f32 %v1323
        %v3372 = vcvt.s32.f32 %v1324
        %v3373 = vcvt.s32.f32 %v1325
        %v3374 = vcvt.s32.f32 %v1326
        %v3375 = vcvt.s32.f32 %v1327
        %v3376 = vcvt.s32.f32 %v1328
        %v3377 = vcvt.s32.f32 %v1329
        %v3378 = vcvt.s32.f32 %v1330
        %v3379 = vcvt.s32.f32 %v1331
        %v3380 = vcvt.s32.f32 %v1332
        %v3381 = vcvt.s32.f32 %v1333
        %v3382 = vcvt.s32.f32 %v1334
        %v3383 = vcvt.s32.f32 %v1335
        %v3384 = vcvt.s32.f32 %v1336
        %v3385 = vcvt.s32.f32 %v1337
        %v3386 = vcvt.s32.f32 %v1338
        %v3387 = vcvt.s32.f32 %v1339
        %v3388 = vcvt.s32.f32 %v1340
        %v3389 = vcvt.s32.f32 %v1341
        %v3390 = vcvt.s32.f32 %v1342
        %v3391 = vcvt.s32.f32 %v1343
        %v3392 = vcvt.s32.f32 %v1344
        %v3393 = vcvt.s32.f32 %v1345
        %v3394 = vcvt.s32.f32 %v1346
        %v3395 = vcvt.s32.f32 %v1347
        %v3396 = vcvt.s32.f32 %v1348
        %v3397 = vcvt.s32.f32 %v1349
        %v3398 = vcvt.s32.f32 %v1350
        %v3399 = vcvt.s32.f32 %v1351
        %v3400 = vcvt.s32.f32 %v1352
        %v3401 = vcvt.s32.f32 %v1353
        %v3402 = vcvt.s32.f32 %v1354
        %v3403 = vcvt.s32.f32 %v1355
        %v3404 = vcvt.s32.f32 %v1356
        %v3405 = vcvt.s32.f32 %v1357
        %v3406 = vcvt.s32.f32 %v1358
        %v3407 = vcvt.s32.f32 %v1359
        %v3408 = vcvt.s32.f32 %v1360
        %v3409 = vcvt.s32.f32 %v1361
        %v3410 = vcvt.s32.f32 %v1362
        %v3411 = vcvt.s32.f32 %v1363
        %v3412 = vcvt.s32.f32 %v1364
        %v3413 = vcvt.s32.f32 %v1365
        %v3414 = vcvt.s32.f32 %v1366
        %v3415 = vcvt.s32.f32 %v1367
        %v3416 = vcvt.s32.f32 %v1368
        %v3417 = vcvt.s32.f32 %v1369
        %v3418 = vcvt.s32.f32 %v1370
        %v3419 = vcvt.s32.f32 %v1371
        %v3420 = vcvt.s32.f32 %v1372
        %v3421 = vcvt.s32.f32 %v1373
        %v3422 = vcvt.s32.f32 %v1374
        %v3423 = vcvt.s32.f32 %v1375
        %v3424 = vcvt.s32.f32 %v1376
        %v3425 = vcvt.s32.f32 %v1377
        %v3426 = vcvt.s32.f32 %v1378
        %v3427 = vcvt.s32.f32 %v1379
        %v3428 = vcvt.s32.f32 %v1380
        %v3429 = vcvt.s32.f32 %v1381
        %v3430 = vcvt.s32.f32 %v1382
        %v3431 = vcvt.s32.f32 %v1383
        %v3432 = vcvt.s32.f32 %v1384
        %v3433 = vcvt.s32.f32 %v1385
        %v3434 = vcvt.s32.f32 %v1386
        %v3435 = vcvt.s32.f32 %v1387
        %v3436 = vcvt.s32.f32 %v1388
        %v3437 = vcvt.s32.f32 %v1389
        %v3438 = vcvt.s32.f32 %v1390
        %v3439 = vcvt.s32.f32 %v1391
        %v3440 = vcvt.s32.f32 %v1392
        %v3441 = vcvt.s32.f32 %v1393
        %v3442 = vcvt.s32.f32 %v1394
        %v3443 = vcvt.s32.f32 %v1395
        %v3444 = vcvt.s32.f32 %v1396
        %v3445 = vcvt.s32.f32 %v1397
        %v3446 = vcvt.s32.f32 %v1398
        %v3447 = vcvt.s32.f32 %v1399
        %v3448 = vcvt.s32.f32 %v1400
        %v3449 = vcvt.s32.f32 %v1401
        %v3450 = vcvt.s32.f32 %v1402
        %v3451 = vcvt.s32.f32 %v1403
        %v3452 = vcvt.s32.f32 %v1404
        %v3453 = vcvt.s32.f32 %v1405
        %v3454 = vcvt.s32.f32 %v1406
        %v3455 = vcvt.s32.f32 %v1407
        %v3456 = vcvt.s32.f32 %v1408
        %v3457 = vcvt.s32.f32 %v1409
        %v3458 = vcvt.s32.f32 %v1410
        %v3459 = vcvt.s32.f32 %v1411
        %v3460 = vcvt.s32.f32 %v1412
        %v3461 = vcvt.s32.f32 %v1413
        %v3462 = vcvt.s32.f32 %v1414
        %v3463 = vcvt.s32.f32 %v1415
        %v3464 = vcvt.s32.f32 %v1416
        %v3465 = vcvt.s32.f32 %v1417
        %v3466 = vcvt.s32.f32 %v1418
        %v3467 = vcvt.s32.f32 %v1419
        %v3468 = vcvt.s32.f32 %v1420
        %v3469 = vcvt.s32.f32 %v1421
        %v3470 = vcvt.s32.f32 %v1422
        %v3471 = vcvt.s32.f32 %v1423
        %v3472 = vcvt.s32.f32 %v1424
        %v3473 = vcvt.s32.f32 %v1425
        %v3474 = vcvt.s32.f32 %v1426
        %v3475 = vcvt.s32.f32 %v1427
        %v3476 = vcvt.s32.f32 %v1428
        %v3477 = vcvt.s32.f32 %v1429
        %v3478 = vcvt.s32.f32 %v1430
        %v3479 = vcvt.s32.f32 %v1431
        %v3480 = vcvt.s32.f32 %v1432
        %v3481 = vcvt.s32.f32 %v1433
        %v3482 = vcvt.s32.f32 %v1434
        %v3483 = vcvt.s32.f32 %v1435
        %v3484 = vcvt.s32.f32 %v1436
        %v3485 = vcvt.s32.f32 %v1437
        %v3486 = vcvt.s32.f32 %v1438
        %v3487 = vcvt.s32.f32 %v1439
        %v3488 = vcvt.s32.f32 %v1440
        %v3489 = vcvt.s32.f32 %v1441
        %v3490 = vcvt.s32.f32 %v1442
        %v3491 = vcvt.s32.f32 %v1443
        %v3492 = vcvt.s32.f32 %v1444
        %v3493 = vcvt.s32.f32 %v1445
        %v3494 = vcvt.s32.f32 %v1446
        %v3495 = vcvt.s32.f32 %v1447
        %v3496 = vcvt.s32.f32 %v1448
        %v3497 = vcvt.s32.f32 %v1449
        %v3498 = vcvt.s32.f32 %v1450
        %v3499 = vcvt.s32.f32 %v1451
        %v3500 = vcvt.s32.f32 %v1452
        %v3501 = vcvt.s32.f32 %v1453
        %v3502 = vcvt.s32.f32 %v1454
        %v3503 = vcvt.s32.f32 %v1455
        %v3504 = vcvt.s32.f32 %v1456
        %v3505 = vcvt.s32.f32 %v1457
        %v3506 = vcvt.s32.f32 %v1458
        %v3507 = vcvt.s32.f32 %v1459
        %v3508 = vcvt.s32.f32 %v1460
        %v3509 = vcvt.s32.f32 %v1461
        %v3510 = vcvt.s32.f32 %v1462
        %v3511 = vcvt.s32.f32 %v1463
        %v3512 = vcvt.s32.f32 %v1464
        %v3513 = vcvt.s32.f32 %v1465
        %v3514 = vcvt.s32.f32 %v1466
        %v3515 = vcvt.s32.f32 %v1467
        %v3516 = vcvt.s32.f32 %v1468
        %v3517 = vcvt.s32.f32 %v1469
        %v3518 = vcvt.s32.f32 %v1470
        %v3519 = vcvt.s32.f32 %v1471
        %v3520 = vcvt.s32.f32 %v1472
        %v3521 = vcvt.s32.f32 %v1473
        %v3522 = vcvt.s32.f32 %v1474
        %v3523 = vcvt.s32.f32 %v1475
        %v3524 = vcvt.s32.f32 %v1476
        %v3525 = vcvt.s32.f32 %v1477
        %v3526 = vcvt.s32.f32 %v1478
        %v3527 = vcvt.s32.f32 %v1479
        %v3528 = vcvt.s32.f32 %v1480
        %v3529 = vcvt.s32.f32 %v1481
        %v3530 = vcvt.s32.f32 %v1482
        %v3531 = vcvt.s32.f32 %v1483
        %v3532 = vcvt.s32.f32 %v1484
        %v3533 = vcvt.s32.f32 %v1485
        %v3534 = vcvt.s32.f32 %v1486
        %v3535 = vcvt.s32.f32 %v1487
        %v3536 = vcvt.s32.f32 %v1488
        %v3537 = vcvt.s32.f32 %v1489
        %v3538 = vcvt.s32.f32 %v1490
        %v3539 = vcvt.s32.f32 %v1491
        %v3540 = vcvt.s32.f32 %v1492
        %v3541 = vcvt.s32.f32 %v1493
        %v3542 = vcvt.s32.f32 %v1494
        %v3543 = vcvt.s32.f32 %v1495
        %v3544 = vcvt.s32.f32 %v1496
        %v3545 = vcvt.s32.f32 %v1497
        %v3546 = vcvt.s32.f32 %v1498
        %v3547 = vcvt.s32.f32 %v1499
        %v3548 = vcvt.s32.f32 %v1500
        %v3549 = vcvt.s32.f32 %v1501
        %v3550 = vcvt.s32.f32 %v1502
        %v3551 = vcvt.s32.f32 %v1503
        %v3552 = vcvt.s32.f32 %v1504
        %v3553 = vcvt.s32.f32 %v1505
        %v3554 = vcvt.s32.f32 %v1506
        %v3555 = vcvt.s32.f32 %v1507
        %v3556 = vcvt.s32.f32 %v1508
        %v3557 = vcvt.s32.f32 %v1509
        %v3558 = vcvt.s32.f32 %v1510
        %v3559 = vcvt.s32.f32 %v1511
        %v3560 = vcvt.s32.f32 %v1512
        %v3561 = vcvt.s32.f32 %v1513
        %v3562 = vcvt.s32.f32 %v1514
        %v3563 = vcvt.s32.f32 %v1515
        %v3564 = vcvt.s32.f32 %v1516
        %v3565 = vcvt.s32.f32 %v1517
        %v3566 = vcvt.s32.f32 %v1518
        %v3567 = vcvt.s32.f32 %v1519
        %v3568 = vcvt.s32.f32 %v1520
        %v3569 = vcvt.s32.f32 %v1521
        %v3570 = vcvt.s32.f32 %v1522
        %v3571 = vcvt.s32.f32 %v1523
        %v3572 = vcvt.s32.f32 %v1524
        %v3573 = vcvt.s32.f32 %v1525
        %v3574 = vcvt.s32.f32 %v1526
        %v3575 = vcvt.s32.f32 %v1527
        %v3576 = vcvt.s32.f32 %v1528
        %v3577 = vcvt.s32.f32 %v1529
        %v3578 = vcvt.s32.f32 %v1530
        %v3579 = vcvt.s32.f32 %v1531
        %v3580 = vcvt.s32.f32 %v1532
        %v3581 = vcvt.s32.f32 %v1533
        %v3582 = vcvt.s32.f32 %v1534
        %v3583 = vcvt.s32.f32 %v1535
        %v3584 = vcvt.s32.f32 %v1536
        %v3585 = vcvt.s32.f32 %v1537
        %v3586 = vcvt.s32.f32 %v1538
        %v3587 = vcvt.s32.f32 %v1539
        %v3588 = vcvt.s32.f32 %v1540
        %v3589 = vcvt.s32.f32 %v1541
        %v3590 = vcvt.s32.f32 %v1542
        %v3591 = vcvt.s32.f32 %v1543
        %v3592 = vcvt.s32.f32 %v1544
        %v3593 = vcvt.s32.f32 %v1545
        %v3594 = vcvt.s32.f32 %v1546
        %v3595 = vcvt.s32.f32 %v1547
        %v3596 = vcvt.s32.f32 %v1548
        %v3597 = vcvt.s32.f32 %v1549
        %v3598 = vcvt.s32.f32 %v1550
        %v3599 = vcvt.s32.f32 %v1551
        %v3600 = vcvt.s32.f32 %v1552
        %v3601 = vcvt.s32.f32 %v1553
        %v3602 = vcvt.s32.f32 %v1554
        %v3603 = vcvt.s32.f32 %v1555
        %v3604 = vcvt.s32.f32 %v1556
        %v3605 = vcvt.s32.f32 %v1557
        %v3606 = vcvt.s32.f32 %v1558
        %v3607 = vcvt.s32.f32 %v1559
        %v3608 = vcvt.s32.f32 %v1560
        %v3609 = vcvt.s32.f32 %v1561
        %v3610 = vcvt.s32.f32 %v1562
        %v3611 = vcvt.s32.f32 %v1563
        %v3612 = vcvt.s32.f32 %v1564
        %v3613 = vcvt.s32.f32 %v1565
        %v3614 = vcvt.s32.f32 %v1566
        %v3615 = vcvt.s32.f32 %v1567
        %v3616 = vcvt.s32.f32 %v1568
        %v3617 = vcvt.s32.f32 %v1569
        %v3618 = vcvt.s32.f32 %v1570
        %v3619 = vcvt.s32.f32 %v1571
        %v3620 = vcvt.s32.f32 %v1572
        %v3621 = vcvt.s32.f32 %v1573
        %v3622 = vcvt.s32.f32 %v1574
        %v3623 = vcvt.s32.f32 %v1575
        %v3624 = vcvt.s32.f32 %v1576
        %v3625 = vcvt.s32.f32 %v1577
        %v3626 = vcvt.s32.f32 %v1578
        %v3627 = vcvt.s32.f32 %v1579
        %v3628 = vcvt.s32.f32 %v1580
        %v3629 = vcvt.s32.f32 %v1581
        %v3630 = vcvt.s32.f32 %v1582
        %v3631 = vcvt.s32.f32 %v1583
        %v3632 = vcvt.s32.f32 %v1584
        %v3633 = vcvt.s32.f32 %v1585
        %v3634 = vcvt.s32.f32 %v1586
        %v3635 = vcvt.s32.f32 %v1587
        %v3636 = vcvt.s32.f32 %v1588
        %v3637 = vcvt.s32.f32 %v1589
        %v3638 = vcvt.s32.f32 %v1590
        %v3639 = vcvt.s32.f32 %v1591
        %v3640 = vcvt.s32.f32 %v1592
        %v3641 = vcvt.s32.f32 %v1593
        %v3642 = vcvt.s32.f32 %v1594
        %v3643 = vcvt.s32.f32 %v1595
        %v3644 = vcvt.s32.f32 %v1596
        %v3645 = vcvt.s32.f32 %v1597
        %v3646 = vcvt.s32.f32 %v1598
        %v3647 = vcvt.s32.f32 %v1599
        %v3648 = vcvt.s32.f32 %v1600
        %v3649 = vcvt.s32.f32 %v1601
        %v3650 = vcvt.s32.f32 %v1602
        %v3651 = vcvt.s32.f32 %v1603
        %v3652 = vcvt.s32.f32 %v1604
        %v3653 = vcvt.s32.f32 %v1605
        %v3654 = vcvt.s32.f32 %v1606
        %v3655 = vcvt.s32.f32 %v1607
        %v3656 = vcvt.s32.f32 %v1608
        %v3657 = vcvt.s32.f32 %v1609
        %v3658 = vcvt.s32.f32 %v1610
        %v3659 = vcvt.s32.f32 %v1611
        %v3660 = vcvt.s32.f32 %v1612
        %v3661 = vcvt.s32.f32 %v1613
        %v3662 = vcvt.s32.f32 %v1614
        %v3663 = vcvt.s32.f32 %v1615
        %v3664 = vcvt.s32.f32 %v1616
        %v3665 = vcvt.s32.f32 %v1617
        %v3666 = vcvt.s32.f32 %v1618
        %v3667 = vcvt.s32.f32 %v1619
        %v3668 = vcvt.s32.f32 %v1620
        %v3669 = vcvt.s32.f32 %v1621
        %v3670 = vcvt.s32.f32 %v1622
        %v3671 = vcvt.s32.f32 %v1623
        %v3672 = vcvt.s32.f32 %v1624
        %v3673 = vcvt.s32.f32 %v1625
        %v3674 = vcvt.s32.f32 %v1626
        %v3675 = vcvt.s32.f32 %v1627
        %v3676 = vcvt.s32.f32 %v1628
        %v3677 = vcvt.s32.f32 %v1629
        %v3678 = vcvt.s32.f32 %v1630
        %v3679 = vcvt.s32.f32 %v1631
        %v3680 = vcvt.s32.f32 %v1632
        %v3681 = vcvt.s32.f32 %v1633
        %v3682 = vcvt.s32.f32 %v1634
        %v3683 = vcvt.s32.f32 %v1635
        %v3684 = vcvt.s32.f32 %v1636
        %v3685 = vcvt.s32.f32 %v1637
        %v3686 = vcvt.s32.f32 %v1638
        %v3687 = vcvt.s32.f32 %v1639
        %v3688 = vcvt.s32.f32 %v1640
        %v3689 = vcvt.s32.f32 %v1641
        %v3690 = vcvt.s32.f32 %v1642
        %v3691 = vcvt.s32.f32 %v1643
        %v3692 = vcvt.s32.f32 %v1644
        %v3693 = vcvt.s32.f32 %v1645
        %v3694 = vcvt.s32.f32 %v1646
        %v3695 = vcvt.s32.f32 %v1647
        %v3696 = vcvt.s32.f32 %v1648
        %v3697 = vcvt.s32.f32 %v1649
        %v3698 = vcvt.s32.f32 %v1650
        %v3699 = vcvt.s32.f32 %v1651
        %v3700 = vcvt.s32.f32 %v1652
        %v3701 = vcvt.s32.f32 %v1653
        %v3702 = vcvt.s32.f32 %v1654
        %v3703 = vcvt.s32.f32 %v1655
        %v3704 = vcvt.s32.f32 %v1656
        %v3705 = vcvt.s32.f32 %v1657
        %v3706 = vcvt.s32.f32 %v1658
        %v3707 = vcvt.s32.f32 %v1659
        %v3708 = vcvt.s32.f32 %v1660
        %v3709 = vcvt.s32.f32 %v1661
        %v3710 = vcvt.s32.f32 %v1662
        %v3711 = vcvt.s32.f32 %v1663
        %v3712 = vcvt.s32.f32 %v1664
        %v3713 = vcvt.s32.f32 %v1665
        %v3714 = vcvt.s32.f32 %v1666
        %v3715 = vcvt.s32.f32 %v1667
        %v3716 = vcvt.s32.f32 %v1668
        %v3717 = vcvt.s32.f32 %v1669
        %v3718 = vcvt.s32.f32 %v1670
        %v3719 = vcvt.s32.f32 %v1671
        %v3720 = vcvt.s32.f32 %v1672
        %v3721 = vcvt.s32.f32 %v1673
        %v3722 = vcvt.s32.f32 %v1674
        %v3723 = vcvt.s32.f32 %v1675
        %v3724 = vcvt.s32.f32 %v1676
        %v3725 = vcvt.s32.f32 %v1677
        %v3726 = vcvt.s32.f32 %v1678
        %v3727 = vcvt.s32.f32 %v1679
        %v3728 = vcvt.s32.f32 %v1680
        %v3729 = vcvt.s32.f32 %v1681
        %v3730 = vcvt.s32.f32 %v1682
        %v3731 = vcvt.s32.f32 %v1683
        %v3732 = vcvt.s32.f32 %v1684
        %v3733 = vcvt.s32.f32 %v1685
        %v3734 = vcvt.s32.f32 %v1686
        %v3735 = vcvt.s32.f32 %v1687
        %v3736 = vcvt.s32.f32 %v1688
        %v3737 = vcvt.s32.f32 %v1689
        %v3738 = vcvt.s32.f32 %v1690
        %v3739 = vcvt.s32.f32 %v1691
        %v3740 = vcvt.s32.f32 %v1692
        %v3741 = vcvt.s32.f32 %v1693
        %v3742 = vcvt.s32.f32 %v1694
        %v3743 = vcvt.s32.f32 %v1695
        %v3744 = vcvt.s32.f32 %v1696
        %v3745 = vcvt.s32.f32 %v1697
        %v3746 = vcvt.s32.f32 %v1698
        %v3747 = vcvt.s32.f32 %v1699
        %v3748 = vcvt.s32.f32 %v1700
        %v3749 = vcvt.s32.f32 %v1701
        %v3750 = vcvt.s32.f32 %v1702
        %v3751 = vcvt.s32.f32 %v1703
        %v3752 = vcvt.s32.f32 %v1704
        %v3753 = vcvt.s32.f32 %v1705
        %v3754 = vcvt.s32.f32 %v1706
        %v3755 = vcvt.s32.f32 %v1707
        %v3756 = vcvt.s32.f32 %v1708
        %v3757 = vcvt.s32.f32 %v1709
        %v3758 = vcvt.s32.f32 %v1710
        %v3759 = vcvt.s32.f32 %v1711
        %v3760 = vcvt.s32.f32 %v1712
        %v3761 = vcvt.s32.f32 %v1713
        %v3762 = vcvt.s32.f32 %v1714
        %v3763 = vcvt.s32.f32 %v1715
        %v3764 = vcvt.s32.f32 %v1716
        %v3765 = vcvt.s32.f32 %v1717
        %v3766 = vcvt.s32.f32 %v1718
        %v3767 = vcvt.s32.f32 %v1719
        %v3768 = vcvt.s32.f32 %v1720
        %v3769 = vcvt.s32.f32 %v1721
        %v3770 = vcvt.s32.f32 %v1722
        %v3771 = vcvt.s32.f32 %v1723
        %v3772 = vcvt.s32.f32 %v1724
        %v3773 = vcvt.s32.f32 %v1725
        %v3774 = vcvt.s32.f32 %v1726
        %v3775 = vcvt.s32.f32 %v1727
        %v3776 = vcvt.s32.f32 %v1728
        %v3777 = vcvt.s32.f32 %v1729
        %v3778 = vcvt.s32.f32 %v1730
        %v3779 = vcvt.s32.f32 %v1731
        %v3780 = vcvt.s32.f32 %v1732
        %v3781 = vcvt.s32.f32 %v1733
        %v3782 = vcvt.s32.f32 %v1734
        %v3783 = vcvt.s32.f32 %v1735
        %v3784 = vcvt.s32.f32 %v1736
        %v3785 = vcvt.s32.f32 %v1737
        %v3786 = vcvt.s32.f32 %v1738
        %v3787 = vcvt.s32.f32 %v1739
        %v3788 = vcvt.s32.f32 %v1740
        %v3789 = vcvt.s32.f32 %v1741
        %v3790 = vcvt.s32.f32 %v1742
        %v3791 = vcvt.s32.f32 %v1743
        %v3792 = vcvt.s32.f32 %v1744
        %v3793 = vcvt.s32.f32 %v1745
        %v3794 = vcvt.s32.f32 %v1746
        %v3795 = vcvt.s32.f32 %v1747
        %v3796 = vcvt.s32.f32 %v1748
        %v3797 = vcvt.s32.f32 %v1749
        %v3798 = vcvt.s32.f32 %v1750
        %v3799 = vcvt.s32.f32 %v1751
        %v3800 = vcvt.s32.f32 %v1752
        %v3801 = vcvt.s32.f32 %v1753
        %v3802 = vcvt.s32.f32 %v1754
        %v3803 = vcvt.s32.f32 %v1755
        %v3804 = vcvt.s32.f32 %v1756
        %v3805 = vcvt.s32.f32 %v1757
        %v3806 = vcvt.s32.f32 %v1758
        %v3807 = vcvt.s32.f32 %v1759
        %v3808 = vcvt.s32.f32 %v1760
        %v3809 = vcvt.s32.f32 %v1761
        %v3810 = vcvt.s32.f32 %v1762
        %v3811 = vcvt.s32.f32 %v1763
        %v3812 = vcvt.s32.f32 %v1764
        %v3813 = vcvt.s32.f32 %v1765
        %v3814 = vcvt.s32.f32 %v1766
        %v3815 = vcvt.s32.f32 %v1767
        %v3816 = vcvt.s32.f32 %v1768
        %v3817 = vcvt.s32.f32 %v1769
        %v3818 = vcvt.s32.f32 %v1770
        %v3819 = vcvt.s32.f32 %v1771
        %v3820 = vcvt.s32.f32 %v1772
        %v3821 = vcvt.s32.f32 %v1773
        %v3822 = vcvt.s32.f32 %v1774
        %v3823 = vcvt.s32.f32 %v1775
        %v3824 = vcvt.s32.f32 %v1776
        %v3825 = vcvt.s32.f32 %v1777
        %v3826 = vcvt.s32.f32 %v1778
        %v3827 = vcvt.s32.f32 %v1779
        %v3828 = vcvt.s32.f32 %v1780
        %v3829 = vcvt.s32.f32 %v1781
        %v3830 = vcvt.s32.f32 %v1782
        %v3831 = vcvt.s32.f32 %v1783
        %v3832 = vcvt.s32.f32 %v1784
        %v3833 = vcvt.s32.f32 %v1785
        %v3834 = vcvt.s32.f32 %v1786
        %v3835 = vcvt.s32.f32 %v1787
        %v3836 = vcvt.s32.f32 %v1788
        %v3837 = vcvt.s32.f32 %v1789
        %v3838 = vcvt.s32.f32 %v1790
        %v3839 = vcvt.s32.f32 %v1791
        %v3840 = vcvt.s32.f32 %v1792
        %v3841 = vcvt.s32.f32 %v1793
        %v3842 = vcvt.s32.f32 %v1794
        %v3843 = vcvt.s32.f32 %v1795
        %v3844 = vcvt.s32.f32 %v1796
        %v3845 = vcvt.s32.f32 %v1797
        %v3846 = vcvt.s32.f32 %v1798
        %v3847 = vcvt.s32.f32 %v1799
        %v3848 = vcvt.s32.f32 %v1800
        %v3849 = vcvt.s32.f32 %v1801
        %v3850 = vcvt.s32.f32 %v1802
        %v3851 = vcvt.s32.f32 %v1803
        %v3852 = vcvt.s32.f32 %v1804
        %v3853 = vcvt.s32.f32 %v1805
        %v3854 = vcvt.s32.f32 %v1806
        %v3855 = vcvt.s32.f32 %v1807
        %v3856 = vcvt.s32.f32 %v1808
        %v3857 = vcvt.s32.f32 %v1809
        %v3858 = vcvt.s32.f32 %v1810
        %v3859 = vcvt.s32.f32 %v1811
        %v3860 = vcvt.s32.f32 %v1812
        %v3861 = vcvt.s32.f32 %v1813
        %v3862 = vcvt.s32.f32 %v1814
        %v3863 = vcvt.s32.f32 %v1815
        %v3864 = vcvt.s32.f32 %v1816
        %v3865 = vcvt.s32.f32 %v1817
        %v3866 = vcvt.s32.f32 %v1818
        %v3867 = vcvt.s32.f32 %v1819
        %v3868 = vcvt.s32.f32 %v1820
        %v3869 = vcvt.s32.f32 %v1821
        %v3870 = vcvt.s32.f32 %v1822
        %v3871 = vcvt.s32.f32 %v1823
        %v3872 = vcvt.s32.f32 %v1824
        %v3873 = vcvt.s32.f32 %v1825
        %v3874 = vcvt.s32.f32 %v1826
        %v3875 = vcvt.s32.f32 %v1827
        %v3876 = vcvt.s32.f32 %v1828
        %v3877 = vcvt.s32.f32 %v1829
        %v3878 = vcvt.s32.f32 %v1830
        %v3879 = vcvt.s32.f32 %v1831
        %v3880 = vcvt.s32.f32 %v1832
        %v3881 = vcvt.s32.f32 %v1833
        %v3882 = vcvt.s32.f32 %v1834
        %v3883 = vcvt.s32.f32 %v1835
        %v3884 = vcvt.s32.f32 %v1836
        %v3885 = vcvt.s32.f32 %v1837
        %v3886 = vcvt.s32.f32 %v1838
        %v3887 = vcvt.s32.f32 %v1839
        %v3888 = vcvt.s32.f32 %v1840
        %v3889 = vcvt.s32.f32 %v1841
        %v3890 = vcvt.s32.f32 %v1842
        %v3891 = vcvt.s32.f32 %v1843
        %v3892 = vcvt.s32.f32 %v1844
        %v3893 = vcvt.s32.f32 %v1845
        %v3894 = vcvt.s32.f32 %v1846
        %v3895 = vcvt.s32.f32 %v1847
        %v3896 = vcvt.s32.f32 %v1848
        %v3897 = vcvt.s32.f32 %v1849
        %v3898 = vcvt.s32.f32 %v1850
        %v3899 = vcvt.s32.f32 %v1851
        %v3900 = vcvt.s32.f32 %v1852
        %v3901 = vcvt.s32.f32 %v1853
        %v3902 = vcvt.s32.f32 %v1854
        %v3903 = vcvt.s32.f32 %v1855
        %v3904 = vcvt.s32.f32 %v1856
        %v3905 = vcvt.s32.f32 %v1857
        %v3906 = vcvt.s32.f32 %v1858
        %v3907 = vcvt.s32.f32 %v1859
        %v3908 = vcvt.s32.f32 %v1860
        %v3909 = vcvt.s32.f32 %v1861
        %v3910 = vcvt.s32.f32 %v1862
        %v3911 = vcvt.s32.f32 %v1863
        %v3912 = vcvt.s32.f32 %v1864
        %v3913 = vcvt.s32.f32 %v1865
        %v3914 = vcvt.s32.f32 %v1866
        %v3915 = vcvt.s32.f32 %v1867
        %v3916 = vcvt.s32.f32 %v1868
        %v3917 = vcvt.s32.f32 %v1869
        %v3918 = vcvt.s32.f32 %v1870
        %v3919 = vcvt.s32.f32 %v1871
        %v3920 = vcvt.s32.f32 %v1872
        %v3921 = vcvt.s32.f32 %v1873
        %v3922 = vcvt.s32.f32 %v1874
        %v3923 = vcvt.s32.f32 %v1875
        %v3924 = vcvt.s32.f32 %v1876
        %v3925 = vcvt.s32.f32 %v1877
        %v3926 = vcvt.s32.f32 %v1878
        %v3927 = vcvt.s32.f32 %v1879
        %v3928 = vcvt.s32.f32 %v1880
        %v3929 = vcvt.s32.f32 %v1881
        %v3930 = vcvt.s32.f32 %v1882
        %v3931 = vcvt.s32.f32 %v1883
        %v3932 = vcvt.s32.f32 %v1884
        %v3933 = vcvt.s32.f32 %v1885
        %v3934 = vcvt.s32.f32 %v1886
        %v3935 = vcvt.s32.f32 %v1887
        %v3936 = vcvt.s32.f32 %v1888
        %v3937 = vcvt.s32.f32 %v1889
        %v3938 = vcvt.s32.f32 %v1890
        %v3939 = vcvt.s32.f32 %v1891
        %v3940 = vcvt.s32.f32 %v1892
        %v3941 = vcvt.s32.f32 %v1893
        %v3942 = vcvt.s32.f32 %v1894
        %v3943 = vcvt.s32.f32 %v1895
        %v3944 = vcvt.s32.f32 %v1896
        %v3945 = vcvt.s32.f32 %v1897
        %v3946 = vcvt.s32.f32 %v1898
        %v3947 = vcvt.s32.f32 %v1899
        %v3948 = vcvt.s32.f32 %v1900
        %v3949 = vcvt.s32.f32 %v1901
        %v3950 = vcvt.s32.f32 %v1902
        %v3951 = vcvt.s32.f32 %v1903
        %v3952 = vcvt.s32.f32 %v1904
        %v3953 = vcvt.s32.f32 %v1905
        %v3954 = vcvt.s32.f32 %v1906
        %v3955 = vcvt.s32.f32 %v1907
        %v3956 = vcvt.s32.f32 %v1908
        %v3957 = vcvt.s32.f32 %v1909
        %v3958 = vcvt.s32.f32 %v1910
        %v3959 = vcvt.s32.f32 %v1911
        %v3960 = vcvt.s32.f32 %v1912
        %v3961 = vcvt.s32.f32 %v1913
        %v3962 = vcvt.s32.f32 %v1914
        %v3963 = vcvt.s32.f32 %v1915
        %v3964 = vcvt.s32.f32 %v1916
        %v3965 = vcvt.s32.f32 %v1917
        %v3966 = vcvt.s32.f32 %v1918
        %v3967 = vcvt.s32.f32 %v1919
        %v3968 = vcvt.s32.f32 %v1920
        %v3969 = vcvt.s32.f32 %v1921
        %v3970 = vcvt.s32.f32 %v1922
        %v3971 = vcvt.s32.f32 %v1923
        %v3972 = vcvt.s32.f32 %v1924
        %v3973 = vcvt.s32.f32 %v1925
        %v3974 = vcvt.s32.f32 %v1926
        %v3975 = vcvt.s32.f32 %v1927
        %v3976 = vcvt.s32.f32 %v1928
        %v3977 = vcvt.s32.f32 %v1929
        %v3978 = vcvt.s32.f32 %v1930
        %v3979 = vcvt.s32.f32 %v1931
        %v3980 = vcvt.s32.f32 %v1932
        %v3981 = vcvt.s32.f32 %v1933
        %v3982 = vcvt.s32.f32 %v1934
        %v3983 = vcvt.s32.f32 %v1935
        %v3984 = vcvt.s32.f32 %v1936
        %v3985 = vcvt.s32.f32 %v1937
        %v3986 = vcvt.s32.f32 %v1938
        %v3987 = vcvt.s32.f32 %v1939
        %v3988 = vcvt.s32.f32 %v1940
        %v3989 = vcvt.s32.f32 %v1941
        %v3990 = vcvt.s32.f32 %v1942
        %v3991 = vcvt.s32.f32 %v1943
        %v3992 = vcvt.s32.f32 %v1944
        %v3993 = vcvt.s32.f32 %v1945
        %v3994 = vcvt.s32.f32 %v1946
        %v3995 = vcvt.s32.f32 %v1947
        %v3996 = vcvt.s32.f32 %v1948
        %v3997 = vcvt.s32.f32 %v1949
        %v3998 = vcvt.s32.f32 %v1950
        %v3999 = vcvt.s32.f32 %v1951
        %v4000 = vcvt.s32.f32 %v1952
        %v4001 = vcvt.s32.f32 %v1953
        %v4002 = vcvt.s32.f32 %v1954
        %v4003 = vcvt.s32.f32 %v1955
        %v4004 = vcvt.s32.f32 %v1956
        %v4005 = vcvt.s32.f32 %v1957
        %v4006 = vcvt.s32.f32 %v1958
        %v4007 = vcvt.s32.f32 %v1959
        %v4008 = vcvt.s32.f32 %v1960
        %v4009 = vcvt.s32.f32 %v1961
        %v4010 = vcvt.s32.f32 %v1962
        %v4011 = vcvt.s32.f32 %v1963
        %v4012 = vcvt.s32.f32 %v1964
        %v4013 = vcvt.s32.f32 %v1965
        %v4014 = vcvt.s32.f32 %v1966
        %v4015 = vcvt.s32.f32 %v1967
        %v4016 = vcvt.s32.f32 %v1968
        %v4017 = vcvt.s32.f32 %v1969
        %v4018 = vcvt.s32.f32 %v1970
        %v4019 = vcvt.s32.f32 %v1971
        %v4020 = vcvt.s32.f32 %v1972
        %v4021 = vcvt.s32.f32 %v1973
        %v4022 = vcvt.s32.f32 %v1974
        %v4023 = vcvt.s32.f32 %v1975
        %v4024 = vcvt.s32.f32 %v1976
        %v4025 = vcvt.s32.f32 %v1977
        %v4026 = vcvt.s32.f32 %v1978
        %v4027 = vcvt.s32.f32 %v1979
        %v4028 = vcvt.s32.f32 %v1980
        %v4029 = vcvt.s32.f32 %v1981
        %v4030 = vcvt.s32.f32 %v1982
        %v4031 = vcvt.s32.f32 %v1983
        %v4032 = vcvt.s32.f32 %v1984
        %v4033 = vcvt.s32.f32 %v1985
        %v4034 = vcvt.s32.f32 %v1986
        %v4035 = vcvt.s32.f32 %v1987
        %v4036 = vcvt.s32.f32 %v1988
        %v4037 = vcvt.s32.f32 %v1989
        %v4038 = vcvt.s32.f32 %v1990
        %v4039 = vcvt.s32.f32 %v1991
        %v4040 = vcvt.s32.f32 %v1992
        %v4041 = vcvt.s32.f32 %v1993
        %v4042 = vcvt.s32.f32 %v1994
        %v4043 = vcvt.s32.f32 %v1995
        %v4044 = vcvt.s32.f32 %v1996
        %v4045 = vcvt.s32.f32 %v1997
        %v4046 = vcvt.s32.f32 %v1998
        %v4047 = vcvt.s32.f32 %v1999
        %v4048 = vcvt.s32.f32 %v2000
        %v4049 = vcvt.s32.f32 %v2001
        %v4050 = vcvt.s32.f32 %v2002
        %v4051 = vcvt.s32.f32 %v2003
        %v4052 = vcvt.s32.f32 %v2004
        %v4053 = vcvt.s32.f32 %v2005
        %v4054 = vcvt.s32.f32 %v2006
        %v4055 = vcvt.s32.f32 %v2007
        %v4056 = vcvt.s32.f32 %v2008
        %v4057 = vcvt.s32.f32 %v2009
        %v4058 = vcvt.s32.f32 %v2010
        %v4059 = vcvt.s32.f32 %v2011
        %v4060 = vcvt.s32.f32 %v2012
        %v4061 = vcvt.s32.f32 %v2013
        %v4062 = vcvt.s32.f32 %v2014
        %v4063 = vcvt.s32.f32 %v2015
        %v4064 = vcvt.s32.f32 %v2016
        %v4065 = vcvt.s32.f32 %v2017
        %v4066 = vcvt.s32.f32 %v2018
        %v4067 = vcvt.s32.f32 %v2019
        %v4068 = vcvt.s32.f32 %v2020
        %v4069 = vcvt.s32.f32 %v2021
        %v4070 = vcvt.s32.f32 %v2022
        %v4071 = vcvt.s32.f32 %v2023
        %v4072 = vcvt.s32.f32 %v2024
        %v4073 = vcvt.s32.f32 %v2025
        %v4074 = vcvt.s32.f32 %v2026
        %v4075 = vcvt.s32.f32 %v2027
        %v4076 = vcvt.s32.f32 %v2028
        %v4077 = vcvt.s32.f32 %v2029
        %v4078 = vcvt.s32.f32 %v2030
        %v4079 = vcvt.s32.f32 %v2031
        %v4080 = vcvt.s32.f32 %v2032
        %v4081 = vcvt.s32.f32 %v2033
        %v4082 = vcvt.s32.f32 %v2034
        %v4083 = vcvt.s32.f32 %v2035
        %v4084 = vcvt.s32.f32 %v2036
        %v4085 = vcvt.s32.f32 %v2037
        %v4086 = vcvt.s32.f32 %v2038
        %v4087 = vcvt.s32.f32 %v2039
        %v4088 = vcvt.s32.f32 %v2040
        %v4089 = vcvt.s32.f32 %v2041
        %v4090 = vcvt.s32.f32 %v2042
        %v4091 = vcvt.s32.f32 %v2043
        %v4092 = vcvt.s32.f32 %v2044
        %v4093 = vcvt.s32.f32 %v2045
        %v4094 = vcvt.s32.f32 %v2046
        %v4095 = vcvt.s32.f32 %v2047
        %v4096 = vcvt.s32.f32 %v2048
        %v4097 = vcvt.s32.f32 %v2049
        %v4098 = vcvt.s32.f32 %v2050
        %v4099 = vcvt.s32.f32 %v2051
        %v4100 = vcvt.s32.f32 %v2052
        %v4101 = vcvt.s32.f32 %v2053
        %v4102 = vcvt.s32.f32 %v2054
        %v4103 = vcvt.s32.f32 %v2055
        %v4104 = vcvt.s32.f32 %v2056
        %v4105 = vcvt.s32.f32 %v2057
        %v4106 = vcvt.s32.f32 %v2058
        %v4107 = vcvt.s32.f32 %v2059
        %v4108 = vcvt.s32.f32 %v2060
        %v4109 = vcvt.s32.f32 %v2061
        %v4110 = vcvt.s32.f32 %v2062
        %v4111 = vcvt.s32.f32 %v2063
        %v4112 = vcvt.s32.f32 %v2064
        %v4113 = vcvt.s32.f32 %v2065
        %v4114 = vcvt.s32.f32 %v2066
        %v4115 = vcvt.s32.f32 %v2067
        %v4116 = vcvt.s32.f32 %v2068
        %v4117 = vcvt.s32.f32 %v2069
        %v4118 = vcvt.s32.f32 %v2070
        %v4119 = vcvt.s32.f32 %v2071
        %v4120 = vcvt.s32.f32 %v2072
        %v4121 = vcvt.s32.f32 %v2073
        %v4122 = vcvt.s32.f32 %v2074
        %v4123 = vcvt.s32.f32 %v2075
        %v4124 = vcvt.s32.f32 %v2076
        %v4125 = vcvt.s32.f32 %v2077
        %v4126 = vcvt.s32.f32 %v2078
        %v4127 = vcvt.s32.f32 %v2079
        %v4128 = vcvt.s32.f32 %v2080
        %v4129 = vcvt.s32.f32 %v2081
        %v4130 = vcvt.s32.f32 %v2082
        %v4131 = vcvt.s32.f32 %v2083
        %v4132 = vcvt.s32.f32 %v2084
        %v4133 = vcvt.s32.f32 %v2085
        %v4134 = vcvt.s32.f32 %v2086
        %v4135 = vcvt.s32.f32 %v2087
        %v4136 = vcvt.s32.f32 %v2088
        %v4137 = vcvt.s32.f32 %v2089
        %v4138 = vcvt.s32.f32 %v2090
        %v4139 = vcvt.s32.f32 %v2091
        %v4140 = vcvt.s32.f32 %v2092
        %v4141 = vcvt.s32.f32 %v2093
        %v4142 = vcvt.s32.f32 %v2094
        %v4143 = vcvt.s32.f32 %v2095
        %v4144 = vcvt.s32.f32 %v2096
        %v4145 = vcvt.s32.f32 %v2097
        %v4146 = vcvt.s32.f32 %v2098
        %v4147 = vcvt.s32.f32 %v2099
        %v4148 = vcvt.s32.f32 %v2100
        %v4149 = vcvt.s32.f32 %v2101
        %v4150 = vcvt.s32.f32 %v2102
        %v4151 = vcvt.s32.f32 %v2103
        %v4152 = vcvt.s32.f32 %v2104
        %v4153 = vcvt.s32.f32 %v2105
        %v4154 = vcvt.s32.f32 %v2106
        %v4155 = vcvt.s32.f32 %v2107
        %v4156 = vcvt.s32.f32 %v2108
        %v4157 = vcvt.s32.f32 %v2109
        %v4158 = vcvt.s32.f32 %v2110
        %v4159 = vcvt.s32.f32 %v2111
        %v4160 = vcvt.s32.f32 %v2112
        %v4161 = vcvt.s32.f32 %v2113
        %v4162 = vcvt.s32.f32 %v2114
        %v4163 = vcvt.s32.f32 %v2115
        %v4164 = vcvt.s32.f32 %v2116
        %v4165 = vcvt.s32.f32 %v2117
        %v4166 = vcvt.s32.f32 %v2118
        %v4167 = vcvt.s32.f32 %v2119
        %v4168 = vcvt.s32.f32 %v2120
        %v4169 = vcvt.s32.f32 %v2121
        %v4170 = vcvt.s32.f32 %v2122
        %v4171 = vcvt.s32.f32 %v2123
        %v4172 = vcvt.s32.f32 %v2124
        %v4173 = vcvt.s32.f32 %v2125
        %v4174 = vcvt.s32.f32 %v2126
        %v4175 = vcvt.s32.f32 %v2127
        %v4176 = vcvt.s32.f32 %v2128
        %v4177 = vcvt.s32.f32 %v2129
        %v4178 = vcvt.s32.f32 %v2130
        %v4179 = vcvt.s32.f32 %v2131
        %v4180 = vcvt.s32.f32 %v2132
        %v4181 = vcvt.s32.f32 %v2133
        %v4182 = vcvt.s32.f32 %v2134
        %v4183 = vcvt.s32.f32 %v2135
        %v4184 = vcvt.s32.f32 %v2136
        %v4185 = vcvt.s32.f32 %v2137
        %v4186 = vcvt.s32.f32 %v2138
        %v4187 = vcvt.s32.f32 %v2139
        %v4188 = vcvt.s32.f32 %v2140
        %v4189 = vcvt.s32.f32 %v2141
        %v4190 = vcvt.s32.f32 %v2142
        %v4191 = vcvt.s32.f32 %v2143
        %v4192 = vcvt.s32.f32 %v2144
        %v4193 = vcvt.s32.f32 %v2145
        %v4194 = vcvt.s32.f32 %v2146
        %v4195 = vcvt.s32.f32 %v2147
        %v4196 = vcvt.s32.f32 %v2148
        %v4197 = vcvt.s32.f32 %v2149
        %v4198 = vcvt.s32.f32 %v2150
        %v4199 = vcvt.s32.f32 %v2151
        %v4200 = vcvt.s32.f32 %v2152
        %v4201 = vcvt.s32.f32 %v2153
        %v4202 = vcvt.s32.f32 %v2154
        %v4203 = vcvt.s32.f32 %v2155
        %v4204 = vcvt.s32.f32 %v2156
        %v4205 = vcvt.s32.f32 %v2157
        %v4206 = vcvt.s32.f32 %v2158
        %v4207 = vcvt.s32.f32 %v2159
        %v4208 = vcvt.s32.f32 %v2160
        %v4209 = vcvt.s32.f32 %v2161
        %v4210 = vcvt.s32.f32 %v2162
        %v4211 = vcvt.s32.f32 %v2163
        %v4212 = vcvt.s32.f32 %v2164
        %v4213 = vcvt.s32.f32 %v2165
        %v4214 = vcvt.s32.f32 %v2166
        %v4215 = vcvt.s32.f32 %v2167
        %v4216 = vcvt.s32.f32 %v2168
        %v4217 = vcvt.s32.f32 %v2169
        %v4218 = vcvt.s32.f32 %v2170
        %v4219 = vcvt.s32.f32 %v2171
        %v4220 = vcvt.s32.f32 %v2172
        %v4221 = vcvt.s32.f32 %v2173
        %v4222 = vcvt.s32.f32 %v2174
        %v4223 = vcvt.s32.f32 %v2175
        %v4224 = vcvt.s32.f32 %v2176
        %v4225 = vcvt.s32.f32 %v2177
        %v4226 = vcvt.s32.f32 %v2178
        %v4227 = vcvt.s32.f32 %v2179
        %v4228 = vcvt.s32.f32 %v2180
        %v4229 = vcvt.s32.f32 %v2181
        %v4230 = vcvt.s32.f32 %v2182
        %v4231 = vcvt.s32.f32 %v2183
        %v4232 = vcvt.s32.f32 %v2184
        %v4233 = vcvt.s32.f32 %v2185
        %v4234 = vcvt.s32.f32 %v2186
        %v4235 = vcvt.s32.f32 %v2187
        %v4236 = vcvt.s32.f32 %v2188
        %v4237 = vcvt.s32.f32 %v2189
        %v4238 = vcvt.s32.f32 %v2190
        %v4239 = vcvt.s32.f32 %v2191
        %v4240 = vcvt.s32.f32 %v2192
        %v4241 = vcvt.s32.f32 %v2193
        %v4242 = vcvt.s32.f32 %v2194
        %v4243 = vcvt.s32.f32 %v2195
        %v4244 = vcvt.s32.f32 %v2196
        %v4245 = vcvt.s32.f32 %v2197
        %v4246 = vcvt.s32.f32 %v2198
        %v4247 = vcvt.s32.f32 %v2199
        %v4248 = vcvt.s32.f32 %v2200
        %v4249 = vcvt.s32.f32 %v2201
        %v4250 = vcvt.s32.f32 %v2202
        %v4251 = vcvt.s32.f32 %v2203
        %v4252 = vcvt.s32.f32 %v2204
        %v4253 = vcvt.s32.f32 %v2205
        %v4254 = vcvt.s32.f32 %v2206
        %v4255 = vcvt.s32.f32 %v2207
        %v4256 = vcvt.s32.f32 %v2208
        %v4257 = vcvt.s32.f32 %v2209
        %v4258 = vcvt.s32.f32 %v2210
        %v4259 = vcvt.s32.f32 %v2211
        %v4260 = vcvt.s32.f32 %v2212
        %v4261 = vcvt.s32.f32 %v2213
        %v4262 = vcvt.s32.f32 %v2214
        %v4263 = vcvt.s32.f32 %v2215
        %v4264 = vcvt.s32.f32 %v2216
        %v4265 = vcvt.s32.f32 %v2217
        %v4266 = vcvt.s32.f32 %v2218
        %v4267 = vcvt.s32.f32 %v2219
        %v4268 = vcvt.s32.f32 %v2220
        %v4269 = vcvt.s32.f32 %v2221
        %v4270 = vcvt.s32.f32 %v2222
        %v4271 = vcvt.s32.f32 %v2223
        %v4272 = vcvt.s32.f32 %v2224
        %v4273 = vcvt.s32.f32 %v2225
        %v4274 = vcvt.s32.f32 %v2226
        %v4275 = vcvt.s32.f32 %v2227
        %v4276 = vcvt.s32.f32 %v2228
        %v4277 = vcvt.s32.f32 %v2229
        %v4278 = vcvt.s32.f32 %v2230
        %v4279 = vcvt.s32.f32 %v2231
        %v4280 = vcvt.s32.f32 %v2232
        %v4281 = vcvt.s32.f32 %v2233
        %v4282 = vcvt.s32.f32 %v2234
        %v4283 = vcvt.s32.f32 %v2235
        %v4284 = vcvt.s32.f32 %v2236
        %v4285 = vcvt.s32.f32 %v2237
        %v4286 = vcvt.s32.f32 %v2238
        %v4287 = vcvt.s32.f32 %v2239
        %v4288 = vcvt.s32.f32 %v2240
        %v4289 = vcvt.s32.f32 %v2241
        %v4290 = vcvt.s32.f32 %v2242
        %v4291 = vcvt.s32.f32 %v2243
        %v4292 = vcvt.s32.f32 %v2244
        %v4293 = vcvt.s32.f32 %v2245
        %v4294 = vcvt.s32.f32 %v2246
        %v4295 = vcvt.s32.f32 %v2247
        %v4296 = vcvt.s32.f32 %v2248
        %v4297 = vcvt.s32.f32 %v2249
        %v4298 = vcvt.s32.f32 %v2250
        %v4299 = vcvt.s32.f32 %v2251
        %v4300 = vcvt.s32.f32 %v2252
        %v4301 = vcvt.s32.f32 %v2253
        %v4302 = vcvt.s32.f32 %v2254
        %v4303 = vcvt.s32.f32 %v2255
        %v4304 = vcvt.s32.f32 %v2256
        %v4305 = vcvt.s32.f32 %v2257
        %v4306 = vcvt.s32.f32 %v2258
        %v4307 = vcvt.s32.f32 %v2259
        %v4308 = vcvt.s32.f32 %v2260
        %v4309 = vcvt.s32.f32 %v2261
        %v4310 = vcvt.s32.f32 %v2262
        %v4311 = vcvt.s32.f32 %v2263
        %v4312 = vcvt.s32.f32 %v2264
        %v4313 = vcvt.s32.f32 %v2265
        %v4314 = vcvt.s32.f32 %v2266
        %v4315 = vcvt.s32.f32 %v2267
        %v4316 = vcvt.s32.f32 %v2268
        %v4317 = vcvt.s32.f32 %v2269
        %v4318 = vcvt.s32.f32 %v2270
        %v4319 = vcvt.s32.f32 %v2271
        %v4320 = vcvt.s32.f32 %v2272
        %v4321 = vcvt.s32.f32 %v2273
        %v4322 = vcvt.s32.f32 %v2274
        %v4323 = vcvt.s32.f32 %v2275
        %v4324 = vcvt.s32.f32 %v2276
        %v4325 = vcvt.s32.f32 %v2277
        %v4326 = vcvt.s32.f32 %v2278
        %v4327 = vcvt.s32.f32 %v2279
        %v4328 = vcvt.s32.f32 %v2280
        %v4329 = vcvt.s32.f32 %v2281
        %v4330 = vcvt.s32.f32 %v2282
        %v4331 = vcvt.s32.f32 %v2283
        %v4332 = vcvt.s32.f32 %v2284
        %v4333 = vcvt.s32.f32 %v2285
        %v4334 = vcvt.s32.f32 %v2286
        %v4335 = vcvt.s32.f32 %v2287
        %v4336 = vcvt.s32.f32 %v2288
        %v4337 = vcvt.s32.f32 %v2289
        %v4338 = vcvt.s32.f32 %v2290
        %v4339 = vcvt.s32.f32 %v2291
        %v4340 = vcvt.s32.f32 %v2292
        %v4341 = vcvt.s32.f32 %v2293
        %v4342 = vcvt.s32.f32 %v2294
        %v4343 = vcvt.s32.f32 %v2295
        %v4344 = vcvt.s32.f32 %v2296
        %v4345 = vcvt.s32.f32 %v2297
        %v4346 = vcvt.s32.f32 %v2298
        %v4347 = vcvt.s32.f32 %v2299
        %v4348 = vcvt.s32.f32 %v2300
        %v4349 = vcvt.s32.f32 %v2301
        %v4350 = vcvt.s32.f32 %v2302
        %v4351 = vcvt.s32.f32 %v2303
        %v4352 = vcvt.s32.f32 %v2304
        %v4353 = vcvt.s32.f32 %v2305
        %v4354 = vcvt.s32.f32 %v2306
        %v4355 = vcvt.s32.f32 %v2307
        %v4356 = vcvt.s32.f32 %v2308
        %v4357 = vcvt.s32.f32 %v2309
        %v4358 = vcvt.s32.f32 %v2310
        %v4359 = vcvt.s32.f32 %v2311
        %v4360 = vcvt.s32.f32 %v2312
        %v4361 = vcvt.s32.f32 %v2313
        %v4362 = vcvt.s32.f32 %v2314
        %v4363 = vcvt.s32.f32 %v2315
        %v4364 = vcvt.s32.f32 %v2316
        %v4365 = vcvt.s32.f32 %v2317
        %v4366 = vcvt.s32.f32 %v2318
        %v4367 = vcvt.s32.f32 %v2319
        %v4368 = vcvt.s32.f32 %v2320
        %v4369 = vcvt.s32.f32 %v2321
        %v4370 = vcvt.s32.f32 %v2322
        %v4371 = vcvt.s32.f32 %v2323
        %v4372 = vcvt.s32.f32 %v2324
        %v4373 = vcvt.s32.f32 %v2325
        %v4374 = vcvt.s32.f32 %v2326
        %v4375 = vcvt.s32.f32 %v2327
        %v4376 = vcvt.s32.f32 %v2328
        %v4377 = vcvt.s32.f32 %v2329
        %v4378 = vcvt.s32.f32 %v2330
        %v4379 = vcvt.s32.f32 %v2331
        %v4380 = vcvt.s32.f32 %v2332
        %v4381 = vcvt.s32.f32 %v2333
        %v4382 = vcvt.s32.f32 %v2334
        %v4383 = vcvt.s32.f32 %v2335
        %v4384 = vcvt.s32.f32 %v2336
        %v4385 = vcvt.s32.f32 %v2337
        %v4386 = vcvt.s32.f32 %v2338
        %v4387 = vcvt.s32.f32 %v2339
        %v4388 = vcvt.s32.f32 %v2340
        %v4389 = vcvt.s32.f32 %v2341
        %v4390 = vcvt.s32.f32 %v2342
        %v4391 = vcvt.s32.f32 %v2343
        %v4392 = vcvt.s32.f32 %v2344
        %v4393 = vcvt.s32.f32 %v2345
        %v4394 = vcvt.s32.f32 %v2346
        %v4395 = vcvt.s32.f32 %v2347
        %v4396 = vcvt.s32.f32 %v2348
        %v4397 = vcvt.s32.f32 %v2349
        %v4398 = vcvt.s32.f32 %v2350
        %v4399 = vcvt.s32.f32 %v2351
        %v4400 = vcvt.s32.f32 %v2352
        %v4401 = vcvt.s32.f32 %v2353
        %v4402 = vcvt.s32.f32 %v2354
        %v4403 = vcvt.s32.f32 %v2355
        %v4404 = vcvt.s32.f32 %v2356
        %v4405 = vcvt.s32.f32 %v2357
        %v4406 = vcvt.s32.f32 %v2358
        %v4407 = vcvt.s32.f32 %v2359
        %v4408 = vcvt.s32.f32 %v2360
        %v4409 = vcvt.s32.f32 %v2361
        %v4410 = vcvt.s32.f32 %v2362
        %v4411 = vcvt.s32.f32 %v2363
        %v4412 = vcvt.s32.f32 %v2364
        %v4413 = vcvt.s32.f32 %v2365
        %v4414 = vcvt.s32.f32 %v2366
        %v4415 = vcvt.s32.f32 %v2367
        %v4416 = vcvt.s32.f32 %v2368
        %v4417 = vcvt.s32.f32 %v2369
        %v4418 = vcvt.s32.f32 %v2370
        %v4419 = vcvt.s32.f32 %v2371
        %v4420 = vcvt.s32.f32 %v2372
        %v4421 = vcvt.s32.f32 %v2373
        %v4422 = vcvt.s32.f32 %v2374
        %v4423 = vcvt.s32.f32 %v2375
        %v4424 = vcvt.s32.f32 %v2376
        %v4425 = vcvt.s32.f32 %v2377
        %v4426 = vcvt.s32.f32 %v2378
        %v4427 = vcvt.s32.f32 %v2379
        %v4428 = vcvt.s32.f32 %v2380
        %v4429 = vcvt.s32.f32 %v2381
        %v4430 = vcvt.s32.f32 %v2382
        %v4431 = vcvt.s32.f32 %v2383
        %v4432 = vcvt.s32.f32 %v2384
        %v4433 = vcvt.s32.f32 %v2385
        %v4434 = vcvt.s32.f32 %v2386
        %v4435 = vcvt.s32.f32 %v2387
        %v4436 = vcvt.s32.f32 %v2388
        %v4437 = vcvt.s32.f32 %v2389
        %v4438 = vcvt.s32.f32 %v2390
        %v4439 = vcvt.s32.f32 %v2391
        %v4440 = vcvt.s32.f32 %v2392
        %v4441 = vcvt.s32.f32 %v2393
        %v4442 = vcvt.s32.f32 %v2394
        %v4443 = vcvt.s32.f32 %v2395
        %v4444 = vcvt.s32.f32 %v2396
        %v4445 = vcvt.s32.f32 %v2397
        %v4446 = vcvt.s32.f32 %v2398
        %v4447 = vcvt.s32.f32 %v2399
        %v4448 = vcvt.s32.f32 %v2400
        %v4449 = vcvt.s32.f32 %v2401
        %v4450 = vcvt.s32.f32 %v2402
        %v4451 = vcvt.s32.f32 %v2403
        %v4452 = vcvt.s32.f32 %v2404
        %v4453 = vcvt.s32.f32 %v2405
        %v4454 = vcvt.s32.f32 %v2406
        %v4455 = vcvt.s32.f32 %v2407
        %v4456 = vcvt.s32.f32 %v2408
        %v4457 = vcvt.s32.f32 %v2409
        %v4458 = vcvt.s32.f32 %v2410
        %v4459 = vcvt.s32.f32 %v2411
        %v4460 = vcvt.s32.f32 %v2412
        %v4461 = vcvt.s32.f32 %v2413
        %v4462 = vcvt.s32.f32 %v2414
        %v4463 = vcvt.s32.f32 %v2415
        %v4464 = vcvt.s32.f32 %v2416
        %v4465 = vcvt.s32.f32 %v2417
        %v4466 = vcvt.s32.f32 %v2418
        %v4467 = vcvt.s32.f32 %v2419
        %v4468 = vcvt.s32.f32 %v2420
        %v4469 = vcvt.s32.f32 %v2421
        %v4470 = vcvt.s32.f32 %v2422
        %v4471 = vcvt.s32.f32 %v2423
        %v4472 = vcvt.s32.f32 %v2424
        %v4473 = vcvt.s32.f32 %v2425
        %v4474 = vcvt.s32.f32 %v2426
        %v4475 = vcvt.s32.f32 %v2427
        %v4476 = vcvt.s32.f32 %v2428
        %v4477 = vcvt.s32.f32 %v2429
        %v4478 = vcvt.s32.f32 %v2430
        %v4479 = vcvt.s32.f32 %v2431
        %v4480 = vcvt.s32.f32 %v2432
        %v4481 = vcvt.s32.f32 %v2433
        %v4482 = vcvt.s32.f32 %v2434
        %v4483 = vcvt.s32.f32 %v2435
        %v4484 = vcvt.s32.f32 %v2436
        %v4485 = vcvt.s32.f32 %v2437
        %v4486 = vcvt.s32.f32 %v2438
        %v4487 = vcvt.s32.f32 %v2439
        %v4488 = vcvt.s32.f32 %v2440
        %v4489 = vcvt.s32.f32 %v2441
        %v4490 = vcvt.s32.f32 %v2442
        %v4491 = vcvt.s32.f32 %v2443
        %v4492 = vcvt.s32.f32 %v2444
        %v4493 = vcvt.s32.f32 %v2445
        %v4494 = vcvt.s32.f32 %v2446
        %v4495 = vcvt.s32.f32 %v2447
        %v4496 = vcvt.s32.f32 %v2448
        %v4497 = vcvt.s32.f32 %v2449
        %v4498 = vcvt.s32.f32 %v2450
        %v4499 = vcvt.s32.f32 %v2451
        %v4500 = vcvt.s32.f32 %v2452
        %v4501 = vcvt.s32.f32 %v2453
        %v4502 = vcvt.s32.f32 %v2454
        %v4503 = vcvt.s32.f32 %v2455
        %v4504 = vcvt.s32.f32 %v2456
        %v4505 = vcvt.s32.f32 %v2457
        %v4506 = vcvt.s32.f32 %v2458
        %v4507 = vcvt.s32.f32 %v2459
        %v4508 = vcvt.s32.f32 %v2460
        %v4509 = vcvt.s32.f32 %v2461
        %v4510 = vcvt.s32.f32 %v2462
        %v4511 = vcvt.s32.f32 %v2463
        %v4512 = vcvt.s32.f32 %v2464
        %v4513 = vcvt.s32.f32 %v2465
        %v4514 = vcvt.s32.f32 %v2466
        %v4515 = vcvt.s32.f32 %v2467
        %v4516 = vcvt.s32.f32 %v2468
        %v4517 = vcvt.s32.f32 %v2469
        %v4518 = vcvt.s32.f32 %v2470
        %v4519 = vcvt.s32.f32 %v2471
        %v4520 = vcvt.s32.f32 %v2472
        %v4521 = vcvt.s32.f32 %v2473
        %v4522 = vcvt.s32.f32 %v2474
        %v4523 = vcvt.s32.f32 %v2475
        %v4524 = vcvt.s32.f32 %v2476
        %v4525 = vcvt.s32.f32 %v2477
        %v4526 = vcvt.s32.f32 %v2478
        %v4527 = vcvt.s32.f32 %v2479
        %v4528 = vcvt.s32.f32 %v2480
        %v4529 = vcvt.s32.f32 %v2481
        %v4530 = vcvt.s32.f32 %v2482
        %v4531 = vcvt.s32.f32 %v2483
        %v4532 = vcvt.s32.f32 %v2484
        %v4533 = vcvt.s32.f32 %v2485
        %v4534 = vcvt.s32.f32 %v2486
        %v4535 = vcvt.s32.f32 %v2487
        %v4536 = vcvt.s32.f32 %v2488
        %v4537 = vcvt.s32.f32 %v2489
        %v4538 = vcvt.s32.f32 %v2490
        %v4539 = vcvt.s32.f32 %v2491
        %v4540 = vcvt.s32.f32 %v2492
        %v4541 = vcvt.s32.f32 %v2493
        %v4542 = vcvt.s32.f32 %v2494
        %v4543 = vcvt.s32.f32 %v2495
        %v4544 = vcvt.s32.f32 %v2496
        %v4545 = vcvt.s32.f32 %v2497
        %v4546 = vcvt.s32.f32 %v2498
        %v4547 = vcvt.s32.f32 %v2499
        %v4548 = vcvt.s32.f32 %v2500
        %v4549 = vcvt.s32.f32 %v2501
        %v4550 = vcvt.s32.f32 %v2502
        %v4551 = vcvt.s32.f32 %v2503
        %v4552 = vcvt.s32.f32 %v2504
        %v4553 = vcvt.s32.f32 %v2505
        %v4554 = vcvt.s32.f32 %v2506
        %v4555 = vcvt.s32.f32 %v2507
        %v4556 = vcvt.s32.f32 %v2508
        %v4557 = vcvt.s32.f32 %v2509
        %v4558 = vcvt.s32.f32 %v2510
        %v4559 = vcvt.s32.f32 %v2511
        %v4560 = vcvt.s32.f32 %v2512
        %v4561 = vcvt.s32.f32 %v2513
        %v4562 = vcvt.s32.f32 %v2514
        %v4563 = vcvt.s32.f32 %v2515
        %v4564 = vcvt.s32.f32 %v2516
        %v4565 = vcvt.s32.f32 %v2517
        %v4566 = vcvt.s32.f32 %v2518
        %v4567 = vcvt.s32.f32 %v2519
        %v4568 = vcvt.s32.f32 %v2520
        %v4569 = vcvt.s32.f32 %v2521
        %v4570 = vcvt.s32.f32 %v2522
        %v4571 = vcvt.s32.f32 %v2523
        %v4572 = vcvt.s32.f32 %v2524
        %v4573 = vcvt.s32.f32 %v2525
        %v4574 = vcvt.s32.f32 %v2526
        %v4575 = vcvt.s32.f32 %v2527
        %v4576 = vcvt.s32.f32 %v2528
        %v4577 = vcvt.s32.f32 %v2529
        %v4578 = vcvt.s32.f32 %v2530
        %v4579 = vcvt.s32.f32 %v2531
        %v4580 = vcvt.s32.f32 %v2532
        %v4581 = vcvt.s32.f32 %v2533
        %v4582 = vcvt.s32.f32 %v2534
        %v4583 = vcvt.s32.f32 %v2535
        %v4584 = vcvt.s32.f32 %v2536
        %v4585 = vcvt.s32.f32 %v2537
        %v4586 = vcvt.s32.f32 %v2538
        %v4587 = vcvt.s32.f32 %v2539
        %v4588 = vcvt.s32.f32 %v2540
        %v4589 = vcvt.s32.f32 %v2541
        %v4590 = vcvt.s32.f32 %v2542
        %v4591 = vcvt.s32.f32 %v2543
        %v4592 = vcvt.s32.f32 %v2544
        %v4593 = vcvt.s32.f32 %v2545
        %v4594 = vcvt.s32.f32 %v2546
        %v4595 = vcvt.s32.f32 %v2547
        %v4596 = vcvt.s32.f32 %v2548
        %v4597 = vcvt.s32.f32 %v2549
        %v4598 = vcvt.s32.f32 %v2550
        %v4599 = vcvt.s32.f32 %v2551
        %v4600 = vcvt.s32.f32 %v2552
        %v4601 = vcvt.s32.f32 %v2553
        %v4602 = vcvt.s32.f32 %v2554
        %v4603 = vcvt.s32.f32 %v2555
        %v4604 = vcvt.s32.f32 %v2556
        %v4605 = vcvt.s32.f32 %v2557
        %v4606 = vcvt.s32.f32 %v2558
        %v4607 = vcvt.s32.f32 %v2559
        %v4608 = vcvt.s32.f32 %v2560
        %v4609 = vcvt.s32.f32 %v2561
        %v4610 = vcvt.s32.f32 %v2562
        %v4611 = vcvt.s32.f32 %v2563
        %v4612 = vcvt.s32.f32 %v2564
        %v4613 = vcvt.s32.f32 %v2565
        %v4614 = vcvt.s32.f32 %v2566
        %v4615 = vcvt.s32.f32 %v2567
        %v4616 = vcvt.s32.f32 %v2568
        %v4617 = vcvt.s32.f32 %v2569
        %v4618 = vcvt.s32.f32 %v2570
        %v4619 = vcvt.s32.f32 %v2571
        %v4620 = vcvt.s32.f32 %v2572
        %v4621 = vcvt.s32.f32 %v2573
        %v4622 = vcvt.s32.f32 %v2574
        %v4623 = vcvt.s32.f32 %v2575
        %v4624 = vcvt.s32.f32 %v2576
        %v4625 = vcvt.s32.f32 %v2577
        %v4626 = vcvt.s32.f32 %v2578
        %v4627 = vcvt.s32.f32 %v2579
        %v4628 = vcvt.s32.f32 %v2580
        %v4629 = vcvt.s32.f32 %v2581
        %v4630 = vcvt.s32.f32 %v2582
        %v4631 = vcvt.s32.f32 %v2583
        %v4632 = vcvt.s32.f32 %v2584
        %v4633 = vcvt.s32.f32 %v2585
        %v4634 = vcvt.s32.f32 %v2586
        %v4635 = vcvt.s32.f32 %v2587
        %v4636 = vcvt.s32.f32 %v2588
        %v4637 = vcvt.s32.f32 %v2589
        %v4638 = vcvt.s32.f32 %v2590
        %v4639 = vcvt.s32.f32 %v2591
        %v4640 = vcvt.s32.f32 %v2592
        %v4641 = vcvt.s32.f32 %v2593
        %v4642 = vcvt.s32.f32 %v2594
        %v4643 = vcvt.s32.f32 %v2595
        %v4644 = vcvt.s32.f32 %v2596
        %v4645 = vcvt.s32.f32 %v2597
        %v4646 = vcvt.s32.f32 %v2598
        %v4647 = vcvt.s32.f32 %v2599
        %v4648 = vcvt.s32.f32 %v2600
        %v4649 = vcvt.s32.f32 %v2601
        %v4650 = vcvt.s32.f32 %v2602
        %v4651 = vcvt.s32.f32 %v2603
        %v4652 = vcvt.s32.f32 %v2604
        %v4653 = vcvt.s32.f32 %v2605
        %v4654 = vcvt.s32.f32 %v2606
        %v4655 = vcvt.s32.f32 %v2607
        %v4656 = vcvt.s32.f32 %v2608
        %v4657 = vcvt.s32.f32 %v2609
        %v4658 = vcvt.s32.f32 %v2610
        %v4659 = vcvt.s32.f32 %v2611
        %v4660 = vcvt.s32.f32 %v2612
        %v4661 = vcvt.s32.f32 %v2613
        %v4662 = vcvt.s32.f32 %v2614
        %v4663 = vcvt.s32.f32 %v2615
        %v4664 = vcvt.s32.f32 %v2616
        %v4665 = vcvt.s32.f32 %v2617
        %v4666 = vcvt.s32.f32 %v2618
        %v4667 = vcvt.s32.f32 %v2619
        %v4668 = vcvt.s32.f32 %v2620
        %v4669 = vcvt.s32.f32 %v2621
        %v4670 = vcvt.s32.f32 %v2622
        %v4671 = vcvt.s32.f32 %v2623
        %v4672 = vcvt.s32.f32 %v2624
        %v4673 = vcvt.s32.f32 %v2625
        %v4674 = vcvt.s32.f32 %v2626
        %v4675 = vcvt.s32.f32 %v2627
        %v4676 = vcvt.s32.f32 %v2628
        %v4677 = vcvt.s32.f32 %v2629
        %v4678 = vcvt.s32.f32 %v2630
        %v4679 = vcvt.s32.f32 %v2631
        %v4680 = vcvt.s32.f32 %v2632
        %v4681 = vcvt.s32.f32 %v2633
        %v4682 = vcvt.s32.f32 %v2634
        %v4683 = vcvt.s32.f32 %v2635
        %v4684 = vcvt.s32.f32 %v2636
        %v4685 = vcvt.s32.f32 %v2637
        %v4686 = vcvt.s32.f32 %v2638
        %v4687 = vcvt.s32.f32 %v2639
        %v4688 = vcvt.s32.f32 %v2640
        %v4689 = vcvt.s32.f32 %v2641
        %v4690 = vcvt.s32.f32 %v2642
        %v4691 = vcvt.s32.f32 %v2643
        %v4692 = vcvt.s32.f32 %v2644
        %v4693 = vcvt.s32.f32 %v2645
        %v4694 = vcvt.s32.f32 %v2646
        %v4695 = vcvt.s32.f32 %v2647
        %v4696 = vcvt.s32.f32 %v2648
        %v4697 = vcvt.s32.f32 %v2649
        %v4698 = vcvt.s32.f32 %v2650
        %v4699 = vcvt.s32.f32 %v2651
        %v4700 = vcvt.s32.f32 %v2652
        %v4701 = vcvt.s32.f32 %v2653
        %v4702 = vcvt.s32.f32 %v2654
        %v4703 = vcvt.s32.f32 %v2655
        %v4704 = vcvt.s32.f32 %v2656
        %v4705 = vcvt.s32.f32 %v2657
        %v4706 = vcvt.s32.f32 %v2658
        %v4707 = vcvt.s32.f32 %v2659
        %v4708 = vcvt.s32.f32 %v2660
        %v4709 = vcvt.s32.f32 %v2661
        %v4710 = vcvt.s32.f32 %v2662
        %v4711 = vcvt.s32.f32 %v2663
        %v4712 = vcvt.s32.f32 %v2664
        %v4713 = vcvt.s32.f32 %v2665
        %v4714 = vcvt.s32.f32 %v2666
        %v4715 = vcvt.s32.f32 %v2667
        %v4716 = vcvt.s32.f32 %v2668
        %v4717 = vcvt.s32.f32 %v2669
        %v4718 = vcvt.s32.f32 %v2670
        %v4719 = vcvt.s32.f32 %v2671
        %v4720 = vcvt.s32.f32 %v2672
        %v4721 = vcvt.s32.f32 %v2673
        %v4722 = vcvt.s32.f32 %v2674
        %v4723 = vcvt.s32.f32 %v2675
        %v4724 = vcvt.s32.f32 %v2676
        %v4725 = vcvt.s32.f32 %v2677
        %v4726 = vcvt.s32.f32 %v2678
        %v4727 = vcvt.s32.f32 %v2679
        %v4728 = vcvt.s32.f32 %v2680
        %v4729 = vcvt.s32.f32 %v2681
        %v4730 = vcvt.s32.f32 %v2682
        %v4731 = vcvt.s32.f32 %v2683
        %v4732 = vcvt.s32.f32 %v2684
        %v4733 = vcvt.s32.f32 %v2685
        %v4734 = vcvt.s32.f32 %v2686
        %v4735 = vcvt.s32.f32 %v2687
        %v4736 = vcvt.s32.f32 %v2688
        %v4737 = vcvt.s32.f32 %v2689
        %v4738 = vcvt.s32.f32 %v2690
        %v4739 = vcvt.s32.f32 %v2691
        %v4740 = vcvt.s32.f32 %v2692
        %v4741 = vcvt.s32.f32 %v2693
        %v4742 = vcvt.s32.f32 %v2694
        %v4743 = vcvt.s32.f32 %v2695
        %v4744 = vcvt.s32.f32 %v2696
        %v4745 = vcvt.s32.f32 %v2697
        %v4746 = vcvt.s32.f32 %v2698
        %v4747 = vcvt.s32.f32 %v2699
        %v4748 = vcvt.s32.f32 %v2700
        %v4749 = vcvt.s32.f32 %v2701
        %v4750 = vcvt.s32.f32 %v2702
        %v4751 = vcvt.s32.f32 %v2703
        %v4752 = vcvt.s32.f32 %v2704
        %v4753 = vcvt.s32.f32 %v2705
        %v4754 = vcvt.s32.f32 %v2706
        %v4755 = vcvt.s32.f32 %v2707
        %v4756 = vcvt.s32.f32 %v2708
        %v4757 = vcvt.s32.f32 %v2709
        %v4758 = vcvt.s32.f32 %v2710
        %v4759 = vcvt.s32.f32 %v2711
        %v4760 = vcvt.s32.f32 %v2712
        %v4761 = vcvt.s32.f32 %v2713
        %v4762 = vcvt.s32.f32 %v2714
        %v4763 = vcvt.s32.f32 %v2715
        %v4764 = vcvt.s32.f32 %v2716
        %v4765 = vcvt.s32.f32 %v2717
        %v4766 = vcvt.s32.f32 %v2718
        %v4767 = vcvt.s32.f32 %v2719
        %v4768 = vcvt.s32.f32 %v2720
        %v4769 = vcvt.s32.f32 %v2721
        %v4770 = vcvt.s32.f32 %v2722
        %v4771 = vcvt.s32.f32 %v2723
        %v4772 = vcvt.s32.f32 %v2724
        %v4773 = vcvt.s32.f32 %v2725
        %v4774 = vcvt.s32.f32 %v2726
        %v4775 = vcvt.s32.f32 %v2727
        %v4776 = vcvt.s32.f32 %v2728
        %v4777 = vcvt.s32.f32 %v2729
        %v4778 = vcvt.s32.f32 %v2730
        %v4779 = vcvt.s32.f32 %v2731
        %v4780 = vcvt.s32.f32 %v2732
        %v4781 = vcvt.s32.f32 %v2733
        %v4782 = vcvt.s32.f32 %v2734
        %v4783 = vcvt.s32.f32 %v2735
        %v4784 = vcvt.s32.f32 %v2736
        %v4785 = vcvt.s32.f32 %v2737
        %v4786 = vcvt.s32.f32 %v2738
        %v4787 = vcvt.s32.f32 %v2739
        %v4788 = vcvt.s32.f32 %v2740
        %v4789 = vcvt.s32.f32 %v2741
        %v4790 = vcvt.s32.f32 %v2742
        %v4791 = vcvt.s32.f32 %v2743
        %v4792 = vcvt.s32.f32 %v2744
        %v4793 = vcvt.s32.f32 %v2745
        %v4794 = vcvt.s32.f32 %v2746
        %v4795 = vcvt.s32.f32 %v2747
        %v4796 = vcvt.s32.f32 %v2748
        %v4797 = vcvt.s32.f32 %v2749
        %v4798 = vcvt.s32.f32 %v2750
        %v4799 = vcvt.s32.f32 %v2751
        %v4800 = vcvt.s32.f32 %v2752
        %v4801 = vcvt.s32.f32 %v2753
        %v4802 = vcvt.s32.f32 %v2754
        %v4803 = vcvt.s32.f32 %v2755
        %v4804 = vcvt.s32.f32 %v2756
        %v4805 = vcvt.s32.f32 %v2757
        %v4806 = vcvt.s32.f32 %v2758
        %v4807 = vcvt.s32.f32 %v2759
        %v4808 = vcvt.s32.f32 %v2760
        %v4809 = vcvt.s32.f32 %v2761
        %v4810 = vcvt.s32.f32 %v2762
        %v4811 = vcvt.s32.f32 %v2763
        %v4812 = vcvt.s32.f32 %v2764
        %v4813 = vcvt.s32.f32 %v2765
        %v4814 = vcvt.s32.f32 %v2766
        %v4815 = vcvt.s32.f32 %v2767
        %v4816 = vcvt.s32.f32 %v2768
        %v4817 = vcvt.s32.f32 %v2769
        %v4818 = vcvt.s32.f32 %v2770
        %v4819 = vcvt.s32.f32 %v2771
        %v4820 = vcvt.s32.f32 %v2772
        %v4821 = vcvt.s32.f32 %v2773
        %v4822 = vcvt.s32.f32 %v2774
        %v4823 = vcvt.s32.f32 %v2775
        %v4824 = vcvt.s32.f32 %v2776
        %v4825 = vcvt.s32.f32 %v2777
        %v4826 = vcvt.s32.f32 %v2778
        %v4827 = vcvt.s32.f32 %v2779
        %v4828 = vcvt.s32.f32 %v2780
        %v4829 = vcvt.s32.f32 %v2781
        %v4830 = vcvt.s32.f32 %v2782
        %v4831 = vcvt.s32.f32 %v2783
        %v4832 = vcvt.s32.f32 %v2784
        %v4833 = vcvt.s32.f32 %v2785
        %v4834 = vcvt.s32.f32 %v2786
        %v4835 = vcvt.s32.f32 %v2787
        %v4836 = vcvt.s32.f32 %v2788
        %v4837 = vcvt.s32.f32 %v2789
        %v4838 = vcvt.s32.f32 %v2790
        %v4839 = vcvt.s32.f32 %v2791
        %v4840 = vcvt.s32.f32 %v2792
        %v4841 = vcvt.s32.f32 %v2793
        %v4842 = vcvt.s32.f32 %v2794
        %v4843 = vcvt.s32.f32 %v2795
        %v4844 = vcvt.s32.f32 %v2796
        %v4845 = vpack.c.bf16 %v2805, %v2797
        %v4846 = vpack.c.bf16 %v2806, %v2798
        %v4847 = vpack.c.bf16 %v2807, %v2799
        %v4848 = vpack.c.bf16 %v2808, %v2800
        %v4849 = vpack.c.bf16 %v2809, %v2801
        %v4850 = vpack.c.bf16 %v2810, %v2802
        %v4851 = vpack.c.bf16 %v2811, %v2803
        %v4852 = vpack.c.bf16 %v2812, %v2804
        %v4853 = vpack.c.bf16 %v2821, %v2813
        %v4854 = vpack.c.bf16 %v2822, %v2814
        %v4855 = vpack.c.bf16 %v2823, %v2815
        %v4856 = vpack.c.bf16 %v2824, %v2816
        %v4857 = vpack.c.bf16 %v2825, %v2817
        %v4858 = vpack.c.bf16 %v2826, %v2818
        %v4859 = vpack.c.bf16 %v2827, %v2819
        %v4860 = vpack.c.bf16 %v2828, %v2820
        %v4861 = vpack.c.bf16 %v2837, %v2829
        %v4862 = vpack.c.bf16 %v2838, %v2830
        %v4863 = vpack.c.bf16 %v2839, %v2831
        %v4864 = vpack.c.bf16 %v2840, %v2832
        %v4865 = vpack.c.bf16 %v2841, %v2833
        %v4866 = vpack.c.bf16 %v2842, %v2834
        %v4867 = vpack.c.bf16 %v2843, %v2835
        %v4868 = vpack.c.bf16 %v2844, %v2836
        %v4869 = vpack.c.bf16 %v2853, %v2845
        %v4870 = vpack.c.bf16 %v2854, %v2846
        %v4871 = vpack.c.bf16 %v2855, %v2847
        %v4872 = vpack.c.bf16 %v2856, %v2848
        %v4873 = vpack.c.bf16 %v2857, %v2849
        %v4874 = vpack.c.bf16 %v2858, %v2850
        %v4875 = vpack.c.bf16 %v2859, %v2851
        %v4876 = vpack.c.bf16 %v2860, %v2852
        %v4877 = vpack.c.bf16 %v2869, %v2861
        %v4878 = vpack.c.bf16 %v2870, %v2862
        %v4879 = vpack.c.bf16 %v2871, %v2863
        %v4880 = vpack.c.bf16 %v2872, %v2864
        %v4881 = vpack.c.bf16 %v2873, %v2865
        %v4882 = vpack.c.bf16 %v2874, %v2866
        %v4883 = vpack.c.bf16 %v2875, %v2867
        %v4884 = vpack.c.bf16 %v2876, %v2868
        %v4885 = vpack.c.bf16 %v2885, %v2877
        %v4886 = vpack.c.bf16 %v2886, %v2878
        %v4887 = vpack.c.bf16 %v2887, %v2879
        %v4888 = vpack.c.bf16 %v2888, %v2880
        %v4889 = vpack.c.bf16 %v2889, %v2881
        %v4890 = vpack.c.bf16 %v2890, %v2882
        %v4891 = vpack.c.bf16 %v2891, %v2883
        %v4892 = vpack.c.bf16 %v2892, %v2884
        %v4893 = vpack.c.bf16 %v2901, %v2893
        %v4894 = vpack.c.bf16 %v2902, %v2894
        %v4895 = vpack.c.bf16 %v2903, %v2895
        %v4896 = vpack.c.bf16 %v2904, %v2896
        %v4897 = vpack.c.bf16 %v2905, %v2897
        %v4898 = vpack.c.bf16 %v2906, %v2898
        %v4899 = vpack.c.bf16 %v2907, %v2899
        %v4900 = vpack.c.bf16 %v2908, %v2900
        %v4901 = vpack.c.bf16 %v2917, %v2909
        %v4902 = vpack.c.bf16 %v2918, %v2910
        %v4903 = vpack.c.bf16 %v2919, %v2911
        %v4904 = vpack.c.bf16 %v2920, %v2912
        %v4905 = vpack.c.bf16 %v2921, %v2913
        %v4906 = vpack.c.bf16 %v2922, %v2914
        %v4907 = vpack.c.bf16 %v2923, %v2915
        %v4908 = vpack.c.bf16 %v2924, %v2916
        %v4909 = vpack.c.bf16 %v2933, %v2925
        %v4910 = vpack.c.bf16 %v2934, %v2926
        %v4911 = vpack.c.bf16 %v2935, %v2927
        %v4912 = vpack.c.bf16 %v2936, %v2928
        %v4913 = vpack.c.bf16 %v2937, %v2929
        %v4914 = vpack.c.bf16 %v2938, %v2930
        %v4915 = vpack.c.bf16 %v2939, %v2931
        %v4916 = vpack.c.bf16 %v2940, %v2932
        %v4917 = vpack.c.bf16 %v2949, %v2941
        %v4918 = vpack.c.bf16 %v2950, %v2942
        %v4919 = vpack.c.bf16 %v2951, %v2943
        %v4920 = vpack.c.bf16 %v2952, %v2944
        %v4921 = vpack.c.bf16 %v2953, %v2945
        %v4922 = vpack.c.bf16 %v2954, %v2946
        %v4923 = vpack.c.bf16 %v2955, %v2947
        %v4924 = vpack.c.bf16 %v2956, %v2948
        %v4925 = vpack.c.bf16 %v2965, %v2957
        %v4926 = vpack.c.bf16 %v2966, %v2958
        %v4927 = vpack.c.bf16 %v2967, %v2959
        %v4928 = vpack.c.bf16 %v2968, %v2960
        %v4929 = vpack.c.bf16 %v2969, %v2961
        %v4930 = vpack.c.bf16 %v2970, %v2962
        %v4931 = vpack.c.bf16 %v2971, %v2963
        %v4932 = vpack.c.bf16 %v2972, %v2964
        %v4933 = vpack.c.bf16 %v2981, %v2973
        %v4934 = vpack.c.bf16 %v2982, %v2974
        %v4935 = vpack.c.bf16 %v2983, %v2975
        %v4936 = vpack.c.bf16 %v2984, %v2976
        %v4937 = vpack.c.bf16 %v2985, %v2977
        %v4938 = vpack.c.bf16 %v2986, %v2978
        %v4939 = vpack.c.bf16 %v2987, %v2979
        %v4940 = vpack.c.bf16 %v2988, %v2980
        %v4941 = vpack.c.bf16 %v2997, %v2989
        %v4942 = vpack.c.bf16 %v2998, %v2990
        %v4943 = vpack.c.bf16 %v2999, %v2991
        %v4944 = vpack.c.bf16 %v3000, %v2992
        %v4945 = vpack.c.bf16 %v3001, %v2993
        %v4946 = vpack.c.bf16 %v3002, %v2994
        %v4947 = vpack.c.bf16 %v3003, %v2995
        %v4948 = vpack.c.bf16 %v3004, %v2996
        %v4949 = vpack.c.bf16 %v3013, %v3005
        %v4950 = vpack.c.bf16 %v3014, %v3006
        %v4951 = vpack.c.bf16 %v3015, %v3007
        %v4952 = vpack.c.bf16 %v3016, %v3008
        %v4953 = vpack.c.bf16 %v3017, %v3009
        %v4954 = vpack.c.bf16 %v3018, %v3010
        %v4955 = vpack.c.bf16 %v3019, %v3011
        %v4956 = vpack.c.bf16 %v3020, %v3012
        %v4957 = vpack.c.bf16 %v3029, %v3021
        %v4958 = vpack.c.bf16 %v3030, %v3022
        %v4959 = vpack.c.bf16 %v3031, %v3023
        %v4960 = vpack.c.bf16 %v3032, %v3024
        %v4961 = vpack.c.bf16 %v3033, %v3025
        %v4962 = vpack.c.bf16 %v3034, %v3026
        %v4963 = vpack.c.bf16 %v3035, %v3027
        %v4964 = vpack.c.bf16 %v3036, %v3028
        %v4965 = vpack.c.bf16 %v3045, %v3037
        %v4966 = vpack.c.bf16 %v3046, %v3038
        %v4967 = vpack.c.bf16 %v3047, %v3039
        %v4968 = vpack.c.bf16 %v3048, %v3040
        %v4969 = vpack.c.bf16 %v3049, %v3041
        %v4970 = vpack.c.bf16 %v3050, %v3042
        %v4971 = vpack.c.bf16 %v3051, %v3043
        %v4972 = vpack.c.bf16 %v3052, %v3044
        %v4973 = vpack.c.bf16 %v3061, %v3053
        %v4974 = vpack.c.bf16 %v3062, %v3054
        %v4975 = vpack.c.bf16 %v3063, %v3055
        %v4976 = vpack.c.bf16 %v3064, %v3056
        %v4977 = vpack.c.bf16 %v3065, %v3057
        %v4978 = vpack.c.bf16 %v3066, %v3058
        %v4979 = vpack.c.bf16 %v3067, %v3059
        %v4980 = vpack.c.bf16 %v3068, %v3060
        %v4981 = vpack.c.bf16 %v3077, %v3069
        %v4982 = vpack.c.bf16 %v3078, %v3070
        %v4983 = vpack.c.bf16 %v3079, %v3071
        %v4984 = vpack.c.bf16 %v3080, %v3072
        %v4985 = vpack.c.bf16 %v3081, %v3073
        %v4986 = vpack.c.bf16 %v3082, %v3074
        %v4987 = vpack.c.bf16 %v3083, %v3075
        %v4988 = vpack.c.bf16 %v3084, %v3076
        %v4989 = vpack.c.bf16 %v3093, %v3085
        %v4990 = vpack.c.bf16 %v3094, %v3086
        %v4991 = vpack.c.bf16 %v3095, %v3087
        %v4992 = vpack.c.bf16 %v3096, %v3088
        %v4993 = vpack.c.bf16 %v3097, %v3089
        %v4994 = vpack.c.bf16 %v3098, %v3090
        %v4995 = vpack.c.bf16 %v3099, %v3091
        %v4996 = vpack.c.bf16 %v3100, %v3092
        %v4997 = vpack.c.bf16 %v3109, %v3101
        %v4998 = vpack.c.bf16 %v3110, %v3102
        %v4999 = vpack.c.bf16 %v3111, %v3103
        %v5000 = vpack.c.bf16 %v3112, %v3104
        %v5001 = vpack.c.bf16 %v3113, %v3105
        %v5002 = vpack.c.bf16 %v3114, %v3106
        %v5003 = vpack.c.bf16 %v3115, %v3107
        %v5004 = vpack.c.bf16 %v3116, %v3108
        %v5005 = vpack.c.bf16 %v3125, %v3117
        %v5006 = vpack.c.bf16 %v3126, %v3118
        %v5007 = vpack.c.bf16 %v3127, %v3119
        %v5008 = vpack.c.bf16 %v3128, %v3120
        %v5009 = vpack.c.bf16 %v3129, %v3121
        %v5010 = vpack.c.bf16 %v3130, %v3122
        %v5011 = vpack.c.bf16 %v3131, %v3123
        %v5012 = vpack.c.bf16 %v3132, %v3124
        %v5013 = vpack.c.bf16 %v3141, %v3133
        %v5014 = vpack.c.bf16 %v3142, %v3134
        %v5015 = vpack.c.bf16 %v3143, %v3135
        %v5016 = vpack.c.bf16 %v3144, %v3136
        %v5017 = vpack.c.bf16 %v3145, %v3137
        %v5018 = vpack.c.bf16 %v3146, %v3138
        %v5019 = vpack.c.bf16 %v3147, %v3139
        %v5020 = vpack.c.bf16 %v3148, %v3140
        %v5021 = vpack.c.bf16 %v3157, %v3149
        %v5022 = vpack.c.bf16 %v3158, %v3150
        %v5023 = vpack.c.bf16 %v3159, %v3151
        %v5024 = vpack.c.bf16 %v3160, %v3152
        %v5025 = vpack.c.bf16 %v3161, %v3153
        %v5026 = vpack.c.bf16 %v3162, %v3154
        %v5027 = vpack.c.bf16 %v3163, %v3155
        %v5028 = vpack.c.bf16 %v3164, %v3156
        %v5029 = vpack.c.bf16 %v3173, %v3165
        %v5030 = vpack.c.bf16 %v3174, %v3166
        %v5031 = vpack.c.bf16 %v3175, %v3167
        %v5032 = vpack.c.bf16 %v3176, %v3168
        %v5033 = vpack.c.bf16 %v3177, %v3169
        %v5034 = vpack.c.bf16 %v3178, %v3170
        %v5035 = vpack.c.bf16 %v3179, %v3171
        %v5036 = vpack.c.bf16 %v3180, %v3172
        %v5037 = vpack.c.bf16 %v3189, %v3181
        %v5038 = vpack.c.bf16 %v3190, %v3182
        %v5039 = vpack.c.bf16 %v3191, %v3183
        %v5040 = vpack.c.bf16 %v3192, %v3184
        %v5041 = vpack.c.bf16 %v3193, %v3185
        %v5042 = vpack.c.bf16 %v3194, %v3186
        %v5043 = vpack.c.bf16 %v3195, %v3187
        %v5044 = vpack.c.bf16 %v3196, %v3188
        %v5045 = vpack.c.bf16 %v3205, %v3197
        %v5046 = vpack.c.bf16 %v3206, %v3198
        %v5047 = vpack.c.bf16 %v3207, %v3199
        %v5048 = vpack.c.bf16 %v3208, %v3200
        %v5049 = vpack.c.bf16 %v3209, %v3201
        %v5050 = vpack.c.bf16 %v3210, %v3202
        %v5051 = vpack.c.bf16 %v3211, %v3203
        %v5052 = vpack.c.bf16 %v3212, %v3204
        %v5053 = vpack.c.bf16 %v3221, %v3213
        %v5054 = vpack.c.bf16 %v3222, %v3214
        %v5055 = vpack.c.bf16 %v3223, %v3215
        %v5056 = vpack.c.bf16 %v3224, %v3216
        %v5057 = vpack.c.bf16 %v3225, %v3217
        %v5058 = vpack.c.bf16 %v3226, %v3218
        %v5059 = vpack.c.bf16 %v3227, %v3219
        %v5060 = vpack.c.bf16 %v3228, %v3220
        %v5061 = vpack.c.bf16 %v3237, %v3229
        %v5062 = vpack.c.bf16 %v3238, %v3230
        %v5063 = vpack.c.bf16 %v3239, %v3231
        %v5064 = vpack.c.bf16 %v3240, %v3232
        %v5065 = vpack.c.bf16 %v3241, %v3233
        %v5066 = vpack.c.bf16 %v3242, %v3234
        %v5067 = vpack.c.bf16 %v3243, %v3235
        %v5068 = vpack.c.bf16 %v3244, %v3236
        %v5069 = vpack.c.bf16 %v3253, %v3245
        %v5070 = vpack.c.bf16 %v3254, %v3246
        %v5071 = vpack.c.bf16 %v3255, %v3247
        %v5072 = vpack.c.bf16 %v3256, %v3248
        %v5073 = vpack.c.bf16 %v3257, %v3249
        %v5074 = vpack.c.bf16 %v3258, %v3250
        %v5075 = vpack.c.bf16 %v3259, %v3251
        %v5076 = vpack.c.bf16 %v3260, %v3252
        %v5077 = vpack.c.bf16 %v3269, %v3261
        %v5078 = vpack.c.bf16 %v3270, %v3262
        %v5079 = vpack.c.bf16 %v3271, %v3263
        %v5080 = vpack.c.bf16 %v3272, %v3264
        %v5081 = vpack.c.bf16 %v3273, %v3265
        %v5082 = vpack.c.bf16 %v3274, %v3266
        %v5083 = vpack.c.bf16 %v3275, %v3267
        %v5084 = vpack.c.bf16 %v3276, %v3268
        %v5085 = vpack.c.bf16 %v3285, %v3277
        %v5086 = vpack.c.bf16 %v3286, %v3278
        %v5087 = vpack.c.bf16 %v3287, %v3279
        %v5088 = vpack.c.bf16 %v3288, %v3280
        %v5089 = vpack.c.bf16 %v3289, %v3281
        %v5090 = vpack.c.bf16 %v3290, %v3282
        %v5091 = vpack.c.bf16 %v3291, %v3283
        %v5092 = vpack.c.bf16 %v3292, %v3284
        %v5093 = vpack.c.bf16 %v3301, %v3293
        %v5094 = vpack.c.bf16 %v3302, %v3294
        %v5095 = vpack.c.bf16 %v3303, %v3295
        %v5096 = vpack.c.bf16 %v3304, %v3296
        %v5097 = vpack.c.bf16 %v3305, %v3297
        %v5098 = vpack.c.bf16 %v3306, %v3298
        %v5099 = vpack.c.bf16 %v3307, %v3299
        %v5100 = vpack.c.bf16 %v3308, %v3300
        %v5101 = vpack.c.bf16 %v3317, %v3309
        %v5102 = vpack.c.bf16 %v3318, %v3310
        %v5103 = vpack.c.bf16 %v3319, %v3311
        %v5104 = vpack.c.bf16 %v3320, %v3312
        %v5105 = vpack.c.bf16 %v3321, %v3313
        %v5106 = vpack.c.bf16 %v3322, %v3314
        %v5107 = vpack.c.bf16 %v3323, %v3315
        %v5108 = vpack.c.bf16 %v3324, %v3316
        %v5109 = vpack.c.bf16 %v3333, %v3325
        %v5110 = vpack.c.bf16 %v3334, %v3326
        %v5111 = vpack.c.bf16 %v3335, %v3327
        %v5112 = vpack.c.bf16 %v3336, %v3328
        %v5113 = vpack.c.bf16 %v3337, %v3329
        %v5114 = vpack.c.bf16 %v3338, %v3330
        %v5115 = vpack.c.bf16 %v3339, %v3331
        %v5116 = vpack.c.bf16 %v3340, %v3332
        %v5117 = vpack.c.bf16 %v3349, %v3341
        %v5118 = vpack.c.bf16 %v3350, %v3342
        %v5119 = vpack.c.bf16 %v3351, %v3343
        %v5120 = vpack.c.bf16 %v3352, %v3344
        %v5121 = vpack.c.bf16 %v3353, %v3345
        %v5122 = vpack.c.bf16 %v3354, %v3346
        %v5123 = vpack.c.bf16 %v3355, %v3347
        %v5124 = vpack.c.bf16 %v3356, %v3348
        %v5125 = vpack.c.bf16 %v3365, %v3357
        %v5126 = vpack.c.bf16 %v3366, %v3358
        %v5127 = vpack.c.bf16 %v3367, %v3359
        %v5128 = vpack.c.bf16 %v3368, %v3360
        %v5129 = vpack.c.bf16 %v3369, %v3361
        %v5130 = vpack.c.bf16 %v3370, %v3362
        %v5131 = vpack.c.bf16 %v3371, %v3363
        %v5132 = vpack.c.bf16 %v3372, %v3364
        %v5133 = vpack.c.bf16 %v3381, %v3373
        %v5134 = vpack.c.bf16 %v3382, %v3374
        %v5135 = vpack.c.bf16 %v3383, %v3375
        %v5136 = vpack.c.bf16 %v3384, %v3376
        %v5137 = vpack.c.bf16 %v3385, %v3377
        %v5138 = vpack.c.bf16 %v3386, %v3378
        %v5139 = vpack.c.bf16 %v3387, %v3379
        %v5140 = vpack.c.bf16 %v3388, %v3380
        %v5141 = vpack.c.bf16 %v3397, %v3389
        %v5142 = vpack.c.bf16 %v3398, %v3390
        %v5143 = vpack.c.bf16 %v3399, %v3391
        %v5144 = vpack.c.bf16 %v3400, %v3392
        %v5145 = vpack.c.bf16 %v3401, %v3393
        %v5146 = vpack.c.bf16 %v3402, %v3394
        %v5147 = vpack.c.bf16 %v3403, %v3395
        %v5148 = vpack.c.bf16 %v3404, %v3396
        %v5149 = vpack.c.bf16 %v3413, %v3405
        %v5150 = vpack.c.bf16 %v3414, %v3406
        %v5151 = vpack.c.bf16 %v3415, %v3407
        %v5152 = vpack.c.bf16 %v3416, %v3408
        %v5153 = vpack.c.bf16 %v3417, %v3409
        %v5154 = vpack.c.bf16 %v3418, %v3410
        %v5155 = vpack.c.bf16 %v3419, %v3411
        %v5156 = vpack.c.bf16 %v3420, %v3412
        %v5157 = vpack.c.bf16 %v3429, %v3421
        %v5158 = vpack.c.bf16 %v3430, %v3422
        %v5159 = vpack.c.bf16 %v3431, %v3423
        %v5160 = vpack.c.bf16 %v3432, %v3424
        %v5161 = vpack.c.bf16 %v3433, %v3425
        %v5162 = vpack.c.bf16 %v3434, %v3426
        %v5163 = vpack.c.bf16 %v3435, %v3427
        %v5164 = vpack.c.bf16 %v3436, %v3428
        %v5165 = vpack.c.bf16 %v3445, %v3437
        %v5166 = vpack.c.bf16 %v3446, %v3438
        %v5167 = vpack.c.bf16 %v3447, %v3439
        %v5168 = vpack.c.bf16 %v3448, %v3440
        %v5169 = vpack.c.bf16 %v3449, %v3441
        %v5170 = vpack.c.bf16 %v3450, %v3442
        %v5171 = vpack.c.bf16 %v3451, %v3443
        %v5172 = vpack.c.bf16 %v3452, %v3444
        %v5173 = vpack.c.bf16 %v3461, %v3453
        %v5174 = vpack.c.bf16 %v3462, %v3454
        %v5175 = vpack.c.bf16 %v3463, %v3455
        %v5176 = vpack.c.bf16 %v3464, %v3456
        %v5177 = vpack.c.bf16 %v3465, %v3457
        %v5178 = vpack.c.bf16 %v3466, %v3458
        %v5179 = vpack.c.bf16 %v3467, %v3459
        %v5180 = vpack.c.bf16 %v3468, %v3460
        %v5181 = vpack.c.bf16 %v3477, %v3469
        %v5182 = vpack.c.bf16 %v3478, %v3470
        %v5183 = vpack.c.bf16 %v3479, %v3471
        %v5184 = vpack.c.bf16 %v3480, %v3472
        %v5185 = vpack.c.bf16 %v3481, %v3473
        %v5186 = vpack.c.bf16 %v3482, %v3474
        %v5187 = vpack.c.bf16 %v3483, %v3475
        %v5188 = vpack.c.bf16 %v3484, %v3476
        %v5189 = vpack.c.bf16 %v3493, %v3485
        %v5190 = vpack.c.bf16 %v3494, %v3486
        %v5191 = vpack.c.bf16 %v3495, %v3487
        %v5192 = vpack.c.bf16 %v3496, %v3488
        %v5193 = vpack.c.bf16 %v3497, %v3489
        %v5194 = vpack.c.bf16 %v3498, %v3490
        %v5195 = vpack.c.bf16 %v3499, %v3491
        %v5196 = vpack.c.bf16 %v3500, %v3492
        %v5197 = vpack.c.bf16 %v3509, %v3501
        %v5198 = vpack.c.bf16 %v3510, %v3502
        %v5199 = vpack.c.bf16 %v3511, %v3503
        %v5200 = vpack.c.bf16 %v3512, %v3504
        %v5201 = vpack.c.bf16 %v3513, %v3505
        %v5202 = vpack.c.bf16 %v3514, %v3506
        %v5203 = vpack.c.bf16 %v3515, %v3507
        %v5204 = vpack.c.bf16 %v3516, %v3508
        %v5205 = vpack.c.bf16 %v3525, %v3517
        %v5206 = vpack.c.bf16 %v3526, %v3518
        %v5207 = vpack.c.bf16 %v3527, %v3519
        %v5208 = vpack.c.bf16 %v3528, %v3520
        %v5209 = vpack.c.bf16 %v3529, %v3521
        %v5210 = vpack.c.bf16 %v3530, %v3522
        %v5211 = vpack.c.bf16 %v3531, %v3523
        %v5212 = vpack.c.bf16 %v3532, %v3524
        %v5213 = vpack.c.bf16 %v3541, %v3533
        %v5214 = vpack.c.bf16 %v3542, %v3534
        %v5215 = vpack.c.bf16 %v3543, %v3535
        %v5216 = vpack.c.bf16 %v3544, %v3536
        %v5217 = vpack.c.bf16 %v3545, %v3537
        %v5218 = vpack.c.bf16 %v3546, %v3538
        %v5219 = vpack.c.bf16 %v3547, %v3539
        %v5220 = vpack.c.bf16 %v3548, %v3540
        %v5221 = vpack.c.bf16 %v3557, %v3549
        %v5222 = vpack.c.bf16 %v3558, %v3550
        %v5223 = vpack.c.bf16 %v3559, %v3551
        %v5224 = vpack.c.bf16 %v3560, %v3552
        %v5225 = vpack.c.bf16 %v3561, %v3553
        %v5226 = vpack.c.bf16 %v3562, %v3554
        %v5227 = vpack.c.bf16 %v3563, %v3555
        %v5228 = vpack.c.bf16 %v3564, %v3556
        %v5229 = vpack.c.bf16 %v3573, %v3565
        %v5230 = vpack.c.bf16 %v3574, %v3566
        %v5231 = vpack.c.bf16 %v3575, %v3567
        %v5232 = vpack.c.bf16 %v3576, %v3568
        %v5233 = vpack.c.bf16 %v3577, %v3569
        %v5234 = vpack.c.bf16 %v3578, %v3570
        %v5235 = vpack.c.bf16 %v3579, %v3571
        %v5236 = vpack.c.bf16 %v3580, %v3572
        %v5237 = vpack.c.bf16 %v3589, %v3581
        %v5238 = vpack.c.bf16 %v3590, %v3582
        %v5239 = vpack.c.bf16 %v3591, %v3583
        %v5240 = vpack.c.bf16 %v3592, %v3584
        %v5241 = vpack.c.bf16 %v3593, %v3585
        %v5242 = vpack.c.bf16 %v3594, %v3586
        %v5243 = vpack.c.bf16 %v3595, %v3587
        %v5244 = vpack.c.bf16 %v3596, %v3588
        %v5245 = vpack.c.bf16 %v3605, %v3597
        %v5246 = vpack.c.bf16 %v3606, %v3598
        %v5247 = vpack.c.bf16 %v3607, %v3599
        %v5248 = vpack.c.bf16 %v3608, %v3600
        %v5249 = vpack.c.bf16 %v3609, %v3601
        %v5250 = vpack.c.bf16 %v3610, %v3602
        %v5251 = vpack.c.bf16 %v3611, %v3603
        %v5252 = vpack.c.bf16 %v3612, %v3604
        %v5253 = vpack.c.bf16 %v3621, %v3613
        %v5254 = vpack.c.bf16 %v3622, %v3614
        %v5255 = vpack.c.bf16 %v3623, %v3615
        %v5256 = vpack.c.bf16 %v3624, %v3616
        %v5257 = vpack.c.bf16 %v3625, %v3617
        %v5258 = vpack.c.bf16 %v3626, %v3618
        %v5259 = vpack.c.bf16 %v3627, %v3619
        %v5260 = vpack.c.bf16 %v3628, %v3620
        %v5261 = vpack.c.bf16 %v3637, %v3629
        %v5262 = vpack.c.bf16 %v3638, %v3630
        %v5263 = vpack.c.bf16 %v3639, %v3631
        %v5264 = vpack.c.bf16 %v3640, %v3632
        %v5265 = vpack.c.bf16 %v3641, %v3633
        %v5266 = vpack.c.bf16 %v3642, %v3634
        %v5267 = vpack.c.bf16 %v3643, %v3635
        %v5268 = vpack.c.bf16 %v3644, %v3636
        %v5269 = vpack.c.bf16 %v3653, %v3645
        %v5270 = vpack.c.bf16 %v3654, %v3646
        %v5271 = vpack.c.bf16 %v3655, %v3647
        %v5272 = vpack.c.bf16 %v3656, %v3648
        %v5273 = vpack.c.bf16 %v3657, %v3649
        %v5274 = vpack.c.bf16 %v3658, %v3650
        %v5275 = vpack.c.bf16 %v3659, %v3651
        %v5276 = vpack.c.bf16 %v3660, %v3652
        %v5277 = vpack.c.bf16 %v3669, %v3661
        %v5278 = vpack.c.bf16 %v3670, %v3662
        %v5279 = vpack.c.bf16 %v3671, %v3663
        %v5280 = vpack.c.bf16 %v3672, %v3664
        %v5281 = vpack.c.bf16 %v3673, %v3665
        %v5282 = vpack.c.bf16 %v3674, %v3666
        %v5283 = vpack.c.bf16 %v3675, %v3667
        %v5284 = vpack.c.bf16 %v3676, %v3668
        %v5285 = vpack.c.bf16 %v3685, %v3677
        %v5286 = vpack.c.bf16 %v3686, %v3678
        %v5287 = vpack.c.bf16 %v3687, %v3679
        %v5288 = vpack.c.bf16 %v3688, %v3680
        %v5289 = vpack.c.bf16 %v3689, %v3681
        %v5290 = vpack.c.bf16 %v3690, %v3682
        %v5291 = vpack.c.bf16 %v3691, %v3683
        %v5292 = vpack.c.bf16 %v3692, %v3684
        %v5293 = vpack.c.bf16 %v3701, %v3693
        %v5294 = vpack.c.bf16 %v3702, %v3694
        %v5295 = vpack.c.bf16 %v3703, %v3695
        %v5296 = vpack.c.bf16 %v3704, %v3696
        %v5297 = vpack.c.bf16 %v3705, %v3697
        %v5298 = vpack.c.bf16 %v3706, %v3698
        %v5299 = vpack.c.bf16 %v3707, %v3699
        %v5300 = vpack.c.bf16 %v3708, %v3700
        %v5301 = vpack.c.bf16 %v3717, %v3709
        %v5302 = vpack.c.bf16 %v3718, %v3710
        %v5303 = vpack.c.bf16 %v3719, %v3711
        %v5304 = vpack.c.bf16 %v3720, %v3712
        %v5305 = vpack.c.bf16 %v3721, %v3713
        %v5306 = vpack.c.bf16 %v3722, %v3714
        %v5307 = vpack.c.bf16 %v3723, %v3715
        %v5308 = vpack.c.bf16 %v3724, %v3716
        %v5309 = vpack.c.bf16 %v3733, %v3725
        %v5310 = vpack.c.bf16 %v3734, %v3726
        %v5311 = vpack.c.bf16 %v3735, %v3727
        %v5312 = vpack.c.bf16 %v3736, %v3728
        %v5313 = vpack.c.bf16 %v3737, %v3729
        %v5314 = vpack.c.bf16 %v3738, %v3730
        %v5315 = vpack.c.bf16 %v3739, %v3731
        %v5316 = vpack.c.bf16 %v3740, %v3732
        %v5317 = vpack.c.bf16 %v3749, %v3741
        %v5318 = vpack.c.bf16 %v3750, %v3742
        %v5319 = vpack.c.bf16 %v3751, %v3743
        %v5320 = vpack.c.bf16 %v3752, %v3744
        %v5321 = vpack.c.bf16 %v3753, %v3745
        %v5322 = vpack.c.bf16 %v3754, %v3746
        %v5323 = vpack.c.bf16 %v3755, %v3747
        %v5324 = vpack.c.bf16 %v3756, %v3748
        %v5325 = vpack.c.bf16 %v3765, %v3757
        %v5326 = vpack.c.bf16 %v3766, %v3758
        %v5327 = vpack.c.bf16 %v3767, %v3759
        %v5328 = vpack.c.bf16 %v3768, %v3760
        %v5329 = vpack.c.bf16 %v3769, %v3761
        %v5330 = vpack.c.bf16 %v3770, %v3762
        %v5331 = vpack.c.bf16 %v3771, %v3763
        %v5332 = vpack.c.bf16 %v3772, %v3764
        %v5333 = vpack.c.bf16 %v3781, %v3773
        %v5334 = vpack.c.bf16 %v3782, %v3774
        %v5335 = vpack.c.bf16 %v3783, %v3775
        %v5336 = vpack.c.bf16 %v3784, %v3776
        %v5337 = vpack.c.bf16 %v3785, %v3777
        %v5338 = vpack.c.bf16 %v3786, %v3778
        %v5339 = vpack.c.bf16 %v3787, %v3779
        %v5340 = vpack.c.bf16 %v3788, %v3780
        %v5341 = vpack.c.bf16 %v3797, %v3789
        %v5342 = vpack.c.bf16 %v3798, %v3790
        %v5343 = vpack.c.bf16 %v3799, %v3791
        %v5344 = vpack.c.bf16 %v3800, %v3792
        %v5345 = vpack.c.bf16 %v3801, %v3793
        %v5346 = vpack.c.bf16 %v3802, %v3794
        %v5347 = vpack.c.bf16 %v3803, %v3795
        %v5348 = vpack.c.bf16 %v3804, %v3796
        %v5349 = vpack.c.bf16 %v3813, %v3805
        %v5350 = vpack.c.bf16 %v3814, %v3806
        %v5351 = vpack.c.bf16 %v3815, %v3807
        %v5352 = vpack.c.bf16 %v3816, %v3808
        %v5353 = vpack.c.bf16 %v3817, %v3809
        %v5354 = vpack.c.bf16 %v3818, %v3810
        %v5355 = vpack.c.bf16 %v3819, %v3811
        %v5356 = vpack.c.bf16 %v3820, %v3812
        %v5357 = vpack.c.bf16 %v3829, %v3821
        %v5358 = vpack.c.bf16 %v3830, %v3822
        %v5359 = vpack.c.bf16 %v3831, %v3823
        %v5360 = vpack.c.bf16 %v3832, %v3824
        %v5361 = vpack.c.bf16 %v3833, %v3825
        %v5362 = vpack.c.bf16 %v3834, %v3826
        %v5363 = vpack.c.bf16 %v3835, %v3827
        %v5364 = vpack.c.bf16 %v3836, %v3828
        %v5365 = vpack.c.bf16 %v3845, %v3837
        %v5366 = vpack.c.bf16 %v3846, %v3838
        %v5367 = vpack.c.bf16 %v3847, %v3839
        %v5368 = vpack.c.bf16 %v3848, %v3840
        %v5369 = vpack.c.bf16 %v3849, %v3841
        %v5370 = vpack.c.bf16 %v3850, %v3842
        %v5371 = vpack.c.bf16 %v3851, %v3843
        %v5372 = vpack.c.bf16 %v3852, %v3844
        %v5373 = vpack.c.bf16 %v3861, %v3853
        %v5374 = vpack.c.bf16 %v3862, %v3854
        %v5375 = vpack.c.bf16 %v3863, %v3855
        %v5376 = vpack.c.bf16 %v3864, %v3856
        %v5377 = vpack.c.bf16 %v3865, %v3857
        %v5378 = vpack.c.bf16 %v3866, %v3858
        %v5379 = vpack.c.bf16 %v3867, %v3859
        %v5380 = vpack.c.bf16 %v3868, %v3860
        %v5381 = vpack.c.bf16 %v3877, %v3869
        %v5382 = vpack.c.bf16 %v3878, %v3870
        %v5383 = vpack.c.bf16 %v3879, %v3871
        %v5384 = vpack.c.bf16 %v3880, %v3872
        %v5385 = vpack.c.bf16 %v3881, %v3873
        %v5386 = vpack.c.bf16 %v3882, %v3874
        %v5387 = vpack.c.bf16 %v3883, %v3875
        %v5388 = vpack.c.bf16 %v3884, %v3876
        %v5389 = vpack.c.bf16 %v3893, %v3885
        %v5390 = vpack.c.bf16 %v3894, %v3886
        %v5391 = vpack.c.bf16 %v3895, %v3887
        %v5392 = vpack.c.bf16 %v3896, %v3888
        %v5393 = vpack.c.bf16 %v3897, %v3889
        %v5394 = vpack.c.bf16 %v3898, %v3890
        %v5395 = vpack.c.bf16 %v3899, %v3891
        %v5396 = vpack.c.bf16 %v3900, %v3892
        %v5397 = vpack.c.bf16 %v3909, %v3901
        %v5398 = vpack.c.bf16 %v3910, %v3902
        %v5399 = vpack.c.bf16 %v3911, %v3903
        %v5400 = vpack.c.bf16 %v3912, %v3904
        %v5401 = vpack.c.bf16 %v3913, %v3905
        %v5402 = vpack.c.bf16 %v3914, %v3906
        %v5403 = vpack.c.bf16 %v3915, %v3907
        %v5404 = vpack.c.bf16 %v3916, %v3908
        %v5405 = vpack.c.bf16 %v3925, %v3917
        %v5406 = vpack.c.bf16 %v3926, %v3918
        %v5407 = vpack.c.bf16 %v3927, %v3919
        %v5408 = vpack.c.bf16 %v3928, %v3920
        %v5409 = vpack.c.bf16 %v3929, %v3921
        %v5410 = vpack.c.bf16 %v3930, %v3922
        %v5411 = vpack.c.bf16 %v3931, %v3923
        %v5412 = vpack.c.bf16 %v3932, %v3924
        %v5413 = vpack.c.bf16 %v3941, %v3933
        %v5414 = vpack.c.bf16 %v3942, %v3934
        %v5415 = vpack.c.bf16 %v3943, %v3935
        %v5416 = vpack.c.bf16 %v3944, %v3936
        %v5417 = vpack.c.bf16 %v3945, %v3937
        %v5418 = vpack.c.bf16 %v3946, %v3938
        %v5419 = vpack.c.bf16 %v3947, %v3939
        %v5420 = vpack.c.bf16 %v3948, %v3940
        %v5421 = vpack.c.bf16 %v3957, %v3949
        %v5422 = vpack.c.bf16 %v3958, %v3950
        %v5423 = vpack.c.bf16 %v3959, %v3951
        %v5424 = vpack.c.bf16 %v3960, %v3952
        %v5425 = vpack.c.bf16 %v3961, %v3953
        %v5426 = vpack.c.bf16 %v3962, %v3954
        %v5427 = vpack.c.bf16 %v3963, %v3955
        %v5428 = vpack.c.bf16 %v3964, %v3956
        %v5429 = vpack.c.bf16 %v3973, %v3965
        %v5430 = vpack.c.bf16 %v3974, %v3966
        %v5431 = vpack.c.bf16 %v3975, %v3967
        %v5432 = vpack.c.bf16 %v3976, %v3968
        %v5433 = vpack.c.bf16 %v3977, %v3969
        %v5434 = vpack.c.bf16 %v3978, %v3970
        %v5435 = vpack.c.bf16 %v3979, %v3971
        %v5436 = vpack.c.bf16 %v3980, %v3972
        %v5437 = vpack.c.bf16 %v3989, %v3981
        %v5438 = vpack.c.bf16 %v3990, %v3982
        %v5439 = vpack.c.bf16 %v3991, %v3983
        %v5440 = vpack.c.bf16 %v3992, %v3984
        %v5441 = vpack.c.bf16 %v3993, %v3985
        %v5442 = vpack.c.bf16 %v3994, %v3986
        %v5443 = vpack.c.bf16 %v3995, %v3987
        %v5444 = vpack.c.bf16 %v3996, %v3988
        %v5445 = vpack.c.bf16 %v4005, %v3997
        %v5446 = vpack.c.bf16 %v4006, %v3998
        %v5447 = vpack.c.bf16 %v4007, %v3999
        %v5448 = vpack.c.bf16 %v4008, %v4000
        %v5449 = vpack.c.bf16 %v4009, %v4001
        %v5450 = vpack.c.bf16 %v4010, %v4002
        %v5451 = vpack.c.bf16 %v4011, %v4003
        %v5452 = vpack.c.bf16 %v4012, %v4004
        %v5453 = vpack.c.bf16 %v4021, %v4013
        %v5454 = vpack.c.bf16 %v4022, %v4014
        %v5455 = vpack.c.bf16 %v4023, %v4015
        %v5456 = vpack.c.bf16 %v4024, %v4016
        %v5457 = vpack.c.bf16 %v4025, %v4017
        %v5458 = vpack.c.bf16 %v4026, %v4018
        %v5459 = vpack.c.bf16 %v4027, %v4019
        %v5460 = vpack.c.bf16 %v4028, %v4020
        %v5461 = vpack.c.bf16 %v4037, %v4029
        %v5462 = vpack.c.bf16 %v4038, %v4030
        %v5463 = vpack.c.bf16 %v4039, %v4031
        %v5464 = vpack.c.bf16 %v4040, %v4032
        %v5465 = vpack.c.bf16 %v4041, %v4033
        %v5466 = vpack.c.bf16 %v4042, %v4034
        %v5467 = vpack.c.bf16 %v4043, %v4035
        %v5468 = vpack.c.bf16 %v4044, %v4036
        %v5469 = vpack.c.bf16 %v4053, %v4045
        %v5470 = vpack.c.bf16 %v4054, %v4046
        %v5471 = vpack.c.bf16 %v4055, %v4047
        %v5472 = vpack.c.bf16 %v4056, %v4048
        %v5473 = vpack.c.bf16 %v4057, %v4049
        %v5474 = vpack.c.bf16 %v4058, %v4050
        %v5475 = vpack.c.bf16 %v4059, %v4051
        %v5476 = vpack.c.bf16 %v4060, %v4052
        %v5477 = vpack.c.bf16 %v4069, %v4061
        %v5478 = vpack.c.bf16 %v4070, %v4062
        %v5479 = vpack.c.bf16 %v4071, %v4063
        %v5480 = vpack.c.bf16 %v4072, %v4064
        %v5481 = vpack.c.bf16 %v4073, %v4065
        %v5482 = vpack.c.bf16 %v4074, %v4066
        %v5483 = vpack.c.bf16 %v4075, %v4067
        %v5484 = vpack.c.bf16 %v4076, %v4068
        %v5485 = vpack.c.bf16 %v4085, %v4077
        %v5486 = vpack.c.bf16 %v4086, %v4078
        %v5487 = vpack.c.bf16 %v4087, %v4079
        %v5488 = vpack.c.bf16 %v4088, %v4080
        %v5489 = vpack.c.bf16 %v4089, %v4081
        %v5490 = vpack.c.bf16 %v4090, %v4082
        %v5491 = vpack.c.bf16 %v4091, %v4083
        %v5492 = vpack.c.bf16 %v4092, %v4084
        %v5493 = vpack.c.bf16 %v4101, %v4093
        %v5494 = vpack.c.bf16 %v4102, %v4094
        %v5495 = vpack.c.bf16 %v4103, %v4095
        %v5496 = vpack.c.bf16 %v4104, %v4096
        %v5497 = vpack.c.bf16 %v4105, %v4097
        %v5498 = vpack.c.bf16 %v4106, %v4098
        %v5499 = vpack.c.bf16 %v4107, %v4099
        %v5500 = vpack.c.bf16 %v4108, %v4100
        %v5501 = vpack.c.bf16 %v4117, %v4109
        %v5502 = vpack.c.bf16 %v4118, %v4110
        %v5503 = vpack.c.bf16 %v4119, %v4111
        %v5504 = vpack.c.bf16 %v4120, %v4112
        %v5505 = vpack.c.bf16 %v4121, %v4113
        %v5506 = vpack.c.bf16 %v4122, %v4114
        %v5507 = vpack.c.bf16 %v4123, %v4115
        %v5508 = vpack.c.bf16 %v4124, %v4116
        %v5509 = vpack.c.bf16 %v4133, %v4125
        %v5510 = vpack.c.bf16 %v4134, %v4126
        %v5511 = vpack.c.bf16 %v4135, %v4127
        %v5512 = vpack.c.bf16 %v4136, %v4128
        %v5513 = vpack.c.bf16 %v4137, %v4129
        %v5514 = vpack.c.bf16 %v4138, %v4130
        %v5515 = vpack.c.bf16 %v4139, %v4131
        %v5516 = vpack.c.bf16 %v4140, %v4132
        %v5517 = vpack.c.bf16 %v4149, %v4141
        %v5518 = vpack.c.bf16 %v4150, %v4142
        %v5519 = vpack.c.bf16 %v4151, %v4143
        %v5520 = vpack.c.bf16 %v4152, %v4144
        %v5521 = vpack.c.bf16 %v4153, %v4145
        %v5522 = vpack.c.bf16 %v4154, %v4146
        %v5523 = vpack.c.bf16 %v4155, %v4147
        %v5524 = vpack.c.bf16 %v4156, %v4148
        %v5525 = vpack.c.bf16 %v4165, %v4157
        %v5526 = vpack.c.bf16 %v4166, %v4158
        %v5527 = vpack.c.bf16 %v4167, %v4159
        %v5528 = vpack.c.bf16 %v4168, %v4160
        %v5529 = vpack.c.bf16 %v4169, %v4161
        %v5530 = vpack.c.bf16 %v4170, %v4162
        %v5531 = vpack.c.bf16 %v4171, %v4163
        %v5532 = vpack.c.bf16 %v4172, %v4164
        %v5533 = vpack.c.bf16 %v4181, %v4173
        %v5534 = vpack.c.bf16 %v4182, %v4174
        %v5535 = vpack.c.bf16 %v4183, %v4175
        %v5536 = vpack.c.bf16 %v4184, %v4176
        %v5537 = vpack.c.bf16 %v4185, %v4177
        %v5538 = vpack.c.bf16 %v4186, %v4178
        %v5539 = vpack.c.bf16 %v4187, %v4179
        %v5540 = vpack.c.bf16 %v4188, %v4180
        %v5541 = vpack.c.bf16 %v4197, %v4189
        %v5542 = vpack.c.bf16 %v4198, %v4190
        %v5543 = vpack.c.bf16 %v4199, %v4191
        %v5544 = vpack.c.bf16 %v4200, %v4192
        %v5545 = vpack.c.bf16 %v4201, %v4193
        %v5546 = vpack.c.bf16 %v4202, %v4194
        %v5547 = vpack.c.bf16 %v4203, %v4195
        %v5548 = vpack.c.bf16 %v4204, %v4196
        %v5549 = vpack.c.bf16 %v4213, %v4205
        %v5550 = vpack.c.bf16 %v4214, %v4206
        %v5551 = vpack.c.bf16 %v4215, %v4207
        %v5552 = vpack.c.bf16 %v4216, %v4208
        %v5553 = vpack.c.bf16 %v4217, %v4209
        %v5554 = vpack.c.bf16 %v4218, %v4210
        %v5555 = vpack.c.bf16 %v4219, %v4211
        %v5556 = vpack.c.bf16 %v4220, %v4212
        %v5557 = vpack.c.bf16 %v4229, %v4221
        %v5558 = vpack.c.bf16 %v4230, %v4222
        %v5559 = vpack.c.bf16 %v4231, %v4223
        %v5560 = vpack.c.bf16 %v4232, %v4224
        %v5561 = vpack.c.bf16 %v4233, %v4225
        %v5562 = vpack.c.bf16 %v4234, %v4226
        %v5563 = vpack.c.bf16 %v4235, %v4227
        %v5564 = vpack.c.bf16 %v4236, %v4228
        %v5565 = vpack.c.bf16 %v4245, %v4237
        %v5566 = vpack.c.bf16 %v4246, %v4238
        %v5567 = vpack.c.bf16 %v4247, %v4239
        %v5568 = vpack.c.bf16 %v4248, %v4240
        %v5569 = vpack.c.bf16 %v4249, %v4241
        %v5570 = vpack.c.bf16 %v4250, %v4242
        %v5571 = vpack.c.bf16 %v4251, %v4243
        %v5572 = vpack.c.bf16 %v4252, %v4244
        %v5573 = vpack.c.bf16 %v4261, %v4253
        %v5574 = vpack.c.bf16 %v4262, %v4254
        %v5575 = vpack.c.bf16 %v4263, %v4255
        %v5576 = vpack.c.bf16 %v4264, %v4256
        %v5577 = vpack.c.bf16 %v4265, %v4257
        %v5578 = vpack.c.bf16 %v4266, %v4258
        %v5579 = vpack.c.bf16 %v4267, %v4259
        %v5580 = vpack.c.bf16 %v4268, %v4260
        %v5581 = vpack.c.bf16 %v4277, %v4269
        %v5582 = vpack.c.bf16 %v4278, %v4270
        %v5583 = vpack.c.bf16 %v4279, %v4271
        %v5584 = vpack.c.bf16 %v4280, %v4272
        %v5585 = vpack.c.bf16 %v4281, %v4273
        %v5586 = vpack.c.bf16 %v4282, %v4274
        %v5587 = vpack.c.bf16 %v4283, %v4275
        %v5588 = vpack.c.bf16 %v4284, %v4276
        %v5589 = vpack.c.bf16 %v4293, %v4285
        %v5590 = vpack.c.bf16 %v4294, %v4286
        %v5591 = vpack.c.bf16 %v4295, %v4287
        %v5592 = vpack.c.bf16 %v4296, %v4288
        %v5593 = vpack.c.bf16 %v4297, %v4289
        %v5594 = vpack.c.bf16 %v4298, %v4290
        %v5595 = vpack.c.bf16 %v4299, %v4291
        %v5596 = vpack.c.bf16 %v4300, %v4292
        %v5597 = vpack.c.bf16 %v4309, %v4301
        %v5598 = vpack.c.bf16 %v4310, %v4302
        %v5599 = vpack.c.bf16 %v4311, %v4303
        %v5600 = vpack.c.bf16 %v4312, %v4304
        %v5601 = vpack.c.bf16 %v4313, %v4305
        %v5602 = vpack.c.bf16 %v4314, %v4306
        %v5603 = vpack.c.bf16 %v4315, %v4307
        %v5604 = vpack.c.bf16 %v4316, %v4308
        %v5605 = vpack.c.bf16 %v4325, %v4317
        %v5606 = vpack.c.bf16 %v4326, %v4318
        %v5607 = vpack.c.bf16 %v4327, %v4319
        %v5608 = vpack.c.bf16 %v4328, %v4320
        %v5609 = vpack.c.bf16 %v4329, %v4321
        %v5610 = vpack.c.bf16 %v4330, %v4322
        %v5611 = vpack.c.bf16 %v4331, %v4323
        %v5612 = vpack.c.bf16 %v4332, %v4324
        %v5613 = vpack.c.bf16 %v4341, %v4333
        %v5614 = vpack.c.bf16 %v4342, %v4334
        %v5615 = vpack.c.bf16 %v4343, %v4335
        %v5616 = vpack.c.bf16 %v4344, %v4336
        %v5617 = vpack.c.bf16 %v4345, %v4337
        %v5618 = vpack.c.bf16 %v4346, %v4338
        %v5619 = vpack.c.bf16 %v4347, %v4339
        %v5620 = vpack.c.bf16 %v4348, %v4340
        %v5621 = vpack.c.bf16 %v4357, %v4349
        %v5622 = vpack.c.bf16 %v4358, %v4350
        %v5623 = vpack.c.bf16 %v4359, %v4351
        %v5624 = vpack.c.bf16 %v4360, %v4352
        %v5625 = vpack.c.bf16 %v4361, %v4353
        %v5626 = vpack.c.bf16 %v4362, %v4354
        %v5627 = vpack.c.bf16 %v4363, %v4355
        %v5628 = vpack.c.bf16 %v4364, %v4356
        %v5629 = vpack.c.bf16 %v4373, %v4365
        %v5630 = vpack.c.bf16 %v4374, %v4366
        %v5631 = vpack.c.bf16 %v4375, %v4367
        %v5632 = vpack.c.bf16 %v4376, %v4368
        %v5633 = vpack.c.bf16 %v4377, %v4369
        %v5634 = vpack.c.bf16 %v4378, %v4370
        %v5635 = vpack.c.bf16 %v4379, %v4371
        %v5636 = vpack.c.bf16 %v4380, %v4372
        %v5637 = vpack.c.bf16 %v4389, %v4381
        %v5638 = vpack.c.bf16 %v4390, %v4382
        %v5639 = vpack.c.bf16 %v4391, %v4383
        %v5640 = vpack.c.bf16 %v4392, %v4384
        %v5641 = vpack.c.bf16 %v4393, %v4385
        %v5642 = vpack.c.bf16 %v4394, %v4386
        %v5643 = vpack.c.bf16 %v4395, %v4387
        %v5644 = vpack.c.bf16 %v4396, %v4388
        %v5645 = vpack.c.bf16 %v4405, %v4397
        %v5646 = vpack.c.bf16 %v4406, %v4398
        %v5647 = vpack.c.bf16 %v4407, %v4399
        %v5648 = vpack.c.bf16 %v4408, %v4400
        %v5649 = vpack.c.bf16 %v4409, %v4401
        %v5650 = vpack.c.bf16 %v4410, %v4402
        %v5651 = vpack.c.bf16 %v4411, %v4403
        %v5652 = vpack.c.bf16 %v4412, %v4404
        %v5653 = vpack.c.bf16 %v4421, %v4413
        %v5654 = vpack.c.bf16 %v4422, %v4414
        %v5655 = vpack.c.bf16 %v4423, %v4415
        %v5656 = vpack.c.bf16 %v4424, %v4416
        %v5657 = vpack.c.bf16 %v4425, %v4417
        %v5658 = vpack.c.bf16 %v4426, %v4418
        %v5659 = vpack.c.bf16 %v4427, %v4419
        %v5660 = vpack.c.bf16 %v4428, %v4420
        %v5661 = vpack.c.bf16 %v4437, %v4429
        %v5662 = vpack.c.bf16 %v4438, %v4430
        %v5663 = vpack.c.bf16 %v4439, %v4431
        %v5664 = vpack.c.bf16 %v4440, %v4432
        %v5665 = vpack.c.bf16 %v4441, %v4433
        %v5666 = vpack.c.bf16 %v4442, %v4434
        %v5667 = vpack.c.bf16 %v4443, %v4435
        %v5668 = vpack.c.bf16 %v4444, %v4436
        %v5669 = vpack.c.bf16 %v4453, %v4445
        %v5670 = vpack.c.bf16 %v4454, %v4446
        %v5671 = vpack.c.bf16 %v4455, %v4447
        %v5672 = vpack.c.bf16 %v4456, %v4448
        %v5673 = vpack.c.bf16 %v4457, %v4449
        %v5674 = vpack.c.bf16 %v4458, %v4450
        %v5675 = vpack.c.bf16 %v4459, %v4451
        %v5676 = vpack.c.bf16 %v4460, %v4452
        %v5677 = vpack.c.bf16 %v4469, %v4461
        %v5678 = vpack.c.bf16 %v4470, %v4462
        %v5679 = vpack.c.bf16 %v4471, %v4463
        %v5680 = vpack.c.bf16 %v4472, %v4464
        %v5681 = vpack.c.bf16 %v4473, %v4465
        %v5682 = vpack.c.bf16 %v4474, %v4466
        %v5683 = vpack.c.bf16 %v4475, %v4467
        %v5684 = vpack.c.bf16 %v4476, %v4468
        %v5685 = vpack.c.bf16 %v4485, %v4477
        %v5686 = vpack.c.bf16 %v4486, %v4478
        %v5687 = vpack.c.bf16 %v4487, %v4479
        %v5688 = vpack.c.bf16 %v4488, %v4480
        %v5689 = vpack.c.bf16 %v4489, %v4481
        %v5690 = vpack.c.bf16 %v4490, %v4482
        %v5691 = vpack.c.bf16 %v4491, %v4483
        %v5692 = vpack.c.bf16 %v4492, %v4484
        %v5693 = vpack.c.bf16 %v4501, %v4493
        %v5694 = vpack.c.bf16 %v4502, %v4494
        %v5695 = vpack.c.bf16 %v4503, %v4495
        %v5696 = vpack.c.bf16 %v4504, %v4496
        %v5697 = vpack.c.bf16 %v4505, %v4497
        %v5698 = vpack.c.bf16 %v4506, %v4498
        %v5699 = vpack.c.bf16 %v4507, %v4499
        %v5700 = vpack.c.bf16 %v4508, %v4500
        %v5701 = vpack.c.bf16 %v4517, %v4509
        %v5702 = vpack.c.bf16 %v4518, %v4510
        %v5703 = vpack.c.bf16 %v4519, %v4511
        %v5704 = vpack.c.bf16 %v4520, %v4512
        %v5705 = vpack.c.bf16 %v4521, %v4513
        %v5706 = vpack.c.bf16 %v4522, %v4514
        %v5707 = vpack.c.bf16 %v4523, %v4515
        %v5708 = vpack.c.bf16 %v4524, %v4516
        %v5709 = vpack.c.bf16 %v4533, %v4525
        %v5710 = vpack.c.bf16 %v4534, %v4526
        %v5711 = vpack.c.bf16 %v4535, %v4527
        %v5712 = vpack.c.bf16 %v4536, %v4528
        %v5713 = vpack.c.bf16 %v4537, %v4529
        %v5714 = vpack.c.bf16 %v4538, %v4530
        %v5715 = vpack.c.bf16 %v4539, %v4531
        %v5716 = vpack.c.bf16 %v4540, %v4532
        %v5717 = vpack.c.bf16 %v4549, %v4541
        %v5718 = vpack.c.bf16 %v4550, %v4542
        %v5719 = vpack.c.bf16 %v4551, %v4543
        %v5720 = vpack.c.bf16 %v4552, %v4544
        %v5721 = vpack.c.bf16 %v4553, %v4545
        %v5722 = vpack.c.bf16 %v4554, %v4546
        %v5723 = vpack.c.bf16 %v4555, %v4547
        %v5724 = vpack.c.bf16 %v4556, %v4548
        %v5725 = vpack.c.bf16 %v4565, %v4557
        %v5726 = vpack.c.bf16 %v4566, %v4558
        %v5727 = vpack.c.bf16 %v4567, %v4559
        %v5728 = vpack.c.bf16 %v4568, %v4560
        %v5729 = vpack.c.bf16 %v4569, %v4561
        %v5730 = vpack.c.bf16 %v4570, %v4562
        %v5731 = vpack.c.bf16 %v4571, %v4563
        %v5732 = vpack.c.bf16 %v4572, %v4564
        %v5733 = vpack.c.bf16 %v4581, %v4573
        %v5734 = vpack.c.bf16 %v4582, %v4574
        %v5735 = vpack.c.bf16 %v4583, %v4575
        %v5736 = vpack.c.bf16 %v4584, %v4576
        %v5737 = vpack.c.bf16 %v4585, %v4577
        %v5738 = vpack.c.bf16 %v4586, %v4578
        %v5739 = vpack.c.bf16 %v4587, %v4579
        %v5740 = vpack.c.bf16 %v4588, %v4580
        %v5741 = vpack.c.bf16 %v4597, %v4589
        %v5742 = vpack.c.bf16 %v4598, %v4590
        %v5743 = vpack.c.bf16 %v4599, %v4591
        %v5744 = vpack.c.bf16 %v4600, %v4592
        %v5745 = vpack.c.bf16 %v4601, %v4593
        %v5746 = vpack.c.bf16 %v4602, %v4594
        %v5747 = vpack.c.bf16 %v4603, %v4595
        %v5748 = vpack.c.bf16 %v4604, %v4596
        %v5749 = vpack.c.bf16 %v4613, %v4605
        %v5750 = vpack.c.bf16 %v4614, %v4606
        %v5751 = vpack.c.bf16 %v4615, %v4607
        %v5752 = vpack.c.bf16 %v4616, %v4608
        %v5753 = vpack.c.bf16 %v4617, %v4609
        %v5754 = vpack.c.bf16 %v4618, %v4610
        %v5755 = vpack.c.bf16 %v4619, %v4611
        %v5756 = vpack.c.bf16 %v4620, %v4612
        %v5757 = vpack.c.bf16 %v4629, %v4621
        %v5758 = vpack.c.bf16 %v4630, %v4622
        %v5759 = vpack.c.bf16 %v4631, %v4623
        %v5760 = vpack.c.bf16 %v4632, %v4624
        %v5761 = vpack.c.bf16 %v4633, %v4625
        %v5762 = vpack.c.bf16 %v4634, %v4626
        %v5763 = vpack.c.bf16 %v4635, %v4627
        %v5764 = vpack.c.bf16 %v4636, %v4628
        %v5765 = vpack.c.bf16 %v4645, %v4637
        %v5766 = vpack.c.bf16 %v4646, %v4638
        %v5767 = vpack.c.bf16 %v4647, %v4639
        %v5768 = vpack.c.bf16 %v4648, %v4640
        %v5769 = vpack.c.bf16 %v4649, %v4641
        %v5770 = vpack.c.bf16 %v4650, %v4642
        %v5771 = vpack.c.bf16 %v4651, %v4643
        %v5772 = vpack.c.bf16 %v4652, %v4644
        %v5773 = vpack.c.bf16 %v4661, %v4653
        %v5774 = vpack.c.bf16 %v4662, %v4654
        %v5775 = vpack.c.bf16 %v4663, %v4655
        %v5776 = vpack.c.bf16 %v4664, %v4656
        %v5777 = vpack.c.bf16 %v4665, %v4657
        %v5778 = vpack.c.bf16 %v4666, %v4658
        %v5779 = vpack.c.bf16 %v4667, %v4659
        %v5780 = vpack.c.bf16 %v4668, %v4660
        %v5781 = vpack.c.bf16 %v4677, %v4669
        %v5782 = vpack.c.bf16 %v4678, %v4670
        %v5783 = vpack.c.bf16 %v4679, %v4671
        %v5784 = vpack.c.bf16 %v4680, %v4672
        %v5785 = vpack.c.bf16 %v4681, %v4673
        %v5786 = vpack.c.bf16 %v4682, %v4674
        %v5787 = vpack.c.bf16 %v4683, %v4675
        %v5788 = vpack.c.bf16 %v4684, %v4676
        %v5789 = vpack.c.bf16 %v4693, %v4685
        %v5790 = vpack.c.bf16 %v4694, %v4686
        %v5791 = vpack.c.bf16 %v4695, %v4687
        %v5792 = vpack.c.bf16 %v4696, %v4688
        %v5793 = vpack.c.bf16 %v4697, %v4689
        %v5794 = vpack.c.bf16 %v4698, %v4690
        %v5795 = vpack.c.bf16 %v4699, %v4691
        %v5796 = vpack.c.bf16 %v4700, %v4692
        %v5797 = vpack.c.bf16 %v4709, %v4701
        %v5798 = vpack.c.bf16 %v4710, %v4702
        %v5799 = vpack.c.bf16 %v4711, %v4703
        %v5800 = vpack.c.bf16 %v4712, %v4704
        %v5801 = vpack.c.bf16 %v4713, %v4705
        %v5802 = vpack.c.bf16 %v4714, %v4706
        %v5803 = vpack.c.bf16 %v4715, %v4707
        %v5804 = vpack.c.bf16 %v4716, %v4708
        %v5805 = vpack.c.bf16 %v4725, %v4717
        %v5806 = vpack.c.bf16 %v4726, %v4718
        %v5807 = vpack.c.bf16 %v4727, %v4719
        %v5808 = vpack.c.bf16 %v4728, %v4720
        %v5809 = vpack.c.bf16 %v4729, %v4721
        %v5810 = vpack.c.bf16 %v4730, %v4722
        %v5811 = vpack.c.bf16 %v4731, %v4723
        %v5812 = vpack.c.bf16 %v4732, %v4724
        %v5813 = vpack.c.bf16 %v4741, %v4733
        %v5814 = vpack.c.bf16 %v4742, %v4734
        %v5815 = vpack.c.bf16 %v4743, %v4735
        %v5816 = vpack.c.bf16 %v4744, %v4736
        %v5817 = vpack.c.bf16 %v4745, %v4737
        %v5818 = vpack.c.bf16 %v4746, %v4738
        %v5819 = vpack.c.bf16 %v4747, %v4739
        %v5820 = vpack.c.bf16 %v4748, %v4740
        %v5821 = vpack.c.bf16 %v4757, %v4749
        %v5822 = vpack.c.bf16 %v4758, %v4750
        %v5823 = vpack.c.bf16 %v4759, %v4751
        %v5824 = vpack.c.bf16 %v4760, %v4752
        %v5825 = vpack.c.bf16 %v4761, %v4753
        %v5826 = vpack.c.bf16 %v4762, %v4754
        %v5827 = vpack.c.bf16 %v4763, %v4755
        %v5828 = vpack.c.bf16 %v4764, %v4756
        %v5829 = vpack.c.bf16 %v4773, %v4765
        %v5830 = vpack.c.bf16 %v4774, %v4766
        %v5831 = vpack.c.bf16 %v4775, %v4767
        %v5832 = vpack.c.bf16 %v4776, %v4768
        %v5833 = vpack.c.bf16 %v4777, %v4769
        %v5834 = vpack.c.bf16 %v4778, %v4770
        %v5835 = vpack.c.bf16 %v4779, %v4771
        %v5836 = vpack.c.bf16 %v4780, %v4772
        %v5837 = vpack.c.bf16 %v4789, %v4781
        %v5838 = vpack.c.bf16 %v4790, %v4782
        %v5839 = vpack.c.bf16 %v4791, %v4783
        %v5840 = vpack.c.bf16 %v4792, %v4784
        %v5841 = vpack.c.bf16 %v4793, %v4785
        %v5842 = vpack.c.bf16 %v4794, %v4786
        %v5843 = vpack.c.bf16 %v4795, %v4787
        %v5844 = vpack.c.bf16 %v4796, %v4788
        %v5845 = vpack.c.bf16 %v4805, %v4797
        %v5846 = vpack.c.bf16 %v4806, %v4798
        %v5847 = vpack.c.bf16 %v4807, %v4799
        %v5848 = vpack.c.bf16 %v4808, %v4800
        %v5849 = vpack.c.bf16 %v4809, %v4801
        %v5850 = vpack.c.bf16 %v4810, %v4802
        %v5851 = vpack.c.bf16 %v4811, %v4803
        %v5852 = vpack.c.bf16 %v4812, %v4804
        %v5853 = vpack.c.bf16 %v4821, %v4813
        %v5854 = vpack.c.bf16 %v4822, %v4814
        %v5855 = vpack.c.bf16 %v4823, %v4815
        %v5856 = vpack.c.bf16 %v4824, %v4816
        %v5857 = vpack.c.bf16 %v4825, %v4817
        %v5858 = vpack.c.bf16 %v4826, %v4818
        %v5859 = vpack.c.bf16 %v4827, %v4819
        %v5860 = vpack.c.bf16 %v4828, %v4820
        %v5861 = vpack.c.bf16 %v4837, %v4829
        %v5862 = vpack.c.bf16 %v4838, %v4830
        %v5863 = vpack.c.bf16 %v4839, %v4831
        %v5864 = vpack.c.bf16 %v4840, %v4832
        %v5865 = vpack.c.bf16 %v4841, %v4833
        %v5866 = vpack.c.bf16 %v4842, %v4834
        %v5867 = vpack.c.bf16 %v4843, %v4835
        %v5868 = vpack.c.bf16 %v4844, %v4836
        %v5869 = vld [vmem:[%s223] sm:$0xff]
        %v5870 = vld [vmem:[%s223 + $0x8] sm:$0xff]
        %v5871 = vld [vmem:[%s223 + $0x10] sm:$0xff]
        %v5872 = vld [vmem:[%s223 + $0x18] sm:$0xff]
        %v5873 = vld [vmem:[%s223 + $0x20] sm:$0xff]
        %v5874 = vld [vmem:[%s223 + $0x28] sm:$0xff]
        %v5875 = vld [vmem:[%s223 + $0x30] sm:$0xff]
        %v5876 = vld [vmem:[%s223 + $0x38] sm:$0xff]
        %v5877 = vld [vmem:[%s212] sm:$0xff]
        %v5878 = vld [vmem:[%s212 + $0x8] sm:$0xff]
        %v5879 = vld [vmem:[%s212 + $0x10] sm:$0xff]
        %v5880 = vld [vmem:[%s212 + $0x18] sm:$0xff]
        %v5881 = vld [vmem:[%s212 + $0x20] sm:$0xff]
        %v5882 = vld [vmem:[%s212 + $0x28] sm:$0xff]
        %v5883 = vld [vmem:[%s212 + $0x30] sm:$0xff]
        %v5884 = vld [vmem:[%s212 + $0x38] sm:$0xff]
        %v5893 = vunpack.c.l.b16 %v5877
        %v5894 = vunpack.c.h.b16 %v5877
        %v5895 = vunpack.c.l.b16 %v5878
        %v5896 = vunpack.c.h.b16 %v5878
        %v5897 = vunpack.c.l.b16 %v5879
        %v5898 = vunpack.c.h.b16 %v5879
        %v5899 = vunpack.c.l.b16 %v5880
        %v5900 = vunpack.c.h.b16 %v5880
        %v5901 = vunpack.c.l.b16 %v5881
        %v5902 = vunpack.c.h.b16 %v5881
        %v5903 = vunpack.c.l.b16 %v5882
        %v5904 = vunpack.c.h.b16 %v5882
        %v5905 = vunpack.c.l.b16 %v5883
        %v5906 = vunpack.c.h.b16 %v5883
        %v5907 = vunpack.c.l.b16 %v5884
        %v5908 = vunpack.c.h.b16 %v5884
        %v5909 = vpack.c.b16 %v5893, %v5893
        %v5910 = vpack.c.b16 %v5894, %v5894
        %v5911 = vpack.c.b16 %v5895, %v5895
        %v5912 = vpack.c.b16 %v5896, %v5896
        %v5913 = vpack.c.b16 %v5897, %v5897
        %v5914 = vpack.c.b16 %v5898, %v5898
        %v5915 = vpack.c.b16 %v5899, %v5899
        %v5916 = vpack.c.b16 %v5900, %v5900
        %v5917 = vpack.c.b16 %v5901, %v5901
        %v5918 = vpack.c.b16 %v5902, %v5902
        %v5919 = vpack.c.b16 %v5903, %v5903
        %v5920 = vpack.c.b16 %v5904, %v5904
        %v5921 = vpack.c.b16 %v5905, %v5905
        %v5922 = vpack.c.b16 %v5906, %v5906
        %v5923 = vpack.c.b16 %v5907, %v5907
        %v5924 = vpack.c.b16 %v5908, %v5908
        %5941 = vmatpush.bf16.msra.mxu0 %v4901
        %5942 = vmatpush.bf16.msra.mxu0 %v4893
        %5943 = vmatpush.bf16.msra.mxu0 %v4885
        %5944 = vmatpush.bf16.msra.mxu0 %v4877
        %5945 = vmatpush.bf16.msra.mxu0 %v4869
        %5946 = vmatpush.bf16.msra.mxu0 %v4861
        %5947 = vmatpush.bf16.msra.mxu0 %v4853
        %5948 = vmatpush.bf16.msra.mxu0 %v4845
        %5949 = vmatmul.bf16.gmra.mxu0 %v5909
        %v5950 = vpop.f32.mrf.mxu0
        %v5951 = vadd.f32 0.0, %v5950
        %v5952 = vpop.f32.mrf.mxu0
        %5953 = vdwg.mxu0
        %5954 = vmatpush.bf16.msra.mxu0 %v4965
        %5955 = vmatpush.bf16.msra.mxu0 %v4957
        %5956 = vmatpush.bf16.msra.mxu0 %v4949
        %5957 = vmatpush.bf16.msra.mxu0 %v4941
        %5958 = vmatpush.bf16.msra.mxu0 %v4933
        %5959 = vmatpush.bf16.msra.mxu0 %v4925
        %5960 = vmatpush.bf16.msra.mxu0 %v4917
        %5961 = vmatpush.bf16.msra.mxu0 %v4909
        %5962 = vmatmul.bf16.gmra.mxu0 %v5910
        %v5963 = vpop.f32.mrf.mxu0
        %v5964 = vadd.f32 %v5951, %v5963
        %v5965 = vpop.f32.mrf.mxu0
        %5966 = vdwg.mxu0
        %5967 = vmatpush.bf16.msra.mxu0 %v5029
        %5968 = vmatpush.bf16.msra.mxu0 %v5021
        %5969 = vmatpush.bf16.msra.mxu0 %v5013
        %5970 = vmatpush.bf16.msra.mxu0 %v5005
        %5971 = vmatpush.bf16.msra.mxu0 %v4997
        %5972 = vmatpush.bf16.msra.mxu0 %v4989
        %5973 = vmatpush.bf16.msra.mxu0 %v4981
        %5974 = vmatpush.bf16.msra.mxu0 %v4973
        %5975 = vmatmul.bf16.gmra.mxu0 %v5911
        %v5976 = vpop.f32.mrf.mxu0
        %v5977 = vadd.f32 %v5964, %v5976
        %v5978 = vpop.f32.mrf.mxu0
        %5979 = vdwg.mxu0
        %5980 = vmatpush.bf16.msra.mxu0 %v5093
        %5981 = vmatpush.bf16.msra.mxu0 %v5085
        %5982 = vmatpush.bf16.msra.mxu0 %v5077
        %5983 = vmatpush.bf16.msra.mxu0 %v5069
        %5984 = vmatpush.bf16.msra.mxu0 %v5061
        %5985 = vmatpush.bf16.msra.mxu0 %v5053
        %5986 = vmatpush.bf16.msra.mxu0 %v5045
        %5987 = vmatpush.bf16.msra.mxu0 %v5037
        %5988 = vmatmul.bf16.gmra.mxu0 %v5912
        %v5989 = vpop.f32.mrf.mxu0
        %v5990 = vadd.f32 %v5977, %v5989
        %v5991 = vpop.f32.mrf.mxu0
        %5992 = vdwg.mxu0
        %5993 = vmatpush.bf16.msra.mxu0 %v5157
        %5994 = vmatpush.bf16.msra.mxu0 %v5149
        %5995 = vmatpush.bf16.msra.mxu0 %v5141
        %5996 = vmatpush.bf16.msra.mxu0 %v5133
        %5997 = vmatpush.bf16.msra.mxu0 %v5125
        %5998 = vmatpush.bf16.msra.mxu0 %v5117
        %5999 = vmatpush.bf16.msra.mxu0 %v5109
        %6000 = vmatpush.bf16.msra.mxu0 %v5101
        %6001 = vmatmul.bf16.gmra.mxu0 %v5913
        %v6002 = vpop.f32.mrf.mxu0
        %v6003 = vadd.f32 %v5990, %v6002
        %v6004 = vpop.f32.mrf.mxu0
        %6005 = vdwg.mxu0
        %6006 = vmatpush.bf16.msra.mxu0 %v5221
        %6007 = vmatpush.bf16.msra.mxu0 %v5213
        %6008 = vmatpush.bf16.msra.mxu0 %v5205
        %6009 = vmatpush.bf16.msra.mxu0 %v5197
        %6010 = vmatpush.bf16.msra.mxu0 %v5189
        %6011 = vmatpush.bf16.msra.mxu0 %v5181
        %6012 = vmatpush.bf16.msra.mxu0 %v5173
        %6013 = vmatpush.bf16.msra.mxu0 %v5165
        %6014 = vmatmul.bf16.gmra.mxu0 %v5914
        %v6015 = vpop.f32.mrf.mxu0
        %v6016 = vadd.f32 %v6003, %v6015
        %v6017 = vpop.f32.mrf.mxu0
        %6018 = vdwg.mxu0
        %6019 = vmatpush.bf16.msra.mxu0 %v5285
        %6020 = vmatpush.bf16.msra.mxu0 %v5277
        %6021 = vmatpush.bf16.msra.mxu0 %v5269
        %6022 = vmatpush.bf16.msra.mxu0 %v5261
        %6023 = vmatpush.bf16.msra.mxu0 %v5253
        %6024 = vmatpush.bf16.msra.mxu0 %v5245
        %6025 = vmatpush.bf16.msra.mxu0 %v5237
        %6026 = vmatpush.bf16.msra.mxu0 %v5229
        %6027 = vmatmul.bf16.gmra.mxu0 %v5915
        %v6028 = vpop.f32.mrf.mxu0
        %v6029 = vadd.f32 %v6016, %v6028
        %v6030 = vpop.f32.mrf.mxu0
        %6031 = vdwg.mxu0
        %6032 = vmatpush.bf16.msra.mxu0 %v5349
        %6033 = vmatpush.bf16.msra.mxu0 %v5341
        %6034 = vmatpush.bf16.msra.mxu0 %v5333
        %6035 = vmatpush.bf16.msra.mxu0 %v5325
        %6036 = vmatpush.bf16.msra.mxu0 %v5317
        %6037 = vmatpush.bf16.msra.mxu0 %v5309
        %6038 = vmatpush.bf16.msra.mxu0 %v5301
        %6039 = vmatpush.bf16.msra.mxu0 %v5293
        %6040 = vmatmul.bf16.gmra.mxu0 %v5916
        %v6041 = vpop.f32.mrf.mxu0
        %v6042 = vadd.f32 %v6029, %v6041
        %v6043 = vpop.f32.mrf.mxu0
        %6044 = vdwg.mxu0
        %6045 = vmatpush.bf16.msra.mxu0 %v5413
        %6046 = vmatpush.bf16.msra.mxu0 %v5405
        %6047 = vmatpush.bf16.msra.mxu0 %v5397
        %6048 = vmatpush.bf16.msra.mxu0 %v5389
        %6049 = vmatpush.bf16.msra.mxu0 %v5381
        %6050 = vmatpush.bf16.msra.mxu0 %v5373
        %6051 = vmatpush.bf16.msra.mxu0 %v5365
        %6052 = vmatpush.bf16.msra.mxu0 %v5357
        %6053 = vmatmul.bf16.gmra.mxu0 %v5917
        %v6054 = vpop.f32.mrf.mxu0
        %v6055 = vadd.f32 %v6042, %v6054
        %v6056 = vpop.f32.mrf.mxu0
        %6057 = vdwg.mxu0
        %6058 = vmatpush.bf16.msra.mxu0 %v5477
        %6059 = vmatpush.bf16.msra.mxu0 %v5469
        %6060 = vmatpush.bf16.msra.mxu0 %v5461
        %6061 = vmatpush.bf16.msra.mxu0 %v5453
        %6062 = vmatpush.bf16.msra.mxu0 %v5445
        %6063 = vmatpush.bf16.msra.mxu0 %v5437
        %6064 = vmatpush.bf16.msra.mxu0 %v5429
        %6065 = vmatpush.bf16.msra.mxu0 %v5421
        %6066 = vmatmul.bf16.gmra.mxu0 %v5918
        %v6067 = vpop.f32.mrf.mxu0
        %v6068 = vadd.f32 %v6055, %v6067
        %v6069 = vpop.f32.mrf.mxu0
        %6070 = vdwg.mxu0
        %6071 = vmatpush.bf16.msra.mxu0 %v5541
        %6072 = vmatpush.bf16.msra.mxu0 %v5533
        %6073 = vmatpush.bf16.msra.mxu0 %v5525
        %6074 = vmatpush.bf16.msra.mxu0 %v5517
        %6075 = vmatpush.bf16.msra.mxu0 %v5509
        %6076 = vmatpush.bf16.msra.mxu0 %v5501
        %6077 = vmatpush.bf16.msra.mxu0 %v5493
        %6078 = vmatpush.bf16.msra.mxu0 %v5485
        %6079 = vmatmul.bf16.gmra.mxu0 %v5919
        %v6080 = vpop.f32.mrf.mxu0
        %v6081 = vadd.f32 %v6068, %v6080
        %v6082 = vpop.f32.mrf.mxu0
        %6083 = vdwg.mxu0
        %6084 = vmatpush.bf16.msra.mxu0 %v5605
        %6085 = vmatpush.bf16.msra.mxu0 %v5597
        %6086 = vmatpush.bf16.msra.mxu0 %v5589
        %6087 = vmatpush.bf16.msra.mxu0 %v5581
        %6088 = vmatpush.bf16.msra.mxu0 %v5573
        %6089 = vmatpush.bf16.msra.mxu0 %v5565
        %6090 = vmatpush.bf16.msra.mxu0 %v5557
        %6091 = vmatpush.bf16.msra.mxu0 %v5549
        %6092 = vmatmul.bf16.gmra.mxu0 %v5920
        %v6093 = vpop.f32.mrf.mxu0
        %v6094 = vadd.f32 %v6081, %v6093
        %v6095 = vpop.f32.mrf.mxu0
        %6096 = vdwg.mxu0
        %6097 = vmatpush.bf16.msra.mxu0 %v5669
        %6098 = vmatpush.bf16.msra.mxu0 %v5661
        %6099 = vmatpush.bf16.msra.mxu0 %v5653
        %6100 = vmatpush.bf16.msra.mxu0 %v5645
        %6101 = vmatpush.bf16.msra.mxu0 %v5637
        %6102 = vmatpush.bf16.msra.mxu0 %v5629
        %6103 = vmatpush.bf16.msra.mxu0 %v5621
        %6104 = vmatpush.bf16.msra.mxu0 %v5613
        %6105 = vmatmul.bf16.gmra.mxu0 %v5921
        %v6106 = vpop.f32.mrf.mxu0
        %v6107 = vadd.f32 %v6094, %v6106
        %v6108 = vpop.f32.mrf.mxu0
        %6109 = vdwg.mxu0
        %6110 = vmatpush.bf16.msra.mxu0 %v5733
        %6111 = vmatpush.bf16.msra.mxu0 %v5725
        %6112 = vmatpush.bf16.msra.mxu0 %v5717
        %6113 = vmatpush.bf16.msra.mxu0 %v5709
        %6114 = vmatpush.bf16.msra.mxu0 %v5701
        %6115 = vmatpush.bf16.msra.mxu0 %v5693
        %6116 = vmatpush.bf16.msra.mxu0 %v5685
        %6117 = vmatpush.bf16.msra.mxu0 %v5677
        %6118 = vmatmul.bf16.gmra.mxu0 %v5922
        %v6119 = vpop.f32.mrf.mxu0
        %v6120 = vadd.f32 %v6107, %v6119
        %v6121 = vpop.f32.mrf.mxu0
        %6122 = vdwg.mxu0
        %6123 = vmatpush.bf16.msra.mxu0 %v5797
        %6124 = vmatpush.bf16.msra.mxu0 %v5789
        %6125 = vmatpush.bf16.msra.mxu0 %v5781
        %6126 = vmatpush.bf16.msra.mxu0 %v5773
        %6127 = vmatpush.bf16.msra.mxu0 %v5765
        %6128 = vmatpush.bf16.msra.mxu0 %v5757
        %6129 = vmatpush.bf16.msra.mxu0 %v5749
        %6130 = vmatpush.bf16.msra.mxu0 %v5741
        %6131 = vmatmul.bf16.gmra.mxu0 %v5923
        %v6132 = vpop.f32.mrf.mxu0
        %v6133 = vadd.f32 %v6120, %v6132
        %v6134 = vpop.f32.mrf.mxu0
        %6135 = vdwg.mxu0
        %6136 = vmatpush.bf16.msra.mxu0 %v5861
        %6137 = vmatpush.bf16.msra.mxu0 %v5853
        %6138 = vmatpush.bf16.msra.mxu0 %v5845
        %6139 = vmatpush.bf16.msra.mxu0 %v5837
        %6140 = vmatpush.bf16.msra.mxu0 %v5829
        %6141 = vmatpush.bf16.msra.mxu0 %v5821
        %6142 = vmatpush.bf16.msra.mxu0 %v5813
        %6143 = vmatpush.bf16.msra.mxu0 %v5805
        %6144 = vmatmul.bf16.gmra.mxu0 %v5924
        %v6145 = vpop.f32.mrf.mxu0
        %v6146 = vadd.f32 %v6133, %v6145
        %v6147 = vpop.f32.mrf.mxu0
        %6148 = vdwg.mxu0
        %6149 = vmatpush.bf16.msra.mxu0 %v4902
        %6150 = vmatpush.bf16.msra.mxu0 %v4894
        %6151 = vmatpush.bf16.msra.mxu0 %v4886
        %6152 = vmatpush.bf16.msra.mxu0 %v4878
        %6153 = vmatpush.bf16.msra.mxu0 %v4870
        %6154 = vmatpush.bf16.msra.mxu0 %v4862
        %6155 = vmatpush.bf16.msra.mxu0 %v4854
        %6156 = vmatpush.bf16.msra.mxu0 %v4846
        %6157 = vmatmul.bf16.gmra.mxu0 %v5909
        %v6158 = vpop.f32.mrf.mxu0
        %v6159 = vadd.f32 0.0, %v6158
        %v6160 = vpop.f32.mrf.mxu0
        %6161 = vdwg.mxu0
        %6162 = vmatpush.bf16.msra.mxu0 %v4966
        %6163 = vmatpush.bf16.msra.mxu0 %v4958
        %6164 = vmatpush.bf16.msra.mxu0 %v4950
        %6165 = vmatpush.bf16.msra.mxu0 %v4942
        %6166 = vmatpush.bf16.msra.mxu0 %v4934
        %6167 = vmatpush.bf16.msra.mxu0 %v4926
        %6168 = vmatpush.bf16.msra.mxu0 %v4918
        %6169 = vmatpush.bf16.msra.mxu0 %v4910
        %6170 = vmatmul.bf16.gmra.mxu0 %v5910
        %v6171 = vpop.f32.mrf.mxu0
        %v6172 = vadd.f32 %v6159, %v6171
        %v6173 = vpop.f32.mrf.mxu0
        %6174 = vdwg.mxu0
        %6175 = vmatpush.bf16.msra.mxu0 %v5030
        %6176 = vmatpush.bf16.msra.mxu0 %v5022
        %6177 = vmatpush.bf16.msra.mxu0 %v5014
        %6178 = vmatpush.bf16.msra.mxu0 %v5006
        %6179 = vmatpush.bf16.msra.mxu0 %v4998
        %6180 = vmatpush.bf16.msra.mxu0 %v4990
        %6181 = vmatpush.bf16.msra.mxu0 %v4982
        %6182 = vmatpush.bf16.msra.mxu0 %v4974
        %6183 = vmatmul.bf16.gmra.mxu0 %v5911
        %v6184 = vpop.f32.mrf.mxu0
        %v6185 = vadd.f32 %v6172, %v6184
        %v6186 = vpop.f32.mrf.mxu0
        %6187 = vdwg.mxu0
        %6188 = vmatpush.bf16.msra.mxu0 %v5094
        %6189 = vmatpush.bf16.msra.mxu0 %v5086
        %6190 = vmatpush.bf16.msra.mxu0 %v5078
        %6191 = vmatpush.bf16.msra.mxu0 %v5070
        %6192 = vmatpush.bf16.msra.mxu0 %v5062
        %6193 = vmatpush.bf16.msra.mxu0 %v5054
        %6194 = vmatpush.bf16.msra.mxu0 %v5046
        %6195 = vmatpush.bf16.msra.mxu0 %v5038
        %6196 = vmatmul.bf16.gmra.mxu0 %v5912
        %v6197 = vpop.f32.mrf.mxu0
        %v6198 = vadd.f32 %v6185, %v6197
        %v6199 = vpop.f32.mrf.mxu0
        %6200 = vdwg.mxu0
        %6201 = vmatpush.bf16.msra.mxu0 %v5158
        %6202 = vmatpush.bf16.msra.mxu0 %v5150
        %6203 = vmatpush.bf16.msra.mxu0 %v5142
        %6204 = vmatpush.bf16.msra.mxu0 %v5134
        %6205 = vmatpush.bf16.msra.mxu0 %v5126
        %6206 = vmatpush.bf16.msra.mxu0 %v5118
        %6207 = vmatpush.bf16.msra.mxu0 %v5110
        %6208 = vmatpush.bf16.msra.mxu0 %v5102
        %6209 = vmatmul.bf16.gmra.mxu0 %v5913
        %v6210 = vpop.f32.mrf.mxu0
        %v6211 = vadd.f32 %v6198, %v6210
        %v6212 = vpop.f32.mrf.mxu0
        %6213 = vdwg.mxu0
        %6214 = vmatpush.bf16.msra.mxu0 %v5222
        %6215 = vmatpush.bf16.msra.mxu0 %v5214
        %6216 = vmatpush.bf16.msra.mxu0 %v5206
        %6217 = vmatpush.bf16.msra.mxu0 %v5198
        %6218 = vmatpush.bf16.msra.mxu0 %v5190
        %6219 = vmatpush.bf16.msra.mxu0 %v5182
        %6220 = vmatpush.bf16.msra.mxu0 %v5174
        %6221 = vmatpush.bf16.msra.mxu0 %v5166
        %6222 = vmatmul.bf16.gmra.mxu0 %v5914
        %v6223 = vpop.f32.mrf.mxu0
        %v6224 = vadd.f32 %v6211, %v6223
        %v6225 = vpop.f32.mrf.mxu0
        %6226 = vdwg.mxu0
        %6227 = vmatpush.bf16.msra.mxu0 %v5286
        %6228 = vmatpush.bf16.msra.mxu0 %v5278
        %6229 = vmatpush.bf16.msra.mxu0 %v5270
        %6230 = vmatpush.bf16.msra.mxu0 %v5262
        %6231 = vmatpush.bf16.msra.mxu0 %v5254
        %6232 = vmatpush.bf16.msra.mxu0 %v5246
        %6233 = vmatpush.bf16.msra.mxu0 %v5238
        %6234 = vmatpush.bf16.msra.mxu0 %v5230
        %6235 = vmatmul.bf16.gmra.mxu0 %v5915
        %v6236 = vpop.f32.mrf.mxu0
        %v6237 = vadd.f32 %v6224, %v6236
        %v6238 = vpop.f32.mrf.mxu0
        %6239 = vdwg.mxu0
        %6240 = vmatpush.bf16.msra.mxu0 %v5350
        %6241 = vmatpush.bf16.msra.mxu0 %v5342
        %6242 = vmatpush.bf16.msra.mxu0 %v5334
        %6243 = vmatpush.bf16.msra.mxu0 %v5326
        %6244 = vmatpush.bf16.msra.mxu0 %v5318
        %6245 = vmatpush.bf16.msra.mxu0 %v5310
        %6246 = vmatpush.bf16.msra.mxu0 %v5302
        %6247 = vmatpush.bf16.msra.mxu0 %v5294
        %6248 = vmatmul.bf16.gmra.mxu0 %v5916
        %v6249 = vpop.f32.mrf.mxu0
        %v6250 = vadd.f32 %v6237, %v6249
        %v6251 = vpop.f32.mrf.mxu0
        %6252 = vdwg.mxu0
        %6253 = vmatpush.bf16.msra.mxu0 %v5414
        %6254 = vmatpush.bf16.msra.mxu0 %v5406
        %6255 = vmatpush.bf16.msra.mxu0 %v5398
        %6256 = vmatpush.bf16.msra.mxu0 %v5390
        %6257 = vmatpush.bf16.msra.mxu0 %v5382
        %6258 = vmatpush.bf16.msra.mxu0 %v5374
        %6259 = vmatpush.bf16.msra.mxu0 %v5366
        %6260 = vmatpush.bf16.msra.mxu0 %v5358
        %6261 = vmatmul.bf16.gmra.mxu0 %v5917
        %v6262 = vpop.f32.mrf.mxu0
        %v6263 = vadd.f32 %v6250, %v6262
        %v6264 = vpop.f32.mrf.mxu0
        %6265 = vdwg.mxu0
        %6266 = vmatpush.bf16.msra.mxu0 %v5478
        %6267 = vmatpush.bf16.msra.mxu0 %v5470
        %6268 = vmatpush.bf16.msra.mxu0 %v5462
        %6269 = vmatpush.bf16.msra.mxu0 %v5454
        %6270 = vmatpush.bf16.msra.mxu0 %v5446
        %6271 = vmatpush.bf16.msra.mxu0 %v5438
        %6272 = vmatpush.bf16.msra.mxu0 %v5430
        %6273 = vmatpush.bf16.msra.mxu0 %v5422
        %6274 = vmatmul.bf16.gmra.mxu0 %v5918
        %v6275 = vpop.f32.mrf.mxu0
        %v6276 = vadd.f32 %v6263, %v6275
        %v6277 = vpop.f32.mrf.mxu0
        %6278 = vdwg.mxu0
        %6279 = vmatpush.bf16.msra.mxu0 %v5542
        %6280 = vmatpush.bf16.msra.mxu0 %v5534
        %6281 = vmatpush.bf16.msra.mxu0 %v5526
        %6282 = vmatpush.bf16.msra.mxu0 %v5518
        %6283 = vmatpush.bf16.msra.mxu0 %v5510
        %6284 = vmatpush.bf16.msra.mxu0 %v5502
        %6285 = vmatpush.bf16.msra.mxu0 %v5494
        %6286 = vmatpush.bf16.msra.mxu0 %v5486
        %6287 = vmatmul.bf16.gmra.mxu0 %v5919
        %v6288 = vpop.f32.mrf.mxu0
        %v6289 = vadd.f32 %v6276, %v6288
        %v6290 = vpop.f32.mrf.mxu0
        %6291 = vdwg.mxu0
        %6292 = vmatpush.bf16.msra.mxu0 %v5606
        %6293 = vmatpush.bf16.msra.mxu0 %v5598
        %6294 = vmatpush.bf16.msra.mxu0 %v5590
        %6295 = vmatpush.bf16.msra.mxu0 %v5582
        %6296 = vmatpush.bf16.msra.mxu0 %v5574
        %6297 = vmatpush.bf16.msra.mxu0 %v5566
        %6298 = vmatpush.bf16.msra.mxu0 %v5558
        %6299 = vmatpush.bf16.msra.mxu0 %v5550
        %6300 = vmatmul.bf16.gmra.mxu0 %v5920
        %v6301 = vpop.f32.mrf.mxu0
        %v6302 = vadd.f32 %v6289, %v6301
        %v6303 = vpop.f32.mrf.mxu0
        %6304 = vdwg.mxu0
        %6305 = vmatpush.bf16.msra.mxu0 %v5670
        %6306 = vmatpush.bf16.msra.mxu0 %v5662
        %6307 = vmatpush.bf16.msra.mxu0 %v5654
        %6308 = vmatpush.bf16.msra.mxu0 %v5646
        %6309 = vmatpush.bf16.msra.mxu0 %v5638
        %6310 = vmatpush.bf16.msra.mxu0 %v5630
        %6311 = vmatpush.bf16.msra.mxu0 %v5622
        %6312 = vmatpush.bf16.msra.mxu0 %v5614
        %6313 = vmatmul.bf16.gmra.mxu0 %v5921
        %v6314 = vpop.f32.mrf.mxu0
        %v6315 = vadd.f32 %v6302, %v6314
        %v6316 = vpop.f32.mrf.mxu0
        %6317 = vdwg.mxu0
        %6318 = vmatpush.bf16.msra.mxu0 %v5734
        %6319 = vmatpush.bf16.msra.mxu0 %v5726
        %6320 = vmatpush.bf16.msra.mxu0 %v5718
        %6321 = vmatpush.bf16.msra.mxu0 %v5710
        %6322 = vmatpush.bf16.msra.mxu0 %v5702
        %6323 = vmatpush.bf16.msra.mxu0 %v5694
        %6324 = vmatpush.bf16.msra.mxu0 %v5686
        %6325 = vmatpush.bf16.msra.mxu0 %v5678
        %6326 = vmatmul.bf16.gmra.mxu0 %v5922
        %v6327 = vpop.f32.mrf.mxu0
        %v6328 = vadd.f32 %v6315, %v6327
        %v6329 = vpop.f32.mrf.mxu0
        %6330 = vdwg.mxu0
        %6331 = vmatpush.bf16.msra.mxu0 %v5798
        %6332 = vmatpush.bf16.msra.mxu0 %v5790
        %6333 = vmatpush.bf16.msra.mxu0 %v5782
        %6334 = vmatpush.bf16.msra.mxu0 %v5774
        %6335 = vmatpush.bf16.msra.mxu0 %v5766
        %6336 = vmatpush.bf16.msra.mxu0 %v5758
        %6337 = vmatpush.bf16.msra.mxu0 %v5750
        %6338 = vmatpush.bf16.msra.mxu0 %v5742
        %6339 = vmatmul.bf16.gmra.mxu0 %v5923
        %v6340 = vpop.f32.mrf.mxu0
        %v6341 = vadd.f32 %v6328, %v6340
        %v6342 = vpop.f32.mrf.mxu0
        %6343 = vdwg.mxu0
        %6344 = vmatpush.bf16.msra.mxu0 %v5862
        %6345 = vmatpush.bf16.msra.mxu0 %v5854
        %6346 = vmatpush.bf16.msra.mxu0 %v5846
        %6347 = vmatpush.bf16.msra.mxu0 %v5838
        %6348 = vmatpush.bf16.msra.mxu0 %v5830
        %6349 = vmatpush.bf16.msra.mxu0 %v5822
        %6350 = vmatpush.bf16.msra.mxu0 %v5814
        %6351 = vmatpush.bf16.msra.mxu0 %v5806
        %6352 = vmatmul.bf16.gmra.mxu0 %v5924
        %v6353 = vpop.f32.mrf.mxu0
        %v6354 = vadd.f32 %v6341, %v6353
        %v6355 = vpop.f32.mrf.mxu0
        %6356 = vdwg.mxu0
        %6357 = vmatpush.bf16.msra.mxu0 %v4903
        %6358 = vmatpush.bf16.msra.mxu0 %v4895
        %6359 = vmatpush.bf16.msra.mxu0 %v4887
        %6360 = vmatpush.bf16.msra.mxu0 %v4879
        %6361 = vmatpush.bf16.msra.mxu0 %v4871
        %6362 = vmatpush.bf16.msra.mxu0 %v4863
        %6363 = vmatpush.bf16.msra.mxu0 %v4855
        %6364 = vmatpush.bf16.msra.mxu0 %v4847
        %6365 = vmatmul.bf16.gmra.mxu0 %v5909
        %v6366 = vpop.f32.mrf.mxu0
        %v6367 = vadd.f32 0.0, %v6366
        %v6368 = vpop.f32.mrf.mxu0
        %6369 = vdwg.mxu0
        %6370 = vmatpush.bf16.msra.mxu0 %v4967
        %6371 = vmatpush.bf16.msra.mxu0 %v4959
        %6372 = vmatpush.bf16.msra.mxu0 %v4951
        %6373 = vmatpush.bf16.msra.mxu0 %v4943
        %6374 = vmatpush.bf16.msra.mxu0 %v4935
        %6375 = vmatpush.bf16.msra.mxu0 %v4927
        %6376 = vmatpush.bf16.msra.mxu0 %v4919
        %6377 = vmatpush.bf16.msra.mxu0 %v4911
        %6378 = vmatmul.bf16.gmra.mxu0 %v5910
        %v6379 = vpop.f32.mrf.mxu0
        %v6380 = vadd.f32 %v6367, %v6379
        %v6381 = vpop.f32.mrf.mxu0
        %6382 = vdwg.mxu0
        %6383 = vmatpush.bf16.msra.mxu0 %v5031
        %6384 = vmatpush.bf16.msra.mxu0 %v5023
        %6385 = vmatpush.bf16.msra.mxu0 %v5015
        %6386 = vmatpush.bf16.msra.mxu0 %v5007
        %6387 = vmatpush.bf16.msra.mxu0 %v4999
        %6388 = vmatpush.bf16.msra.mxu0 %v4991
        %6389 = vmatpush.bf16.msra.mxu0 %v4983
        %6390 = vmatpush.bf16.msra.mxu0 %v4975
        %6391 = vmatmul.bf16.gmra.mxu0 %v5911
        %v6392 = vpop.f32.mrf.mxu0
        %v6393 = vadd.f32 %v6380, %v6392
        %v6394 = vpop.f32.mrf.mxu0
        %6395 = vdwg.mxu0
        %6396 = vmatpush.bf16.msra.mxu0 %v5095
        %6397 = vmatpush.bf16.msra.mxu0 %v5087
        %6398 = vmatpush.bf16.msra.mxu0 %v5079
        %6399 = vmatpush.bf16.msra.mxu0 %v5071
        %6400 = vmatpush.bf16.msra.mxu0 %v5063
        %6401 = vmatpush.bf16.msra.mxu0 %v5055
        %6402 = vmatpush.bf16.msra.mxu0 %v5047
        %6403 = vmatpush.bf16.msra.mxu0 %v5039
        %6404 = vmatmul.bf16.gmra.mxu0 %v5912
        %v6405 = vpop.f32.mrf.mxu0
        %v6406 = vadd.f32 %v6393, %v6405
        %v6407 = vpop.f32.mrf.mxu0
        %6408 = vdwg.mxu0
        %6409 = vmatpush.bf16.msra.mxu0 %v5159
        %6410 = vmatpush.bf16.msra.mxu0 %v5151
        %6411 = vmatpush.bf16.msra.mxu0 %v5143
        %6412 = vmatpush.bf16.msra.mxu0 %v5135
        %6413 = vmatpush.bf16.msra.mxu0 %v5127
        %6414 = vmatpush.bf16.msra.mxu0 %v5119
        %6415 = vmatpush.bf16.msra.mxu0 %v5111
        %6416 = vmatpush.bf16.msra.mxu0 %v5103
        %6417 = vmatmul.bf16.gmra.mxu0 %v5913
        %v6418 = vpop.f32.mrf.mxu0
        %v6419 = vadd.f32 %v6406, %v6418
        %v6420 = vpop.f32.mrf.mxu0
        %6421 = vdwg.mxu0
        %6422 = vmatpush.bf16.msra.mxu0 %v5223
        %6423 = vmatpush.bf16.msra.mxu0 %v5215
        %6424 = vmatpush.bf16.msra.mxu0 %v5207
        %6425 = vmatpush.bf16.msra.mxu0 %v5199
        %6426 = vmatpush.bf16.msra.mxu0 %v5191
        %6427 = vmatpush.bf16.msra.mxu0 %v5183
        %6428 = vmatpush.bf16.msra.mxu0 %v5175
        %6429 = vmatpush.bf16.msra.mxu0 %v5167
        %6430 = vmatmul.bf16.gmra.mxu0 %v5914
        %v6431 = vpop.f32.mrf.mxu0
        %v6432 = vadd.f32 %v6419, %v6431
        %v6433 = vpop.f32.mrf.mxu0
        %6434 = vdwg.mxu0
        %6435 = vmatpush.bf16.msra.mxu0 %v5287
        %6436 = vmatpush.bf16.msra.mxu0 %v5279
        %6437 = vmatpush.bf16.msra.mxu0 %v5271
        %6438 = vmatpush.bf16.msra.mxu0 %v5263
        %6439 = vmatpush.bf16.msra.mxu0 %v5255
        %6440 = vmatpush.bf16.msra.mxu0 %v5247
        %6441 = vmatpush.bf16.msra.mxu0 %v5239
        %6442 = vmatpush.bf16.msra.mxu0 %v5231
        %6443 = vmatmul.bf16.gmra.mxu0 %v5915
        %v6444 = vpop.f32.mrf.mxu0
        %v6445 = vadd.f32 %v6432, %v6444
        %v6446 = vpop.f32.mrf.mxu0
        %6447 = vdwg.mxu0
        %6448 = vmatpush.bf16.msra.mxu0 %v5351
        %6449 = vmatpush.bf16.msra.mxu0 %v5343
        %6450 = vmatpush.bf16.msra.mxu0 %v5335
        %6451 = vmatpush.bf16.msra.mxu0 %v5327
        %6452 = vmatpush.bf16.msra.mxu0 %v5319
        %6453 = vmatpush.bf16.msra.mxu0 %v5311
        %6454 = vmatpush.bf16.msra.mxu0 %v5303
        %6455 = vmatpush.bf16.msra.mxu0 %v5295
        %6456 = vmatmul.bf16.gmra.mxu0 %v5916
        %v6457 = vpop.f32.mrf.mxu0
        %v6458 = vadd.f32 %v6445, %v6457
        %v6459 = vpop.f32.mrf.mxu0
        %6460 = vdwg.mxu0
        %6461 = vmatpush.bf16.msra.mxu0 %v5415
        %6462 = vmatpush.bf16.msra.mxu0 %v5407
        %6463 = vmatpush.bf16.msra.mxu0 %v5399
        %6464 = vmatpush.bf16.msra.mxu0 %v5391
        %6465 = vmatpush.bf16.msra.mxu0 %v5383
        %6466 = vmatpush.bf16.msra.mxu0 %v5375
        %6467 = vmatpush.bf16.msra.mxu0 %v5367
        %6468 = vmatpush.bf16.msra.mxu0 %v5359
        %6469 = vmatmul.bf16.gmra.mxu0 %v5917
        %v6470 = vpop.f32.mrf.mxu0
        %v6471 = vadd.f32 %v6458, %v6470
        %v6472 = vpop.f32.mrf.mxu0
        %6473 = vdwg.mxu0
        %6474 = vmatpush.bf16.msra.mxu0 %v5479
        %6475 = vmatpush.bf16.msra.mxu0 %v5471
        %6476 = vmatpush.bf16.msra.mxu0 %v5463
        %6477 = vmatpush.bf16.msra.mxu0 %v5455
        %6478 = vmatpush.bf16.msra.mxu0 %v5447
        %6479 = vmatpush.bf16.msra.mxu0 %v5439
        %6480 = vmatpush.bf16.msra.mxu0 %v5431
        %6481 = vmatpush.bf16.msra.mxu0 %v5423
        %6482 = vmatmul.bf16.gmra.mxu0 %v5918
        %v6483 = vpop.f32.mrf.mxu0
        %v6484 = vadd.f32 %v6471, %v6483
        %v6485 = vpop.f32.mrf.mxu0
        %6486 = vdwg.mxu0
        %6487 = vmatpush.bf16.msra.mxu0 %v5543
        %6488 = vmatpush.bf16.msra.mxu0 %v5535
        %6489 = vmatpush.bf16.msra.mxu0 %v5527
        %6490 = vmatpush.bf16.msra.mxu0 %v5519
        %6491 = vmatpush.bf16.msra.mxu0 %v5511
        %6492 = vmatpush.bf16.msra.mxu0 %v5503
        %6493 = vmatpush.bf16.msra.mxu0 %v5495
        %6494 = vmatpush.bf16.msra.mxu0 %v5487
        %6495 = vmatmul.bf16.gmra.mxu0 %v5919
        %v6496 = vpop.f32.mrf.mxu0
        %v6497 = vadd.f32 %v6484, %v6496
        %v6498 = vpop.f32.mrf.mxu0
        %6499 = vdwg.mxu0
        %6500 = vmatpush.bf16.msra.mxu0 %v5607
        %6501 = vmatpush.bf16.msra.mxu0 %v5599
        %6502 = vmatpush.bf16.msra.mxu0 %v5591
        %6503 = vmatpush.bf16.msra.mxu0 %v5583
        %6504 = vmatpush.bf16.msra.mxu0 %v5575
        %6505 = vmatpush.bf16.msra.mxu0 %v5567
        %6506 = vmatpush.bf16.msra.mxu0 %v5559
        %6507 = vmatpush.bf16.msra.mxu0 %v5551
        %6508 = vmatmul.bf16.gmra.mxu0 %v5920
        %v6509 = vpop.f32.mrf.mxu0
        %v6510 = vadd.f32 %v6497, %v6509
        %v6511 = vpop.f32.mrf.mxu0
        %6512 = vdwg.mxu0
        %6513 = vmatpush.bf16.msra.mxu0 %v5671
        %6514 = vmatpush.bf16.msra.mxu0 %v5663
        %6515 = vmatpush.bf16.msra.mxu0 %v5655
        %6516 = vmatpush.bf16.msra.mxu0 %v5647
        %6517 = vmatpush.bf16.msra.mxu0 %v5639
        %6518 = vmatpush.bf16.msra.mxu0 %v5631
        %6519 = vmatpush.bf16.msra.mxu0 %v5623
        %6520 = vmatpush.bf16.msra.mxu0 %v5615
        %6521 = vmatmul.bf16.gmra.mxu0 %v5921
        %v6522 = vpop.f32.mrf.mxu0
        %v6523 = vadd.f32 %v6510, %v6522
        %v6524 = vpop.f32.mrf.mxu0
        %6525 = vdwg.mxu0
        %6526 = vmatpush.bf16.msra.mxu0 %v5735
        %6527 = vmatpush.bf16.msra.mxu0 %v5727
        %6528 = vmatpush.bf16.msra.mxu0 %v5719
        %6529 = vmatpush.bf16.msra.mxu0 %v5711
        %6530 = vmatpush.bf16.msra.mxu0 %v5703
        %6531 = vmatpush.bf16.msra.mxu0 %v5695
        %6532 = vmatpush.bf16.msra.mxu0 %v5687
        %6533 = vmatpush.bf16.msra.mxu0 %v5679
        %6534 = vmatmul.bf16.gmra.mxu0 %v5922
        %v6535 = vpop.f32.mrf.mxu0
        %v6536 = vadd.f32 %v6523, %v6535
        %v6537 = vpop.f32.mrf.mxu0
        %6538 = vdwg.mxu0
        %6539 = vmatpush.bf16.msra.mxu0 %v5799
        %6540 = vmatpush.bf16.msra.mxu0 %v5791
        %6541 = vmatpush.bf16.msra.mxu0 %v5783
        %6542 = vmatpush.bf16.msra.mxu0 %v5775
        %6543 = vmatpush.bf16.msra.mxu0 %v5767
        %6544 = vmatpush.bf16.msra.mxu0 %v5759
        %6545 = vmatpush.bf16.msra.mxu0 %v5751
        %6546 = vmatpush.bf16.msra.mxu0 %v5743
        %6547 = vmatmul.bf16.gmra.mxu0 %v5923
        %v6548 = vpop.f32.mrf.mxu0
        %v6549 = vadd.f32 %v6536, %v6548
        %v6550 = vpop.f32.mrf.mxu0
        %6551 = vdwg.mxu0
        %6552 = vmatpush.bf16.msra.mxu0 %v5863
        %6553 = vmatpush.bf16.msra.mxu0 %v5855
        %6554 = vmatpush.bf16.msra.mxu0 %v5847
        %6555 = vmatpush.bf16.msra.mxu0 %v5839
        %6556 = vmatpush.bf16.msra.mxu0 %v5831
        %6557 = vmatpush.bf16.msra.mxu0 %v5823
        %6558 = vmatpush.bf16.msra.mxu0 %v5815
        %6559 = vmatpush.bf16.msra.mxu0 %v5807
        %6560 = vmatmul.bf16.gmra.mxu0 %v5924
        %v6561 = vpop.f32.mrf.mxu0
        %v6562 = vadd.f32 %v6549, %v6561
        %v6563 = vpop.f32.mrf.mxu0
        %6564 = vdwg.mxu0
        %6565 = vmatpush.bf16.msra.mxu0 %v4904
        %6566 = vmatpush.bf16.msra.mxu0 %v4896
        %6567 = vmatpush.bf16.msra.mxu0 %v4888
        %6568 = vmatpush.bf16.msra.mxu0 %v4880
        %6569 = vmatpush.bf16.msra.mxu0 %v4872
        %6570 = vmatpush.bf16.msra.mxu0 %v4864
        %6571 = vmatpush.bf16.msra.mxu0 %v4856
        %6572 = vmatpush.bf16.msra.mxu0 %v4848
        %6573 = vmatmul.bf16.gmra.mxu0 %v5909
        %v6574 = vpop.f32.mrf.mxu0
        %v6575 = vadd.f32 0.0, %v6574
        %v6576 = vpop.f32.mrf.mxu0
        %6577 = vdwg.mxu0
        %6578 = vmatpush.bf16.msra.mxu0 %v4968
        %6579 = vmatpush.bf16.msra.mxu0 %v4960
        %6580 = vmatpush.bf16.msra.mxu0 %v4952
        %6581 = vmatpush.bf16.msra.mxu0 %v4944
        %6582 = vmatpush.bf16.msra.mxu0 %v4936
        %6583 = vmatpush.bf16.msra.mxu0 %v4928
        %6584 = vmatpush.bf16.msra.mxu0 %v4920
        %6585 = vmatpush.bf16.msra.mxu0 %v4912
        %6586 = vmatmul.bf16.gmra.mxu0 %v5910
        %v6587 = vpop.f32.mrf.mxu0
        %v6588 = vadd.f32 %v6575, %v6587
        %v6589 = vpop.f32.mrf.mxu0
        %6590 = vdwg.mxu0
        %6591 = vmatpush.bf16.msra.mxu0 %v5032
        %6592 = vmatpush.bf16.msra.mxu0 %v5024
        %6593 = vmatpush.bf16.msra.mxu0 %v5016
        %6594 = vmatpush.bf16.msra.mxu0 %v5008
        %6595 = vmatpush.bf16.msra.mxu0 %v5000
        %6596 = vmatpush.bf16.msra.mxu0 %v4992
        %6597 = vmatpush.bf16.msra.mxu0 %v4984
        %6598 = vmatpush.bf16.msra.mxu0 %v4976
        %6599 = vmatmul.bf16.gmra.mxu0 %v5911
        %v6600 = vpop.f32.mrf.mxu0
        %v6601 = vadd.f32 %v6588, %v6600
        %v6602 = vpop.f32.mrf.mxu0
        %6603 = vdwg.mxu0
        %6604 = vmatpush.bf16.msra.mxu0 %v5096
        %6605 = vmatpush.bf16.msra.mxu0 %v5088
        %6606 = vmatpush.bf16.msra.mxu0 %v5080
        %6607 = vmatpush.bf16.msra.mxu0 %v5072
        %6608 = vmatpush.bf16.msra.mxu0 %v5064
        %6609 = vmatpush.bf16.msra.mxu0 %v5056
        %6610 = vmatpush.bf16.msra.mxu0 %v5048
        %6611 = vmatpush.bf16.msra.mxu0 %v5040
        %6612 = vmatmul.bf16.gmra.mxu0 %v5912
        %v6613 = vpop.f32.mrf.mxu0
        %v6614 = vadd.f32 %v6601, %v6613
        %v6615 = vpop.f32.mrf.mxu0
        %6616 = vdwg.mxu0
        %6617 = vmatpush.bf16.msra.mxu0 %v5160
        %6618 = vmatpush.bf16.msra.mxu0 %v5152
        %6619 = vmatpush.bf16.msra.mxu0 %v5144
        %6620 = vmatpush.bf16.msra.mxu0 %v5136
        %6621 = vmatpush.bf16.msra.mxu0 %v5128
        %6622 = vmatpush.bf16.msra.mxu0 %v5120
        %6623 = vmatpush.bf16.msra.mxu0 %v5112
        %6624 = vmatpush.bf16.msra.mxu0 %v5104
        %6625 = vmatmul.bf16.gmra.mxu0 %v5913
        %v6626 = vpop.f32.mrf.mxu0
        %v6627 = vadd.f32 %v6614, %v6626
        %v6628 = vpop.f32.mrf.mxu0
        %6629 = vdwg.mxu0
        %6630 = vmatpush.bf16.msra.mxu0 %v5224
        %6631 = vmatpush.bf16.msra.mxu0 %v5216
        %6632 = vmatpush.bf16.msra.mxu0 %v5208
        %6633 = vmatpush.bf16.msra.mxu0 %v5200
        %6634 = vmatpush.bf16.msra.mxu0 %v5192
        %6635 = vmatpush.bf16.msra.mxu0 %v5184
        %6636 = vmatpush.bf16.msra.mxu0 %v5176
        %6637 = vmatpush.bf16.msra.mxu0 %v5168
        %6638 = vmatmul.bf16.gmra.mxu0 %v5914
        %v6639 = vpop.f32.mrf.mxu0
        %v6640 = vadd.f32 %v6627, %v6639
        %v6641 = vpop.f32.mrf.mxu0
        %6642 = vdwg.mxu0
        %6643 = vmatpush.bf16.msra.mxu0 %v5288
        %6644 = vmatpush.bf16.msra.mxu0 %v5280
        %6645 = vmatpush.bf16.msra.mxu0 %v5272
        %6646 = vmatpush.bf16.msra.mxu0 %v5264
        %6647 = vmatpush.bf16.msra.mxu0 %v5256
        %6648 = vmatpush.bf16.msra.mxu0 %v5248
        %6649 = vmatpush.bf16.msra.mxu0 %v5240
        %6650 = vmatpush.bf16.msra.mxu0 %v5232
        %6651 = vmatmul.bf16.gmra.mxu0 %v5915
        %v6652 = vpop.f32.mrf.mxu0
        %v6653 = vadd.f32 %v6640, %v6652
        %v6654 = vpop.f32.mrf.mxu0
        %6655 = vdwg.mxu0
        %6656 = vmatpush.bf16.msra.mxu0 %v5352
        %6657 = vmatpush.bf16.msra.mxu0 %v5344
        %6658 = vmatpush.bf16.msra.mxu0 %v5336
        %6659 = vmatpush.bf16.msra.mxu0 %v5328
        %6660 = vmatpush.bf16.msra.mxu0 %v5320
        %6661 = vmatpush.bf16.msra.mxu0 %v5312
        %6662 = vmatpush.bf16.msra.mxu0 %v5304
        %6663 = vmatpush.bf16.msra.mxu0 %v5296
        %6664 = vmatmul.bf16.gmra.mxu0 %v5916
        %v6665 = vpop.f32.mrf.mxu0
        %v6666 = vadd.f32 %v6653, %v6665
        %v6667 = vpop.f32.mrf.mxu0
        %6668 = vdwg.mxu0
        %6669 = vmatpush.bf16.msra.mxu0 %v5416
        %6670 = vmatpush.bf16.msra.mxu0 %v5408
        %6671 = vmatpush.bf16.msra.mxu0 %v5400
        %6672 = vmatpush.bf16.msra.mxu0 %v5392
        %6673 = vmatpush.bf16.msra.mxu0 %v5384
        %6674 = vmatpush.bf16.msra.mxu0 %v5376
        %6675 = vmatpush.bf16.msra.mxu0 %v5368
        %6676 = vmatpush.bf16.msra.mxu0 %v5360
        %6677 = vmatmul.bf16.gmra.mxu0 %v5917
        %v6678 = vpop.f32.mrf.mxu0
        %v6679 = vadd.f32 %v6666, %v6678
        %v6680 = vpop.f32.mrf.mxu0
        %6681 = vdwg.mxu0
        %6682 = vmatpush.bf16.msra.mxu0 %v5480
        %6683 = vmatpush.bf16.msra.mxu0 %v5472
        %6684 = vmatpush.bf16.msra.mxu0 %v5464
        %6685 = vmatpush.bf16.msra.mxu0 %v5456
        %6686 = vmatpush.bf16.msra.mxu0 %v5448
        %6687 = vmatpush.bf16.msra.mxu0 %v5440
        %6688 = vmatpush.bf16.msra.mxu0 %v5432
        %6689 = vmatpush.bf16.msra.mxu0 %v5424
        %6690 = vmatmul.bf16.gmra.mxu0 %v5918
        %v6691 = vpop.f32.mrf.mxu0
        %v6692 = vadd.f32 %v6679, %v6691
        %v6693 = vpop.f32.mrf.mxu0
        %6694 = vdwg.mxu0
        %6695 = vmatpush.bf16.msra.mxu0 %v5544
        %6696 = vmatpush.bf16.msra.mxu0 %v5536
        %6697 = vmatpush.bf16.msra.mxu0 %v5528
        %6698 = vmatpush.bf16.msra.mxu0 %v5520
        %6699 = vmatpush.bf16.msra.mxu0 %v5512
        %6700 = vmatpush.bf16.msra.mxu0 %v5504
        %6701 = vmatpush.bf16.msra.mxu0 %v5496
        %6702 = vmatpush.bf16.msra.mxu0 %v5488
        %6703 = vmatmul.bf16.gmra.mxu0 %v5919
        %v6704 = vpop.f32.mrf.mxu0
        %v6705 = vadd.f32 %v6692, %v6704
        %v6706 = vpop.f32.mrf.mxu0
        %6707 = vdwg.mxu0
        %6708 = vmatpush.bf16.msra.mxu0 %v5608
        %6709 = vmatpush.bf16.msra.mxu0 %v5600
        %6710 = vmatpush.bf16.msra.mxu0 %v5592
        %6711 = vmatpush.bf16.msra.mxu0 %v5584
        %6712 = vmatpush.bf16.msra.mxu0 %v5576
        %6713 = vmatpush.bf16.msra.mxu0 %v5568
        %6714 = vmatpush.bf16.msra.mxu0 %v5560
        %6715 = vmatpush.bf16.msra.mxu0 %v5552
        %6716 = vmatmul.bf16.gmra.mxu0 %v5920
        %v6717 = vpop.f32.mrf.mxu0
        %v6718 = vadd.f32 %v6705, %v6717
        %v6719 = vpop.f32.mrf.mxu0
        %6720 = vdwg.mxu0
        %6721 = vmatpush.bf16.msra.mxu0 %v5672
        %6722 = vmatpush.bf16.msra.mxu0 %v5664
        %6723 = vmatpush.bf16.msra.mxu0 %v5656
        %6724 = vmatpush.bf16.msra.mxu0 %v5648
        %6725 = vmatpush.bf16.msra.mxu0 %v5640
        %6726 = vmatpush.bf16.msra.mxu0 %v5632
        %6727 = vmatpush.bf16.msra.mxu0 %v5624
        %6728 = vmatpush.bf16.msra.mxu0 %v5616
        %6729 = vmatmul.bf16.gmra.mxu0 %v5921
        %v6730 = vpop.f32.mrf.mxu0
        %v6731 = vadd.f32 %v6718, %v6730
        %v6732 = vpop.f32.mrf.mxu0
        %6733 = vdwg.mxu0
        %6734 = vmatpush.bf16.msra.mxu0 %v5736
        %6735 = vmatpush.bf16.msra.mxu0 %v5728
        %6736 = vmatpush.bf16.msra.mxu0 %v5720
        %6737 = vmatpush.bf16.msra.mxu0 %v5712
        %6738 = vmatpush.bf16.msra.mxu0 %v5704
        %6739 = vmatpush.bf16.msra.mxu0 %v5696
        %6740 = vmatpush.bf16.msra.mxu0 %v5688
        %6741 = vmatpush.bf16.msra.mxu0 %v5680
        %6742 = vmatmul.bf16.gmra.mxu0 %v5922
        %v6743 = vpop.f32.mrf.mxu0
        %v6744 = vadd.f32 %v6731, %v6743
        %v6745 = vpop.f32.mrf.mxu0
        %6746 = vdwg.mxu0
        %6747 = vmatpush.bf16.msra.mxu0 %v5800
        %6748 = vmatpush.bf16.msra.mxu0 %v5792
        %6749 = vmatpush.bf16.msra.mxu0 %v5784
        %6750 = vmatpush.bf16.msra.mxu0 %v5776
        %6751 = vmatpush.bf16.msra.mxu0 %v5768
        %6752 = vmatpush.bf16.msra.mxu0 %v5760
        %6753 = vmatpush.bf16.msra.mxu0 %v5752
        %6754 = vmatpush.bf16.msra.mxu0 %v5744
        %6755 = vmatmul.bf16.gmra.mxu0 %v5923
        %v6756 = vpop.f32.mrf.mxu0
        %v6757 = vadd.f32 %v6744, %v6756
        %v6758 = vpop.f32.mrf.mxu0
        %6759 = vdwg.mxu0
        %6760 = vmatpush.bf16.msra.mxu0 %v5864
        %6761 = vmatpush.bf16.msra.mxu0 %v5856
        %6762 = vmatpush.bf16.msra.mxu0 %v5848
        %6763 = vmatpush.bf16.msra.mxu0 %v5840
        %6764 = vmatpush.bf16.msra.mxu0 %v5832
        %6765 = vmatpush.bf16.msra.mxu0 %v5824
        %6766 = vmatpush.bf16.msra.mxu0 %v5816
        %6767 = vmatpush.bf16.msra.mxu0 %v5808
        %6768 = vmatmul.bf16.gmra.mxu0 %v5924
        %v6769 = vpop.f32.mrf.mxu0
        %v6770 = vadd.f32 %v6757, %v6769
        %v6771 = vpop.f32.mrf.mxu0
        %6772 = vdwg.mxu0
        %6773 = vmatpush.bf16.msra.mxu0 %v4905
        %6774 = vmatpush.bf16.msra.mxu0 %v4897
        %6775 = vmatpush.bf16.msra.mxu0 %v4889
        %6776 = vmatpush.bf16.msra.mxu0 %v4881
        %6777 = vmatpush.bf16.msra.mxu0 %v4873
        %6778 = vmatpush.bf16.msra.mxu0 %v4865
        %6779 = vmatpush.bf16.msra.mxu0 %v4857
        %6780 = vmatpush.bf16.msra.mxu0 %v4849
        %6781 = vmatmul.bf16.gmra.mxu0 %v5909
        %v6782 = vpop.f32.mrf.mxu0
        %v6783 = vadd.f32 0.0, %v6782
        %v6784 = vpop.f32.mrf.mxu0
        %6785 = vdwg.mxu0
        %6786 = vmatpush.bf16.msra.mxu0 %v4969
        %6787 = vmatpush.bf16.msra.mxu0 %v4961
        %6788 = vmatpush.bf16.msra.mxu0 %v4953
        %6789 = vmatpush.bf16.msra.mxu0 %v4945
        %6790 = vmatpush.bf16.msra.mxu0 %v4937
        %6791 = vmatpush.bf16.msra.mxu0 %v4929
        %6792 = vmatpush.bf16.msra.mxu0 %v4921
        %6793 = vmatpush.bf16.msra.mxu0 %v4913
        %6794 = vmatmul.bf16.gmra.mxu0 %v5910
        %v6795 = vpop.f32.mrf.mxu0
        %v6796 = vadd.f32 %v6783, %v6795
        %v6797 = vpop.f32.mrf.mxu0
        %6798 = vdwg.mxu0
        %6799 = vmatpush.bf16.msra.mxu0 %v5033
        %6800 = vmatpush.bf16.msra.mxu0 %v5025
        %6801 = vmatpush.bf16.msra.mxu0 %v5017
        %6802 = vmatpush.bf16.msra.mxu0 %v5009
        %6803 = vmatpush.bf16.msra.mxu0 %v5001
        %6804 = vmatpush.bf16.msra.mxu0 %v4993
        %6805 = vmatpush.bf16.msra.mxu0 %v4985
        %6806 = vmatpush.bf16.msra.mxu0 %v4977
        %6807 = vmatmul.bf16.gmra.mxu0 %v5911
        %v6808 = vpop.f32.mrf.mxu0
        %v6809 = vadd.f32 %v6796, %v6808
        %v6810 = vpop.f32.mrf.mxu0
        %6811 = vdwg.mxu0
        %6812 = vmatpush.bf16.msra.mxu0 %v5097
        %6813 = vmatpush.bf16.msra.mxu0 %v5089
        %6814 = vmatpush.bf16.msra.mxu0 %v5081
        %6815 = vmatpush.bf16.msra.mxu0 %v5073
        %6816 = vmatpush.bf16.msra.mxu0 %v5065
        %6817 = vmatpush.bf16.msra.mxu0 %v5057
        %6818 = vmatpush.bf16.msra.mxu0 %v5049
        %6819 = vmatpush.bf16.msra.mxu0 %v5041
        %6820 = vmatmul.bf16.gmra.mxu0 %v5912
        %v6821 = vpop.f32.mrf.mxu0
        %v6822 = vadd.f32 %v6809, %v6821
        %v6823 = vpop.f32.mrf.mxu0
        %6824 = vdwg.mxu0
        %6825 = vmatpush.bf16.msra.mxu0 %v5161
        %6826 = vmatpush.bf16.msra.mxu0 %v5153
        %6827 = vmatpush.bf16.msra.mxu0 %v5145
        %6828 = vmatpush.bf16.msra.mxu0 %v5137
        %6829 = vmatpush.bf16.msra.mxu0 %v5129
        %6830 = vmatpush.bf16.msra.mxu0 %v5121
        %6831 = vmatpush.bf16.msra.mxu0 %v5113
        %6832 = vmatpush.bf16.msra.mxu0 %v5105
        %6833 = vmatmul.bf16.gmra.mxu0 %v5913
        %v6834 = vpop.f32.mrf.mxu0
        %v6835 = vadd.f32 %v6822, %v6834
        %v6836 = vpop.f32.mrf.mxu0
        %6837 = vdwg.mxu0
        %6838 = vmatpush.bf16.msra.mxu0 %v5225
        %6839 = vmatpush.bf16.msra.mxu0 %v5217
        %6840 = vmatpush.bf16.msra.mxu0 %v5209
        %6841 = vmatpush.bf16.msra.mxu0 %v5201
        %6842 = vmatpush.bf16.msra.mxu0 %v5193
        %6843 = vmatpush.bf16.msra.mxu0 %v5185
        %6844 = vmatpush.bf16.msra.mxu0 %v5177
        %6845 = vmatpush.bf16.msra.mxu0 %v5169
        %6846 = vmatmul.bf16.gmra.mxu0 %v5914
        %v6847 = vpop.f32.mrf.mxu0
        %v6848 = vadd.f32 %v6835, %v6847
        %v6849 = vpop.f32.mrf.mxu0
        %6850 = vdwg.mxu0
        %6851 = vmatpush.bf16.msra.mxu0 %v5289
        %6852 = vmatpush.bf16.msra.mxu0 %v5281
        %6853 = vmatpush.bf16.msra.mxu0 %v5273
        %6854 = vmatpush.bf16.msra.mxu0 %v5265
        %6855 = vmatpush.bf16.msra.mxu0 %v5257
        %6856 = vmatpush.bf16.msra.mxu0 %v5249
        %6857 = vmatpush.bf16.msra.mxu0 %v5241
        %6858 = vmatpush.bf16.msra.mxu0 %v5233
        %6859 = vmatmul.bf16.gmra.mxu0 %v5915
        %v6860 = vpop.f32.mrf.mxu0
        %v6861 = vadd.f32 %v6848, %v6860
        %v6862 = vpop.f32.mrf.mxu0
        %6863 = vdwg.mxu0
        %6864 = vmatpush.bf16.msra.mxu0 %v5353
        %6865 = vmatpush.bf16.msra.mxu0 %v5345
        %6866 = vmatpush.bf16.msra.mxu0 %v5337
        %6867 = vmatpush.bf16.msra.mxu0 %v5329
        %6868 = vmatpush.bf16.msra.mxu0 %v5321
        %6869 = vmatpush.bf16.msra.mxu0 %v5313
        %6870 = vmatpush.bf16.msra.mxu0 %v5305
        %6871 = vmatpush.bf16.msra.mxu0 %v5297
        %6872 = vmatmul.bf16.gmra.mxu0 %v5916
        %v6873 = vpop.f32.mrf.mxu0
        %v6874 = vadd.f32 %v6861, %v6873
        %v6875 = vpop.f32.mrf.mxu0
        %6876 = vdwg.mxu0
        %6877 = vmatpush.bf16.msra.mxu0 %v5417
        %6878 = vmatpush.bf16.msra.mxu0 %v5409
        %6879 = vmatpush.bf16.msra.mxu0 %v5401
        %6880 = vmatpush.bf16.msra.mxu0 %v5393
        %6881 = vmatpush.bf16.msra.mxu0 %v5385
        %6882 = vmatpush.bf16.msra.mxu0 %v5377
        %6883 = vmatpush.bf16.msra.mxu0 %v5369
        %6884 = vmatpush.bf16.msra.mxu0 %v5361
        %6885 = vmatmul.bf16.gmra.mxu0 %v5917
        %v6886 = vpop.f32.mrf.mxu0
        %v6887 = vadd.f32 %v6874, %v6886
        %v6888 = vpop.f32.mrf.mxu0
        %6889 = vdwg.mxu0
        %6890 = vmatpush.bf16.msra.mxu0 %v5481
        %6891 = vmatpush.bf16.msra.mxu0 %v5473
        %6892 = vmatpush.bf16.msra.mxu0 %v5465
        %6893 = vmatpush.bf16.msra.mxu0 %v5457
        %6894 = vmatpush.bf16.msra.mxu0 %v5449
        %6895 = vmatpush.bf16.msra.mxu0 %v5441
        %6896 = vmatpush.bf16.msra.mxu0 %v5433
        %6897 = vmatpush.bf16.msra.mxu0 %v5425
        %6898 = vmatmul.bf16.gmra.mxu0 %v5918
        %v6899 = vpop.f32.mrf.mxu0
        %v6900 = vadd.f32 %v6887, %v6899
        %v6901 = vpop.f32.mrf.mxu0
        %6902 = vdwg.mxu0
        %6903 = vmatpush.bf16.msra.mxu0 %v5545
        %6904 = vmatpush.bf16.msra.mxu0 %v5537
        %6905 = vmatpush.bf16.msra.mxu0 %v5529
        %6906 = vmatpush.bf16.msra.mxu0 %v5521
        %6907 = vmatpush.bf16.msra.mxu0 %v5513
        %6908 = vmatpush.bf16.msra.mxu0 %v5505
        %6909 = vmatpush.bf16.msra.mxu0 %v5497
        %6910 = vmatpush.bf16.msra.mxu0 %v5489
        %6911 = vmatmul.bf16.gmra.mxu0 %v5919
        %v6912 = vpop.f32.mrf.mxu0
        %v6913 = vadd.f32 %v6900, %v6912
        %v6914 = vpop.f32.mrf.mxu0
        %6915 = vdwg.mxu0
        %6916 = vmatpush.bf16.msra.mxu0 %v5609
        %6917 = vmatpush.bf16.msra.mxu0 %v5601
        %6918 = vmatpush.bf16.msra.mxu0 %v5593
        %6919 = vmatpush.bf16.msra.mxu0 %v5585
        %6920 = vmatpush.bf16.msra.mxu0 %v5577
        %6921 = vmatpush.bf16.msra.mxu0 %v5569
        %6922 = vmatpush.bf16.msra.mxu0 %v5561
        %6923 = vmatpush.bf16.msra.mxu0 %v5553
        %6924 = vmatmul.bf16.gmra.mxu0 %v5920
        %v6925 = vpop.f32.mrf.mxu0
        %v6926 = vadd.f32 %v6913, %v6925
        %v6927 = vpop.f32.mrf.mxu0
        %6928 = vdwg.mxu0
        %6929 = vmatpush.bf16.msra.mxu0 %v5673
        %6930 = vmatpush.bf16.msra.mxu0 %v5665
        %6931 = vmatpush.bf16.msra.mxu0 %v5657
        %6932 = vmatpush.bf16.msra.mxu0 %v5649
        %6933 = vmatpush.bf16.msra.mxu0 %v5641
        %6934 = vmatpush.bf16.msra.mxu0 %v5633
        %6935 = vmatpush.bf16.msra.mxu0 %v5625
        %6936 = vmatpush.bf16.msra.mxu0 %v5617
        %6937 = vmatmul.bf16.gmra.mxu0 %v5921
        %v6938 = vpop.f32.mrf.mxu0
        %v6939 = vadd.f32 %v6926, %v6938
        %v6940 = vpop.f32.mrf.mxu0
        %6941 = vdwg.mxu0
        %6942 = vmatpush.bf16.msra.mxu0 %v5737
        %6943 = vmatpush.bf16.msra.mxu0 %v5729
        %6944 = vmatpush.bf16.msra.mxu0 %v5721
        %6945 = vmatpush.bf16.msra.mxu0 %v5713
        %6946 = vmatpush.bf16.msra.mxu0 %v5705
        %6947 = vmatpush.bf16.msra.mxu0 %v5697
        %6948 = vmatpush.bf16.msra.mxu0 %v5689
        %6949 = vmatpush.bf16.msra.mxu0 %v5681
        %6950 = vmatmul.bf16.gmra.mxu0 %v5922
        %v6951 = vpop.f32.mrf.mxu0
        %v6952 = vadd.f32 %v6939, %v6951
        %v6953 = vpop.f32.mrf.mxu0
        %6954 = vdwg.mxu0
        %6955 = vmatpush.bf16.msra.mxu0 %v5801
        %6956 = vmatpush.bf16.msra.mxu0 %v5793
        %6957 = vmatpush.bf16.msra.mxu0 %v5785
        %6958 = vmatpush.bf16.msra.mxu0 %v5777
        %6959 = vmatpush.bf16.msra.mxu0 %v5769
        %6960 = vmatpush.bf16.msra.mxu0 %v5761
        %6961 = vmatpush.bf16.msra.mxu0 %v5753
        %6962 = vmatpush.bf16.msra.mxu0 %v5745
        %6963 = vmatmul.bf16.gmra.mxu0 %v5923
        %v6964 = vpop.f32.mrf.mxu0
        %v6965 = vadd.f32 %v6952, %v6964
        %v6966 = vpop.f32.mrf.mxu0
        %6967 = vdwg.mxu0
        %6968 = vmatpush.bf16.msra.mxu0 %v5865
        %6969 = vmatpush.bf16.msra.mxu0 %v5857
        %6970 = vmatpush.bf16.msra.mxu0 %v5849
        %6971 = vmatpush.bf16.msra.mxu0 %v5841
        %6972 = vmatpush.bf16.msra.mxu0 %v5833
        %6973 = vmatpush.bf16.msra.mxu0 %v5825
        %6974 = vmatpush.bf16.msra.mxu0 %v5817
        %6975 = vmatpush.bf16.msra.mxu0 %v5809
        %6976 = vmatmul.bf16.gmra.mxu0 %v5924
        %v6977 = vpop.f32.mrf.mxu0
        %v6978 = vadd.f32 %v6965, %v6977
        %v6979 = vpop.f32.mrf.mxu0
        %6980 = vdwg.mxu0
        %6981 = vmatpush.bf16.msra.mxu0 %v4906
        %6982 = vmatpush.bf16.msra.mxu0 %v4898
        %6983 = vmatpush.bf16.msra.mxu0 %v4890
        %6984 = vmatpush.bf16.msra.mxu0 %v4882
        %6985 = vmatpush.bf16.msra.mxu0 %v4874
        %6986 = vmatpush.bf16.msra.mxu0 %v4866
        %6987 = vmatpush.bf16.msra.mxu0 %v4858
        %6988 = vmatpush.bf16.msra.mxu0 %v4850
        %6989 = vmatmul.bf16.gmra.mxu0 %v5909
        %v6990 = vpop.f32.mrf.mxu0
        %v6991 = vadd.f32 0.0, %v6990
        %v6992 = vpop.f32.mrf.mxu0
        %6993 = vdwg.mxu0
        %6994 = vmatpush.bf16.msra.mxu0 %v4970
        %6995 = vmatpush.bf16.msra.mxu0 %v4962
        %6996 = vmatpush.bf16.msra.mxu0 %v4954
        %6997 = vmatpush.bf16.msra.mxu0 %v4946
        %6998 = vmatpush.bf16.msra.mxu0 %v4938
        %6999 = vmatpush.bf16.msra.mxu0 %v4930
        %7000 = vmatpush.bf16.msra.mxu0 %v4922
        %7001 = vmatpush.bf16.msra.mxu0 %v4914
        %7002 = vmatmul.bf16.gmra.mxu0 %v5910
        %v7003 = vpop.f32.mrf.mxu0
        %v7004 = vadd.f32 %v6991, %v7003
        %v7005 = vpop.f32.mrf.mxu0
        %7006 = vdwg.mxu0
        %7007 = vmatpush.bf16.msra.mxu0 %v5034
        %7008 = vmatpush.bf16.msra.mxu0 %v5026
        %7009 = vmatpush.bf16.msra.mxu0 %v5018
        %7010 = vmatpush.bf16.msra.mxu0 %v5010
        %7011 = vmatpush.bf16.msra.mxu0 %v5002
        %7012 = vmatpush.bf16.msra.mxu0 %v4994
        %7013 = vmatpush.bf16.msra.mxu0 %v4986
        %7014 = vmatpush.bf16.msra.mxu0 %v4978
        %7015 = vmatmul.bf16.gmra.mxu0 %v5911
        %v7016 = vpop.f32.mrf.mxu0
        %v7017 = vadd.f32 %v7004, %v7016
        %v7018 = vpop.f32.mrf.mxu0
        %7019 = vdwg.mxu0
        %7020 = vmatpush.bf16.msra.mxu0 %v5098
        %7021 = vmatpush.bf16.msra.mxu0 %v5090
        %7022 = vmatpush.bf16.msra.mxu0 %v5082
        %7023 = vmatpush.bf16.msra.mxu0 %v5074
        %7024 = vmatpush.bf16.msra.mxu0 %v5066
        %7025 = vmatpush.bf16.msra.mxu0 %v5058
        %7026 = vmatpush.bf16.msra.mxu0 %v5050
        %7027 = vmatpush.bf16.msra.mxu0 %v5042
        %7028 = vmatmul.bf16.gmra.mxu0 %v5912
        %v7029 = vpop.f32.mrf.mxu0
        %v7030 = vadd.f32 %v7017, %v7029
        %v7031 = vpop.f32.mrf.mxu0
        %7032 = vdwg.mxu0
        %7033 = vmatpush.bf16.msra.mxu0 %v5162
        %7034 = vmatpush.bf16.msra.mxu0 %v5154
        %7035 = vmatpush.bf16.msra.mxu0 %v5146
        %7036 = vmatpush.bf16.msra.mxu0 %v5138
        %7037 = vmatpush.bf16.msra.mxu0 %v5130
        %7038 = vmatpush.bf16.msra.mxu0 %v5122
        %7039 = vmatpush.bf16.msra.mxu0 %v5114
        %7040 = vmatpush.bf16.msra.mxu0 %v5106
        %7041 = vmatmul.bf16.gmra.mxu0 %v5913
        %v7042 = vpop.f32.mrf.mxu0
        %v7043 = vadd.f32 %v7030, %v7042
        %v7044 = vpop.f32.mrf.mxu0
        %7045 = vdwg.mxu0
        %7046 = vmatpush.bf16.msra.mxu0 %v5226
        %7047 = vmatpush.bf16.msra.mxu0 %v5218
        %7048 = vmatpush.bf16.msra.mxu0 %v5210
        %7049 = vmatpush.bf16.msra.mxu0 %v5202
        %7050 = vmatpush.bf16.msra.mxu0 %v5194
        %7051 = vmatpush.bf16.msra.mxu0 %v5186
        %7052 = vmatpush.bf16.msra.mxu0 %v5178
        %7053 = vmatpush.bf16.msra.mxu0 %v5170
        %7054 = vmatmul.bf16.gmra.mxu0 %v5914
        %v7055 = vpop.f32.mrf.mxu0
        %v7056 = vadd.f32 %v7043, %v7055
        %v7057 = vpop.f32.mrf.mxu0
        %7058 = vdwg.mxu0
        %7059 = vmatpush.bf16.msra.mxu0 %v5290
        %7060 = vmatpush.bf16.msra.mxu0 %v5282
        %7061 = vmatpush.bf16.msra.mxu0 %v5274
        %7062 = vmatpush.bf16.msra.mxu0 %v5266
        %7063 = vmatpush.bf16.msra.mxu0 %v5258
        %7064 = vmatpush.bf16.msra.mxu0 %v5250
        %7065 = vmatpush.bf16.msra.mxu0 %v5242
        %7066 = vmatpush.bf16.msra.mxu0 %v5234
        %7067 = vmatmul.bf16.gmra.mxu0 %v5915
        %v7068 = vpop.f32.mrf.mxu0
        %v7069 = vadd.f32 %v7056, %v7068
        %v7070 = vpop.f32.mrf.mxu0
        %7071 = vdwg.mxu0
        %7072 = vmatpush.bf16.msra.mxu0 %v5354
        %7073 = vmatpush.bf16.msra.mxu0 %v5346
        %7074 = vmatpush.bf16.msra.mxu0 %v5338
        %7075 = vmatpush.bf16.msra.mxu0 %v5330
        %7076 = vmatpush.bf16.msra.mxu0 %v5322
        %7077 = vmatpush.bf16.msra.mxu0 %v5314
        %7078 = vmatpush.bf16.msra.mxu0 %v5306
        %7079 = vmatpush.bf16.msra.mxu0 %v5298
        %7080 = vmatmul.bf16.gmra.mxu0 %v5916
        %v7081 = vpop.f32.mrf.mxu0
        %v7082 = vadd.f32 %v7069, %v7081
        %v7083 = vpop.f32.mrf.mxu0
        %7084 = vdwg.mxu0
        %7085 = vmatpush.bf16.msra.mxu0 %v5418
        %7086 = vmatpush.bf16.msra.mxu0 %v5410
        %7087 = vmatpush.bf16.msra.mxu0 %v5402
        %7088 = vmatpush.bf16.msra.mxu0 %v5394
        %7089 = vmatpush.bf16.msra.mxu0 %v5386
        %7090 = vmatpush.bf16.msra.mxu0 %v5378
        %7091 = vmatpush.bf16.msra.mxu0 %v5370
        %7092 = vmatpush.bf16.msra.mxu0 %v5362
        %7093 = vmatmul.bf16.gmra.mxu0 %v5917
        %v7094 = vpop.f32.mrf.mxu0
        %v7095 = vadd.f32 %v7082, %v7094
        %v7096 = vpop.f32.mrf.mxu0
        %7097 = vdwg.mxu0
        %7098 = vmatpush.bf16.msra.mxu0 %v5482
        %7099 = vmatpush.bf16.msra.mxu0 %v5474
        %7100 = vmatpush.bf16.msra.mxu0 %v5466
        %7101 = vmatpush.bf16.msra.mxu0 %v5458
        %7102 = vmatpush.bf16.msra.mxu0 %v5450
        %7103 = vmatpush.bf16.msra.mxu0 %v5442
        %7104 = vmatpush.bf16.msra.mxu0 %v5434
        %7105 = vmatpush.bf16.msra.mxu0 %v5426
        %7106 = vmatmul.bf16.gmra.mxu0 %v5918
        %v7107 = vpop.f32.mrf.mxu0
        %v7108 = vadd.f32 %v7095, %v7107
        %v7109 = vpop.f32.mrf.mxu0
        %7110 = vdwg.mxu0
        %7111 = vmatpush.bf16.msra.mxu0 %v5546
        %7112 = vmatpush.bf16.msra.mxu0 %v5538
        %7113 = vmatpush.bf16.msra.mxu0 %v5530
        %7114 = vmatpush.bf16.msra.mxu0 %v5522
        %7115 = vmatpush.bf16.msra.mxu0 %v5514
        %7116 = vmatpush.bf16.msra.mxu0 %v5506
        %7117 = vmatpush.bf16.msra.mxu0 %v5498
        %7118 = vmatpush.bf16.msra.mxu0 %v5490
        %7119 = vmatmul.bf16.gmra.mxu0 %v5919
        %v7120 = vpop.f32.mrf.mxu0
        %v7121 = vadd.f32 %v7108, %v7120
        %v7122 = vpop.f32.mrf.mxu0
        %7123 = vdwg.mxu0
        %7124 = vmatpush.bf16.msra.mxu0 %v5610
        %7125 = vmatpush.bf16.msra.mxu0 %v5602
        %7126 = vmatpush.bf16.msra.mxu0 %v5594
        %7127 = vmatpush.bf16.msra.mxu0 %v5586
        %7128 = vmatpush.bf16.msra.mxu0 %v5578
        %7129 = vmatpush.bf16.msra.mxu0 %v5570
        %7130 = vmatpush.bf16.msra.mxu0 %v5562
        %7131 = vmatpush.bf16.msra.mxu0 %v5554
        %7132 = vmatmul.bf16.gmra.mxu0 %v5920
        %v7133 = vpop.f32.mrf.mxu0
        %v7134 = vadd.f32 %v7121, %v7133
        %v7135 = vpop.f32.mrf.mxu0
        %7136 = vdwg.mxu0
        %7137 = vmatpush.bf16.msra.mxu0 %v5674
        %7138 = vmatpush.bf16.msra.mxu0 %v5666
        %7139 = vmatpush.bf16.msra.mxu0 %v5658
        %7140 = vmatpush.bf16.msra.mxu0 %v5650
        %7141 = vmatpush.bf16.msra.mxu0 %v5642
        %7142 = vmatpush.bf16.msra.mxu0 %v5634
        %7143 = vmatpush.bf16.msra.mxu0 %v5626
        %7144 = vmatpush.bf16.msra.mxu0 %v5618
        %7145 = vmatmul.bf16.gmra.mxu0 %v5921
        %v7146 = vpop.f32.mrf.mxu0
        %v7147 = vadd.f32 %v7134, %v7146
        %v7148 = vpop.f32.mrf.mxu0
        %7149 = vdwg.mxu0
        %7150 = vmatpush.bf16.msra.mxu0 %v5738
        %7151 = vmatpush.bf16.msra.mxu0 %v5730
        %7152 = vmatpush.bf16.msra.mxu0 %v5722
        %7153 = vmatpush.bf16.msra.mxu0 %v5714
        %7154 = vmatpush.bf16.msra.mxu0 %v5706
        %7155 = vmatpush.bf16.msra.mxu0 %v5698
        %7156 = vmatpush.bf16.msra.mxu0 %v5690
        %7157 = vmatpush.bf16.msra.mxu0 %v5682
        %7158 = vmatmul.bf16.gmra.mxu0 %v5922
        %v7159 = vpop.f32.mrf.mxu0
        %v7160 = vadd.f32 %v7147, %v7159
        %v7161 = vpop.f32.mrf.mxu0
        %7162 = vdwg.mxu0
        %7163 = vmatpush.bf16.msra.mxu0 %v5802
        %7164 = vmatpush.bf16.msra.mxu0 %v5794
        %7165 = vmatpush.bf16.msra.mxu0 %v5786
        %7166 = vmatpush.bf16.msra.mxu0 %v5778
        %7167 = vmatpush.bf16.msra.mxu0 %v5770
        %7168 = vmatpush.bf16.msra.mxu0 %v5762
        %7169 = vmatpush.bf16.msra.mxu0 %v5754
        %7170 = vmatpush.bf16.msra.mxu0 %v5746
        %7171 = vmatmul.bf16.gmra.mxu0 %v5923
        %v7172 = vpop.f32.mrf.mxu0
        %v7173 = vadd.f32 %v7160, %v7172
        %v7174 = vpop.f32.mrf.mxu0
        %7175 = vdwg.mxu0
        %7176 = vmatpush.bf16.msra.mxu0 %v5866
        %7177 = vmatpush.bf16.msra.mxu0 %v5858
        %7178 = vmatpush.bf16.msra.mxu0 %v5850
        %7179 = vmatpush.bf16.msra.mxu0 %v5842
        %7180 = vmatpush.bf16.msra.mxu0 %v5834
        %7181 = vmatpush.bf16.msra.mxu0 %v5826
        %7182 = vmatpush.bf16.msra.mxu0 %v5818
        %7183 = vmatpush.bf16.msra.mxu0 %v5810
        %7184 = vmatmul.bf16.gmra.mxu0 %v5924
        %v7185 = vpop.f32.mrf.mxu0
        %v7186 = vadd.f32 %v7173, %v7185
        %v7187 = vpop.f32.mrf.mxu0
        %7188 = vdwg.mxu0
        %7189 = vmatpush.bf16.msra.mxu0 %v4907
        %7190 = vmatpush.bf16.msra.mxu0 %v4899
        %7191 = vmatpush.bf16.msra.mxu0 %v4891
        %7192 = vmatpush.bf16.msra.mxu0 %v4883
        %7193 = vmatpush.bf16.msra.mxu0 %v4875
        %7194 = vmatpush.bf16.msra.mxu0 %v4867
        %7195 = vmatpush.bf16.msra.mxu0 %v4859
        %7196 = vmatpush.bf16.msra.mxu0 %v4851
        %7197 = vmatmul.bf16.gmra.mxu0 %v5909
        %v7198 = vpop.f32.mrf.mxu0
        %v7199 = vadd.f32 0.0, %v7198
        %v7200 = vpop.f32.mrf.mxu0
        %7201 = vdwg.mxu0
        %7202 = vmatpush.bf16.msra.mxu0 %v4971
        %7203 = vmatpush.bf16.msra.mxu0 %v4963
        %7204 = vmatpush.bf16.msra.mxu0 %v4955
        %7205 = vmatpush.bf16.msra.mxu0 %v4947
        %7206 = vmatpush.bf16.msra.mxu0 %v4939
        %7207 = vmatpush.bf16.msra.mxu0 %v4931
        %7208 = vmatpush.bf16.msra.mxu0 %v4923
        %7209 = vmatpush.bf16.msra.mxu0 %v4915
        %7210 = vmatmul.bf16.gmra.mxu0 %v5910
        %v7211 = vpop.f32.mrf.mxu0
        %v7212 = vadd.f32 %v7199, %v7211
        %v7213 = vpop.f32.mrf.mxu0
        %7214 = vdwg.mxu0
        %7215 = vmatpush.bf16.msra.mxu0 %v5035
        %7216 = vmatpush.bf16.msra.mxu0 %v5027
        %7217 = vmatpush.bf16.msra.mxu0 %v5019
        %7218 = vmatpush.bf16.msra.mxu0 %v5011
        %7219 = vmatpush.bf16.msra.mxu0 %v5003
        %7220 = vmatpush.bf16.msra.mxu0 %v4995
        %7221 = vmatpush.bf16.msra.mxu0 %v4987
        %7222 = vmatpush.bf16.msra.mxu0 %v4979
        %7223 = vmatmul.bf16.gmra.mxu0 %v5911
        %v7224 = vpop.f32.mrf.mxu0
        %v7225 = vadd.f32 %v7212, %v7224
        %v7226 = vpop.f32.mrf.mxu0
        %7227 = vdwg.mxu0
        %7228 = vmatpush.bf16.msra.mxu0 %v5099
        %7229 = vmatpush.bf16.msra.mxu0 %v5091
        %7230 = vmatpush.bf16.msra.mxu0 %v5083
        %7231 = vmatpush.bf16.msra.mxu0 %v5075
        %7232 = vmatpush.bf16.msra.mxu0 %v5067
        %7233 = vmatpush.bf16.msra.mxu0 %v5059
        %7234 = vmatpush.bf16.msra.mxu0 %v5051
        %7235 = vmatpush.bf16.msra.mxu0 %v5043
        %7236 = vmatmul.bf16.gmra.mxu0 %v5912
        %v7237 = vpop.f32.mrf.mxu0
        %v7238 = vadd.f32 %v7225, %v7237
        %v7239 = vpop.f32.mrf.mxu0
        %7240 = vdwg.mxu0
        %7241 = vmatpush.bf16.msra.mxu0 %v5163
        %7242 = vmatpush.bf16.msra.mxu0 %v5155
        %7243 = vmatpush.bf16.msra.mxu0 %v5147
        %7244 = vmatpush.bf16.msra.mxu0 %v5139
        %7245 = vmatpush.bf16.msra.mxu0 %v5131
        %7246 = vmatpush.bf16.msra.mxu0 %v5123
        %7247 = vmatpush.bf16.msra.mxu0 %v5115
        %7248 = vmatpush.bf16.msra.mxu0 %v5107
        %7249 = vmatmul.bf16.gmra.mxu0 %v5913
        %v7250 = vpop.f32.mrf.mxu0
        %v7251 = vadd.f32 %v7238, %v7250
        %v7252 = vpop.f32.mrf.mxu0
        %7253 = vdwg.mxu0
        %7254 = vmatpush.bf16.msra.mxu0 %v5227
        %7255 = vmatpush.bf16.msra.mxu0 %v5219
        %7256 = vmatpush.bf16.msra.mxu0 %v5211
        %7257 = vmatpush.bf16.msra.mxu0 %v5203
        %7258 = vmatpush.bf16.msra.mxu0 %v5195
        %7259 = vmatpush.bf16.msra.mxu0 %v5187
        %7260 = vmatpush.bf16.msra.mxu0 %v5179
        %7261 = vmatpush.bf16.msra.mxu0 %v5171
        %7262 = vmatmul.bf16.gmra.mxu0 %v5914
        %v7263 = vpop.f32.mrf.mxu0
        %v7264 = vadd.f32 %v7251, %v7263
        %v7265 = vpop.f32.mrf.mxu0
        %7266 = vdwg.mxu0
        %7267 = vmatpush.bf16.msra.mxu0 %v5291
        %7268 = vmatpush.bf16.msra.mxu0 %v5283
        %7269 = vmatpush.bf16.msra.mxu0 %v5275
        %7270 = vmatpush.bf16.msra.mxu0 %v5267
        %7271 = vmatpush.bf16.msra.mxu0 %v5259
        %7272 = vmatpush.bf16.msra.mxu0 %v5251
        %7273 = vmatpush.bf16.msra.mxu0 %v5243
        %7274 = vmatpush.bf16.msra.mxu0 %v5235
        %7275 = vmatmul.bf16.gmra.mxu0 %v5915
        %v7276 = vpop.f32.mrf.mxu0
        %v7277 = vadd.f32 %v7264, %v7276
        %v7278 = vpop.f32.mrf.mxu0
        %7279 = vdwg.mxu0
        %7280 = vmatpush.bf16.msra.mxu0 %v5355
        %7281 = vmatpush.bf16.msra.mxu0 %v5347
        %7282 = vmatpush.bf16.msra.mxu0 %v5339
        %7283 = vmatpush.bf16.msra.mxu0 %v5331
        %7284 = vmatpush.bf16.msra.mxu0 %v5323
        %7285 = vmatpush.bf16.msra.mxu0 %v5315
        %7286 = vmatpush.bf16.msra.mxu0 %v5307
        %7287 = vmatpush.bf16.msra.mxu0 %v5299
        %7288 = vmatmul.bf16.gmra.mxu0 %v5916
        %v7289 = vpop.f32.mrf.mxu0
        %v7290 = vadd.f32 %v7277, %v7289
        %v7291 = vpop.f32.mrf.mxu0
        %7292 = vdwg.mxu0
        %7293 = vmatpush.bf16.msra.mxu0 %v5419
        %7294 = vmatpush.bf16.msra.mxu0 %v5411
        %7295 = vmatpush.bf16.msra.mxu0 %v5403
        %7296 = vmatpush.bf16.msra.mxu0 %v5395
        %7297 = vmatpush.bf16.msra.mxu0 %v5387
        %7298 = vmatpush.bf16.msra.mxu0 %v5379
        %7299 = vmatpush.bf16.msra.mxu0 %v5371
        %7300 = vmatpush.bf16.msra.mxu0 %v5363
        %7301 = vmatmul.bf16.gmra.mxu0 %v5917
        %v7302 = vpop.f32.mrf.mxu0
        %v7303 = vadd.f32 %v7290, %v7302
        %v7304 = vpop.f32.mrf.mxu0
        %7305 = vdwg.mxu0
        %7306 = vmatpush.bf16.msra.mxu0 %v5483
        %7307 = vmatpush.bf16.msra.mxu0 %v5475
        %7308 = vmatpush.bf16.msra.mxu0 %v5467
        %7309 = vmatpush.bf16.msra.mxu0 %v5459
        %7310 = vmatpush.bf16.msra.mxu0 %v5451
        %7311 = vmatpush.bf16.msra.mxu0 %v5443
        %7312 = vmatpush.bf16.msra.mxu0 %v5435
        %7313 = vmatpush.bf16.msra.mxu0 %v5427
        %7314 = vmatmul.bf16.gmra.mxu0 %v5918
        %v7315 = vpop.f32.mrf.mxu0
        %v7316 = vadd.f32 %v7303, %v7315
        %v7317 = vpop.f32.mrf.mxu0
        %7318 = vdwg.mxu0
        %7319 = vmatpush.bf16.msra.mxu0 %v5547
        %7320 = vmatpush.bf16.msra.mxu0 %v5539
        %7321 = vmatpush.bf16.msra.mxu0 %v5531
        %7322 = vmatpush.bf16.msra.mxu0 %v5523
        %7323 = vmatpush.bf16.msra.mxu0 %v5515
        %7324 = vmatpush.bf16.msra.mxu0 %v5507
        %7325 = vmatpush.bf16.msra.mxu0 %v5499
        %7326 = vmatpush.bf16.msra.mxu0 %v5491
        %7327 = vmatmul.bf16.gmra.mxu0 %v5919
        %v7328 = vpop.f32.mrf.mxu0
        %v7329 = vadd.f32 %v7316, %v7328
        %v7330 = vpop.f32.mrf.mxu0
        %7331 = vdwg.mxu0
        %7332 = vmatpush.bf16.msra.mxu0 %v5611
        %7333 = vmatpush.bf16.msra.mxu0 %v5603
        %7334 = vmatpush.bf16.msra.mxu0 %v5595
        %7335 = vmatpush.bf16.msra.mxu0 %v5587
        %7336 = vmatpush.bf16.msra.mxu0 %v5579
        %7337 = vmatpush.bf16.msra.mxu0 %v5571
        %7338 = vmatpush.bf16.msra.mxu0 %v5563
        %7339 = vmatpush.bf16.msra.mxu0 %v5555
        %7340 = vmatmul.bf16.gmra.mxu0 %v5920
        %v7341 = vpop.f32.mrf.mxu0
        %v7342 = vadd.f32 %v7329, %v7341
        %v7343 = vpop.f32.mrf.mxu0
        %7344 = vdwg.mxu0
        %7345 = vmatpush.bf16.msra.mxu0 %v5675
        %7346 = vmatpush.bf16.msra.mxu0 %v5667
        %7347 = vmatpush.bf16.msra.mxu0 %v5659
        %7348 = vmatpush.bf16.msra.mxu0 %v5651
        %7349 = vmatpush.bf16.msra.mxu0 %v5643
        %7350 = vmatpush.bf16.msra.mxu0 %v5635
        %7351 = vmatpush.bf16.msra.mxu0 %v5627
        %7352 = vmatpush.bf16.msra.mxu0 %v5619
        %7353 = vmatmul.bf16.gmra.mxu0 %v5921
        %v7354 = vpop.f32.mrf.mxu0
        %v7355 = vadd.f32 %v7342, %v7354
        %v7356 = vpop.f32.mrf.mxu0
        %7357 = vdwg.mxu0
        %7358 = vmatpush.bf16.msra.mxu0 %v5739
        %7359 = vmatpush.bf16.msra.mxu0 %v5731
        %7360 = vmatpush.bf16.msra.mxu0 %v5723
        %7361 = vmatpush.bf16.msra.mxu0 %v5715
        %7362 = vmatpush.bf16.msra.mxu0 %v5707
        %7363 = vmatpush.bf16.msra.mxu0 %v5699
        %7364 = vmatpush.bf16.msra.mxu0 %v5691
        %7365 = vmatpush.bf16.msra.mxu0 %v5683
        %7366 = vmatmul.bf16.gmra.mxu0 %v5922
        %v7367 = vpop.f32.mrf.mxu0
        %v7368 = vadd.f32 %v7355, %v7367
        %v7369 = vpop.f32.mrf.mxu0
        %7370 = vdwg.mxu0
        %7371 = vmatpush.bf16.msra.mxu0 %v5803
        %7372 = vmatpush.bf16.msra.mxu0 %v5795
        %7373 = vmatpush.bf16.msra.mxu0 %v5787
        %7374 = vmatpush.bf16.msra.mxu0 %v5779
        %7375 = vmatpush.bf16.msra.mxu0 %v5771
        %7376 = vmatpush.bf16.msra.mxu0 %v5763
        %7377 = vmatpush.bf16.msra.mxu0 %v5755
        %7378 = vmatpush.bf16.msra.mxu0 %v5747
        %7379 = vmatmul.bf16.gmra.mxu0 %v5923
        %v7380 = vpop.f32.mrf.mxu0
        %v7381 = vadd.f32 %v7368, %v7380
        %v7382 = vpop.f32.mrf.mxu0
        %7383 = vdwg.mxu0
        %7384 = vmatpush.bf16.msra.mxu0 %v5867
        %7385 = vmatpush.bf16.msra.mxu0 %v5859
        %7386 = vmatpush.bf16.msra.mxu0 %v5851
        %7387 = vmatpush.bf16.msra.mxu0 %v5843
        %7388 = vmatpush.bf16.msra.mxu0 %v5835
        %7389 = vmatpush.bf16.msra.mxu0 %v5827
        %7390 = vmatpush.bf16.msra.mxu0 %v5819
        %7391 = vmatpush.bf16.msra.mxu0 %v5811
        %7392 = vmatmul.bf16.gmra.mxu0 %v5924
        %v7393 = vpop.f32.mrf.mxu0
        %v7394 = vadd.f32 %v7381, %v7393
        %v7395 = vpop.f32.mrf.mxu0
        %7396 = vdwg.mxu0
        %7397 = vmatpush.bf16.msra.mxu0 %v4908
        %7398 = vmatpush.bf16.msra.mxu0 %v4900
        %7399 = vmatpush.bf16.msra.mxu0 %v4892
        %7400 = vmatpush.bf16.msra.mxu0 %v4884
        %7401 = vmatpush.bf16.msra.mxu0 %v4876
        %7402 = vmatpush.bf16.msra.mxu0 %v4868
        %7403 = vmatpush.bf16.msra.mxu0 %v4860
        %7404 = vmatpush.bf16.msra.mxu0 %v4852
        %7405 = vmatmul.bf16.gmra.mxu0 %v5909
        %v7406 = vpop.f32.mrf.mxu0
        %v7407 = vadd.f32 0.0, %v7406
        %v7408 = vpop.f32.mrf.mxu0
        %7409 = vdwg.mxu0
        %7410 = vmatpush.bf16.msra.mxu0 %v4972
        %7411 = vmatpush.bf16.msra.mxu0 %v4964
        %7412 = vmatpush.bf16.msra.mxu0 %v4956
        %7413 = vmatpush.bf16.msra.mxu0 %v4948
        %7414 = vmatpush.bf16.msra.mxu0 %v4940
        %7415 = vmatpush.bf16.msra.mxu0 %v4932
        %7416 = vmatpush.bf16.msra.mxu0 %v4924
        %7417 = vmatpush.bf16.msra.mxu0 %v4916
        %7418 = vmatmul.bf16.gmra.mxu0 %v5910
        %v7419 = vpop.f32.mrf.mxu0
        %v7420 = vadd.f32 %v7407, %v7419
        %v7421 = vpop.f32.mrf.mxu0
        %7422 = vdwg.mxu0
        %7423 = vmatpush.bf16.msra.mxu0 %v5036
        %7424 = vmatpush.bf16.msra.mxu0 %v5028
        %7425 = vmatpush.bf16.msra.mxu0 %v5020
        %7426 = vmatpush.bf16.msra.mxu0 %v5012
        %7427 = vmatpush.bf16.msra.mxu0 %v5004
        %7428 = vmatpush.bf16.msra.mxu0 %v4996
        %7429 = vmatpush.bf16.msra.mxu0 %v4988
        %7430 = vmatpush.bf16.msra.mxu0 %v4980
        %7431 = vmatmul.bf16.gmra.mxu0 %v5911
        %v7432 = vpop.f32.mrf.mxu0
        %v7433 = vadd.f32 %v7420, %v7432
        %v7434 = vpop.f32.mrf.mxu0
        %7435 = vdwg.mxu0
        %7436 = vmatpush.bf16.msra.mxu0 %v5100
        %7437 = vmatpush.bf16.msra.mxu0 %v5092
        %7438 = vmatpush.bf16.msra.mxu0 %v5084
        %7439 = vmatpush.bf16.msra.mxu0 %v5076
        %7440 = vmatpush.bf16.msra.mxu0 %v5068
        %7441 = vmatpush.bf16.msra.mxu0 %v5060
        %7442 = vmatpush.bf16.msra.mxu0 %v5052
        %7443 = vmatpush.bf16.msra.mxu0 %v5044
        %7444 = vmatmul.bf16.gmra.mxu0 %v5912
        %v7445 = vpop.f32.mrf.mxu0
        %v7446 = vadd.f32 %v7433, %v7445
        %v7447 = vpop.f32.mrf.mxu0
        %7448 = vdwg.mxu0
        %7449 = vmatpush.bf16.msra.mxu0 %v5164
        %7450 = vmatpush.bf16.msra.mxu0 %v5156
        %7451 = vmatpush.bf16.msra.mxu0 %v5148
        %7452 = vmatpush.bf16.msra.mxu0 %v5140
        %7453 = vmatpush.bf16.msra.mxu0 %v5132
        %7454 = vmatpush.bf16.msra.mxu0 %v5124
        %7455 = vmatpush.bf16.msra.mxu0 %v5116
        %7456 = vmatpush.bf16.msra.mxu0 %v5108
        %7457 = vmatmul.bf16.gmra.mxu0 %v5913
        %v7458 = vpop.f32.mrf.mxu0
        %v7459 = vadd.f32 %v7446, %v7458
        %v7460 = vpop.f32.mrf.mxu0
        %7461 = vdwg.mxu0
        %7462 = vmatpush.bf16.msra.mxu0 %v5228
        %7463 = vmatpush.bf16.msra.mxu0 %v5220
        %7464 = vmatpush.bf16.msra.mxu0 %v5212
        %7465 = vmatpush.bf16.msra.mxu0 %v5204
        %7466 = vmatpush.bf16.msra.mxu0 %v5196
        %7467 = vmatpush.bf16.msra.mxu0 %v5188
        %7468 = vmatpush.bf16.msra.mxu0 %v5180
        %7469 = vmatpush.bf16.msra.mxu0 %v5172
        %7470 = vmatmul.bf16.gmra.mxu0 %v5914
        %v7471 = vpop.f32.mrf.mxu0
        %v7472 = vadd.f32 %v7459, %v7471
        %v7473 = vpop.f32.mrf.mxu0
        %7474 = vdwg.mxu0
        %7475 = vmatpush.bf16.msra.mxu0 %v5292
        %7476 = vmatpush.bf16.msra.mxu0 %v5284
        %7477 = vmatpush.bf16.msra.mxu0 %v5276
        %7478 = vmatpush.bf16.msra.mxu0 %v5268
        %7479 = vmatpush.bf16.msra.mxu0 %v5260
        %7480 = vmatpush.bf16.msra.mxu0 %v5252
        %7481 = vmatpush.bf16.msra.mxu0 %v5244
        %7482 = vmatpush.bf16.msra.mxu0 %v5236
        %7483 = vmatmul.bf16.gmra.mxu0 %v5915
        %v7484 = vpop.f32.mrf.mxu0
        %v7485 = vadd.f32 %v7472, %v7484
        %v7486 = vpop.f32.mrf.mxu0
        %7487 = vdwg.mxu0
        %7488 = vmatpush.bf16.msra.mxu0 %v5356
        %7489 = vmatpush.bf16.msra.mxu0 %v5348
        %7490 = vmatpush.bf16.msra.mxu0 %v5340
        %7491 = vmatpush.bf16.msra.mxu0 %v5332
        %7492 = vmatpush.bf16.msra.mxu0 %v5324
        %7493 = vmatpush.bf16.msra.mxu0 %v5316
        %7494 = vmatpush.bf16.msra.mxu0 %v5308
        %7495 = vmatpush.bf16.msra.mxu0 %v5300
        %7496 = vmatmul.bf16.gmra.mxu0 %v5916
        %v7497 = vpop.f32.mrf.mxu0
        %v7498 = vadd.f32 %v7485, %v7497
        %v7499 = vpop.f32.mrf.mxu0
        %7500 = vdwg.mxu0
        %7501 = vmatpush.bf16.msra.mxu0 %v5420
        %7502 = vmatpush.bf16.msra.mxu0 %v5412
        %7503 = vmatpush.bf16.msra.mxu0 %v5404
        %7504 = vmatpush.bf16.msra.mxu0 %v5396
        %7505 = vmatpush.bf16.msra.mxu0 %v5388
        %7506 = vmatpush.bf16.msra.mxu0 %v5380
        %7507 = vmatpush.bf16.msra.mxu0 %v5372
        %7508 = vmatpush.bf16.msra.mxu0 %v5364
        %7509 = vmatmul.bf16.gmra.mxu0 %v5917
        %v7510 = vpop.f32.mrf.mxu0
        %v7511 = vadd.f32 %v7498, %v7510
        %v7512 = vpop.f32.mrf.mxu0
        %7513 = vdwg.mxu0
        %7514 = vmatpush.bf16.msra.mxu0 %v5484
        %7515 = vmatpush.bf16.msra.mxu0 %v5476
        %7516 = vmatpush.bf16.msra.mxu0 %v5468
        %7517 = vmatpush.bf16.msra.mxu0 %v5460
        %7518 = vmatpush.bf16.msra.mxu0 %v5452
        %7519 = vmatpush.bf16.msra.mxu0 %v5444
        %7520 = vmatpush.bf16.msra.mxu0 %v5436
        %7521 = vmatpush.bf16.msra.mxu0 %v5428
        %7522 = vmatmul.bf16.gmra.mxu0 %v5918
        %v7523 = vpop.f32.mrf.mxu0
        %v7524 = vadd.f32 %v7511, %v7523
        %v7525 = vpop.f32.mrf.mxu0
        %7526 = vdwg.mxu0
        %7527 = vmatpush.bf16.msra.mxu0 %v5548
        %7528 = vmatpush.bf16.msra.mxu0 %v5540
        %7529 = vmatpush.bf16.msra.mxu0 %v5532
        %7530 = vmatpush.bf16.msra.mxu0 %v5524
        %7531 = vmatpush.bf16.msra.mxu0 %v5516
        %7532 = vmatpush.bf16.msra.mxu0 %v5508
        %7533 = vmatpush.bf16.msra.mxu0 %v5500
        %7534 = vmatpush.bf16.msra.mxu0 %v5492
        %7535 = vmatmul.bf16.gmra.mxu0 %v5919
        %v7536 = vpop.f32.mrf.mxu0
        %v7537 = vadd.f32 %v7524, %v7536
        %v7538 = vpop.f32.mrf.mxu0
        %7539 = vdwg.mxu0
        %7540 = vmatpush.bf16.msra.mxu0 %v5612
        %7541 = vmatpush.bf16.msra.mxu0 %v5604
        %7542 = vmatpush.bf16.msra.mxu0 %v5596
        %7543 = vmatpush.bf16.msra.mxu0 %v5588
        %7544 = vmatpush.bf16.msra.mxu0 %v5580
        %7545 = vmatpush.bf16.msra.mxu0 %v5572
        %7546 = vmatpush.bf16.msra.mxu0 %v5564
        %7547 = vmatpush.bf16.msra.mxu0 %v5556
        %7548 = vmatmul.bf16.gmra.mxu0 %v5920
        %v7549 = vpop.f32.mrf.mxu0
        %v7550 = vadd.f32 %v7537, %v7549
        %v7551 = vpop.f32.mrf.mxu0
        %7552 = vdwg.mxu0
        %7553 = vmatpush.bf16.msra.mxu0 %v5676
        %7554 = vmatpush.bf16.msra.mxu0 %v5668
        %7555 = vmatpush.bf16.msra.mxu0 %v5660
        %7556 = vmatpush.bf16.msra.mxu0 %v5652
        %7557 = vmatpush.bf16.msra.mxu0 %v5644
        %7558 = vmatpush.bf16.msra.mxu0 %v5636
        %7559 = vmatpush.bf16.msra.mxu0 %v5628
        %7560 = vmatpush.bf16.msra.mxu0 %v5620
        %7561 = vmatmul.bf16.gmra.mxu0 %v5921
        %v7562 = vpop.f32.mrf.mxu0
        %v7563 = vadd.f32 %v7550, %v7562
        %v7564 = vpop.f32.mrf.mxu0
        %7565 = vdwg.mxu0
        %7566 = vmatpush.bf16.msra.mxu0 %v5740
        %7567 = vmatpush.bf16.msra.mxu0 %v5732
        %7568 = vmatpush.bf16.msra.mxu0 %v5724
        %7569 = vmatpush.bf16.msra.mxu0 %v5716
        %7570 = vmatpush.bf16.msra.mxu0 %v5708
        %7571 = vmatpush.bf16.msra.mxu0 %v5700
        %7572 = vmatpush.bf16.msra.mxu0 %v5692
        %7573 = vmatpush.bf16.msra.mxu0 %v5684
        %7574 = vmatmul.bf16.gmra.mxu0 %v5922
        %v7575 = vpop.f32.mrf.mxu0
        %v7576 = vadd.f32 %v7563, %v7575
        %v7577 = vpop.f32.mrf.mxu0
        %7578 = vdwg.mxu0
        %7579 = vmatpush.bf16.msra.mxu0 %v5804
        %7580 = vmatpush.bf16.msra.mxu0 %v5796
        %7581 = vmatpush.bf16.msra.mxu0 %v5788
        %7582 = vmatpush.bf16.msra.mxu0 %v5780
        %7583 = vmatpush.bf16.msra.mxu0 %v5772
        %7584 = vmatpush.bf16.msra.mxu0 %v5764
        %7585 = vmatpush.bf16.msra.mxu0 %v5756
        %7586 = vmatpush.bf16.msra.mxu0 %v5748
        %7587 = vmatmul.bf16.gmra.mxu0 %v5923
        %v7588 = vpop.f32.mrf.mxu0
        %v7589 = vadd.f32 %v7576, %v7588
        %v7590 = vpop.f32.mrf.mxu0
        %7591 = vdwg.mxu0
        %7592 = vmatpush.bf16.msra.mxu0 %v5868
        %7593 = vmatpush.bf16.msra.mxu0 %v5860
        %7594 = vmatpush.bf16.msra.mxu0 %v5852
        %7595 = vmatpush.bf16.msra.mxu0 %v5844
        %7596 = vmatpush.bf16.msra.mxu0 %v5836
        %7597 = vmatpush.bf16.msra.mxu0 %v5828
        %7598 = vmatpush.bf16.msra.mxu0 %v5820
        %7599 = vmatpush.bf16.msra.mxu0 %v5812
        %7600 = vmatmul.bf16.gmra.mxu0 %v5924
        %v7601 = vpop.f32.mrf.mxu0
        %v7602 = vadd.f32 %v7589, %v7601
        %v7603 = vpop.f32.mrf.mxu0
        %7604 = vdwg.mxu0
        %v7605 = vadd.f32 %v5869, %v6146
        %v7606 = vadd.f32 %v5870, %v6354
        %v7607 = vadd.f32 %v5871, %v6562
        %v7608 = vadd.f32 %v5872, %v6770
        %v7609 = vadd.f32 %v5873, %v6978
        %v7610 = vadd.f32 %v5874, %v7186
        %v7611 = vadd.f32 %v5875, %v7394
        %v7612 = vadd.f32 %v5876, %v7602
        %7613 = vst [vmem:[%s223] sm:$0xff] %v7605
        %7614 = vst [vmem:[%s223 + $0x8] sm:$0xff] %v7606
        %7615 = vst [vmem:[%s223 + $0x10] sm:$0xff] %v7607
        %7616 = vst [vmem:[%s223 + $0x18] sm:$0xff] %v7608
        %7617 = vst [vmem:[%s223 + $0x20] sm:$0xff] %v7609
        %7618 = vst [vmem:[%s223 + $0x28] sm:$0xff] %v7610
        %7619 = vst [vmem:[%s223 + $0x30] sm:$0xff] %v7611
        %7620 = vst [vmem:[%s223 + $0x38] sm:$0xff] %v7612
        %s7621 = smul.u32 8, %s20
        %p7622 = scmp.lt.s32.totalorder %s7621, 15
        %s7623 = scalar_select %p7622, %s7621, 15
        %s7624 = smul.addr %s7623, 8
        %s7625 = scalar_lea.vmem %s2, %s7624
        // Predicated region
        $region37: #{fcnet_forward.2} parent=27 // pred_check
          %p7626 = pneg %p106
        $region38: #{fcnet_forward.2} parent=27 // pred_check_branch
          %7628 = sbr.rel (%p7626) target = $region40
        $region39: #{fcnet_forward.2} parent=27 // pred_region
          %s7629 = smul.u32 8, %s20
        $region40: #{fcnet_forward.2} parent=27 // pred_fallthru
          _
      $region28: #{fcnet_forward.2} parent=5 // pred_fallthru
        _
      %p7630 = scmp.le.s32.totalorder 2, %s11
      // Predicated region
      $region41: #{fcnet_forward.2} parent=5 // pred_check
        %p7631 = pneg %p7630
      $region42: #{fcnet_forward.2} parent=5 // pred_check_branch
        %7633 = sbr.rel (%p7631) target = $region44
      $region43: #{fcnet_forward.2} parent=5 // pred_region
        %s7634 = ssub.s32 %s11, 2
        // Predicated region
        $region45: #{fcnet_forward.2} parent=43 // pred_check
          %p7635 = pneg %p112
        $region46: #{fcnet_forward.2} parent=43 // pred_check_branch
          %7637 = sbr.rel (%p7635) target = $region48
        $region47: #{fcnet_forward.2} parent=43 // pred_region
          %s7638 = smul.u32 8, %s22
          %p7639 = scmp.lt.s32.totalorder %s7638, 15
          %s7640 = scalar_select %p7639, %s7638, 15
          %s7641 = smul.addr %s7640, 8
          %s7642 = scalar_lea.vmem %s2, %s7641
        $region48: #{fcnet_forward.2} parent=43 // pred_fallthru
          _
      $region44: #{fcnet_forward.2} parent=5 // pred_fallthru
        _
    $region6: #{fcnet_forward.2} parent=1 // loop_footer
      %s15 = sadd.s32 1, %s11
    $region7: #{fcnet_forward.2} parent=1 // loop_footer_branch
      %10 = sbr.rel target = $region3
    $region8: #{fcnet_forward.2} parent=1 // loop_exit
      _
    %7643 = vsyncpa [#allocation3], 1
    %s7644 = scalar_lea.sflag [#allocation3], 1
    %7645 = vsyncpa %s7644, 1

</llo_original>
